<compile_context>
chip_gen: v7x
topology: tpu7x:2x2x1
jax: 0.10.0
libtpu: 0.0.40
codegen_flags: <defaults>
</compile_context>

<pallas_src>
import functools

import numpy as np
import jax
import jax.numpy as jnp
from jax import lax
from jax.experimental import pallas as pl
from jax.experimental.pallas import tpu as pltpu

EPS = 1e-5
NEG_SLOPE = 0.2

TM_BIG = 512                    # M tile for large layers (keeps >= 2 M blocks for v7x)
TM_SINGLE_MAX = 1024            # below this, a single M tile = round_up(M, 16)
TK_MAX = 1024                   # single K step if round_up(K,128) <= this
TN_MAX = 512
SMALL_M = 128                   # bypass Pallas below this many output rows
VMEM_LIMIT = 32 * 1024 * 1024   # tiles above are <= a few MiB; safe on v5e/v6e/v7x


def _round_up(x, m):
    return (x + m - 1) // m * m


def _apply_in_act(a, in_act):
    if in_act == "leaky":
        return jnp.where(a > 0, a, NEG_SLOPE * a)
    if in_act == "relu":
        return jnp.maximum(a, 0)
    return a


# ------------------------------- Pallas kernels -------------------------------
def _fused_matmul_kernel_single(a_ref, b_ref, scale_ref, shift_ref, o_ref,
                                *, in_act, out_act):
    """K fits in one tile: out = out_act(in_act(A) @ B * scale + shift)."""
    a = _apply_in_act(a_ref[...], in_act)
    acc = jnp.dot(a, b_ref[...], preferred_element_type=jnp.float32)
    out = acc * scale_ref[...] + shift_ref[...]
    if out_act == "tanh":
        out = jnp.tanh(out)
    o_ref[...] = out.astype(o_ref.dtype)


def _fused_matmul_kernel_acc(a_ref, b_ref, scale_ref, shift_ref, o_ref, acc_ref,
                             *, in_act, out_act):
    """General K-tiled variant with an f32 VMEM accumulator (used when K > TK_MAX)."""
    k = pl.program_id(2)

    @pl.when(k == 0)
    def _():
        acc_ref[...] = jnp.zeros_like(acc_ref)

    a = _apply_in_act(a_ref[...], in_act)
    acc_ref[...] += jnp.dot(a, b_ref[...], preferred_element_type=jnp.float32)

    @pl.when(k == pl.num_programs(2) - 1)
    def _():
        out = acc_ref[...] * scale_ref[...] + shift_ref[...]
        if out_act == "tanh":
            out = jnp.tanh(out)
        o_ref[...] = out.astype(o_ref.dtype)


def fused_matmul(a, b, scale, shift, in_act="none", out_act="none",
                 out_dtype=jnp.bfloat16):
    """out = out_act( in_act(a) @ b * scale + shift ).

    a / b are cast to bf16 (native MXU dtype); accumulation and the epilogue are f32;
    the result is emitted in `out_dtype` (bf16 for intermediate layers).
    """
    M, K = a.shape
    K2, N = b.shape
    assert K == K2
    a = a.astype(jnp.bfloat16)
    b = b.astype(jnp.bfloat16)
    scale = scale.astype(jnp.float32)
    shift = shift.astype(jnp.float32)

    # Tiny bottleneck layers: a plain XLA dot beats a pallas_call's fixed cost.
    if M < SMALL_M:
        out = jnp.dot(_apply_in_act(a, in_act), b,
                      preferred_element_type=jnp.float32)
        out = out * scale[None, :] + shift[None, :]
        if out_act == "tanh":
            out = jnp.tanh(out)
        return out.astype(out_dtype)

    # ------------------------- per-layer tile selection -------------------------
    np128 = _round_up(N, 128)
    TN = np128 if np128 <= TN_MAX else 256
    Np = _round_up(N, TN)

    Kp = _round_up(K, 128)
    if Kp <= TK_MAX:
        TK = Kp                       # single K step; 128-lane aligned
    else:
        TK = 512
        Kp = _round_up(K, TK)

    TM = _round_up(M, 16) if M <= TM_SINGLE_MAX else TM_BIG
    Mp = _round_up(M, TM)

    # Only materialize padded copies when a dimension actually needs padding.
    a_p = a if (Mp == M and Kp == K) else jnp.pad(a, ((0, Mp - M), (0, Kp - K)))
    b_p = b if (Kp == K and Np == N) else jnp.pad(b, ((0, Kp - K), (0, Np - N)))
    scale_p = (scale if Np == N else jnp.pad(scale, (0, Np - N))).reshape(1, Np)
    shift_p = (shift if Np == N else jnp.pad(shift, (0, Np - N))).reshape(1, Np)

    nk = Kp // TK
    if nk == 1:
        kernel = functools.partial(_fused_matmul_kernel_single,
                                   in_act=in_act, out_act=out_act)
        out = pl.pallas_call(
            kernel,
            out_shape=jax.ShapeDtypeStruct((Mp, Np), out_dtype),
            grid_spec=pltpu.PrefetchScalarGridSpec(
                num_scalar_prefetch=0,
                grid=(Mp // TM, Np // TN),
                in_specs=[
                    pl.BlockSpec((TM, Kp), lambda i, j: (i, 0)),
                    pl.BlockSpec((Kp, TN), lambda i, j: (0, j)),
                    pl.BlockSpec((1, TN), lambda i, j: (0, j)),
                    pl.BlockSpec((1, TN), lambda i, j: (0, j)),
                ],
                out_specs=pl.BlockSpec((TM, TN), lambda i, j: (i, j)),
            ),
            compiler_params=pltpu.CompilerParams(
                dimension_semantics=("parallel", "parallel"),
                vmem_limit_bytes=VMEM_LIMIT),
        )(a_p, b_p, scale_p, shift_p)
    else:
        kernel = functools.partial(_fused_matmul_kernel_acc,
                                   in_act=in_act, out_act=out_act)
        out = pl.pallas_call(
            kernel,
            out_shape=jax.ShapeDtypeStruct((Mp, Np), out_dtype),
            grid_spec=pltpu.PrefetchScalarGridSpec(
                num_scalar_prefetch=0,
                grid=(Mp // TM, Np // TN, nk),
                in_specs=[
                    pl.BlockSpec((TM, TK), lambda i, j, k: (i, k)),
                    pl.BlockSpec((TK, TN), lambda i, j, k: (k, j)),
                    pl.BlockSpec((1, TN), lambda i, j, k: (0, j)),
                    pl.BlockSpec((1, TN), lambda i, j, k: (0, j)),
                ],
                out_specs=pl.BlockSpec((TM, TN), lambda i, j, k: (i, j)),
                scratch_shapes=[pltpu.VMEM((TM, TN), jnp.float32)],
            ),
            compiler_params=pltpu.CompilerParams(
                dimension_semantics=("parallel", "parallel", "arbitrary"),
                vmem_limit_bytes=VMEM_LIMIT),
        )(a_p, b_p, scale_p, shift_p)
    return out[:M, :N]


# ----------------------------- JAX-side glue (NHWC) ----------------------------
def _im2col_nhwc(x, kh, kw, stride, pad):
    """x: [N, H, W, C] -> (A[N*Ho*Wo, kh*kw*C], (N, Ho, Wo)).
    Column ordering is (tap_row, tap_col, channel), channel fastest."""
    x = jnp.pad(x, ((0, 0), (pad, pad), (pad, pad), (0, 0)))
    n, h, w, c = x.shape
    ho = (h - kh) // stride + 1
    wo = (w - kw) // stride + 1
    patches = []
    for i in range(kh):
        for j in range(kw):
            patches.append(x[:, i:i + stride * ho:stride, j:j + stride * wo:stride, :])
    p = jnp.stack(patches, axis=3)                          # [n, ho, wo, kh*kw, c]
    return p.reshape(n * ho * wo, kh * kw * c), (n, ho, wo)


def _fold_bn(bias, bn):
    cout = bias.shape[0]
    if bn is None:
        return jnp.ones((cout,), jnp.float32), bias
    gamma, beta, mean, var = bn
    s = gamma / jnp.sqrt(var + EPS)
    return s, (bias - mean) * s + beta


def conv_block(x, p, in_act="none", out_act="none", out_dtype=jnp.bfloat16):
    """NHWC: in_act -> Conv2d(k=4,s=2,p=1) -> [+bias, +BN(eval)] -> out_act."""
    w, b = p["w"], p["b"]                                    # w: [Cout, Cin, 4, 4]
    cout = w.shape[0]
    a, (n, ho, wo) = _im2col_nhwc(x, 4, 4, stride=2, pad=1)
    bm = jnp.transpose(w, (2, 3, 1, 0)).reshape(-1, cout)    # [(i,j,cin), cout]
    scale, shift = _fold_bn(b, p.get("bn"))
    out = fused_matmul(a, bm, scale, shift, in_act, out_act, out_dtype)
    return out.reshape(n, ho, wo, cout)


def _deconv_weight_matrix(w):
    """ConvTranspose2d(k=4,s=2,p=1) weight [Cin, Cout, 4, 4] -> sub-pixel matrix
    B[(a2*2+b2)*Cin + cin, (py*2+px)*Cout + cout] = w[cin, cout, 3-2*a2-py, 3-2*b2-px]:
    each output parity (py, px) is a stride-1 2x2 conv over the (un-dilated) input."""
    cin, cout = w.shape[0], w.shape[1]
    idx = 3 - 2 * np.arange(2)[:, None] - np.arange(2)[None, :]      # [[3, 2], [1, 0]]
    t = w[:, :, idx[:, :, None, None], idx[None, None, :, :]]        # [Cin,Cout,a2,py,b2,px]
    t = jnp.transpose(t, (2, 4, 0, 3, 5, 1))                         # [a2,b2,Cin,py,px,Cout]
    return t.reshape(4 * cin, 4 * cout)


def deconv_block(x, p, in_act="none", out_act="none", out_dtype=jnp.bfloat16):
    """NHWC: in_act -> ConvTranspose2d(k=4,s=2,p=1) -> [+bias, +BN(eval)] -> out_act.

    One fused matmul with K = 4*Cin, N = 4*Cout computes all four output parities;
    the result is interleaved back to [N, 2H, 2W, Cout]."""
    wt, b = p["w"], p["b"]                                   # wt: [Cin, Cout, 4, 4]
    cout = wt.shape[1]
    bm = _deconv_weight_matrix(wt)                           # [4*Cin, 4*Cout]
    a, (n, P, Q) = _im2col_nhwc(x, 2, 2, stride=1, pad=1)    # P = H+1, Q = W+1
    scale, shift = _fold_bn(b, p.get("bn"))
    out = fused_matmul(a, bm, jnp.tile(scale, 4), jnp.tile(shift, 4),
                       in_act, out_act, out_dtype)           # [n*P*Q, 4*Cout]
    h, w_ = P - 1, Q - 1
    out6 = out.reshape(n, P, Q, 2, 2, cout)                  # [..., py, px, cout]
    rows = []
    for py in range(2):
        cols = [out6[:, py:py + h, px:px + w_, py, px, :] for px in range(2)]
        rows.append(jnp.stack(cols, axis=0))
    y = jnp.stack(rows, axis=0)                              # [py, px, n, h, w, cout]
    y = jnp.transpose(y, (2, 3, 0, 4, 1, 5)).reshape(n, 2 * h, 2 * w_, cout)
    return y


def generator_forward(x, params):
    """x: [N, Cin, H, W] f32 (PyTorch NCHW) -> [N, Cout, H, W] f32."""
    x = jnp.transpose(x, (0, 2, 3, 1)).astype(jnp.bfloat16)  # NHWC, bf16 working precision

    en1 = conv_block(x,   params["en1"], in_act="none")
    en2 = conv_block(en1, params["en2"], in_act="leaky")
    en3 = conv_block(en2, params["en3"], in_act="leaky")
    en4 = conv_block(en3, params["en4"], in_act="leaky")
    en5 = conv_block(en4, params["en5"], in_act="leaky")
    en6 = conv_block(en5, params["en6"], in_act="leaky")
    en7 = conv_block(en6, params["en7"], in_act="leaky")
    en8 = conv_block(en7, params["en8"], in_act="leaky")

    de1 = deconv_block(en8, params["de1"], in_act="relu")
    d1c = jnp.concatenate([de1, en7], axis=-1)
    de2 = deconv_block(d1c, params["de2"], in_act="relu")
    d2c = jnp.concatenate([de2, en6], axis=-1)
    de3 = deconv_block(d2c, params["de3"], in_act="relu")
    d3c = jnp.concatenate([de3, en5], axis=-1)
    de4 = deconv_block(d3c, params["de4"], in_act="relu")
    d4c = jnp.concatenate([de4, en4], axis=-1)
    de5 = deconv_block(d4c, params["de5"], in_act="relu")
    d5c = jnp.concatenate([de5, en3], axis=-1)
    de6 = deconv_block(d5c, params["de6"], in_act="relu")
    d6c = jnp.concatenate([de6, en2], axis=-1)
    de7 = deconv_block(d6c, params["de7"], in_act="relu")
    d7c = jnp.concatenate([de7, en1], axis=-1)
    de8 = deconv_block(d7c, params["de8"], in_act="relu", out_act="tanh",
                       out_dtype=jnp.float32)
    return jnp.transpose(de8, (0, 3, 1, 2))                  # back to NCHW


# -------------------------------- parameters -----------------------------------
def _init_layer(key, cout, cin, with_bn, transposed):
    k1, k2, k3, k4, k5, k6 = jax.random.split(key, 6)
    std = 0.7 / np.sqrt(cin * 16)
    wshape = (cin, cout, 4, 4) if transposed else (cout, cin, 4, 4)
    p = {"w": std * jax.random.normal(k1, wshape, jnp.float32),
         "b": 0.05 * jax.random.normal(k2, (cout,), jnp.float32)}
    if with_bn:
        p["bn"] = (1.0 + 0.1 * jax.random.normal(k3, (cout,), jnp.float32),
                   0.1 * jax.random.normal(k4, (cout,), jnp.float32),
                   0.1 * jax.random.normal(k5, (cout,), jnp.float32),
                   jax.random.uniform(k6, (cout,), jnp.float32, 0.5, 1.5))
    return p


def make_params(key, in_ch, out_ch, ngf):
    defs = {
        "en1": (ngf,     in_ch,       False, False),
        "en2": (ngf * 2, ngf,         True,  False),
        "en3": (ngf * 4, ngf * 2,     True,  False),
        "en4": (ngf * 8, ngf * 4,     True,  False),
        "en5": (ngf * 8, ngf * 8,     True,  False),
        "en6": (ngf * 8, ngf * 8,     True,  False),
        "en7": (ngf * 8, ngf * 8,     True,  False),
        "en8": (ngf * 8, ngf * 8,     False, False),
        "de1": (ngf * 8, ngf * 8,     True,  True),
        "de2": (ngf * 8, ngf * 8 * 2, True,  True),
        "de3": (ngf * 8, ngf * 8 * 2, True,  True),
        "de4": (ngf * 8, ngf * 8 * 2, True,  True),
        "de5": (ngf * 4, ngf * 8 * 2, True,  True),
        "de6": (ngf * 2, ngf * 4 * 2, True,  True),
        "de7": (ngf,     ngf * 2 * 2, True,  True),
        "de8": (out_ch,  ngf * 2,     False, True),
    }
    params = {}
    for i, (name, (cout, cin, with_bn, transposed)) in enumerate(defs.items()):
        params[name] = _init_layer(jax.random.fold_in(key, i), cout, cin,
                                   with_bn, transposed)
    return params


# ------------------- precision-matched pure-JAX reference ----------------------
# Same structural semantics as the PyTorch module (eval-mode BN, identity Dropout).
# `bf16=True` casts the conv operands to bf16 with f32 accumulation — the precision
# class adopted for the Pallas path per the performance review — so the allclose
# below tightly validates the im2col / sub-pixel-deconv / BN-fold lowering itself.
def _bn_ref(x, bn):
    if bn is None:
        return x
    gamma, beta, mean, var = bn
    inv = gamma / jnp.sqrt(var + EPS)
    return (x - mean[None, :, None, None]) * inv[None, :, None, None] \
        + beta[None, :, None, None]


def _conv_kwargs(bf16):
    kw = dict(dimension_numbers=("NCHW", "OIHW", "NCHW"),
              preferred_element_type=jnp.float32)
    if not bf16:
        kw["precision"] = lax.Precision.HIGHEST
    return kw


def _conv_ref(x, p, in_act, bf16):
    w = p["w"]
    if bf16:
        x, w = x.astype(jnp.bfloat16), w.astype(jnp.bfloat16)
    x = _apply_in_act(x, in_act)
    y = lax.conv_general_dilated(x, w, (2, 2), [(1, 1), (1, 1)], **_conv_kwargs(bf16))
    y = _bn_ref(y + p["b"][None, :, None, None], p.get("bn"))
    return y.astype(jnp.bfloat16) if bf16 else y


def _deconv_ref(x, p, in_act, bf16, out_act="none"):
    w_eq = jnp.transpose(p["w"], (1, 0, 2, 3))[:, :, ::-1, ::-1]
    if bf16:
        x, w_eq = x.astype(jnp.bfloat16), w_eq.astype(jnp.bfloat16)
    x = _apply_in_act(x, in_act)
    y = lax.conv_general_dilated(x, w_eq, (1, 1), [(2, 2), (2, 2)],
                                 lhs_dilation=(2, 2), **_conv_kwargs(bf16))
    y = _bn_ref(y + p["b"][None, :, None, None], p.get("bn"))
    if out_act == "tanh":
        return jnp.tanh(y)
    return y.astype(jnp.bfloat16) if bf16 else y


def generator_ref(x, params, bf16=True):
    en1 = _conv_ref(x,   params["en1"], "none",  bf16)
    en2 = _conv_ref(en1, params["en2"], "leaky", bf16)
    en3 = _conv_ref(en2, params["en3"], "leaky", bf16)
    en4 = _conv_ref(en3, params["en4"], "leaky", bf16)
    en5 = _conv_ref(en4, params["en5"], "leaky", bf16)
    en6 = _conv_ref(en5, params["en6"], "leaky", bf16)
    en7 = _conv_ref(en6, params["en7"], "leaky", bf16)
    en8 = _conv_ref(en7, params["en8"], "leaky", bf16)
    de1 = _deconv_ref(en8, params["de1"], "relu", bf16)
    de2 = _deconv_ref(jnp.concatenate([de1, en7], 1), params["de2"], "relu", bf16)
    de3 = _deconv_ref(jnp.concatenate([de2, en6], 1), params["de3"], "relu", bf16)
    de4 = _deconv_ref(jnp.concatenate([de3, en5], 1), params["de4"], "relu", bf16)
    de5 = _deconv_ref(jnp.concatenate([de4, en4], 1), params["de5"], "relu", bf16)
    de6 = _deconv_ref(jnp.concatenate([de5, en3], 1), params["de6"], "relu", bf16)
    de7 = _deconv_ref(jnp.concatenate([de6, en2], 1), params["de7"], "relu", bf16)
    de8 = _deconv_ref(jnp.concatenate([de7, en1], 1), params["de8"], "relu", bf16, "tanh")
    return de8


# ------------------------------------ main --------------------------------------
if __name__ == "__main__":
    in_ch, out_ch, ngf = 3, 3, 8          # small ngf; architecture unchanged
    N, H, W = 1, 256, 256                 # 8 stride-2 halvings -> 1x1 bottleneck
    key = jax.random.PRNGKey(0)
    x = jax.random.normal(jax.random.fold_in(key, 123), (N, in_ch, H, W), jnp.float32)
    params = make_params(key, in_ch, out_ch, ngf)

    out = jax.block_until_ready(jax.jit(generator_forward)(x, params))
    assert out.shape == (N, out_ch, H, W), out.shape
    assert bool(jnp.all(jnp.isfinite(out)))

    ref = jax.block_until_ready(
        jax.jit(functools.partial(generator_ref, bf16=True))(x, params))
    np.testing.assert_allclose(np.asarray(out), np.asarray(ref), atol=2e-2, rtol=2e-2)

    print("KERNEL_OK")
</pallas_src>

<mosaic_0001>
module attributes {stable_mosaic.version = 11 : i64} {
  func.func @_fused_matmul_kernel_single(%arg0: i32, %arg1: i32, %arg2: memref<512x128xbf16, #tpu.memory_space<vmem>>, %arg3: memref<128x128xbf16, #tpu.memory_space<vmem>>, %arg4: memref<1x128xf32, #tpu.memory_space<vmem>>, %arg5: memref<1x128xf32, #tpu.memory_space<vmem>>, %arg6: memref<512x128xbf16, #tpu.memory_space<vmem>>) attributes {dimension_semantics = [#tpu.dimension_semantics<parallel>, #tpu.dimension_semantics<parallel>], iteration_bounds = array<i64: 32, 1>, scalar_prefetch = 0 : i64, scratch_operands = 0 : i64, tpu.core_type = #tpu.core_type<tc>, window_params = [{transform_indices = @transform_0, window_bounds = array<i64: 512, 128>}, {transform_indices = @transform_1, window_bounds = array<i64: 128, 128>}, {transform_indices = @transform_2, window_bounds = array<i64: 1, 128>}, {transform_indices = @transform_3, window_bounds = array<i64: 1, 128>}, {transform_indices = @transform_4, window_bounds = array<i64: 512, 128>}]} {
    %c0 = arith.constant 0 : index
    %c0_0 = arith.constant 0 : index
    %0 = vector.load %arg2[%c0, %c0_0] : memref<512x128xbf16, #tpu.memory_space<vmem>>, vector<512x128xbf16>
    %c0_1 = arith.constant 0 : index
    %c0_2 = arith.constant 0 : index
    %1 = vector.load %arg3[%c0_1, %c0_2] : memref<128x128xbf16, #tpu.memory_space<vmem>>, vector<128x128xbf16>
    %cst = arith.constant dense<0.000000e+00> : vector<512x128xf32>
    %2 = tpu.matmul %0, %1, %cst {dimension_numbers = #tpu.dot_dimension_numbers<[1], [0], [0], [1], [0, 0, 1, 1], [], []>} : vector<512x128xbf16>, vector<128x128xbf16>, vector<512x128xf32> -> vector<512x128xf32>
    %c0_3 = arith.constant 0 : index
    %c0_4 = arith.constant 0 : index
    %3 = vector.load %arg4[%c0_3, %c0_4] : memref<1x128xf32, #tpu.memory_space<vmem>>, vector<1x128xf32>
    %4 = vector.broadcast %3 : vector<1x128xf32> to vector<512x128xf32>
    %5 = arith.mulf %2, %4 : vector<512x128xf32>
    %c0_5 = arith.constant 0 : index
    %c0_6 = arith.constant 0 : index
    %6 = vector.load %arg5[%c0_5, %c0_6] : memref<1x128xf32, #tpu.memory_space<vmem>>, vector<1x128xf32>
    %7 = vector.broadcast %6 : vector<1x128xf32> to vector<512x128xf32>
    %8 = arith.addf %5, %7 : vector<512x128xf32>
    %9 = arith.truncf %8 : vector<512x128xf32> to vector<512x128xbf16>
    %c0_7 = arith.constant 0 : index
    %c0_8 = arith.constant 0 : index
    %10 = vector.load %arg6[%c0_7, %c0_8] : memref<512x128xbf16, #tpu.memory_space<vmem>>, vector<512x128xbf16>
    tpu.vector_store %arg6[%c0_7, %c0_8], %9 {strides = array<i32>} : memref<512x128xbf16, #tpu.memory_space<vmem>>, vector<512x128xbf16>,
    return
  }
  func.func @transform_0(%arg0: i32, %arg1: i32) -> (i32, i32) {
    %c0_i32 = arith.constant 0 : i32
    %c0_i32_0 = arith.constant 0 : i32
    return %arg0, %c0_i32 : i32, i32
  }
  func.func @transform_1(%arg0: i32, %arg1: i32) -> (i32, i32) {
    %c0_i32 = arith.constant 0 : i32
    %c0_i32_0 = arith.constant 0 : i32
    return %c0_i32, %arg1 : i32, i32
  }
  func.func @transform_2(%arg0: i32, %arg1: i32) -> (i32, i32) {
    %c0_i32 = arith.constant 0 : i32
    %c0_i32_0 = arith.constant 0 : i32
    return %c0_i32, %arg1 : i32, i32
  }
  func.func @transform_3(%arg0: i32, %arg1: i32) -> (i32, i32) {
    %c0_i32 = arith.constant 0 : i32
    %c0_i32_0 = arith.constant 0 : i32
    return %c0_i32, %arg1 : i32, i32
  }
  func.func @transform_4(%arg0: i32, %arg1: i32) -> (i32, i32) {
    %c0_i32 = arith.constant 0 : i32
    return %arg0, %arg1 : i32, i32
  }
}

module attributes {stable_mosaic.version = 11 : i64} {
  func.func @_fused_matmul_kernel_single(%arg0: i32, %arg1: i32, %arg2: memref<512x128xbf16, #tpu.memory_space<vmem>>, %arg3: memref<128x128xbf16, #tpu.memory_space<vmem>>, %arg4: memref<1x128xf32, #tpu.memory_space<vmem>>, %arg5: memref<1x128xf32, #tpu.memory_space<vmem>>, %arg6: memref<512x128xbf16, #tpu.memory_space<vmem>>) attributes {dimension_semantics = [#tpu.dimension_semantics<parallel>, #tpu.dimension_semantics<parallel>], iteration_bounds = array<i64: 8, 1>, scalar_prefetch = 0 : i64, scratch_operands = 0 : i64, tpu.core_type = #tpu.core_type<tc>, window_params = [{transform_indices = @transform_0, window_bounds = array<i64: 512, 128>}, {transform_indices = @transform_1, window_bounds = array<i64: 128, 128>}, {transform_indices = @transform_2, window_bounds = array<i64: 1, 128>}, {transform_indices = @transform_3, window_bounds = array<i64: 1, 128>}, {transform_indices = @transform_4, window_bounds = array<i64: 512, 128>}]} {
    %c0 = arith.constant 0 : index
    %c0_0 = arith.constant 0 : index
    %0 = vector.load %arg2[%c0, %c0_0] : memref<512x128xbf16, #tpu.memory_space<vmem>>, vector<512x128xbf16>
    %cst = arith.constant 0.000000e+00 : bf16
    %1 = vector.broadcast %cst : bf16 to vector<512x128xbf16>
    %2 = arith.cmpf ogt, %0, %1 : vector<512x128xbf16>
    %cst_1 = arith.constant 2.001950e-01 : bf16
    %3 = vector.broadcast %cst_1 : bf16 to vector<512x128xbf16>
    %4 = arith.mulf %3, %0 : vector<512x128xbf16>
    %5 = arith.select %2, %0, %4 : vector<512x128xi1>, vector<512x128xbf16>
    %c0_2 = arith.constant 0 : index
    %c0_3 = arith.constant 0 : index
    %6 = vector.load %arg3[%c0_2, %c0_3] : memref<128x128xbf16, #tpu.memory_space<vmem>>, vector<128x128xbf16>
    %cst_4 = arith.constant dense<0.000000e+00> : vector<512x128xf32>
    %7 = tpu.matmul %5, %6, %cst_4 {dimension_numbers = #tpu.dot_dimension_numbers<[1], [0], [0], [1], [0, 0, 1, 1], [], []>} : vector<512x128xbf16>, vector<128x128xbf16>, vector<512x128xf32> -> vector<512x128xf32>
    %c0_5 = arith.constant 0 : index
    %c0_6 = arith.constant 0 : index
    %8 = vector.load %arg4[%c0_5, %c0_6] : memref<1x128xf32, #tpu.memory_space<vmem>>, vector<1x128xf32>
    %9 = vector.broadcast %8 : vector<1x128xf32> to vector<512x128xf32>
    %10 = arith.mulf %7, %9 : vector<512x128xf32>
    %c0_7 = arith.constant 0 : index
    %c0_8 = arith.constant 0 : index
    %11 = vector.load %arg5[%c0_7, %c0_8] : memref<1x128xf32, #tpu.memory_space<vmem>>, vector<1x128xf32>
    %12 = vector.broadcast %11 : vector<1x128xf32> to vector<512x128xf32>
    %13 = arith.addf %10, %12 : vector<512x128xf32>
    %14 = arith.truncf %13 : vector<512x128xf32> to vector<512x128xbf16>
    %c0_9 = arith.constant 0 : index
    %c0_10 = arith.constant 0 : index
    %15 = vector.load %arg6[%c0_9, %c0_10] : memref<512x128xbf16, #tpu.memory_space<vmem>>, vector<512x128xbf16>
    tpu.vector_store %arg6[%c0_9, %c0_10], %14 {strides = array<i32>} : memref<512x128xbf16, #tpu.memory_space<vmem>>, vector<512x128xbf16>,
    return
  }
  func.func @transform_0(%arg0: i32, %arg1: i32) -> (i32, i32) {
    %c0_i32 = arith.constant 0 : i32
    %c0_i32_0 = arith.constant 0 : i32
    return %arg0, %c0_i32 : i32, i32
  }
  func.func @transform_1(%arg0: i32, %arg1: i32) -> (i32, i32) {
    %c0_i32 = arith.constant 0 : i32
    %c0_i32_0 = arith.constant 0 : i32
    return %c0_i32, %arg1 : i32, i32
  }
  func.func @transform_2(%arg0: i32, %arg1: i32) -> (i32, i32) {
    %c0_i32 = arith.constant 0 : i32
    %c0_i32_0 = arith.constant 0 : i32
    return %c0_i32, %arg1 : i32, i32
  }
  func.func @transform_3(%arg0: i32, %arg1: i32) -> (i32, i32) {
    %c0_i32 = arith.constant 0 : i32
    %c0_i32_0 = arith.constant 0 : i32
    return %c0_i32, %arg1 : i32, i32
  }
  func.func @transform_4(%arg0: i32, %arg1: i32) -> (i32, i32) {
    %c0_i32 = arith.constant 0 : i32
    return %arg0, %arg1 : i32, i32
  }
}

module attributes {stable_mosaic.version = 11 : i64} {
  func.func @_fused_matmul_kernel_single(%arg0: i32, %arg1: i32, %arg2: memref<1024x256xbf16, #tpu.memory_space<vmem>>, %arg3: memref<256x128xbf16, #tpu.memory_space<vmem>>, %arg4: memref<1x128xf32, #tpu.memory_space<vmem>>, %arg5: memref<1x128xf32, #tpu.memory_space<vmem>>, %arg6: memref<1024x128xbf16, #tpu.memory_space<vmem>>) attributes {dimension_semantics = [#tpu.dimension_semantics<parallel>, #tpu.dimension_semantics<parallel>], iteration_bounds = array<i64: 1, 1>, scalar_prefetch = 0 : i64, scratch_operands = 0 : i64, tpu.core_type = #tpu.core_type<tc>, window_params = [{transform_indices = @transform_0, window_bounds = array<i64: 1024, 256>}, {transform_indices = @transform_1, window_bounds = array<i64: 256, 128>}, {transform_indices = @transform_2, window_bounds = array<i64: 1, 128>}, {transform_indices = @transform_3, window_bounds = array<i64: 1, 128>}, {transform_indices = @transform_4, window_bounds = array<i64: 1024, 128>}]} {
    %c0 = arith.constant 0 : index
    %c0_0 = arith.constant 0 : index
    %0 = vector.load %arg2[%c0, %c0_0] : memref<1024x256xbf16, #tpu.memory_space<vmem>>, vector<1024x256xbf16>
    %cst = arith.constant 0.000000e+00 : bf16
    %1 = vector.broadcast %cst : bf16 to vector<1024x256xbf16>
    %2 = arith.cmpf ogt, %0, %1 : vector<1024x256xbf16>
    %cst_1 = arith.constant 2.001950e-01 : bf16
    %3 = vector.broadcast %cst_1 : bf16 to vector<1024x256xbf16>
    %4 = arith.mulf %3, %0 : vector<1024x256xbf16>
    %5 = arith.select %2, %0, %4 : vector<1024x256xi1>, vector<1024x256xbf16>
    %c0_2 = arith.constant 0 : index
    %c0_3 = arith.constant 0 : index
    %6 = vector.load %arg3[%c0_2, %c0_3] : memref<256x128xbf16, #tpu.memory_space<vmem>>, vector<256x128xbf16>
    %cst_4 = arith.constant dense<0.000000e+00> : vector<1024x128xf32>
    %7 = tpu.matmul %5, %6, %cst_4 {dimension_numbers = #tpu.dot_dimension_numbers<[1], [0], [0], [1], [0, 0, 1, 1], [], []>} : vector<1024x256xbf16>, vector<256x128xbf16>, vector<1024x128xf32> -> vector<1024x128xf32>
    %c0_5 = arith.constant 0 : index
    %c0_6 = arith.constant 0 : index
    %8 = vector.load %arg4[%c0_5, %c0_6] : memref<1x128xf32, #tpu.memory_space<vmem>>, vector<1x128xf32>
    %9 = vector.broadcast %8 : vector<1x128xf32> to vector<1024x128xf32>
    %10 = arith.mulf %7, %9 : vector<1024x128xf32>
    %c0_7 = arith.constant 0 : index
    %c0_8 = arith.constant 0 : index
    %11 = vector.load %arg5[%c0_7, %c0_8] : memref<1x128xf32, #tpu.memory_space<vmem>>, vector<1x128xf32>
    %12 = vector.broadcast %11 : vector<1x128xf32> to vector<1024x128xf32>
    %13 = arith.addf %10, %12 : vector<1024x128xf32>
    %14 = arith.truncf %13 : vector<1024x128xf32> to vector<1024x128xbf16>
    %c0_9 = arith.constant 0 : index
    %c0_10 = arith.constant 0 : index
    %15 = vector.load %arg6[%c0_9, %c0_10] : memref<1024x128xbf16, #tpu.memory_space<vmem>>, vector<1024x128xbf16>
    tpu.vector_store %arg6[%c0_9, %c0_10], %14 {strides = array<i32>} : memref<1024x128xbf16, #tpu.memory_space<vmem>>, vector<1024x128xbf16>,
    return
  }
  func.func @transform_0(%arg0: i32, %arg1: i32) -> (i32, i32) {
    %c0_i32 = arith.constant 0 : i32
    %c0_i32_0 = arith.constant 0 : i32
    return %arg0, %c0_i32 : i32, i32
  }
  func.func @transform_1(%arg0: i32, %arg1: i32) -> (i32, i32) {
    %c0_i32 = arith.constant 0 : i32
    %c0_i32_0 = arith.constant 0 : i32
    return %c0_i32, %arg1 : i32, i32
  }
  func.func @transform_2(%arg0: i32, %arg1: i32) -> (i32, i32) {
    %c0_i32 = arith.constant 0 : i32
    %c0_i32_0 = arith.constant 0 : i32
    return %c0_i32, %arg1 : i32, i32
  }
  func.func @transform_3(%arg0: i32, %arg1: i32) -> (i32, i32) {
    %c0_i32 = arith.constant 0 : i32
    %c0_i32_0 = arith.constant 0 : i32
    return %c0_i32, %arg1 : i32, i32
  }
  func.func @transform_4(%arg0: i32, %arg1: i32) -> (i32, i32) {
    %c0_i32 = arith.constant 0 : i32
    return %arg0, %arg1 : i32, i32
  }
}

module attributes {stable_mosaic.version = 11 : i64} {
  func.func @_fused_matmul_kernel_single(%arg0: i32, %arg1: i32, %arg2: memref<256x512xbf16, #tpu.memory_space<vmem>>, %arg3: memref<512x128xbf16, #tpu.memory_space<vmem>>, %arg4: memref<1x128xf32, #tpu.memory_space<vmem>>, %arg5: memref<1x128xf32, #tpu.memory_space<vmem>>, %arg6: memref<256x128xbf16, #tpu.memory_space<vmem>>) attributes {dimension_semantics = [#tpu.dimension_semantics<parallel>, #tpu.dimension_semantics<parallel>], iteration_bounds = array<i64: 1, 1>, scalar_prefetch = 0 : i64, scratch_operands = 0 : i64, tpu.core_type = #tpu.core_type<tc>, window_params = [{transform_indices = @transform_0, window_bounds = array<i64: 256, 512>}, {transform_indices = @transform_1, window_bounds = array<i64: 512, 128>}, {transform_indices = @transform_2, window_bounds = array<i64: 1, 128>}, {transform_indices = @transform_3, window_bounds = array<i64: 1, 128>}, {transform_indices = @transform_4, window_bounds = array<i64: 256, 128>}]} {
    %c0 = arith.constant 0 : index
    %c0_0 = arith.constant 0 : index
    %0 = vector.load %arg2[%c0, %c0_0] : memref<256x512xbf16, #tpu.memory_space<vmem>>, vector<256x512xbf16>
    %cst = arith.constant 0.000000e+00 : bf16
    %1 = vector.broadcast %cst : bf16 to vector<256x512xbf16>
    %2 = arith.cmpf ogt, %0, %1 : vector<256x512xbf16>
    %cst_1 = arith.constant 2.001950e-01 : bf16
    %3 = vector.broadcast %cst_1 : bf16 to vector<256x512xbf16>
    %4 = arith.mulf %3, %0 : vector<256x512xbf16>
    %5 = arith.select %2, %0, %4 : vector<256x512xi1>, vector<256x512xbf16>
    %c0_2 = arith.constant 0 : index
    %c0_3 = arith.constant 0 : index
    %6 = vector.load %arg3[%c0_2, %c0_3] : memref<512x128xbf16, #tpu.memory_space<vmem>>, vector<512x128xbf16>
    %cst_4 = arith.constant dense<0.000000e+00> : vector<256x128xf32>
    %7 = tpu.matmul %5, %6, %cst_4 {dimension_numbers = #tpu.dot_dimension_numbers<[1], [0], [0], [1], [0, 0, 1, 1], [], []>} : vector<256x512xbf16>, vector<512x128xbf16>, vector<256x128xf32> -> vector<256x128xf32>
    %c0_5 = arith.constant 0 : index
    %c0_6 = arith.constant 0 : index
    %8 = vector.load %arg4[%c0_5, %c0_6] : memref<1x128xf32, #tpu.memory_space<vmem>>, vector<1x128xf32>
    %9 = vector.broadcast %8 : vector<1x128xf32> to vector<256x128xf32>
    %10 = arith.mulf %7, %9 : vector<256x128xf32>
    %c0_7 = arith.constant 0 : index
    %c0_8 = arith.constant 0 : index
    %11 = vector.load %arg5[%c0_7, %c0_8] : memref<1x128xf32, #tpu.memory_space<vmem>>, vector<1x128xf32>
    %12 = vector.broadcast %11 : vector<1x128xf32> to vector<256x128xf32>
    %13 = arith.addf %10, %12 : vector<256x128xf32>
    %14 = arith.truncf %13 : vector<256x128xf32> to vector<256x128xbf16>
    %c0_9 = arith.constant 0 : index
    %c0_10 = arith.constant 0 : index
    %15 = vector.load %arg6[%c0_9, %c0_10] : memref<256x128xbf16, #tpu.memory_space<vmem>>, vector<256x128xbf16>
    tpu.vector_store %arg6[%c0_9, %c0_10], %14 {strides = array<i32>} : memref<256x128xbf16, #tpu.memory_space<vmem>>, vector<256x128xbf16>,
    return
  }
  func.func @transform_0(%arg0: i32, %arg1: i32) -> (i32, i32) {
    %c0_i32 = arith.constant 0 : i32
    %c0_i32_0 = arith.constant 0 : i32
    return %arg0, %c0_i32 : i32, i32
  }
  func.func @transform_1(%arg0: i32, %arg1: i32) -> (i32, i32) {
    %c0_i32 = arith.constant 0 : i32
    %c0_i32_0 = arith.constant 0 : i32
    return %c0_i32, %arg1 : i32, i32
  }
  func.func @transform_2(%arg0: i32, %arg1: i32) -> (i32, i32) {
    %c0_i32 = arith.constant 0 : i32
    %c0_i32_0 = arith.constant 0 : i32
    return %c0_i32, %arg1 : i32, i32
  }
  func.func @transform_3(%arg0: i32, %arg1: i32) -> (i32, i32) {
    %c0_i32 = arith.constant 0 : i32
    %c0_i32_0 = arith.constant 0 : i32
    return %c0_i32, %arg1 : i32, i32
  }
  func.func @transform_4(%arg0: i32, %arg1: i32) -> (i32, i32) {
    %c0_i32 = arith.constant 0 : i32
    return %arg0, %arg1 : i32, i32
  }
}

module attributes {stable_mosaic.version = 11 : i64} {
  func.func @_fused_matmul_kernel_single(%arg0: i32, %arg1: i32, %arg2: memref<304x512xbf16, #tpu.memory_space<vmem>>, %arg3: memref<512x128xbf16, #tpu.memory_space<vmem>>, %arg4: memref<1x128xf32, #tpu.memory_space<vmem>>, %arg5: memref<1x128xf32, #tpu.memory_space<vmem>>, %arg6: memref<304x128xbf16, #tpu.memory_space<vmem>>) attributes {dimension_semantics = [#tpu.dimension_semantics<parallel>, #tpu.dimension_semantics<parallel>], iteration_bounds = array<i64: 1, 1>, scalar_prefetch = 0 : i64, scratch_operands = 0 : i64, tpu.core_type = #tpu.core_type<tc>, window_params = [{transform_indices = @transform_0, window_bounds = array<i64: 304, 512>}, {transform_indices = @transform_1, window_bounds = array<i64: 512, 128>}, {transform_indices = @transform_2, window_bounds = array<i64: 1, 128>}, {transform_indices = @transform_3, window_bounds = array<i64: 1, 128>}, {transform_indices = @transform_4, window_bounds = array<i64: 304, 128>}]} {
    %c0 = arith.constant 0 : index
    %c0_0 = arith.constant 0 : index
    %0 = vector.load %arg2[%c0, %c0_0] : memref<304x512xbf16, #tpu.memory_space<vmem>>, vector<304x512xbf16>
    %cst = arith.constant 0.000000e+00 : bf16
    %1 = vector.broadcast %cst : bf16 to vector<304x512xbf16>
    %2 = arith.maximumf %0, %1 : vector<304x512xbf16>
    %c0_1 = arith.constant 0 : index
    %c0_2 = arith.constant 0 : index
    %3 = vector.load %arg3[%c0_1, %c0_2] : memref<512x128xbf16, #tpu.memory_space<vmem>>, vector<512x128xbf16>
    %cst_3 = arith.constant dense<0.000000e+00> : vector<304x128xf32>
    %4 = tpu.matmul %2, %3, %cst_3 {dimension_numbers = #tpu.dot_dimension_numbers<[1], [0], [0], [1], [0, 0, 1, 1], [], []>} : vector<304x512xbf16>, vector<512x128xbf16>, vector<304x128xf32> -> vector<304x128xf32>
    %c0_4 = arith.constant 0 : index
    %c0_5 = arith.constant 0 : index
    %5 = vector.load %arg4[%c0_4, %c0_5] : memref<1x128xf32, #tpu.memory_space<vmem>>, vector<1x128xf32>
    %6 = vector.broadcast %5 : vector<1x128xf32> to vector<304x128xf32>
    %7 = arith.mulf %4, %6 : vector<304x128xf32>
    %c0_6 = arith.constant 0 : index
    %c0_7 = arith.constant 0 : index
    %8 = vector.load %arg5[%c0_6, %c0_7] : memref<1x128xf32, #tpu.memory_space<vmem>>, vector<1x128xf32>
    %9 = vector.broadcast %8 : vector<1x128xf32> to vector<304x128xf32>
    %10 = arith.addf %7, %9 : vector<304x128xf32>
    %11 = arith.truncf %10 : vector<304x128xf32> to vector<304x128xbf16>
    %c0_8 = arith.constant 0 : index
    %c0_9 = arith.constant 0 : index
    %12 = vector.load %arg6[%c0_8, %c0_9] : memref<304x128xbf16, #tpu.memory_space<vmem>>, vector<304x128xbf16>
    tpu.vector_store %arg6[%c0_8, %c0_9], %11 {strides = array<i32>} : memref<304x128xbf16, #tpu.memory_space<vmem>>, vector<304x128xbf16>,
    return
  }
  func.func @transform_0(%arg0: i32, %arg1: i32) -> (i32, i32) {
    %c0_i32 = arith.constant 0 : i32
    %c0_i32_0 = arith.constant 0 : i32
    return %arg0, %c0_i32 : i32, i32
  }
  func.func @transform_1(%arg0: i32, %arg1: i32) -> (i32, i32) {
    %c0_i32 = arith.constant 0 : i32
    %c0_i32_0 = arith.constant 0 : i32
    return %c0_i32, %arg1 : i32, i32
  }
  func.func @transform_2(%arg0: i32, %arg1: i32) -> (i32, i32) {
    %c0_i32 = arith.constant 0 : i32
    %c0_i32_0 = arith.constant 0 : i32
    return %c0_i32, %arg1 : i32, i32
  }
  func.func @transform_3(%arg0: i32, %arg1: i32) -> (i32, i32) {
    %c0_i32 = arith.constant 0 : i32
    %c0_i32_0 = arith.constant 0 : i32
    return %c0_i32, %arg1 : i32, i32
  }
  func.func @transform_4(%arg0: i32, %arg1: i32) -> (i32, i32) {
    %c0_i32 = arith.constant 0 : i32
    return %arg0, %arg1 : i32, i32
  }
}

module attributes {stable_mosaic.version = 11 : i64} {
  func.func @_fused_matmul_kernel_single(%arg0: i32, %arg1: i32, %arg2: memref<512x256xbf16, #tpu.memory_space<vmem>>, %arg3: memref<256x128xbf16, #tpu.memory_space<vmem>>, %arg4: memref<1x128xf32, #tpu.memory_space<vmem>>, %arg5: memref<1x128xf32, #tpu.memory_space<vmem>>, %arg6: memref<512x128xbf16, #tpu.memory_space<vmem>>) attributes {dimension_semantics = [#tpu.dimension_semantics<parallel>, #tpu.dimension_semantics<parallel>], iteration_bounds = array<i64: 3, 1>, scalar_prefetch = 0 : i64, scratch_operands = 0 : i64, tpu.core_type = #tpu.core_type<tc>, window_params = [{transform_indices = @transform_0, window_bounds = array<i64: 512, 256>}, {transform_indices = @transform_1, window_bounds = array<i64: 256, 128>}, {transform_indices = @transform_2, window_bounds = array<i64: 1, 128>}, {transform_indices = @transform_3, window_bounds = array<i64: 1, 128>}, {transform_indices = @transform_4, window_bounds = array<i64: 512, 128>}]} {
    %c0 = arith.constant 0 : index
    %c0_0 = arith.constant 0 : index
    %0 = vector.load %arg2[%c0, %c0_0] : memref<512x256xbf16, #tpu.memory_space<vmem>>, vector<512x256xbf16>
    %cst = arith.constant 0.000000e+00 : bf16
    %1 = vector.broadcast %cst : bf16 to vector<512x256xbf16>
    %2 = arith.maximumf %0, %1 : vector<512x256xbf16>
    %c0_1 = arith.constant 0 : index
    %c0_2 = arith.constant 0 : index
    %3 = vector.load %arg3[%c0_1, %c0_2] : memref<256x128xbf16, #tpu.memory_space<vmem>>, vector<256x128xbf16>
    %cst_3 = arith.constant dense<0.000000e+00> : vector<512x128xf32>
    %4 = tpu.matmul %2, %3, %cst_3 {dimension_numbers = #tpu.dot_dimension_numbers<[1], [0], [0], [1], [0, 0, 1, 1], [], []>} : vector<512x256xbf16>, vector<256x128xbf16>, vector<512x128xf32> -> vector<512x128xf32>
    %c0_4 = arith.constant 0 : index
    %c0_5 = arith.constant 0 : index
    %5 = vector.load %arg4[%c0_4, %c0_5] : memref<1x128xf32, #tpu.memory_space<vmem>>, vector<1x128xf32>
    %6 = vector.broadcast %5 : vector<1x128xf32> to vector<512x128xf32>
    %7 = arith.mulf %4, %6 : vector<512x128xf32>
    %c0_6 = arith.constant 0 : index
    %c0_7 = arith.constant 0 : index
    %8 = vector.load %arg5[%c0_6, %c0_7] : memref<1x128xf32, #tpu.memory_space<vmem>>, vector<1x128xf32>
    %9 = vector.broadcast %8 : vector<1x128xf32> to vector<512x128xf32>
    %10 = arith.addf %7, %9 : vector<512x128xf32>
    %11 = arith.truncf %10 : vector<512x128xf32> to vector<512x128xbf16>
    %c0_8 = arith.constant 0 : index
    %c0_9 = arith.constant 0 : index
    %12 = vector.load %arg6[%c0_8, %c0_9] : memref<512x128xbf16, #tpu.memory_space<vmem>>, vector<512x128xbf16>
    tpu.vector_store %arg6[%c0_8, %c0_9], %11 {strides = array<i32>} : memref<512x128xbf16, #tpu.memory_space<vmem>>, vector<512x128xbf16>,
    return
  }
  func.func @transform_0(%arg0: i32, %arg1: i32) -> (i32, i32) {
    %c0_i32 = arith.constant 0 : i32
    %c0_i32_0 = arith.constant 0 : i32
    return %arg0, %c0_i32 : i32, i32
  }
  func.func @transform_1(%arg0: i32, %arg1: i32) -> (i32, i32) {
    %c0_i32 = arith.constant 0 : i32
    %c0_i32_0 = arith.constant 0 : i32
    return %c0_i32, %arg1 : i32, i32
  }
  func.func @transform_2(%arg0: i32, %arg1: i32) -> (i32, i32) {
    %c0_i32 = arith.constant 0 : i32
    %c0_i32_0 = arith.constant 0 : i32
    return %c0_i32, %arg1 : i32, i32
  }
  func.func @transform_3(%arg0: i32, %arg1: i32) -> (i32, i32) {
    %c0_i32 = arith.constant 0 : i32
    %c0_i32_0 = arith.constant 0 : i32
    return %c0_i32, %arg1 : i32, i32
  }
  func.func @transform_4(%arg0: i32, %arg1: i32) -> (i32, i32) {
    %c0_i32 = arith.constant 0 : i32
    return %arg0, %arg1 : i32, i32
  }
}

module attributes {stable_mosaic.version = 11 : i64} {
  func.func @_fused_matmul_kernel_single(%arg0: i32, %arg1: i32, %arg2: memref<512x128xbf16, #tpu.memory_space<vmem>>, %arg3: memref<128x128xbf16, #tpu.memory_space<vmem>>, %arg4: memref<1x128xf32, #tpu.memory_space<vmem>>, %arg5: memref<1x128xf32, #tpu.memory_space<vmem>>, %arg6: memref<512x128xbf16, #tpu.memory_space<vmem>>) attributes {dimension_semantics = [#tpu.dimension_semantics<parallel>, #tpu.dimension_semantics<parallel>], iteration_bounds = array<i64: 9, 1>, scalar_prefetch = 0 : i64, scratch_operands = 0 : i64, tpu.core_type = #tpu.core_type<tc>, window_params = [{transform_indices = @transform_0, window_bounds = array<i64: 512, 128>}, {transform_indices = @transform_1, window_bounds = array<i64: 128, 128>}, {transform_indices = @transform_2, window_bounds = array<i64: 1, 128>}, {transform_indices = @transform_3, window_bounds = array<i64: 1, 128>}, {transform_indices = @transform_4, window_bounds = array<i64: 512, 128>}]} {
    %c0 = arith.constant 0 : index
    %c0_0 = arith.constant 0 : index
    %0 = vector.load %arg2[%c0, %c0_0] : memref<512x128xbf16, #tpu.memory_space<vmem>>, vector<512x128xbf16>
    %cst = arith.constant 0.000000e+00 : bf16
    %1 = vector.broadcast %cst : bf16 to vector<512x128xbf16>
    %2 = arith.maximumf %0, %1 : vector<512x128xbf16>
    %c0_1 = arith.constant 0 : index
    %c0_2 = arith.constant 0 : index
    %3 = vector.load %arg3[%c0_1, %c0_2] : memref<128x128xbf16, #tpu.memory_space<vmem>>, vector<128x128xbf16>
    %cst_3 = arith.constant dense<0.000000e+00> : vector<512x128xf32>
    %4 = tpu.matmul %2, %3, %cst_3 {dimension_numbers = #tpu.dot_dimension_numbers<[1], [0], [0], [1], [0, 0, 1, 1], [], []>} : vector<512x128xbf16>, vector<128x128xbf16>, vector<512x128xf32> -> vector<512x128xf32>
    %c0_4 = arith.constant 0 : index
    %c0_5 = arith.constant 0 : index
    %5 = vector.load %arg4[%c0_4, %c0_5] : memref<1x128xf32, #tpu.memory_space<vmem>>, vector<1x128xf32>
    %6 = vector.broadcast %5 : vector<1x128xf32> to vector<512x128xf32>
    %7 = arith.mulf %4, %6 : vector<512x128xf32>
    %c0_6 = arith.constant 0 : index
    %c0_7 = arith.constant 0 : index
    %8 = vector.load %arg5[%c0_6, %c0_7] : memref<1x128xf32, #tpu.memory_space<vmem>>, vector<1x128xf32>
    %9 = vector.broadcast %8 : vector<1x128xf32> to vector<512x128xf32>
    %10 = arith.addf %7, %9 : vector<512x128xf32>
    %11 = arith.truncf %10 : vector<512x128xf32> to vector<512x128xbf16>
    %c0_8 = arith.constant 0 : index
    %c0_9 = arith.constant 0 : index
    %12 = vector.load %arg6[%c0_8, %c0_9] : memref<512x128xbf16, #tpu.memory_space<vmem>>, vector<512x128xbf16>
    tpu.vector_store %arg6[%c0_8, %c0_9], %11 {strides = array<i32>} : memref<512x128xbf16, #tpu.memory_space<vmem>>, vector<512x128xbf16>,
    return
  }
  func.func @transform_0(%arg0: i32, %arg1: i32) -> (i32, i32) {
    %c0_i32 = arith.constant 0 : i32
    %c0_i32_0 = arith.constant 0 : i32
    return %arg0, %c0_i32 : i32, i32
  }
  func.func @transform_1(%arg0: i32, %arg1: i32) -> (i32, i32) {
    %c0_i32 = arith.constant 0 : i32
    %c0_i32_0 = arith.constant 0 : i32
    return %c0_i32, %arg1 : i32, i32
  }
  func.func @transform_2(%arg0: i32, %arg1: i32) -> (i32, i32) {
    %c0_i32 = arith.constant 0 : i32
    %c0_i32_0 = arith.constant 0 : i32
    return %c0_i32, %arg1 : i32, i32
  }
  func.func @transform_3(%arg0: i32, %arg1: i32) -> (i32, i32) {
    %c0_i32 = arith.constant 0 : i32
    %c0_i32_0 = arith.constant 0 : i32
    return %c0_i32, %arg1 : i32, i32
  }
  func.func @transform_4(%arg0: i32, %arg1: i32) -> (i32, i32) {
    %c0_i32 = arith.constant 0 : i32
    return %arg0, %arg1 : i32, i32
  }
}

module attributes {stable_mosaic.version = 11 : i64} {
  func.func @_fused_matmul_kernel_single(%arg0: i32, %arg1: i32, %arg2: memref<512x128xbf16, #tpu.memory_space<vmem>>, %arg3: memref<128x128xbf16, #tpu.memory_space<vmem>>, %arg4: memref<1x128xf32, #tpu.memory_space<vmem>>, %arg5: memref<1x128xf32, #tpu.memory_space<vmem>>, %arg6: memref<512x128xf32, #tpu.memory_space<vmem>>) attributes {dimension_semantics = [#tpu.dimension_semantics<parallel>, #tpu.dimension_semantics<parallel>], iteration_bounds = array<i64: 33, 1>, scalar_prefetch = 0 : i64, scratch_operands = 0 : i64, tpu.core_type = #tpu.core_type<tc>, window_params = [{transform_indices = @transform_0, window_bounds = array<i64: 512, 128>}, {transform_indices = @transform_1, window_bounds = array<i64: 128, 128>}, {transform_indices = @transform_2, window_bounds = array<i64: 1, 128>}, {transform_indices = @transform_3, window_bounds = array<i64: 1, 128>}, {transform_indices = @transform_4, window_bounds = array<i64: 512, 128>}]} {
    %c0 = arith.constant 0 : index
    %c0_0 = arith.constant 0 : index
    %0 = vector.load %arg2[%c0, %c0_0] : memref<512x128xbf16, #tpu.memory_space<vmem>>, vector<512x128xbf16>
    %cst = arith.constant 0.000000e+00 : bf16
    %1 = vector.broadcast %cst : bf16 to vector<512x128xbf16>
    %2 = arith.maximumf %0, %1 : vector<512x128xbf16>
    %c0_1 = arith.constant 0 : index
    %c0_2 = arith.constant 0 : index
    %3 = vector.load %arg3[%c0_1, %c0_2] : memref<128x128xbf16, #tpu.memory_space<vmem>>, vector<128x128xbf16>
    %cst_3 = arith.constant dense<0.000000e+00> : vector<512x128xf32>
    %4 = tpu.matmul %2, %3, %cst_3 {dimension_numbers = #tpu.dot_dimension_numbers<[1], [0], [0], [1], [0, 0, 1, 1], [], []>} : vector<512x128xbf16>, vector<128x128xbf16>, vector<512x128xf32> -> vector<512x128xf32>
    %c0_4 = arith.constant 0 : index
    %c0_5 = arith.constant 0 : index
    %5 = vector.load %arg4[%c0_4, %c0_5] : memref<1x128xf32, #tpu.memory_space<vmem>>, vector<1x128xf32>
    %6 = vector.broadcast %5 : vector<1x128xf32> to vector<512x128xf32>
    %7 = arith.mulf %4, %6 : vector<512x128xf32>
    %c0_6 = arith.constant 0 : index
    %c0_7 = arith.constant 0 : index
    %8 = vector.load %arg5[%c0_6, %c0_7] : memref<1x128xf32, #tpu.memory_space<vmem>>, vector<1x128xf32>
    %9 = vector.broadcast %8 : vector<1x128xf32> to vector<512x128xf32>
    %10 = arith.addf %7, %9 : vector<512x128xf32>
    %11 = math.tanh %10 : vector<512x128xf32>
    %c0_8 = arith.constant 0 : index
    %c0_9 = arith.constant 0 : index
    %12 = vector.load %arg6[%c0_8, %c0_9] : memref<512x128xf32, #tpu.memory_space<vmem>>, vector<512x128xf32>
    tpu.vector_store %arg6[%c0_8, %c0_9], %11 {strides = array<i32>} : memref<512x128xf32, #tpu.memory_space<vmem>>, vector<512x128xf32>,
    return
  }
  func.func @transform_0(%arg0: i32, %arg1: i32) -> (i32, i32) {
    %c0_i32 = arith.constant 0 : i32
    %c0_i32_0 = arith.constant 0 : i32
    return %arg0, %c0_i32 : i32, i32
  }
  func.func @transform_1(%arg0: i32, %arg1: i32) -> (i32, i32) {
    %c0_i32 = arith.constant 0 : i32
    %c0_i32_0 = arith.constant 0 : i32
    return %c0_i32, %arg1 : i32, i32
  }
  func.func @transform_2(%arg0: i32, %arg1: i32) -> (i32, i32) {
    %c0_i32 = arith.constant 0 : i32
    %c0_i32_0 = arith.constant 0 : i32
    return %c0_i32, %arg1 : i32, i32
  }
  func.func @transform_3(%arg0: i32, %arg1: i32) -> (i32, i32) {
    %c0_i32 = arith.constant 0 : i32
    %c0_i32_0 = arith.constant 0 : i32
    return %c0_i32, %arg1 : i32, i32
  }
  func.func @transform_4(%arg0: i32, %arg1: i32) -> (i32, i32) {
    %c0_i32 = arith.constant 0 : i32
    return %arg0, %arg1 : i32, i32
  }
}

</mosaic_0001>

<llo_original>
// kernel: tile.143
$region0: #{tile.143}
  #allocation0 [shape = 's32[1]{0}', space=sflag, size = 0x4, scoped, tag = 'scoped memory for tile.143']
  %s0 = inlined_call_operand.vmem [shape: f32[8], index: 0, kind: input, shape index: {}]
  %s1 = inlined_call_operand.vmem [shape: f32[4,8], index: 1, kind: output, shape index: {}]
  // Predicated region
  $region2: #{tile.143} parent=0 // pred_check
    _
  $region3: #{tile.143} parent=0 // pred_check_branch
    %3 = sbr.rel (0) target = $region5
  $region4: #{tile.143} parent=0 // pred_region
    _
  $region5: #{tile.143} parent=0 // pred_fallthru
    _
  %v4 = vld [vmem:[%s0] ss:$0 sm:$0xff]
  %5 = vst [vmem:[%s1] sm:$0xf] %v4

// kernel: tile.133
$region0: #{tile.133}
  #allocation0 [shape = 's32[1]{0}', space=sflag, size = 0x4, scoped, tag = 'scoped memory for tile.133']
  %s0 = inlined_call_operand.vmem [shape: f32[16], index: 0, kind: input, shape index: {}]
  %s1 = inlined_call_operand.vmem [shape: f32[4,16], index: 1, kind: output, shape index: {}]
  // Predicated region
  $region2: #{tile.133} parent=0 // pred_check
    _
  $region3: #{tile.133} parent=0 // pred_check_branch
    %3 = sbr.rel (0) target = $region5
  $region4: #{tile.133} parent=0 // pred_region
    _
  $region5: #{tile.133} parent=0 // pred_fallthru
    _
  %v4 = vld [vmem:[%s0] ss:$0 sm:$0xff]
  %5 = vst [vmem:[%s1] sm:$0xf] %v4

// kernel: tile.144
$region0: #{tile.144}
  %s0 = inlined_call_operand.vmem [shape: f32[4,8], index: 0, kind: input, shape index: {}]
  %s1 = inlined_call_operand.vmem [shape: f32[32], index: 1, kind: output, shape index: {}]
  $region1: #{tile.144} parent=0
    #allocation0 [shape = 'u8[4096]{0}', space=vmem, size = 0x1000, scoped, tag = 'scoped mem for output reshape']
    #allocation1 [shape = 'u8[4096]{0}', space=vmem, size = 0x1000, scoped, tag = 'scoped mem for input reshape']
    %s3 = sshllo.u32 0, 4
    %v4 = vld [vmem:[%s0] sm:%s3]
    %5 = vst [vmem:[#allocation1] sm:%s3] %v4
    %v6 = vld [vmem:[#allocation1] sm:$0x1]
    %vm7 = vcmask 64512
    %8 = vst.msk [vmem:[#allocation0] sm:$0x1] %vm7, %v6
    %s9 = scalar_lea.vmem [#allocation1], 3
    %v10 = vld [vmem:[%s9] sm:$0x1]
    %11 = vrot.lane.b32.xlu0 %v10, 24
    %v12 = vpop.permute.xlu0 %11
    %vm13 = vcmask 261312
    %14 = vst.msk [vmem:[#allocation0] sm:$0x1] %vm13, %v12
    %s15 = scalar_lea.vmem [#allocation1], 2
    %v16 = vld [vmem:[%s15] sm:$0x1]
    %17 = vrot.lane.b32.xlu0 %v16, 16
    %v18 = vpop.permute.xlu0 %17
    %vm19 = vcmask 195712
    %20 = vst.msk [vmem:[#allocation0] sm:$0x1] %vm19, %v18
    %s21 = scalar_lea.vmem [#allocation1], 1
    %v22 = vld [vmem:[%s21] sm:$0x1]
    %23 = vrot.lane.b32.xlu0 %v22, 8
    %v24 = vpop.permute.xlu0 %23
    %vm25 = vcmask 130112
    %26 = vst.msk [vmem:[#allocation0] sm:$0x1] %vm25, %v24
    %s28 = sshllo.u32 0, 1
    %v30 = vld [vmem:[#allocation0] sm:%s28]
    %s31 = sshllo.u32 0, 1
    %32 = vst [vmem:[%s1] sm:%s31] %v30

// kernel: tile.134
$region0: #{tile.134}
  %s0 = inlined_call_operand.vmem [shape: f32[4,16], index: 0, kind: input, shape index: {}]
  %s1 = inlined_call_operand.vmem [shape: f32[64], index: 1, kind: output, shape index: {}]
  $region1: #{tile.134} parent=0
    #allocation0 [shape = 'u8[4096]{0}', space=vmem, size = 0x1000, scoped, tag = 'scoped mem for output reshape']
    #allocation1 [shape = 'u8[4096]{0}', space=vmem, size = 0x1000, scoped, tag = 'scoped mem for input reshape']
    %s3 = sshllo.u32 0, 4
    %v4 = vld [vmem:[%s0] sm:%s3]
    %5 = vst [vmem:[#allocation1] sm:%s3] %v4
    %v6 = vld [vmem:[#allocation1] sm:$0x1]
    %vm7 = vcmask 130048
    %8 = vst.msk [vmem:[#allocation0] sm:$0x1] %vm7, %v6
    %s9 = scalar_lea.vmem [#allocation1], 3
    %v10 = vld [vmem:[%s9] sm:$0x1]
    %11 = vrot.lane.b32.xlu0 %v10, 48
    %v12 = vpop.permute.xlu0 %11
    %vm13 = vcmask 523648
    %14 = vst.msk [vmem:[#allocation0] sm:$0x1] %vm13, %v12
    %s15 = scalar_lea.vmem [#allocation1], 2
    %v16 = vld [vmem:[%s15] sm:$0x1]
    %17 = vrot.lane.b32.xlu0 %v16, 32
    %v18 = vpop.permute.xlu0 %17
    %vm19 = vcmask 392448
    %20 = vst.msk [vmem:[#allocation0] sm:$0x1] %vm19, %v18
    %s21 = scalar_lea.vmem [#allocation1], 1
    %v22 = vld [vmem:[%s21] sm:$0x1]
    %23 = vrot.lane.b32.xlu0 %v22, 16
    %v24 = vpop.permute.xlu0 %23
    %vm25 = vcmask 261248
    %26 = vst.msk [vmem:[#allocation0] sm:$0x1] %vm25, %v24
    %s28 = sshllo.u32 0, 1
    %v30 = vld [vmem:[#allocation0] sm:%s28]
    %s31 = sshllo.u32 0, 1
    %32 = vst [vmem:[%s1] sm:%s31] %v30

// kernel: tile.122
$region0: #{tile.122}
  #allocation0 [shape = 's32[1]{0}', space=sflag, size = 0x4, scoped, tag = 'scoped memory for tile.122']
  %s0 = inlined_call_operand.vmem [shape: f32[32], index: 0, kind: input, shape index: {}]
  %s1 = inlined_call_operand.vmem [shape: f32[4,32], index: 1, kind: output, shape index: {}]
  // Predicated region
  $region2: #{tile.122} parent=0 // pred_check
    _
  $region3: #{tile.122} parent=0 // pred_check_branch
    %3 = sbr.rel (0) target = $region5
  $region4: #{tile.122} parent=0 // pred_region
    _
  $region5: #{tile.122} parent=0 // pred_fallthru
    _
  %v4 = vld [vmem:[%s0] ss:$0 sm:$0xff]
  %5 = vst [vmem:[%s1] sm:$0xf] %v4

// kernel: tile.124
$region0: #{tile.124}
  %s0 = inlined_call_operand.vmem [shape: f32[4,32], index: 0, kind: input, shape index: {}]
  %s1 = inlined_call_operand.vmem [shape: f32[1,128], index: 1, kind: output, shape index: {}]
  $region1: #{tile.124} parent=0
    #allocation0 [shape = 'u8[4096]{0}', space=vmem, size = 0x1000, scoped, tag = 'scoped mem for output reshape']
    #allocation1 [shape = 'u8[4096]{0}', space=vmem, size = 0x1000, scoped, tag = 'scoped mem for input reshape']
    %s3 = sshllo.u32 0, 4
    %v4 = vld [vmem:[%s0] sm:%s3]
    %5 = vst [vmem:[#allocation1] sm:%s3] %v4
    %v6 = vld [vmem:[#allocation1] sm:$0x1]
    %vm7 = vcmask 261120
    %8 = vst.msk [vmem:[#allocation0] sm:$0x1] %vm7, %v6
    %s9 = scalar_lea.vmem [#allocation1], 3
    %v10 = vld [vmem:[%s9] sm:$0x1]
    %11 = vrot.lane.b32.xlu0 %v10, 96
    %v12 = vpop.permute.xlu0 %11
    %vm13 = vcmask 1048320
    %14 = vst.msk [vmem:[#allocation0] sm:$0x1] %vm13, %v12
    %s15 = scalar_lea.vmem [#allocation1], 2
    %v16 = vld [vmem:[%s15] sm:$0x1]
    %17 = vrot.lane.b32.xlu0 %v16, 64
    %v18 = vpop.permute.xlu0 %17
    %vm19 = vcmask 785920
    %20 = vst.msk [vmem:[#allocation0] sm:$0x1] %vm19, %v18
    %s21 = scalar_lea.vmem [#allocation1], 1
    %v22 = vld [vmem:[%s21] sm:$0x1]
    %23 = vrot.lane.b32.xlu0 %v22, 32
    %v24 = vpop.permute.xlu0 %23
    %vm25 = vcmask 523520
    %26 = vst.msk [vmem:[#allocation0] sm:$0x1] %vm25, %v24
    %s28 = sshllo.u32 0, 1
    %v30 = vld [vmem:[#allocation0] sm:%s28]
    %s31 = sshllo.u32 0, 1
    %32 = vst [vmem:[%s1] sm:%s31] %v30

// kernel: tile.112
$region0: #{tile.112}
  #allocation0 [shape = 's32[1]{0}', space=sflag, size = 0x4, scoped, tag = 'scoped memory for tile.112']
  %s0 = inlined_call_operand.vmem [shape: f32[64], index: 0, kind: input, shape index: {}]
  %s1 = inlined_call_operand.vmem [shape: f32[4,64], index: 1, kind: output, shape index: {}]
  // Predicated region
  $region2: #{tile.112} parent=0 // pred_check
    _
  $region3: #{tile.112} parent=0 // pred_check_branch
    %3 = sbr.rel (0) target = $region5
  $region4: #{tile.112} parent=0 // pred_region
    _
  $region5: #{tile.112} parent=0 // pred_fallthru
    _
  %v4 = vld [vmem:[%s0] ss:$0 sm:$0xff]
  %5 = vst [vmem:[%s1] sm:$0xf] %v4

// kernel: tile.148
$region0: #{tile.148}
  #allocation2 [shape = 's32[1]{0}', space=sflag, size = 0x4, scoped, tag = 'scoped memory for tile.148']
  %s0 = inlined_call_operand.hbm [shape: f32[3], index: 0, kind: input, shape index: {}]
  %s1 = inlined_call_operand.vmem [shape: f32[4,3], index: 1, kind: output, shape index: {}]
  $region1: #{tile.148} parent=0
    #allocation0 [shape = 'u8[512]{0}', space=vmem, size = 0x400, scoped, tag = 'operand span for operand 0']
    #allocation1 [shape = 's32[1]{0}', space=sflag, size = 0x4, scoped, tag = 'scoped memory for tile.148']
    %2 = vsyncpa [#allocation1], 0
    // Predicated region
    $region2: #{tile.148} parent=1 // pred_check
      _
    $region3: #{tile.148} parent=1 // pred_check_branch
      %4 = sbr.rel (0) target = $region5
    $region4: #{tile.148} parent=1 // pred_region
      %s6 = ssub.s32 16, 16
      %7 = vsyncadd [#allocation1], %s6
      %s9 = sshll.u32 [#allocation0], 4
      %s10 = int_to_ptr.vmem [resolvable:$true] %s9
      %12 = dma.hbm_to_vmem [thread:$0]  %s0, 16, %s10, [#allocation1]
    $region5: #{tile.148} parent=1 // pred_fallthru
      _
    // Predicated region
    $region6: #{tile.148} parent=1 // pred_check
      _
    $region7: #{tile.148} parent=1 // pred_check_branch
      %14 = sbr.rel (0) target = $region9
    $region8: #{tile.148} parent=1 // pred_region
      %15 = dma.done [#allocation1], 16
    $region9: #{tile.148} parent=1 // pred_fallthru
      _
    %v16 = vld [vmem:[#allocation0] ss:$0 sm:$0xff]
    %17 = vst [vmem:[%s1] sm:$0xf] %v16
    %18 = vsyncpa [#allocation1], 1

// kernel: tile.149
$region0: #{tile.149}
  %s0 = inlined_call_operand.vmem [shape: f32[4,3], index: 0, kind: input, shape index: {}]
  %s1 = inlined_call_operand.vmem [shape: f32[12], index: 1, kind: output, shape index: {}]
  $region1: #{tile.149} parent=0
    #allocation0 [shape = 'u8[4096]{0}', space=vmem, size = 0x1000, scoped, tag = 'scoped mem for output reshape']
    #allocation1 [shape = 'u8[4096]{0}', space=vmem, size = 0x1000, scoped, tag = 'scoped mem for input reshape']
    %s3 = sshllo.u32 0, 4
    %v4 = vld [vmem:[%s0] sm:%s3]
    %5 = vst [vmem:[#allocation1] sm:%s3] %v4
    %v6 = vld [vmem:[#allocation1] sm:$0x1]
    %vm7 = vcmask 23552
    %8 = vst.msk [vmem:[#allocation0] sm:$0x1] %vm7, %v6
    %s9 = scalar_lea.vmem [#allocation1], 3
    %v10 = vld [vmem:[%s9] sm:$0x1]
    %11 = vrot.lane.b32.xlu0 %v10, 9
    %v12 = vpop.permute.xlu0 %11
    %vm13 = vcmask 97352
    %14 = vst.msk [vmem:[#allocation0] sm:$0x1] %vm13, %v12
    %s15 = scalar_lea.vmem [#allocation1], 2
    %v16 = vld [vmem:[%s15] sm:$0x1]
    %17 = vrot.lane.b32.xlu0 %v16, 6
    %v18 = vpop.permute.xlu0 %17
    %vm19 = vcmask 72752
    %20 = vst.msk [vmem:[#allocation0] sm:$0x1] %vm19, %v18
    %s21 = scalar_lea.vmem [#allocation1], 1
    %v22 = vld [vmem:[%s21] sm:$0x1]
    %23 = vrot.lane.b32.xlu0 %v22, 3
    %v24 = vpop.permute.xlu0 %23
    %vm25 = vcmask 48152
    %26 = vst.msk [vmem:[#allocation0] sm:$0x1] %vm25, %v24
    %s28 = sshllo.u32 0, 1
    %v30 = vld [vmem:[#allocation0] sm:%s28]
    %s31 = sshllo.u32 0, 1
    %32 = vst [vmem:[%s1] sm:%s31] %v30

// kernel: generator_forward.8
$region0: #{generator_forward.8}
  #allocation0 [shape = 'u32[]', space=smem, size = 0x4, offset = 0x4, fixed_abs, tag = 'smem constant byte address 0x4 - core index']
  #allocation1 [shape = 'u32[144,128]{1,0:T(1,128)}', space=vmem, size = 0x12000, scoped, tag = 'internal scratch']
  %s0 = inlined_call_operand.vmem [shape: bf16[16384,128], index: 0, kind: input, shape index: {}]
  %s1 = inlined_call_operand.vmem [shape: bf16[128,128], index: 1, kind: input, shape index: {}]
  %s2 = inlined_call_operand.vmem [shape: f32[1,128], index: 2, kind: input, shape index: {}]
  %s3 = inlined_call_operand.vmem [shape: f32[1,128], index: 3, kind: input, shape index: {}]
  %s4 = inlined_call_operand.vmem [shape: bf16[16384,128], index: 4, kind: output, shape index: {}]
  %s5 = sld [smem:[#allocation0]]
  $region49: #{generator_forward.8} parent=0
    _
  %s7 = ssub.s32 1, %s5
  %s8 = scalar_select 0, %s7, %s5
  loop: start=0, step=1, limit=34
  $region2: #{generator_forward.8} parent=0 // loop_pre_header
    _
  $region3: #{generator_forward.8} parent=0 // loop_header
    %s10 = sphi 0, %s14
    %p11 = scmp.ge.s32.totalorder %s10, 34
    %s17 = sphi 0, %s29
    %s18 = sphi 0, %s25
    %s19 = sphi 0, %s17
    %s20 = sphi 0, %s18
    %s21 = sphi 0, %s19
    %s22 = sphi 0, %s20
    %s32 = sphi 0, %s34
    %s35 = sphi 0, %s32
    %s36 = sphi 0, %s35
    %s52 = sphi 0, %s36
    %s58 = sphi 0, %s60
    %s61 = sphi 0, %s58
    %s62 = sphi 0, %s61
    %s78 = sphi 0, %s62
    %s84 = sphi 0, %s86
    %s87 = sphi 0, %s84
    %s88 = sphi 0, %s87
    %s104 = sphi 0, %s88
    %s110 = sphi 0, %s112
    %s113 = sphi 0, %s110
    %s114 = sphi 0, %s113
    %s130 = sphi 0, %s114
    %s138 = sphi 0, %s140
    %s141 = sphi 0, %s138
    %s142 = sphi 0, %s141
    %s158 = sphi 0, %s142
  $region4: #{generator_forward.8} parent=0 // loop_header_branch
    %13 = sbr.rel (%p11) target = $region8
  $region5: #{generator_forward.8} parent=0 // loop_body
    %s15 = ssub.s32 %s10, 1
    %s16 = ssub.s32 %s10, 2
    %s23 = sadd.s32 1, %s18
    %p24 = scmp.ge.s32.totalorder %s23, 1
    %s25 = scalar_select %p24, 0, %s23
    %s26 = sadd.s32 1, %s17
    %s27 = scalar_select %p24, %s26, %s17
    %p28 = scmp.ge.s32.totalorder %s27, 32
    %s29 = scalar_select %p28, 0, %s27
    %s30 = ssub.s32 %s17, %s29
    %p31 = scmp.eq.s32.totalorder %s30, 0
    %s33 = sadd.s32 %s32, 1
    %s34 = scalar_select %p31, %s32, %s33
    %p37 = pneg %p31
    %p38 = scmp.eq.s32.totalorder %s10, 31
    %p39 = por %p37, %p38
    %p40 = scmp.ne.s32.totalorder %s32, %s35
    %p41 = scmp.eq.s32.totalorder %s10, 0
    %p42 = por %p40, %p41
    %p43 = scmp.ne.s32.totalorder %s32, %s35
    %p44 = scmp.eq.s32.totalorder %s15, 31
    %p45 = por %p43, %p44
    %p46 = scmp.ne.s32.totalorder %s35, %s36
    %p47 = scmp.eq.s32.totalorder %s15, 0
    %p48 = por %p46, %p47
    %p49 = scmp.ne.s32.totalorder %s35, %s36
    %p50 = scmp.eq.s32.totalorder %s16, 31
    %p51 = por %p49, %p50
    %p53 = scmp.ne.s32.totalorder %s36, %s52
    %p54 = scmp.eq.s32.totalorder %s16, 0
    %p55 = por %p53, %p54
    %s56 = ssub.s32 %s18, %s25
    %p57 = scmp.eq.s32.totalorder %s56, 0
    %s59 = sadd.s32 %s58, 1
    %s60 = scalar_select %p57, %s58, %s59
    %p63 = pneg %p57
    %p64 = scmp.eq.s32.totalorder %s10, 31
    %p65 = por %p63, %p64
    %p66 = scmp.ne.s32.totalorder %s58, %s61
    %p67 = scmp.eq.s32.totalorder %s10, 0
    %p68 = por %p66, %p67
    %p69 = scmp.ne.s32.totalorder %s58, %s61
    %p70 = scmp.eq.s32.totalorder %s15, 31
    %p71 = por %p69, %p70
    %p72 = scmp.ne.s32.totalorder %s61, %s62
    %p73 = scmp.eq.s32.totalorder %s15, 0
    %p74 = por %p72, %p73
    %p75 = scmp.ne.s32.totalorder %s61, %s62
    %p76 = scmp.eq.s32.totalorder %s16, 31
    %p77 = por %p75, %p76
    %p79 = scmp.ne.s32.totalorder %s62, %s78
    %p80 = scmp.eq.s32.totalorder %s16, 0
    %p81 = por %p79, %p80
    %s82 = ssub.s32 %s18, %s25
    %p83 = scmp.eq.s32.totalorder %s82, 0
    %s85 = sadd.s32 %s84, 1
    %s86 = scalar_select %p83, %s84, %s85
    %p89 = pneg %p83
    %p90 = scmp.eq.s32.totalorder %s10, 31
    %p91 = por %p89, %p90
    %p92 = scmp.ne.s32.totalorder %s84, %s87
    %p93 = scmp.eq.s32.totalorder %s10, 0
    %p94 = por %p92, %p93
    %p95 = scmp.ne.s32.totalorder %s84, %s87
    %p96 = scmp.eq.s32.totalorder %s15, 31
    %p97 = por %p95, %p96
    %p98 = scmp.ne.s32.totalorder %s87, %s88
    %p99 = scmp.eq.s32.totalorder %s15, 0
    %p100 = por %p98, %p99
    %p101 = scmp.ne.s32.totalorder %s87, %s88
    %p102 = scmp.eq.s32.totalorder %s16, 31
    %p103 = por %p101, %p102
    %p105 = scmp.ne.s32.totalorder %s88, %s104
    %p106 = scmp.eq.s32.totalorder %s16, 0
    %p107 = por %p105, %p106
    %s108 = ssub.s32 %s18, %s25
    %p109 = scmp.eq.s32.totalorder %s108, 0
    %s111 = sadd.s32 %s110, 1
    %s112 = scalar_select %p109, %s110, %s111
    %p115 = pneg %p109
    %p116 = scmp.eq.s32.totalorder %s10, 31
    %p117 = por %p115, %p116
    %p118 = scmp.ne.s32.totalorder %s110, %s113
    %p119 = scmp.eq.s32.totalorder %s10, 0
    %p120 = por %p118, %p119
    %p121 = scmp.ne.s32.totalorder %s110, %s113
    %p122 = scmp.eq.s32.totalorder %s15, 31
    %p123 = por %p121, %p122
    %p124 = scmp.ne.s32.totalorder %s113, %s114
    %p125 = scmp.eq.s32.totalorder %s15, 0
    %p126 = por %p124, %p125
    %p127 = scmp.ne.s32.totalorder %s113, %s114
    %p128 = scmp.eq.s32.totalorder %s16, 31
    %p129 = por %p127, %p128
    %p131 = scmp.ne.s32.totalorder %s114, %s130
    %p132 = scmp.eq.s32.totalorder %s16, 0
    %p133 = por %p131, %p132
    %s134 = ssub.s32 %s17, %s29
    %s135 = ssub.s32 %s18, %s25
    %s136 = sor.u32 %s134, %s135
    %p137 = scmp.eq.s32.totalorder %s136, 0
    %s139 = sadd.s32 %s138, 1
    %s140 = scalar_select %p137, %s138, %s139
    %p143 = pneg %p137
    %p144 = scmp.eq.s32.totalorder %s10, 31
    %p145 = por %p143, %p144
    %p146 = scmp.ne.s32.totalorder %s138, %s141
    %p147 = scmp.eq.s32.totalorder %s10, 0
    %p148 = por %p146, %p147
    %p149 = scmp.ne.s32.totalorder %s138, %s141
    %p150 = scmp.eq.s32.totalorder %s15, 31
    %p151 = por %p149, %p150
    %p152 = scmp.ne.s32.totalorder %s141, %s142
    %p153 = scmp.eq.s32.totalorder %s15, 0
    %p154 = por %p152, %p153
    %p155 = scmp.ne.s32.totalorder %s141, %s142
    %p156 = scmp.eq.s32.totalorder %s16, 31
    %p157 = por %p155, %p156
    %p159 = scmp.ne.s32.totalorder %s142, %s158
    %p160 = scmp.eq.s32.totalorder %s16, 0
    %p161 = por %p159, %p160
    %p162 = scmp.le.s32.totalorder 1, %s10
    %p163 = scmp.lt.s32.totalorder %s10, 33
    %p164 = pnand %p162, %p163
    %p165 = pneg %p164
    // Predicated region
    $region9: #{generator_forward.8} parent=5 // pred_check
      _
    $region10: #{generator_forward.8} parent=5 // pred_check_branch
      %167 = sbr.rel (%p164) target = $region12
    $region11: #{generator_forward.8} parent=5 // pred_region
      %s168 = ssub.s32 %s10, 1
      // Predicated region
      $region13: #{generator_forward.8} parent=11 // pred_check
        %p169 = pneg %p74
      $region14: #{generator_forward.8} parent=11 // pred_check_branch
        %171 = sbr.rel (%p169) target = $region16
      $region15: #{generator_forward.8} parent=11 // pred_region
        %p172 = scmp.lt.s32.totalorder %s20, 0
        %s173 = scalar_select %p172, %s20, 0
        %s174 = smul.addr %s173, 4
        %s175 = scalar_lea.vmem %s1, %s174
      $region16: #{generator_forward.8} parent=11 // pred_fallthru
        _
      // Predicated region
      $region17: #{generator_forward.8} parent=11 // pred_check
        %p176 = pneg %p100
      $region18: #{generator_forward.8} parent=11 // pred_check_branch
        %178 = sbr.rel (%p176) target = $region20
      $region19: #{generator_forward.8} parent=11 // pred_region
        %p179 = scmp.lt.s32.totalorder %s20, 0
        %s180 = scalar_select %p179, %s20, 0
        %s181 = scalar_lea.vmem %s2, %s180
      $region20: #{generator_forward.8} parent=11 // pred_fallthru
        _
      // Predicated region
      $region21: #{generator_forward.8} parent=11 // pred_check
        %p182 = pneg %p126
      $region22: #{generator_forward.8} parent=11 // pred_check_branch
        %184 = sbr.rel (%p182) target = $region24
      $region23: #{generator_forward.8} parent=11 // pred_region
        %p185 = scmp.lt.s32.totalorder %s20, 0
        %s186 = scalar_select %p185, %s20, 0
        %s187 = scalar_lea.vmem %s3, %s186
      $region24: #{generator_forward.8} parent=11 // pred_fallthru
        _
    $region12: #{generator_forward.8} parent=5 // pred_fallthru
      _
    %p188 = scmp.lt.s32.totalorder %s10, 32
    // Predicated region
    $region25: #{generator_forward.8} parent=5 // pred_check
      %p189 = pneg %p188
    $region26: #{generator_forward.8} parent=5 // pred_check_branch
      %191 = sbr.rel (%p189) target = $region28
    $region27: #{generator_forward.8} parent=5 // pred_region
      // Predicated region
      $region29: #{generator_forward.8} parent=27 // pred_check
        %p192 = pneg %p42
      $region30: #{generator_forward.8} parent=27 // pred_check_branch
        %194 = sbr.rel (%p192) target = $region32
      $region31: #{generator_forward.8} parent=27 // pred_region
        %s195 = smul.u32 64, %s17
        %p196 = scmp.lt.s32.totalorder %s195, 2047
        %s197 = scalar_select %p196, %s195, 2047
        %s198 = smul.addr %s197, 4
        %s199 = scalar_lea.vmem %s0, %s198
        %s200 = smul.u32 64, %s17
      $region32: #{generator_forward.8} parent=27 // pred_fallthru
        _
    $region28: #{generator_forward.8} parent=5 // pred_fallthru
      _
    %p201 = scmp.le.s32.totalorder 1, %s10
    %p202 = scmp.lt.s32.totalorder %s10, 33
    %p203 = pnand %p201, %p202
    %p204 = pneg %p203
    // Predicated region
    $region33: #{generator_forward.8} parent=5 // pred_check
      _
    $region34: #{generator_forward.8} parent=5 // pred_check_branch
      %206 = sbr.rel (%p203) target = $region36
    $region35: #{generator_forward.8} parent=5 // pred_region
      %s207 = ssub.s32 %s10, 1
      %s208 = smul.u32 64, %s19
      %p209 = scmp.lt.s32.totalorder %s208, 2047
      %s210 = scalar_select %p209, %s208, 2047
      %s211 = smul.addr %s210, 4
      %s212 = scalar_lea.vmem %s0, %s211
      %p213 = pneg %p48
      %p214 = pneg %p45
      %p215 = scmp.lt.s32.totalorder %s20, 0
      %s216 = scalar_select %p215, %s20, 0
      %s217 = smul.addr %s216, 4
      %s218 = scalar_lea.vmem %s1, %s217
      %p219 = pneg %p74
      %p220 = pneg %p71
      %p221 = scmp.lt.s32.totalorder %s20, 0
      %s222 = scalar_select %p221, %s20, 0
      %s223 = scalar_lea.vmem %s2, %s222
      %p224 = pneg %p100
      %p225 = pneg %p97
      %p226 = scmp.lt.s32.totalorder %s20, 0
      %s227 = scalar_select %p226, %s20, 0
      %s228 = scalar_lea.vmem %s3, %s227
      %p229 = pneg %p126
      %p230 = pneg %p123
      %p231 = pneg %p154
      %p232 = pneg %p151
      %s233 = smul.u32 64, %s19
      %p234 = scmp.lt.s32.totalorder %s233, 2047
      %s235 = scalar_select %p234, %s233, 2047
      %p236 = scmp.lt.s32.totalorder %s20, 0
      %s237 = scalar_select %p236, %s20, 0
      %s238 = sadd.s32 %s237, %s235
      %s239 = smul.addr %s238, 4
      %s240 = scalar_lea.vmem %s4, %s239
      %s241 = smul.u32 64, %s19
      %p242 = scmp.lt.s32.totalorder %s241, 2047
      %s243 = scalar_select %p242, %s241, 2047
      %s244 = smul.addr %s243, 4
      %s245 = scalar_lea.vmem %s0, %s244
      %s246 = smul.u32 64, %s19
      %p247 = scmp.lt.s32.totalorder %s20, 0
      %s248 = scalar_select %p247, %s20, 0
      %s249 = smul.addr %s248, 4
      %s250 = scalar_lea.vmem %s1, %s249
      %p251 = scmp.lt.s32.totalorder %s20, 0
      %s252 = scalar_select %p251, %s20, 0
      %s253 = scalar_lea.vmem %s2, %s252
      %p254 = scmp.lt.s32.totalorder %s20, 0
      %s255 = scalar_select %p254, %s20, 0
      %s256 = scalar_lea.vmem %s3, %s255
      %s257 = smul.u32 64, %s19
      %p258 = scmp.lt.s32.totalorder %s257, 2047
      %s259 = scalar_select %p258, %s257, 2047
      %p260 = scmp.lt.s32.totalorder %s20, 0
      %s261 = scalar_select %p260, %s20, 0
      %s262 = sadd.s32 %s261, %s259
      %s263 = smul.addr %s262, 4
      %s264 = scalar_lea.vmem %s4, %s263
      %s265 = smul.u32 64, %s19
      %v267 = vld [vmem:[%s245] sm:$0xf]
      %v268 = vld [vmem:[%s245 + $0x4] sm:$0xf]
      %v269 = vld [vmem:[%s245 + $0x8] sm:$0xf]
      %v270 = vld [vmem:[%s245 + $0xc] sm:$0xf]
      %v271 = vld [vmem:[%s245 + $0x10] sm:$0xf]
      %v272 = vld [vmem:[%s245 + $0x14] sm:$0xf]
      %v273 = vld [vmem:[%s245 + $0x18] sm:$0xf]
      %v274 = vld [vmem:[%s245 + $0x1c] sm:$0xf]
      %v275 = vld [vmem:[%s245 + $0x20] sm:$0xf]
      %v276 = vld [vmem:[%s245 + $0x24] sm:$0xf]
      %v277 = vld [vmem:[%s245 + $0x28] sm:$0xf]
      %v278 = vld [vmem:[%s245 + $0x2c] sm:$0xf]
      %v279 = vld [vmem:[%s245 + $0x30] sm:$0xf]
      %v280 = vld [vmem:[%s245 + $0x34] sm:$0xf]
      %v281 = vld [vmem:[%s245 + $0x38] sm:$0xf]
      %v282 = vld [vmem:[%s245 + $0x3c] sm:$0xf]
      %v283 = vld [vmem:[%s245 + $0x40] sm:$0xf]
      %v284 = vld [vmem:[%s245 + $0x44] sm:$0xf]
      %v285 = vld [vmem:[%s245 + $0x48] sm:$0xf]
      %v286 = vld [vmem:[%s245 + $0x4c] sm:$0xf]
      %v287 = vld [vmem:[%s245 + $0x50] sm:$0xf]
      %v288 = vld [vmem:[%s245 + $0x54] sm:$0xf]
      %v289 = vld [vmem:[%s245 + $0x58] sm:$0xf]
      %v290 = vld [vmem:[%s245 + $0x5c] sm:$0xf]
      %v291 = vld [vmem:[%s245 + $0x60] sm:$0xf]
      %v292 = vld [vmem:[%s245 + $0x64] sm:$0xf]
      %v293 = vld [vmem:[%s245 + $0x68] sm:$0xf]
      %v294 = vld [vmem:[%s245 + $0x6c] sm:$0xf]
      %v295 = vld [vmem:[%s245 + $0x70] sm:$0xf]
      %v296 = vld [vmem:[%s245 + $0x74] sm:$0xf]
      %v297 = vld [vmem:[%s245 + $0x78] sm:$0xf]
      %v298 = vld [vmem:[%s245 + $0x7c] sm:$0xf]
      %v299 = vld [vmem:[%s245 + $0x80] sm:$0xf]
      %v300 = vld [vmem:[%s245 + $0x84] sm:$0xf]
      %v301 = vld [vmem:[%s245 + $0x88] sm:$0xf]
      %v302 = vld [vmem:[%s245 + $0x8c] sm:$0xf]
      %v303 = vld [vmem:[%s245 + $0x90] sm:$0xf]
      %v304 = vld [vmem:[%s245 + $0x94] sm:$0xf]
      %v305 = vld [vmem:[%s245 + $0x98] sm:$0xf]
      %v306 = vld [vmem:[%s245 + $0x9c] sm:$0xf]
      %v307 = vld [vmem:[%s245 + $0xa0] sm:$0xf]
      %v308 = vld [vmem:[%s245 + $0xa4] sm:$0xf]
      %v309 = vld [vmem:[%s245 + $0xa8] sm:$0xf]
      %v310 = vld [vmem:[%s245 + $0xac] sm:$0xf]
      %v311 = vld [vmem:[%s245 + $0xb0] sm:$0xf]
      %v312 = vld [vmem:[%s245 + $0xb4] sm:$0xf]
      %v313 = vld [vmem:[%s245 + $0xb8] sm:$0xf]
      %v314 = vld [vmem:[%s245 + $0xbc] sm:$0xf]
      %v315 = vld [vmem:[%s245 + $0xc0] sm:$0xf]
      %v316 = vld [vmem:[%s245 + $0xc4] sm:$0xf]
      %v317 = vld [vmem:[%s245 + $0xc8] sm:$0xf]
      %v318 = vld [vmem:[%s245 + $0xcc] sm:$0xf]
      %v319 = vld [vmem:[%s245 + $0xd0] sm:$0xf]
      %v320 = vld [vmem:[%s245 + $0xd4] sm:$0xf]
      %v321 = vld [vmem:[%s245 + $0xd8] sm:$0xf]
      %v322 = vld [vmem:[%s245 + $0xdc] sm:$0xf]
      %v323 = vld [vmem:[%s245 + $0xe0] sm:$0xf]
      %v324 = vld [vmem:[%s245 + $0xe4] sm:$0xf]
      %v325 = vld [vmem:[%s245 + $0xe8] sm:$0xf]
      %v326 = vld [vmem:[%s245 + $0xec] sm:$0xf]
      %v327 = vld [vmem:[%s245 + $0xf0] sm:$0xf]
      %v328 = vld [vmem:[%s245 + $0xf4] sm:$0xf]
      %v329 = vld [vmem:[%s245 + $0xf8] sm:$0xf]
      %v330 = vld [vmem:[%s245 + $0xfc] sm:$0xf]
      %v331 = vld [vmem:[%s250] sm:$0xf]
      %v332 = vld [vmem:[%s250 + $0x4] sm:$0xf]
      %v333 = vld [vmem:[%s250 + $0x8] sm:$0xf]
      %v334 = vld [vmem:[%s250 + $0xc] sm:$0xf]
      %v335 = vld [vmem:[%s250 + $0x10] sm:$0xf]
      %v336 = vld [vmem:[%s250 + $0x14] sm:$0xf]
      %v337 = vld [vmem:[%s250 + $0x18] sm:$0xf]
      %v338 = vld [vmem:[%s250 + $0x1c] sm:$0xf]
      %v339 = vld [vmem:[%s250 + $0x20] sm:$0xf]
      %v340 = vld [vmem:[%s250 + $0x24] sm:$0xf]
      %v341 = vld [vmem:[%s250 + $0x28] sm:$0xf]
      %v342 = vld [vmem:[%s250 + $0x2c] sm:$0xf]
      %v343 = vld [vmem:[%s250 + $0x30] sm:$0xf]
      %v344 = vld [vmem:[%s250 + $0x34] sm:$0xf]
      %v345 = vld [vmem:[%s250 + $0x38] sm:$0xf]
      %v346 = vld [vmem:[%s250 + $0x3c] sm:$0xf]
      %v411 = vunpack.c.l.b16 %v267
      %v412 = vunpack.c.l.b16 %v268
      %v413 = vunpack.c.l.b16 %v269
      %v414 = vunpack.c.l.b16 %v270
      %v415 = vunpack.c.l.b16 %v271
      %v416 = vunpack.c.l.b16 %v272
      %v417 = vunpack.c.l.b16 %v273
      %v418 = vunpack.c.l.b16 %v274
      %v419 = vunpack.c.l.b16 %v275
      %v420 = vunpack.c.l.b16 %v276
      %v421 = vunpack.c.l.b16 %v277
      %v422 = vunpack.c.l.b16 %v278
      %v423 = vunpack.c.l.b16 %v279
      %v424 = vunpack.c.l.b16 %v280
      %v425 = vunpack.c.l.b16 %v281
      %v426 = vunpack.c.l.b16 %v282
      %v427 = vunpack.c.l.b16 %v283
      %v428 = vunpack.c.l.b16 %v284
      %v429 = vunpack.c.l.b16 %v285
      %v430 = vunpack.c.l.b16 %v286
      %v431 = vunpack.c.l.b16 %v287
      %v432 = vunpack.c.l.b16 %v288
      %v433 = vunpack.c.l.b16 %v289
      %v434 = vunpack.c.l.b16 %v290
      %v435 = vunpack.c.l.b16 %v291
      %v436 = vunpack.c.l.b16 %v292
      %v437 = vunpack.c.l.b16 %v293
      %v438 = vunpack.c.l.b16 %v294
      %v439 = vunpack.c.l.b16 %v295
      %v440 = vunpack.c.l.b16 %v296
      %v441 = vunpack.c.l.b16 %v297
      %v442 = vunpack.c.l.b16 %v298
      %v443 = vunpack.c.l.b16 %v299
      %v444 = vunpack.c.l.b16 %v300
      %v445 = vunpack.c.l.b16 %v301
      %v446 = vunpack.c.l.b16 %v302
      %v447 = vunpack.c.l.b16 %v303
      %v448 = vunpack.c.l.b16 %v304
      %v449 = vunpack.c.l.b16 %v305
      %v450 = vunpack.c.l.b16 %v306
      %v451 = vunpack.c.l.b16 %v307
      %v452 = vunpack.c.l.b16 %v308
      %v453 = vunpack.c.l.b16 %v309
      %v454 = vunpack.c.l.b16 %v310
      %v455 = vunpack.c.l.b16 %v311
      %v456 = vunpack.c.l.b16 %v312
      %v457 = vunpack.c.l.b16 %v313
      %v458 = vunpack.c.l.b16 %v314
      %v459 = vunpack.c.l.b16 %v315
      %v460 = vunpack.c.l.b16 %v316
      %v461 = vunpack.c.l.b16 %v317
      %v462 = vunpack.c.l.b16 %v318
      %v463 = vunpack.c.l.b16 %v319
      %v464 = vunpack.c.l.b16 %v320
      %v465 = vunpack.c.l.b16 %v321
      %v466 = vunpack.c.l.b16 %v322
      %v467 = vunpack.c.l.b16 %v323
      %v468 = vunpack.c.l.b16 %v324
      %v469 = vunpack.c.l.b16 %v325
      %v470 = vunpack.c.l.b16 %v326
      %v471 = vunpack.c.l.b16 %v327
      %v472 = vunpack.c.l.b16 %v328
      %v473 = vunpack.c.l.b16 %v329
      %v474 = vunpack.c.l.b16 %v330
      %v475 = vpack.c.b16 %v412, %v411
      %v476 = vpack.c.b16 %v414, %v413
      %v477 = vpack.c.b16 %v416, %v415
      %v478 = vpack.c.b16 %v418, %v417
      %v479 = vpack.c.b16 %v420, %v419
      %v480 = vpack.c.b16 %v422, %v421
      %v481 = vpack.c.b16 %v424, %v423
      %v482 = vpack.c.b16 %v426, %v425
      %v483 = vpack.c.b16 %v428, %v427
      %v484 = vpack.c.b16 %v430, %v429
      %v485 = vpack.c.b16 %v432, %v431
      %v486 = vpack.c.b16 %v434, %v433
      %v487 = vpack.c.b16 %v436, %v435
      %v488 = vpack.c.b16 %v438, %v437
      %v489 = vpack.c.b16 %v440, %v439
      %v490 = vpack.c.b16 %v442, %v441
      %v491 = vpack.c.b16 %v444, %v443
      %v492 = vpack.c.b16 %v446, %v445
      %v493 = vpack.c.b16 %v448, %v447
      %v494 = vpack.c.b16 %v450, %v449
      %v495 = vpack.c.b16 %v452, %v451
      %v496 = vpack.c.b16 %v454, %v453
      %v497 = vpack.c.b16 %v456, %v455
      %v498 = vpack.c.b16 %v458, %v457
      %v499 = vpack.c.b16 %v460, %v459
      %v500 = vpack.c.b16 %v462, %v461
      %v501 = vpack.c.b16 %v464, %v463
      %v502 = vpack.c.b16 %v466, %v465
      %v503 = vpack.c.b16 %v468, %v467
      %v504 = vpack.c.b16 %v470, %v469
      %v505 = vpack.c.b16 %v472, %v471
      %v506 = vpack.c.b16 %v474, %v473
      %v555 = vunpack.c.l.b16 %v331
      %v556 = vunpack.c.l.b16 %v332
      %v557 = vunpack.c.l.b16 %v333
      %v558 = vunpack.c.l.b16 %v334
      %v559 = vunpack.c.l.b16 %v335
      %v560 = vunpack.c.l.b16 %v336
      %v561 = vunpack.c.l.b16 %v337
      %v562 = vunpack.c.l.b16 %v338
      %v563 = vunpack.c.l.b16 %v339
      %v564 = vunpack.c.l.b16 %v340
      %v565 = vunpack.c.l.b16 %v341
      %v566 = vunpack.c.l.b16 %v342
      %v567 = vunpack.c.l.b16 %v343
      %v568 = vunpack.c.l.b16 %v344
      %v569 = vunpack.c.l.b16 %v345
      %v570 = vunpack.c.l.b16 %v346
      %v571 = vpack.c.b16 %v556, %v555
      %v572 = vpack.c.b16 %v558, %v557
      %v573 = vpack.c.b16 %v560, %v559
      %v574 = vpack.c.b16 %v562, %v561
      %v575 = vpack.c.b16 %v564, %v563
      %v576 = vpack.c.b16 %v566, %v565
      %v577 = vpack.c.b16 %v568, %v567
      %v578 = vpack.c.b16 %v570, %v569
      %587 = vmatprep.subr.bf16.mxu0 0
      %588 = vmatpush1.bf16.msra.mxu0 %v571
      %589 = vmatprep.subr.bf16.mxu0 0
      %590 = vmatpush1.bf16.msra.mxu0 %v572
      %591 = vmatprep.subr.bf16.mxu0 0
      %592 = vmatpush1.bf16.msra.mxu0 %v573
      %593 = vmatprep.subr.bf16.mxu0 0
      %594 = vmatpush1.bf16.msra.mxu0 %v574
      %595 = vmatprep.subr.bf16.mxu0 0
      %596 = vmatpush1.bf16.msra.mxu0 %v575
      %597 = vmatprep.subr.bf16.mxu0 0
      %598 = vmatpush1.bf16.msra.mxu0 %v576
      %599 = vmatprep.subr.bf16.mxu0 0
      %600 = vmatpush1.bf16.msra.mxu0 %v577
      %601 = vmatprep.subr.bf16.mxu0 0
      %602 = vmatpush1.bf16.msra.mxu0 %v578
      %603 = vmatprep.subr.bf16.mxu0 0
      %604 = vmatpush1.bf16.msra.mxu0 0
      %605 = vmatprep.subr.bf16.mxu0 0
      %606 = vmatpush1.bf16.msra.mxu0 0
      %607 = vmatprep.subr.bf16.mxu0 0
      %608 = vmatpush1.bf16.msra.mxu0 0
      %609 = vmatprep.subr.bf16.mxu0 0
      %610 = vmatpush1.bf16.msra.mxu0 0
      %611 = vmatprep.subr.bf16.mxu0 0
      %612 = vmatpush1.bf16.msra.mxu0 0
      %613 = vmatprep.subr.bf16.mxu0 0
      %614 = vmatpush1.bf16.msra.mxu0 0
      %615 = vmatprep.subr.bf16.mxu0 0
      %616 = vmatpush1.bf16.msra.mxu0 0
      %617 = vmatprep.subr.bf16.mxu0 0
      %618 = vmatpush1.bf16.msra.mxu0 0
      %619 = vmatprep.mubr.bf16.mxu0 0
      %620 = vmatmul.mubr.bf16.gmra.mrb[0].mxu0 %v475
      %v621 = vpop.f32.mrb[0].mxu0
      %v622 = vadd.f32 0.0, %v621
      %v623 = vpop.f32.mrb[0].mxu0
      %v624 = vpop.f32.mrb[0].mxu0
      %v625 = vadd.f32 0.0, %v624
      %v626 = vpop.f32.mrb[0].mxu0
      %627 = vmatprep.mubr.bf16.mxu0 0
      %628 = vmatmul.mubr.bf16.gmra.mrb[0].mxu0 %v476
      %v629 = vpop.f32.mrb[0].mxu0
      %v630 = vadd.f32 0.0, %v629
      %v631 = vpop.f32.mrb[0].mxu0
      %v632 = vpop.f32.mrb[0].mxu0
      %v633 = vadd.f32 0.0, %v632
      %v634 = vpop.f32.mrb[0].mxu0
      %635 = vmatprep.mubr.bf16.mxu0 0
      %636 = vmatmul.mubr.bf16.gmra.mrb[0].mxu0 %v477
      %v637 = vpop.f32.mrb[0].mxu0
      %v638 = vadd.f32 0.0, %v637
      %v639 = vpop.f32.mrb[0].mxu0
      %v640 = vpop.f32.mrb[0].mxu0
      %v641 = vadd.f32 0.0, %v640
      %v642 = vpop.f32.mrb[0].mxu0
      %643 = vmatprep.mubr.bf16.mxu0 0
      %644 = vmatmul.mubr.bf16.gmra.mrb[0].mxu0 %v478
      %v645 = vpop.f32.mrb[0].mxu0
      %v646 = vadd.f32 0.0, %v645
      %v647 = vpop.f32.mrb[0].mxu0
      %v648 = vpop.f32.mrb[0].mxu0
      %v649 = vadd.f32 0.0, %v648
      %v650 = vpop.f32.mrb[0].mxu0
      %651 = vmatprep.mubr.bf16.mxu0 0
      %652 = vmatmul.mubr.bf16.gmra.mrb[0].mxu0 %v479
      %v653 = vpop.f32.mrb[0].mxu0
      %v654 = vadd.f32 0.0, %v653
      %v655 = vpop.f32.mrb[0].mxu0
      %v656 = vpop.f32.mrb[0].mxu0
      %v657 = vadd.f32 0.0, %v656
      %v658 = vpop.f32.mrb[0].mxu0
      %659 = vmatprep.mubr.bf16.mxu0 0
      %660 = vmatmul.mubr.bf16.gmra.mrb[0].mxu0 %v480
      %v661 = vpop.f32.mrb[0].mxu0
      %v662 = vadd.f32 0.0, %v661
      %v663 = vpop.f32.mrb[0].mxu0
      %v664 = vpop.f32.mrb[0].mxu0
      %v665 = vadd.f32 0.0, %v664
      %v666 = vpop.f32.mrb[0].mxu0
      %667 = vmatprep.mubr.bf16.mxu0 0
      %668 = vmatmul.mubr.bf16.gmra.mrb[0].mxu0 %v481
      %v669 = vpop.f32.mrb[0].mxu0
      %v670 = vadd.f32 0.0, %v669
      %v671 = vpop.f32.mrb[0].mxu0
      %v672 = vpop.f32.mrb[0].mxu0
      %v673 = vadd.f32 0.0, %v672
      %v674 = vpop.f32.mrb[0].mxu0
      %675 = vmatprep.mubr.bf16.mxu0 0
      %676 = vmatmul.mubr.bf16.gmra.mrb[0].mxu0 %v482
      %v677 = vpop.f32.mrb[0].mxu0
      %v678 = vadd.f32 0.0, %v677
      %v679 = vpop.f32.mrb[0].mxu0
      %v680 = vpop.f32.mrb[0].mxu0
      %v681 = vadd.f32 0.0, %v680
      %v682 = vpop.f32.mrb[0].mxu0
      %683 = vmatprep.mubr.bf16.mxu0 0
      %684 = vmatmul.mubr.bf16.gmra.mrb[0].mxu0 %v483
      %v685 = vpop.f32.mrb[0].mxu0
      %v686 = vadd.f32 0.0, %v685
      %v687 = vpop.f32.mrb[0].mxu0
      %v688 = vpop.f32.mrb[0].mxu0
      %v689 = vadd.f32 0.0, %v688
      %v690 = vpop.f32.mrb[0].mxu0
      %691 = vmatprep.mubr.bf16.mxu0 0
      %692 = vmatmul.mubr.bf16.gmra.mrb[0].mxu0 %v484
      %v693 = vpop.f32.mrb[0].mxu0
      %v694 = vadd.f32 0.0, %v693
      %v695 = vpop.f32.mrb[0].mxu0
      %v696 = vpop.f32.mrb[0].mxu0
      %v697 = vadd.f32 0.0, %v696
      %v698 = vpop.f32.mrb[0].mxu0
      %699 = vmatprep.mubr.bf16.mxu0 0
      %700 = vmatmul.mubr.bf16.gmra.mrb[0].mxu0 %v485
      %v701 = vpop.f32.mrb[0].mxu0
      %v702 = vadd.f32 0.0, %v701
      %v703 = vpop.f32.mrb[0].mxu0
      %v704 = vpop.f32.mrb[0].mxu0
      %v705 = vadd.f32 0.0, %v704
      %v706 = vpop.f32.mrb[0].mxu0
      %707 = vmatprep.mubr.bf16.mxu0 0
      %708 = vmatmul.mubr.bf16.gmra.mrb[0].mxu0 %v486
      %v709 = vpop.f32.mrb[0].mxu0
      %v710 = vadd.f32 0.0, %v709
      %v711 = vpop.f32.mrb[0].mxu0
      %v712 = vpop.f32.mrb[0].mxu0
      %v713 = vadd.f32 0.0, %v712
      %v714 = vpop.f32.mrb[0].mxu0
      %715 = vmatprep.mubr.bf16.mxu0 0
      %716 = vmatmul.mubr.bf16.gmra.mrb[0].mxu0 %v487
      %v717 = vpop.f32.mrb[0].mxu0
      %v718 = vadd.f32 0.0, %v717
      %v719 = vpop.f32.mrb[0].mxu0
      %v720 = vpop.f32.mrb[0].mxu0
      %v721 = vadd.f32 0.0, %v720
      %v722 = vpop.f32.mrb[0].mxu0
      %723 = vmatprep.mubr.bf16.mxu0 0
      %724 = vmatmul.mubr.bf16.gmra.mrb[0].mxu0 %v488
      %v725 = vpop.f32.mrb[0].mxu0
      %v726 = vadd.f32 0.0, %v725
      %v727 = vpop.f32.mrb[0].mxu0
      %v728 = vpop.f32.mrb[0].mxu0
      %v729 = vadd.f32 0.0, %v728
      %v730 = vpop.f32.mrb[0].mxu0
      %731 = vmatprep.mubr.bf16.mxu0 0
      %732 = vmatmul.mubr.bf16.gmra.mrb[0].mxu0 %v489
      %v733 = vpop.f32.mrb[0].mxu0
      %v734 = vadd.f32 0.0, %v733
      %v735 = vpop.f32.mrb[0].mxu0
      %v736 = vpop.f32.mrb[0].mxu0
      %v737 = vadd.f32 0.0, %v736
      %v738 = vpop.f32.mrb[0].mxu0
      %739 = vmatprep.mubr.bf16.mxu0 0
      %740 = vmatmul.mubr.bf16.gmra.mrb[0].mxu0 %v490
      %v741 = vpop.f32.mrb[0].mxu0
      %v742 = vadd.f32 0.0, %v741
      %v743 = vpop.f32.mrb[0].mxu0
      %v744 = vpop.f32.mrb[0].mxu0
      %v745 = vadd.f32 0.0, %v744
      %v746 = vpop.f32.mrb[0].mxu0
      %747 = vmatprep.mubr.bf16.mxu0 0
      %748 = vmatmul.mubr.bf16.gmra.mrb[0].mxu0 %v491
      %v749 = vpop.f32.mrb[0].mxu0
      %v750 = vadd.f32 0.0, %v749
      %v751 = vpop.f32.mrb[0].mxu0
      %v752 = vpop.f32.mrb[0].mxu0
      %v753 = vadd.f32 0.0, %v752
      %v754 = vpop.f32.mrb[0].mxu0
      %755 = vmatprep.mubr.bf16.mxu0 0
      %756 = vmatmul.mubr.bf16.gmra.mrb[0].mxu0 %v492
      %v757 = vpop.f32.mrb[0].mxu0
      %v758 = vadd.f32 0.0, %v757
      %v759 = vpop.f32.mrb[0].mxu0
      %v760 = vpop.f32.mrb[0].mxu0
      %v761 = vadd.f32 0.0, %v760
      %v762 = vpop.f32.mrb[0].mxu0
      %763 = vmatprep.mubr.bf16.mxu0 0
      %764 = vmatmul.mubr.bf16.gmra.mrb[0].mxu0 %v493
      %v765 = vpop.f32.mrb[0].mxu0
      %v766 = vadd.f32 0.0, %v765
      %v767 = vpop.f32.mrb[0].mxu0
      %v768 = vpop.f32.mrb[0].mxu0
      %v769 = vadd.f32 0.0, %v768
      %v770 = vpop.f32.mrb[0].mxu0
      %771 = vmatprep.mubr.bf16.mxu0 0
      %772 = vmatmul.mubr.bf16.gmra.mrb[0].mxu0 %v494
      %v773 = vpop.f32.mrb[0].mxu0
      %v774 = vadd.f32 0.0, %v773
      %v775 = vpop.f32.mrb[0].mxu0
      %v776 = vpop.f32.mrb[0].mxu0
      %v777 = vadd.f32 0.0, %v776
      %v778 = vpop.f32.mrb[0].mxu0
      %779 = vmatprep.mubr.bf16.mxu0 0
      %780 = vmatmul.mubr.bf16.gmra.mrb[0].mxu0 %v495
      %v781 = vpop.f32.mrb[0].mxu0
      %v782 = vadd.f32 0.0, %v781
      %v783 = vpop.f32.mrb[0].mxu0
      %v784 = vpop.f32.mrb[0].mxu0
      %v785 = vadd.f32 0.0, %v784
      %v786 = vpop.f32.mrb[0].mxu0
      %787 = vmatprep.mubr.bf16.mxu0 0
      %788 = vmatmul.mubr.bf16.gmra.mrb[0].mxu0 %v496
      %v789 = vpop.f32.mrb[0].mxu0
      %v790 = vadd.f32 0.0, %v789
      %v791 = vpop.f32.mrb[0].mxu0
      %v792 = vpop.f32.mrb[0].mxu0
      %v793 = vadd.f32 0.0, %v792
      %v794 = vpop.f32.mrb[0].mxu0
      %795 = vmatprep.mubr.bf16.mxu0 0
      %796 = vmatmul.mubr.bf16.gmra.mrb[0].mxu0 %v497
      %v797 = vpop.f32.mrb[0].mxu0
      %v798 = vadd.f32 0.0, %v797
      %v799 = vpop.f32.mrb[0].mxu0
      %v800 = vpop.f32.mrb[0].mxu0
      %v801 = vadd.f32 0.0, %v800
      %v802 = vpop.f32.mrb[0].mxu0
      %803 = vmatprep.mubr.bf16.mxu0 0
      %804 = vmatmul.mubr.bf16.gmra.mrb[0].mxu0 %v498
      %v805 = vpop.f32.mrb[0].mxu0
      %v806 = vadd.f32 0.0, %v805
      %v807 = vpop.f32.mrb[0].mxu0
      %v808 = vpop.f32.mrb[0].mxu0
      %v809 = vadd.f32 0.0, %v808
      %v810 = vpop.f32.mrb[0].mxu0
      %811 = vmatprep.mubr.bf16.mxu0 0
      %812 = vmatmul.mubr.bf16.gmra.mrb[0].mxu0 %v499
      %v813 = vpop.f32.mrb[0].mxu0
      %v814 = vadd.f32 0.0, %v813
      %v815 = vpop.f32.mrb[0].mxu0
      %v816 = vpop.f32.mrb[0].mxu0
      %v817 = vadd.f32 0.0, %v816
      %v818 = vpop.f32.mrb[0].mxu0
      %819 = vmatprep.mubr.bf16.mxu0 0
      %820 = vmatmul.mubr.bf16.gmra.mrb[0].mxu0 %v500
      %v821 = vpop.f32.mrb[0].mxu0
      %v822 = vadd.f32 0.0, %v821
      %v823 = vpop.f32.mrb[0].mxu0
      %v824 = vpop.f32.mrb[0].mxu0
      %v825 = vadd.f32 0.0, %v824
      %v826 = vpop.f32.mrb[0].mxu0
      %827 = vmatprep.mubr.bf16.mxu0 0
      %828 = vmatmul.mubr.bf16.gmra.mrb[0].mxu0 %v501
      %v829 = vpop.f32.mrb[0].mxu0
      %v830 = vadd.f32 0.0, %v829
      %v831 = vpop.f32.mrb[0].mxu0
      %v832 = vpop.f32.mrb[0].mxu0
      %v833 = vadd.f32 0.0, %v832
      %v834 = vpop.f32.mrb[0].mxu0
      %835 = vmatprep.mubr.bf16.mxu0 0
      %836 = vmatmul.mubr.bf16.gmra.mrb[0].mxu0 %v502
      %v837 = vpop.f32.mrb[0].mxu0
      %v838 = vadd.f32 0.0, %v837
      %v839 = vpop.f32.mrb[0].mxu0
      %v840 = vpop.f32.mrb[0].mxu0
      %v841 = vadd.f32 0.0, %v840
      %v842 = vpop.f32.mrb[0].mxu0
      %843 = vmatprep.mubr.bf16.mxu0 0
      %844 = vmatmul.mubr.bf16.gmra.mrb[0].mxu0 %v503
      %v845 = vpop.f32.mrb[0].mxu0
      %v846 = vadd.f32 0.0, %v845
      %v847 = vpop.f32.mrb[0].mxu0
      %v848 = vpop.f32.mrb[0].mxu0
      %v849 = vadd.f32 0.0, %v848
      %v850 = vpop.f32.mrb[0].mxu0
      %851 = vmatprep.mubr.bf16.mxu0 0
      %852 = vmatmul.mubr.bf16.gmra.mrb[0].mxu0 %v504
      %v853 = vpop.f32.mrb[0].mxu0
      %v854 = vadd.f32 0.0, %v853
      %v855 = vpop.f32.mrb[0].mxu0
      %v856 = vpop.f32.mrb[0].mxu0
      %v857 = vadd.f32 0.0, %v856
      %v858 = vpop.f32.mrb[0].mxu0
      %859 = vmatprep.mubr.bf16.mxu0 0
      %860 = vmatmul.mubr.bf16.gmra.mrb[0].mxu0 %v505
      %v861 = vpop.f32.mrb[0].mxu0
      %v862 = vadd.f32 0.0, %v861
      %v863 = vpop.f32.mrb[0].mxu0
      %v864 = vpop.f32.mrb[0].mxu0
      %v865 = vadd.f32 0.0, %v864
      %v866 = vpop.f32.mrb[0].mxu0
      %867 = vmatprep.mubr.bf16.mxu0 0
      %868 = vmatmul.mubr.bf16.gmra.mrb[0].mxu0 %v506
      %v869 = vpop.f32.mrb[0].mxu0
      %v870 = vadd.f32 0.0, %v869
      %v871 = vpop.f32.mrb[0].mxu0
      %v872 = vpop.f32.mrb[0].mxu0
      %v873 = vadd.f32 0.0, %v872
      %v874 = vpop.f32.mrb[0].mxu0
      %875 = vdwg.mxu0
      %v876 = vld [vmem:[%s253] sm:$0x1]
      %v878 = vlaneseq
      %v879 = vshrl.u32 %v878, 7
      %v880 = vsub.s32 0, %v879
      %v881 = vrot.slane %v876, %v880
      %v883 = vmul.f32 %v622, %v881
      %v884 = vmul.f32 %v625, %v881
      %v885 = vmul.f32 %v630, %v881
      %v886 = vmul.f32 %v633, %v881
      %v887 = vmul.f32 %v638, %v881
      %v888 = vmul.f32 %v641, %v881
      %v889 = vmul.f32 %v646, %v881
      %v890 = vmul.f32 %v649, %v881
      %v891 = vmul.f32 %v654, %v881
      %v892 = vmul.f32 %v657, %v881
      %v893 = vmul.f32 %v662, %v881
      %v894 = vmul.f32 %v665, %v881
      %v895 = vmul.f32 %v670, %v881
      %v896 = vmul.f32 %v673, %v881
      %v897 = vmul.f32 %v678, %v881
      %v898 = vmul.f32 %v681, %v881
      %v899 = vmul.f32 %v686, %v881
      %v900 = vmul.f32 %v689, %v881
      %v901 = vmul.f32 %v694, %v881
      %v902 = vmul.f32 %v697, %v881
      %v903 = vmul.f32 %v702, %v881
      %v904 = vmul.f32 %v705, %v881
      %v905 = vmul.f32 %v710, %v881
      %v906 = vmul.f32 %v713, %v881
      %v907 = vmul.f32 %v718, %v881
      %v908 = vmul.f32 %v721, %v881
      %v909 = vmul.f32 %v726, %v881
      %v910 = vmul.f32 %v729, %v881
      %v911 = vmul.f32 %v734, %v881
      %v912 = vmul.f32 %v737, %v881
      %v913 = vmul.f32 %v742, %v881
      %v914 = vmul.f32 %v745, %v881
      %v915 = vmul.f32 %v750, %v881
      %v916 = vmul.f32 %v753, %v881
      %v917 = vmul.f32 %v758, %v881
      %v918 = vmul.f32 %v761, %v881
      %v919 = vmul.f32 %v766, %v881
      %v920 = vmul.f32 %v769, %v881
      %v921 = vmul.f32 %v774, %v881
      %v922 = vmul.f32 %v777, %v881
      %v923 = vmul.f32 %v782, %v881
      %v924 = vmul.f32 %v785, %v881
      %v925 = vmul.f32 %v790, %v881
      %v926 = vmul.f32 %v793, %v881
      %v927 = vmul.f32 %v798, %v881
      %v928 = vmul.f32 %v801, %v881
      %v929 = vmul.f32 %v806, %v881
      %v930 = vmul.f32 %v809, %v881
      %v931 = vmul.f32 %v814, %v881
      %v932 = vmul.f32 %v817, %v881
      %v933 = vmul.f32 %v822, %v881
      %v934 = vmul.f32 %v825, %v881
      %v935 = vmul.f32 %v830, %v881
      %v936 = vmul.f32 %v833, %v881
      %v937 = vmul.f32 %v838, %v881
      %v938 = vmul.f32 %v841, %v881
      %v939 = vmul.f32 %v846, %v881
      %v940 = vmul.f32 %v849, %v881
      %v941 = vmul.f32 %v854, %v881
      %v942 = vmul.f32 %v857, %v881
      %v943 = vmul.f32 %v862, %v881
      %v944 = vmul.f32 %v865, %v881
      %v945 = vmul.f32 %v870, %v881
      %v946 = vmul.f32 %v873, %v881
      %v947 = vld [vmem:[%s256] sm:$0x1]
      %v949 = vlaneseq
      %v950 = vshrl.u32 %v949, 7
      %v951 = vsub.s32 0, %v950
      %v952 = vrot.slane %v947, %v951
      %v954 = vadd.f32 %v883, %v952
      %v955 = vadd.f32 %v884, %v952
      %v956 = vadd.f32 %v885, %v952
      %v957 = vadd.f32 %v886, %v952
      %v958 = vadd.f32 %v887, %v952
      %v959 = vadd.f32 %v888, %v952
      %v960 = vadd.f32 %v889, %v952
      %v961 = vadd.f32 %v890, %v952
      %v962 = vadd.f32 %v891, %v952
      %v963 = vadd.f32 %v892, %v952
      %v964 = vadd.f32 %v893, %v952
      %v965 = vadd.f32 %v894, %v952
      %v966 = vadd.f32 %v895, %v952
      %v967 = vadd.f32 %v896, %v952
      %v968 = vadd.f32 %v897, %v952
      %v969 = vadd.f32 %v898, %v952
      %v970 = vadd.f32 %v899, %v952
      %v971 = vadd.f32 %v900, %v952
      %v972 = vadd.f32 %v901, %v952
      %v973 = vadd.f32 %v902, %v952
      %v974 = vadd.f32 %v903, %v952
      %v975 = vadd.f32 %v904, %v952
      %v976 = vadd.f32 %v905, %v952
      %v977 = vadd.f32 %v906, %v952
      %v978 = vadd.f32 %v907, %v952
      %v979 = vadd.f32 %v908, %v952
      %v980 = vadd.f32 %v909, %v952
      %v981 = vadd.f32 %v910, %v952
      %v982 = vadd.f32 %v911, %v952
      %v983 = vadd.f32 %v912, %v952
      %v984 = vadd.f32 %v913, %v952
      %v985 = vadd.f32 %v914, %v952
      %v986 = vadd.f32 %v915, %v952
      %v987 = vadd.f32 %v916, %v952
      %v988 = vadd.f32 %v917, %v952
      %v989 = vadd.f32 %v918, %v952
      %v990 = vadd.f32 %v919, %v952
      %v991 = vadd.f32 %v920, %v952
      %v992 = vadd.f32 %v921, %v952
      %v993 = vadd.f32 %v922, %v952
      %v994 = vadd.f32 %v923, %v952
      %v995 = vadd.f32 %v924, %v952
      %v996 = vadd.f32 %v925, %v952
      %v997 = vadd.f32 %v926, %v952
      %v998 = vadd.f32 %v927, %v952
      %v999 = vadd.f32 %v928, %v952
      %v1000 = vadd.f32 %v929, %v952
      %v1001 = vadd.f32 %v930, %v952
      %v1002 = vadd.f32 %v931, %v952
      %v1003 = vadd.f32 %v932, %v952
      %v1004 = vadd.f32 %v933, %v952
      %v1005 = vadd.f32 %v934, %v952
      %v1006 = vadd.f32 %v935, %v952
      %v1007 = vadd.f32 %v936, %v952
      %v1008 = vadd.f32 %v937, %v952
      %v1009 = vadd.f32 %v938, %v952
      %v1010 = vadd.f32 %v939, %v952
      %v1011 = vadd.f32 %v940, %v952
      %v1012 = vadd.f32 %v941, %v952
      %v1013 = vadd.f32 %v942, %v952
      %v1014 = vadd.f32 %v943, %v952
      %v1015 = vadd.f32 %v944, %v952
      %v1016 = vadd.f32 %v945, %v952
      %v1017 = vadd.f32 %v946, %v952
      %v1018 = vpack.c.bf16 %v955, %v954
      %v1019 = vpack.c.bf16 %v957, %v956
      %v1020 = vpack.c.bf16 %v959, %v958
      %v1021 = vpack.c.bf16 %v961, %v960
      %v1022 = vpack.c.bf16 %v963, %v962
      %v1023 = vpack.c.bf16 %v965, %v964
      %v1024 = vpack.c.bf16 %v967, %v966
      %v1025 = vpack.c.bf16 %v969, %v968
      %v1026 = vpack.c.bf16 %v971, %v970
      %v1027 = vpack.c.bf16 %v973, %v972
      %v1028 = vpack.c.bf16 %v975, %v974
      %v1029 = vpack.c.bf16 %v977, %v976
      %v1030 = vpack.c.bf16 %v979, %v978
      %v1031 = vpack.c.bf16 %v981, %v980
      %v1032 = vpack.c.bf16 %v983, %v982
      %v1033 = vpack.c.bf16 %v985, %v984
      %v1034 = vpack.c.bf16 %v987, %v986
      %v1035 = vpack.c.bf16 %v989, %v988
      %v1036 = vpack.c.bf16 %v991, %v990
      %v1037 = vpack.c.bf16 %v993, %v992
      %v1038 = vpack.c.bf16 %v995, %v994
      %v1039 = vpack.c.bf16 %v997, %v996
      %v1040 = vpack.c.bf16 %v999, %v998
      %v1041 = vpack.c.bf16 %v1001, %v1000
      %v1042 = vpack.c.bf16 %v1003, %v1002
      %v1043 = vpack.c.bf16 %v1005, %v1004
      %v1044 = vpack.c.bf16 %v1007, %v1006
      %v1045 = vpack.c.bf16 %v1009, %v1008
      %v1046 = vpack.c.bf16 %v1011, %v1010
      %v1047 = vpack.c.bf16 %v1013, %v1012
      %v1048 = vpack.c.bf16 %v1015, %v1014
      %v1049 = vpack.c.bf16 %v1017, %v1016
      %v1082 = vunpack.c.l.b16 %v1018
      %v1083 = vunpack.c.h.b16 %v1018
      %v1084 = vunpack.c.l.b16 %v1019
      %v1085 = vunpack.c.h.b16 %v1019
      %v1086 = vunpack.c.l.b16 %v1020
      %v1087 = vunpack.c.h.b16 %v1020
      %v1088 = vunpack.c.l.b16 %v1021
      %v1089 = vunpack.c.h.b16 %v1021
      %v1090 = vunpack.c.l.b16 %v1022
      %v1091 = vunpack.c.h.b16 %v1022
      %v1092 = vunpack.c.l.b16 %v1023
      %v1093 = vunpack.c.h.b16 %v1023
      %v1094 = vunpack.c.l.b16 %v1024
      %v1095 = vunpack.c.h.b16 %v1024
      %v1096 = vunpack.c.l.b16 %v1025
      %v1097 = vunpack.c.h.b16 %v1025
      %v1098 = vunpack.c.l.b16 %v1026
      %v1099 = vunpack.c.h.b16 %v1026
      %v1100 = vunpack.c.l.b16 %v1027
      %v1101 = vunpack.c.h.b16 %v1027
      %v1102 = vunpack.c.l.b16 %v1028
      %v1103 = vunpack.c.h.b16 %v1028
      %v1104 = vunpack.c.l.b16 %v1029
      %v1105 = vunpack.c.h.b16 %v1029
      %v1106 = vunpack.c.l.b16 %v1030
      %v1107 = vunpack.c.h.b16 %v1030
      %v1108 = vunpack.c.l.b16 %v1031
      %v1109 = vunpack.c.h.b16 %v1031
      %v1110 = vunpack.c.l.b16 %v1032
      %v1111 = vunpack.c.h.b16 %v1032
      %v1112 = vunpack.c.l.b16 %v1033
      %v1113 = vunpack.c.h.b16 %v1033
      %v1114 = vunpack.c.l.b16 %v1034
      %v1115 = vunpack.c.h.b16 %v1034
      %v1116 = vunpack.c.l.b16 %v1035
      %v1117 = vunpack.c.h.b16 %v1035
      %v1118 = vunpack.c.l.b16 %v1036
      %v1119 = vunpack.c.h.b16 %v1036
      %v1120 = vunpack.c.l.b16 %v1037
      %v1121 = vunpack.c.h.b16 %v1037
      %v1122 = vunpack.c.l.b16 %v1038
      %v1123 = vunpack.c.h.b16 %v1038
      %v1124 = vunpack.c.l.b16 %v1039
      %v1125 = vunpack.c.h.b16 %v1039
      %v1126 = vunpack.c.l.b16 %v1040
      %v1127 = vunpack.c.h.b16 %v1040
      %v1128 = vunpack.c.l.b16 %v1041
      %v1129 = vunpack.c.h.b16 %v1041
      %v1130 = vunpack.c.l.b16 %v1042
      %v1131 = vunpack.c.h.b16 %v1042
      %v1132 = vunpack.c.l.b16 %v1043
      %v1133 = vunpack.c.h.b16 %v1043
      %v1134 = vunpack.c.l.b16 %v1044
      %v1135 = vunpack.c.h.b16 %v1044
      %v1136 = vunpack.c.l.b16 %v1045
      %v1137 = vunpack.c.h.b16 %v1045
      %v1138 = vunpack.c.l.b16 %v1046
      %v1139 = vunpack.c.h.b16 %v1046
      %v1140 = vunpack.c.l.b16 %v1047
      %v1141 = vunpack.c.h.b16 %v1047
      %v1142 = vunpack.c.l.b16 %v1048
      %v1143 = vunpack.c.h.b16 %v1048
      %v1144 = vunpack.c.l.b16 %v1049
      %v1145 = vunpack.c.h.b16 %v1049
      %v1146 = vpack.c.b16 %v1082, %v1082
      %v1147 = vpack.c.b16 %v1083, %v1083
      %v1148 = vpack.c.b16 %v1084, %v1084
      %v1149 = vpack.c.b16 %v1085, %v1085
      %v1150 = vpack.c.b16 %v1086, %v1086
      %v1151 = vpack.c.b16 %v1087, %v1087
      %v1152 = vpack.c.b16 %v1088, %v1088
      %v1153 = vpack.c.b16 %v1089, %v1089
      %v1154 = vpack.c.b16 %v1090, %v1090
      %v1155 = vpack.c.b16 %v1091, %v1091
      %v1156 = vpack.c.b16 %v1092, %v1092
      %v1157 = vpack.c.b16 %v1093, %v1093
      %v1158 = vpack.c.b16 %v1094, %v1094
      %v1159 = vpack.c.b16 %v1095, %v1095
      %v1160 = vpack.c.b16 %v1096, %v1096
      %v1161 = vpack.c.b16 %v1097, %v1097
      %v1162 = vpack.c.b16 %v1098, %v1098
      %v1163 = vpack.c.b16 %v1099, %v1099
      %v1164 = vpack.c.b16 %v1100, %v1100
      %v1165 = vpack.c.b16 %v1101, %v1101
      %v1166 = vpack.c.b16 %v1102, %v1102
      %v1167 = vpack.c.b16 %v1103, %v1103
      %v1168 = vpack.c.b16 %v1104, %v1104
      %v1169 = vpack.c.b16 %v1105, %v1105
      %v1170 = vpack.c.b16 %v1106, %v1106
      %v1171 = vpack.c.b16 %v1107, %v1107
      %v1172 = vpack.c.b16 %v1108, %v1108
      %v1173 = vpack.c.b16 %v1109, %v1109
      %v1174 = vpack.c.b16 %v1110, %v1110
      %v1175 = vpack.c.b16 %v1111, %v1111
      %v1176 = vpack.c.b16 %v1112, %v1112
      %v1177 = vpack.c.b16 %v1113, %v1113
      %v1178 = vpack.c.b16 %v1114, %v1114
      %v1179 = vpack.c.b16 %v1115, %v1115
      %v1180 = vpack.c.b16 %v1116, %v1116
      %v1181 = vpack.c.b16 %v1117, %v1117
      %v1182 = vpack.c.b16 %v1118, %v1118
      %v1183 = vpack.c.b16 %v1119, %v1119
      %v1184 = vpack.c.b16 %v1120, %v1120
      %v1185 = vpack.c.b16 %v1121, %v1121
      %v1186 = vpack.c.b16 %v1122, %v1122
      %v1187 = vpack.c.b16 %v1123, %v1123
      %v1188 = vpack.c.b16 %v1124, %v1124
      %v1189 = vpack.c.b16 %v1125, %v1125
      %v1190 = vpack.c.b16 %v1126, %v1126
      %v1191 = vpack.c.b16 %v1127, %v1127
      %v1192 = vpack.c.b16 %v1128, %v1128
      %v1193 = vpack.c.b16 %v1129, %v1129
      %v1194 = vpack.c.b16 %v1130, %v1130
      %v1195 = vpack.c.b16 %v1131, %v1131
      %v1196 = vpack.c.b16 %v1132, %v1132
      %v1197 = vpack.c.b16 %v1133, %v1133
      %v1198 = vpack.c.b16 %v1134, %v1134
      %v1199 = vpack.c.b16 %v1135, %v1135
      %v1200 = vpack.c.b16 %v1136, %v1136
      %v1201 = vpack.c.b16 %v1137, %v1137
      %v1202 = vpack.c.b16 %v1138, %v1138
      %v1203 = vpack.c.b16 %v1139, %v1139
      %v1204 = vpack.c.b16 %v1140, %v1140
      %v1205 = vpack.c.b16 %v1141, %v1141
      %v1206 = vpack.c.b16 %v1142, %v1142
      %v1207 = vpack.c.b16 %v1143, %v1143
      %v1208 = vpack.c.b16 %v1144, %v1144
      %v1209 = vpack.c.b16 %v1145, %v1145
      %1274 = vst [vmem:[%s264] sm:$0xf] %v1146
      %1275 = vst [vmem:[%s264 + $0x4] sm:$0xf] %v1147
      %1276 = vst [vmem:[%s264 + $0x8] sm:$0xf] %v1148
      %1277 = vst [vmem:[%s264 + $0xc] sm:$0xf] %v1149
      %1278 = vst [vmem:[%s264 + $0x10] sm:$0xf] %v1150
      %1279 = vst [vmem:[%s264 + $0x14] sm:$0xf] %v1151
      %1280 = vst [vmem:[%s264 + $0x18] sm:$0xf] %v1152
      %1281 = vst [vmem:[%s264 + $0x1c] sm:$0xf] %v1153
      %1282 = vst [vmem:[%s264 + $0x20] sm:$0xf] %v1154
      %1283 = vst [vmem:[%s264 + $0x24] sm:$0xf] %v1155
      %1284 = vst [vmem:[%s264 + $0x28] sm:$0xf] %v1156
      %1285 = vst [vmem:[%s264 + $0x2c] sm:$0xf] %v1157
      %1286 = vst [vmem:[%s264 + $0x30] sm:$0xf] %v1158
      %1287 = vst [vmem:[%s264 + $0x34] sm:$0xf] %v1159
      %1288 = vst [vmem:[%s264 + $0x38] sm:$0xf] %v1160
      %1289 = vst [vmem:[%s264 + $0x3c] sm:$0xf] %v1161
      %1290 = vst [vmem:[%s264 + $0x40] sm:$0xf] %v1162
      %1291 = vst [vmem:[%s264 + $0x44] sm:$0xf] %v1163
      %1292 = vst [vmem:[%s264 + $0x48] sm:$0xf] %v1164
      %1293 = vst [vmem:[%s264 + $0x4c] sm:$0xf] %v1165
      %1294 = vst [vmem:[%s264 + $0x50] sm:$0xf] %v1166
      %1295 = vst [vmem:[%s264 + $0x54] sm:$0xf] %v1167
      %1296 = vst [vmem:[%s264 + $0x58] sm:$0xf] %v1168
      %1297 = vst [vmem:[%s264 + $0x5c] sm:$0xf] %v1169
      %1298 = vst [vmem:[%s264 + $0x60] sm:$0xf] %v1170
      %1299 = vst [vmem:[%s264 + $0x64] sm:$0xf] %v1171
      %1300 = vst [vmem:[%s264 + $0x68] sm:$0xf] %v1172
      %1301 = vst [vmem:[%s264 + $0x6c] sm:$0xf] %v1173
      %1302 = vst [vmem:[%s264 + $0x70] sm:$0xf] %v1174
      %1303 = vst [vmem:[%s264 + $0x74] sm:$0xf] %v1175
      %1304 = vst [vmem:[%s264 + $0x78] sm:$0xf] %v1176
      %1305 = vst [vmem:[%s264 + $0x7c] sm:$0xf] %v1177
      %1306 = vst [vmem:[%s264 + $0x80] sm:$0xf] %v1178
      %1307 = vst [vmem:[%s264 + $0x84] sm:$0xf] %v1179
      %1308 = vst [vmem:[%s264 + $0x88] sm:$0xf] %v1180
      %1309 = vst [vmem:[%s264 + $0x8c] sm:$0xf] %v1181
      %1310 = vst [vmem:[%s264 + $0x90] sm:$0xf] %v1182
      %1311 = vst [vmem:[%s264 + $0x94] sm:$0xf] %v1183
      %1312 = vst [vmem:[%s264 + $0x98] sm:$0xf] %v1184
      %1313 = vst [vmem:[%s264 + $0x9c] sm:$0xf] %v1185
      %1314 = vst [vmem:[%s264 + $0xa0] sm:$0xf] %v1186
      %1315 = vst [vmem:[%s264 + $0xa4] sm:$0xf] %v1187
      %1316 = vst [vmem:[%s264 + $0xa8] sm:$0xf] %v1188
      %1317 = vst [vmem:[%s264 + $0xac] sm:$0xf] %v1189
      %1318 = vst [vmem:[%s264 + $0xb0] sm:$0xf] %v1190
      %1319 = vst [vmem:[%s264 + $0xb4] sm:$0xf] %v1191
      %1320 = vst [vmem:[%s264 + $0xb8] sm:$0xf] %v1192
      %1321 = vst [vmem:[%s264 + $0xbc] sm:$0xf] %v1193
      %1322 = vst [vmem:[%s264 + $0xc0] sm:$0xf] %v1194
      %1323 = vst [vmem:[%s264 + $0xc4] sm:$0xf] %v1195
      %1324 = vst [vmem:[%s264 + $0xc8] sm:$0xf] %v1196
      %1325 = vst [vmem:[%s264 + $0xcc] sm:$0xf] %v1197
      %1326 = vst [vmem:[%s264 + $0xd0] sm:$0xf] %v1198
      %1327 = vst [vmem:[%s264 + $0xd4] sm:$0xf] %v1199
      %1328 = vst [vmem:[%s264 + $0xd8] sm:$0xf] %v1200
      %1329 = vst [vmem:[%s264 + $0xdc] sm:$0xf] %v1201
      %1330 = vst [vmem:[%s264 + $0xe0] sm:$0xf] %v1202
      %1331 = vst [vmem:[%s264 + $0xe4] sm:$0xf] %v1203
      %1332 = vst [vmem:[%s264 + $0xe8] sm:$0xf] %v1204
      %1333 = vst [vmem:[%s264 + $0xec] sm:$0xf] %v1205
      %1334 = vst [vmem:[%s264 + $0xf0] sm:$0xf] %v1206
      %1335 = vst [vmem:[%s264 + $0xf4] sm:$0xf] %v1207
      %1336 = vst [vmem:[%s264 + $0xf8] sm:$0xf] %v1208
      %1337 = vst [vmem:[%s264 + $0xfc] sm:$0xf] %v1209
      %s1338 = smul.u32 64, %s19
      %p1339 = scmp.lt.s32.totalorder %s1338, 2047
      %s1340 = scalar_select %p1339, %s1338, 2047
      %p1341 = scmp.lt.s32.totalorder %s20, 0
      %s1342 = scalar_select %p1341, %s20, 0
      %s1343 = sadd.s32 %s1342, %s1340
      %s1344 = smul.addr %s1343, 4
      %s1345 = scalar_lea.vmem %s4, %s1344
      // Predicated region
      $region37: #{generator_forward.8} parent=35 // pred_check
        %p1346 = pneg %p151
      $region38: #{generator_forward.8} parent=35 // pred_check_branch
        %1348 = sbr.rel (%p1346) target = $region40
      $region39: #{generator_forward.8} parent=35 // pred_region
        %s1349 = smul.u32 64, %s19
      $region40: #{generator_forward.8} parent=35 // pred_fallthru
        _
    $region36: #{generator_forward.8} parent=5 // pred_fallthru
      _
    %p1350 = scmp.le.s32.totalorder 2, %s10
    // Predicated region
    $region41: #{generator_forward.8} parent=5 // pred_check
      %p1351 = pneg %p1350
    $region42: #{generator_forward.8} parent=5 // pred_check_branch
      %1353 = sbr.rel (%p1351) target = $region44
    $region43: #{generator_forward.8} parent=5 // pred_region
      %s1354 = ssub.s32 %s10, 2
      // Predicated region
      $region45: #{generator_forward.8} parent=43 // pred_check
        %p1355 = pneg %p157
      $region46: #{generator_forward.8} parent=43 // pred_check_branch
        %1357 = sbr.rel (%p1355) target = $region48
      $region47: #{generator_forward.8} parent=43 // pred_region
        %s1358 = smul.u32 64, %s21
        %p1359 = scmp.lt.s32.totalorder %s1358, 2047
        %s1360 = scalar_select %p1359, %s1358, 2047
        %p1361 = scmp.lt.s32.totalorder %s22, 0
        %s1362 = scalar_select %p1361, %s22, 0
        %s1363 = sadd.s32 %s1362, %s1360
        %s1364 = smul.addr %s1363, 4
        %s1365 = scalar_lea.vmem %s4, %s1364
      $region48: #{generator_forward.8} parent=43 // pred_fallthru
        _
    $region44: #{generator_forward.8} parent=5 // pred_fallthru
      _
  $region6: #{generator_forward.8} parent=0 // loop_footer
    %s14 = sadd.s32 1, %s10
  $region7: #{generator_forward.8} parent=0 // loop_footer_branch
    %9 = sbr.rel target = $region3
  $region8: #{generator_forward.8} parent=0 // loop_exit
    _

// kernel: generator_forward.9
$region0: #{generator_forward.9}
  #allocation0 [shape = 'u32[]', space=smem, size = 0x4, offset = 0x4, fixed_abs, tag = 'smem constant byte address 0x4 - core index']
  #allocation1 [shape = 'u32[144,128]{1,0:T(1,128)}', space=vmem, size = 0x12000, scoped, tag = 'internal scratch']
  %s0 = inlined_call_operand.vmem [shape: bf16[4096,128], index: 0, kind: input, shape index: {}]
  %s1 = inlined_call_operand.vmem [shape: bf16[128,128], index: 1, kind: input, shape index: {}]
  %s2 = inlined_call_operand.vmem [shape: f32[1,128], index: 2, kind: input, shape index: {}]
  %s3 = inlined_call_operand.vmem [shape: f32[1,128], index: 3, kind: input, shape index: {}]
  %s4 = inlined_call_operand.vmem [shape: bf16[4096,128], index: 4, kind: output, shape index: {}]
  %s5 = sld [smem:[#allocation0]]
  $region49: #{generator_forward.9} parent=0
    _
  %s7 = ssub.s32 1, %s5
  %s8 = scalar_select 0, %s7, %s5
  loop: start=0, step=1, limit=10
  $region2: #{generator_forward.9} parent=0 // loop_pre_header
    _
  $region3: #{generator_forward.9} parent=0 // loop_header
    %s10 = sphi 0, %s14
    %p11 = scmp.ge.s32.totalorder %s10, 10
    %s17 = sphi 0, %s29
    %s18 = sphi 0, %s25
    %s19 = sphi 0, %s17
    %s20 = sphi 0, %s18
    %s21 = sphi 0, %s19
    %s22 = sphi 0, %s20
    %s32 = sphi 0, %s34
    %s35 = sphi 0, %s32
    %s36 = sphi 0, %s35
    %s52 = sphi 0, %s36
    %s58 = sphi 0, %s60
    %s61 = sphi 0, %s58
    %s62 = sphi 0, %s61
    %s78 = sphi 0, %s62
    %s84 = sphi 0, %s86
    %s87 = sphi 0, %s84
    %s88 = sphi 0, %s87
    %s104 = sphi 0, %s88
    %s110 = sphi 0, %s112
    %s113 = sphi 0, %s110
    %s114 = sphi 0, %s113
    %s130 = sphi 0, %s114
    %s138 = sphi 0, %s140
    %s141 = sphi 0, %s138
    %s142 = sphi 0, %s141
    %s158 = sphi 0, %s142
  $region4: #{generator_forward.9} parent=0 // loop_header_branch
    %13 = sbr.rel (%p11) target = $region8
  $region5: #{generator_forward.9} parent=0 // loop_body
    %s15 = ssub.s32 %s10, 1
    %s16 = ssub.s32 %s10, 2
    %s23 = sadd.s32 1, %s18
    %p24 = scmp.ge.s32.totalorder %s23, 1
    %s25 = scalar_select %p24, 0, %s23
    %s26 = sadd.s32 1, %s17
    %s27 = scalar_select %p24, %s26, %s17
    %p28 = scmp.ge.s32.totalorder %s27, 8
    %s29 = scalar_select %p28, 0, %s27
    %s30 = ssub.s32 %s17, %s29
    %p31 = scmp.eq.s32.totalorder %s30, 0
    %s33 = sadd.s32 %s32, 1
    %s34 = scalar_select %p31, %s32, %s33
    %p37 = pneg %p31
    %p38 = scmp.eq.s32.totalorder %s10, 7
    %p39 = por %p37, %p38
    %p40 = scmp.ne.s32.totalorder %s32, %s35
    %p41 = scmp.eq.s32.totalorder %s10, 0
    %p42 = por %p40, %p41
    %p43 = scmp.ne.s32.totalorder %s32, %s35
    %p44 = scmp.eq.s32.totalorder %s15, 7
    %p45 = por %p43, %p44
    %p46 = scmp.ne.s32.totalorder %s35, %s36
    %p47 = scmp.eq.s32.totalorder %s15, 0
    %p48 = por %p46, %p47
    %p49 = scmp.ne.s32.totalorder %s35, %s36
    %p50 = scmp.eq.s32.totalorder %s16, 7
    %p51 = por %p49, %p50
    %p53 = scmp.ne.s32.totalorder %s36, %s52
    %p54 = scmp.eq.s32.totalorder %s16, 0
    %p55 = por %p53, %p54
    %s56 = ssub.s32 %s18, %s25
    %p57 = scmp.eq.s32.totalorder %s56, 0
    %s59 = sadd.s32 %s58, 1
    %s60 = scalar_select %p57, %s58, %s59
    %p63 = pneg %p57
    %p64 = scmp.eq.s32.totalorder %s10, 7
    %p65 = por %p63, %p64
    %p66 = scmp.ne.s32.totalorder %s58, %s61
    %p67 = scmp.eq.s32.totalorder %s10, 0
    %p68 = por %p66, %p67
    %p69 = scmp.ne.s32.totalorder %s58, %s61
    %p70 = scmp.eq.s32.totalorder %s15, 7
    %p71 = por %p69, %p70
    %p72 = scmp.ne.s32.totalorder %s61, %s62
    %p73 = scmp.eq.s32.totalorder %s15, 0
    %p74 = por %p72, %p73
    %p75 = scmp.ne.s32.totalorder %s61, %s62
    %p76 = scmp.eq.s32.totalorder %s16, 7
    %p77 = por %p75, %p76
    %p79 = scmp.ne.s32.totalorder %s62, %s78
    %p80 = scmp.eq.s32.totalorder %s16, 0
    %p81 = por %p79, %p80
    %s82 = ssub.s32 %s18, %s25
    %p83 = scmp.eq.s32.totalorder %s82, 0
    %s85 = sadd.s32 %s84, 1
    %s86 = scalar_select %p83, %s84, %s85
    %p89 = pneg %p83
    %p90 = scmp.eq.s32.totalorder %s10, 7
    %p91 = por %p89, %p90
    %p92 = scmp.ne.s32.totalorder %s84, %s87
    %p93 = scmp.eq.s32.totalorder %s10, 0
    %p94 = por %p92, %p93
    %p95 = scmp.ne.s32.totalorder %s84, %s87
    %p96 = scmp.eq.s32.totalorder %s15, 7
    %p97 = por %p95, %p96
    %p98 = scmp.ne.s32.totalorder %s87, %s88
    %p99 = scmp.eq.s32.totalorder %s15, 0
    %p100 = por %p98, %p99
    %p101 = scmp.ne.s32.totalorder %s87, %s88
    %p102 = scmp.eq.s32.totalorder %s16, 7
    %p103 = por %p101, %p102
    %p105 = scmp.ne.s32.totalorder %s88, %s104
    %p106 = scmp.eq.s32.totalorder %s16, 0
    %p107 = por %p105, %p106
    %s108 = ssub.s32 %s18, %s25
    %p109 = scmp.eq.s32.totalorder %s108, 0
    %s111 = sadd.s32 %s110, 1
    %s112 = scalar_select %p109, %s110, %s111
    %p115 = pneg %p109
    %p116 = scmp.eq.s32.totalorder %s10, 7
    %p117 = por %p115, %p116
    %p118 = scmp.ne.s32.totalorder %s110, %s113
    %p119 = scmp.eq.s32.totalorder %s10, 0
    %p120 = por %p118, %p119
    %p121 = scmp.ne.s32.totalorder %s110, %s113
    %p122 = scmp.eq.s32.totalorder %s15, 7
    %p123 = por %p121, %p122
    %p124 = scmp.ne.s32.totalorder %s113, %s114
    %p125 = scmp.eq.s32.totalorder %s15, 0
    %p126 = por %p124, %p125
    %p127 = scmp.ne.s32.totalorder %s113, %s114
    %p128 = scmp.eq.s32.totalorder %s16, 7
    %p129 = por %p127, %p128
    %p131 = scmp.ne.s32.totalorder %s114, %s130
    %p132 = scmp.eq.s32.totalorder %s16, 0
    %p133 = por %p131, %p132
    %s134 = ssub.s32 %s17, %s29
    %s135 = ssub.s32 %s18, %s25
    %s136 = sor.u32 %s134, %s135
    %p137 = scmp.eq.s32.totalorder %s136, 0
    %s139 = sadd.s32 %s138, 1
    %s140 = scalar_select %p137, %s138, %s139
    %p143 = pneg %p137
    %p144 = scmp.eq.s32.totalorder %s10, 7
    %p145 = por %p143, %p144
    %p146 = scmp.ne.s32.totalorder %s138, %s141
    %p147 = scmp.eq.s32.totalorder %s10, 0
    %p148 = por %p146, %p147
    %p149 = scmp.ne.s32.totalorder %s138, %s141
    %p150 = scmp.eq.s32.totalorder %s15, 7
    %p151 = por %p149, %p150
    %p152 = scmp.ne.s32.totalorder %s141, %s142
    %p153 = scmp.eq.s32.totalorder %s15, 0
    %p154 = por %p152, %p153
    %p155 = scmp.ne.s32.totalorder %s141, %s142
    %p156 = scmp.eq.s32.totalorder %s16, 7
    %p157 = por %p155, %p156
    %p159 = scmp.ne.s32.totalorder %s142, %s158
    %p160 = scmp.eq.s32.totalorder %s16, 0
    %p161 = por %p159, %p160
    %p162 = scmp.le.s32.totalorder 1, %s10
    %p163 = scmp.lt.s32.totalorder %s10, 9
    %p164 = pnand %p162, %p163
    %p165 = pneg %p164
    // Predicated region
    $region9: #{generator_forward.9} parent=5 // pred_check
      _
    $region10: #{generator_forward.9} parent=5 // pred_check_branch
      %167 = sbr.rel (%p164) target = $region12
    $region11: #{generator_forward.9} parent=5 // pred_region
      %s168 = ssub.s32 %s10, 1
      // Predicated region
      $region13: #{generator_forward.9} parent=11 // pred_check
        %p169 = pneg %p74
      $region14: #{generator_forward.9} parent=11 // pred_check_branch
        %171 = sbr.rel (%p169) target = $region16
      $region15: #{generator_forward.9} parent=11 // pred_region
        %p172 = scmp.lt.s32.totalorder %s20, 0
        %s173 = scalar_select %p172, %s20, 0
        %s174 = smul.addr %s173, 4
        %s175 = scalar_lea.vmem %s1, %s174
      $region16: #{generator_forward.9} parent=11 // pred_fallthru
        _
      // Predicated region
      $region17: #{generator_forward.9} parent=11 // pred_check
        %p176 = pneg %p100
      $region18: #{generator_forward.9} parent=11 // pred_check_branch
        %178 = sbr.rel (%p176) target = $region20
      $region19: #{generator_forward.9} parent=11 // pred_region
        %p179 = scmp.lt.s32.totalorder %s20, 0
        %s180 = scalar_select %p179, %s20, 0
        %s181 = scalar_lea.vmem %s2, %s180
      $region20: #{generator_forward.9} parent=11 // pred_fallthru
        _
      // Predicated region
      $region21: #{generator_forward.9} parent=11 // pred_check
        %p182 = pneg %p126
      $region22: #{generator_forward.9} parent=11 // pred_check_branch
        %184 = sbr.rel (%p182) target = $region24
      $region23: #{generator_forward.9} parent=11 // pred_region
        %p185 = scmp.lt.s32.totalorder %s20, 0
        %s186 = scalar_select %p185, %s20, 0
        %s187 = scalar_lea.vmem %s3, %s186
      $region24: #{generator_forward.9} parent=11 // pred_fallthru
        _
    $region12: #{generator_forward.9} parent=5 // pred_fallthru
      _
    %p188 = scmp.lt.s32.totalorder %s10, 8
    // Predicated region
    $region25: #{generator_forward.9} parent=5 // pred_check
      %p189 = pneg %p188
    $region26: #{generator_forward.9} parent=5 // pred_check_branch
      %191 = sbr.rel (%p189) target = $region28
    $region27: #{generator_forward.9} parent=5 // pred_region
      // Predicated region
      $region29: #{generator_forward.9} parent=27 // pred_check
        %p192 = pneg %p42
      $region30: #{generator_forward.9} parent=27 // pred_check_branch
        %194 = sbr.rel (%p192) target = $region32
      $region31: #{generator_forward.9} parent=27 // pred_region
        %s195 = smul.u32 64, %s17
        %p196 = scmp.lt.s32.totalorder %s195, 511
        %s197 = scalar_select %p196, %s195, 511
        %s198 = smul.addr %s197, 4
        %s199 = scalar_lea.vmem %s0, %s198
        %s200 = smul.u32 64, %s17
      $region32: #{generator_forward.9} parent=27 // pred_fallthru
        _
    $region28: #{generator_forward.9} parent=5 // pred_fallthru
      _
    %p201 = scmp.le.s32.totalorder 1, %s10
    %p202 = scmp.lt.s32.totalorder %s10, 9
    %p203 = pnand %p201, %p202
    %p204 = pneg %p203
    // Predicated region
    $region33: #{generator_forward.9} parent=5 // pred_check
      _
    $region34: #{generator_forward.9} parent=5 // pred_check_branch
      %206 = sbr.rel (%p203) target = $region36
    $region35: #{generator_forward.9} parent=5 // pred_region
      %s207 = ssub.s32 %s10, 1
      %s208 = smul.u32 64, %s19
      %p209 = scmp.lt.s32.totalorder %s208, 511
      %s210 = scalar_select %p209, %s208, 511
      %s211 = smul.addr %s210, 4
      %s212 = scalar_lea.vmem %s0, %s211
      %p213 = pneg %p48
      %p214 = pneg %p45
      %p215 = scmp.lt.s32.totalorder %s20, 0
      %s216 = scalar_select %p215, %s20, 0
      %s217 = smul.addr %s216, 4
      %s218 = scalar_lea.vmem %s1, %s217
      %p219 = pneg %p74
      %p220 = pneg %p71
      %p221 = scmp.lt.s32.totalorder %s20, 0
      %s222 = scalar_select %p221, %s20, 0
      %s223 = scalar_lea.vmem %s2, %s222
      %p224 = pneg %p100
      %p225 = pneg %p97
      %p226 = scmp.lt.s32.totalorder %s20, 0
      %s227 = scalar_select %p226, %s20, 0
      %s228 = scalar_lea.vmem %s3, %s227
      %p229 = pneg %p126
      %p230 = pneg %p123
      %p231 = pneg %p154
      %p232 = pneg %p151
      %s233 = smul.u32 64, %s19
      %p234 = scmp.lt.s32.totalorder %s233, 511
      %s235 = scalar_select %p234, %s233, 511
      %p236 = scmp.lt.s32.totalorder %s20, 0
      %s237 = scalar_select %p236, %s20, 0
      %s238 = sadd.s32 %s237, %s235
      %s239 = smul.addr %s238, 4
      %s240 = scalar_lea.vmem %s4, %s239
      %s241 = smul.u32 64, %s19
      %p242 = scmp.lt.s32.totalorder %s241, 511
      %s243 = scalar_select %p242, %s241, 511
      %s244 = smul.addr %s243, 4
      %s245 = scalar_lea.vmem %s0, %s244
      %s246 = smul.u32 64, %s19
      %p247 = scmp.lt.s32.totalorder %s20, 0
      %s248 = scalar_select %p247, %s20, 0
      %s249 = smul.addr %s248, 4
      %s250 = scalar_lea.vmem %s1, %s249
      %p251 = scmp.lt.s32.totalorder %s20, 0
      %s252 = scalar_select %p251, %s20, 0
      %s253 = scalar_lea.vmem %s2, %s252
      %p254 = scmp.lt.s32.totalorder %s20, 0
      %s255 = scalar_select %p254, %s20, 0
      %s256 = scalar_lea.vmem %s3, %s255
      %s257 = smul.u32 64, %s19
      %p258 = scmp.lt.s32.totalorder %s257, 511
      %s259 = scalar_select %p258, %s257, 511
      %p260 = scmp.lt.s32.totalorder %s20, 0
      %s261 = scalar_select %p260, %s20, 0
      %s262 = sadd.s32 %s261, %s259
      %s263 = smul.addr %s262, 4
      %s264 = scalar_lea.vmem %s4, %s263
      %s265 = smul.u32 64, %s19
      %v268 = vld [vmem:[%s245] sm:$0xf]
      %v269 = vld [vmem:[%s245 + $0x4] sm:$0xf]
      %v270 = vld [vmem:[%s245 + $0x8] sm:$0xf]
      %v271 = vld [vmem:[%s245 + $0xc] sm:$0xf]
      %v272 = vld [vmem:[%s245 + $0x10] sm:$0xf]
      %v273 = vld [vmem:[%s245 + $0x14] sm:$0xf]
      %v274 = vld [vmem:[%s245 + $0x18] sm:$0xf]
      %v275 = vld [vmem:[%s245 + $0x1c] sm:$0xf]
      %v276 = vld [vmem:[%s245 + $0x20] sm:$0xf]
      %v277 = vld [vmem:[%s245 + $0x24] sm:$0xf]
      %v278 = vld [vmem:[%s245 + $0x28] sm:$0xf]
      %v279 = vld [vmem:[%s245 + $0x2c] sm:$0xf]
      %v280 = vld [vmem:[%s245 + $0x30] sm:$0xf]
      %v281 = vld [vmem:[%s245 + $0x34] sm:$0xf]
      %v282 = vld [vmem:[%s245 + $0x38] sm:$0xf]
      %v283 = vld [vmem:[%s245 + $0x3c] sm:$0xf]
      %v284 = vld [vmem:[%s245 + $0x40] sm:$0xf]
      %v285 = vld [vmem:[%s245 + $0x44] sm:$0xf]
      %v286 = vld [vmem:[%s245 + $0x48] sm:$0xf]
      %v287 = vld [vmem:[%s245 + $0x4c] sm:$0xf]
      %v288 = vld [vmem:[%s245 + $0x50] sm:$0xf]
      %v289 = vld [vmem:[%s245 + $0x54] sm:$0xf]
      %v290 = vld [vmem:[%s245 + $0x58] sm:$0xf]
      %v291 = vld [vmem:[%s245 + $0x5c] sm:$0xf]
      %v292 = vld [vmem:[%s245 + $0x60] sm:$0xf]
      %v293 = vld [vmem:[%s245 + $0x64] sm:$0xf]
      %v294 = vld [vmem:[%s245 + $0x68] sm:$0xf]
      %v295 = vld [vmem:[%s245 + $0x6c] sm:$0xf]
      %v296 = vld [vmem:[%s245 + $0x70] sm:$0xf]
      %v297 = vld [vmem:[%s245 + $0x74] sm:$0xf]
      %v298 = vld [vmem:[%s245 + $0x78] sm:$0xf]
      %v299 = vld [vmem:[%s245 + $0x7c] sm:$0xf]
      %v300 = vld [vmem:[%s245 + $0x80] sm:$0xf]
      %v301 = vld [vmem:[%s245 + $0x84] sm:$0xf]
      %v302 = vld [vmem:[%s245 + $0x88] sm:$0xf]
      %v303 = vld [vmem:[%s245 + $0x8c] sm:$0xf]
      %v304 = vld [vmem:[%s245 + $0x90] sm:$0xf]
      %v305 = vld [vmem:[%s245 + $0x94] sm:$0xf]
      %v306 = vld [vmem:[%s245 + $0x98] sm:$0xf]
      %v307 = vld [vmem:[%s245 + $0x9c] sm:$0xf]
      %v308 = vld [vmem:[%s245 + $0xa0] sm:$0xf]
      %v309 = vld [vmem:[%s245 + $0xa4] sm:$0xf]
      %v310 = vld [vmem:[%s245 + $0xa8] sm:$0xf]
      %v311 = vld [vmem:[%s245 + $0xac] sm:$0xf]
      %v312 = vld [vmem:[%s245 + $0xb0] sm:$0xf]
      %v313 = vld [vmem:[%s245 + $0xb4] sm:$0xf]
      %v314 = vld [vmem:[%s245 + $0xb8] sm:$0xf]
      %v315 = vld [vmem:[%s245 + $0xbc] sm:$0xf]
      %v316 = vld [vmem:[%s245 + $0xc0] sm:$0xf]
      %v317 = vld [vmem:[%s245 + $0xc4] sm:$0xf]
      %v318 = vld [vmem:[%s245 + $0xc8] sm:$0xf]
      %v319 = vld [vmem:[%s245 + $0xcc] sm:$0xf]
      %v320 = vld [vmem:[%s245 + $0xd0] sm:$0xf]
      %v321 = vld [vmem:[%s245 + $0xd4] sm:$0xf]
      %v322 = vld [vmem:[%s245 + $0xd8] sm:$0xf]
      %v323 = vld [vmem:[%s245 + $0xdc] sm:$0xf]
      %v324 = vld [vmem:[%s245 + $0xe0] sm:$0xf]
      %v325 = vld [vmem:[%s245 + $0xe4] sm:$0xf]
      %v326 = vld [vmem:[%s245 + $0xe8] sm:$0xf]
      %v327 = vld [vmem:[%s245 + $0xec] sm:$0xf]
      %v328 = vld [vmem:[%s245 + $0xf0] sm:$0xf]
      %v329 = vld [vmem:[%s245 + $0xf4] sm:$0xf]
      %v330 = vld [vmem:[%s245 + $0xf8] sm:$0xf]
      %v331 = vld [vmem:[%s245 + $0xfc] sm:$0xf]
      %vm332 = vcmp.gt.bf16.partialorder %v268, 0
      %vm333 = vcmp.gt.bf16.partialorder %v269, 0
      %vm334 = vcmp.gt.bf16.partialorder %v270, 0
      %vm335 = vcmp.gt.bf16.partialorder %v271, 0
      %vm336 = vcmp.gt.bf16.partialorder %v272, 0
      %vm337 = vcmp.gt.bf16.partialorder %v273, 0
      %vm338 = vcmp.gt.bf16.partialorder %v274, 0
      %vm339 = vcmp.gt.bf16.partialorder %v275, 0
      %vm340 = vcmp.gt.bf16.partialorder %v276, 0
      %vm341 = vcmp.gt.bf16.partialorder %v277, 0
      %vm342 = vcmp.gt.bf16.partialorder %v278, 0
      %vm343 = vcmp.gt.bf16.partialorder %v279, 0
      %vm344 = vcmp.gt.bf16.partialorder %v280, 0
      %vm345 = vcmp.gt.bf16.partialorder %v281, 0
      %vm346 = vcmp.gt.bf16.partialorder %v282, 0
      %vm347 = vcmp.gt.bf16.partialorder %v283, 0
      %vm348 = vcmp.gt.bf16.partialorder %v284, 0
      %vm349 = vcmp.gt.bf16.partialorder %v285, 0
      %vm350 = vcmp.gt.bf16.partialorder %v286, 0
      %vm351 = vcmp.gt.bf16.partialorder %v287, 0
      %vm352 = vcmp.gt.bf16.partialorder %v288, 0
      %vm353 = vcmp.gt.bf16.partialorder %v289, 0
      %vm354 = vcmp.gt.bf16.partialorder %v290, 0
      %vm355 = vcmp.gt.bf16.partialorder %v291, 0
      %vm356 = vcmp.gt.bf16.partialorder %v292, 0
      %vm357 = vcmp.gt.bf16.partialorder %v293, 0
      %vm358 = vcmp.gt.bf16.partialorder %v294, 0
      %vm359 = vcmp.gt.bf16.partialorder %v295, 0
      %vm360 = vcmp.gt.bf16.partialorder %v296, 0
      %vm361 = vcmp.gt.bf16.partialorder %v297, 0
      %vm362 = vcmp.gt.bf16.partialorder %v298, 0
      %vm363 = vcmp.gt.bf16.partialorder %v299, 0
      %vm364 = vcmp.gt.bf16.partialorder %v300, 0
      %vm365 = vcmp.gt.bf16.partialorder %v301, 0
      %vm366 = vcmp.gt.bf16.partialorder %v302, 0
      %vm367 = vcmp.gt.bf16.partialorder %v303, 0
      %vm368 = vcmp.gt.bf16.partialorder %v304, 0
      %vm369 = vcmp.gt.bf16.partialorder %v305, 0
      %vm370 = vcmp.gt.bf16.partialorder %v306, 0
      %vm371 = vcmp.gt.bf16.partialorder %v307, 0
      %vm372 = vcmp.gt.bf16.partialorder %v308, 0
      %vm373 = vcmp.gt.bf16.partialorder %v309, 0
      %vm374 = vcmp.gt.bf16.partialorder %v310, 0
      %vm375 = vcmp.gt.bf16.partialorder %v311, 0
      %vm376 = vcmp.gt.bf16.partialorder %v312, 0
      %vm377 = vcmp.gt.bf16.partialorder %v313, 0
      %vm378 = vcmp.gt.bf16.partialorder %v314, 0
      %vm379 = vcmp.gt.bf16.partialorder %v315, 0
      %vm380 = vcmp.gt.bf16.partialorder %v316, 0
      %vm381 = vcmp.gt.bf16.partialorder %v317, 0
      %vm382 = vcmp.gt.bf16.partialorder %v318, 0
      %vm383 = vcmp.gt.bf16.partialorder %v319, 0
      %vm384 = vcmp.gt.bf16.partialorder %v320, 0
      %vm385 = vcmp.gt.bf16.partialorder %v321, 0
      %vm386 = vcmp.gt.bf16.partialorder %v322, 0
      %vm387 = vcmp.gt.bf16.partialorder %v323, 0
      %vm388 = vcmp.gt.bf16.partialorder %v324, 0
      %vm389 = vcmp.gt.bf16.partialorder %v325, 0
      %vm390 = vcmp.gt.bf16.partialorder %v326, 0
      %vm391 = vcmp.gt.bf16.partialorder %v327, 0
      %vm392 = vcmp.gt.bf16.partialorder %v328, 0
      %vm393 = vcmp.gt.bf16.partialorder %v329, 0
      %vm394 = vcmp.gt.bf16.partialorder %v330, 0
      %vm395 = vcmp.gt.bf16.partialorder %v331, 0
      %v396 = vmul.bf16 %v268, 1045249613
      %v397 = vmul.bf16 %v269, 1045249613
      %v398 = vmul.bf16 %v270, 1045249613
      %v399 = vmul.bf16 %v271, 1045249613
      %v400 = vmul.bf16 %v272, 1045249613
      %v401 = vmul.bf16 %v273, 1045249613
      %v402 = vmul.bf16 %v274, 1045249613
      %v403 = vmul.bf16 %v275, 1045249613
      %v404 = vmul.bf16 %v276, 1045249613
      %v405 = vmul.bf16 %v277, 1045249613
      %v406 = vmul.bf16 %v278, 1045249613
      %v407 = vmul.bf16 %v279, 1045249613
      %v408 = vmul.bf16 %v280, 1045249613
      %v409 = vmul.bf16 %v281, 1045249613
      %v410 = vmul.bf16 %v282, 1045249613
      %v411 = vmul.bf16 %v283, 1045249613
      %v412 = vmul.bf16 %v284, 1045249613
      %v413 = vmul.bf16 %v285, 1045249613
      %v414 = vmul.bf16 %v286, 1045249613
      %v415 = vmul.bf16 %v287, 1045249613
      %v416 = vmul.bf16 %v288, 1045249613
      %v417 = vmul.bf16 %v289, 1045249613
      %v418 = vmul.bf16 %v290, 1045249613
      %v419 = vmul.bf16 %v291, 1045249613
      %v420 = vmul.bf16 %v292, 1045249613
      %v421 = vmul.bf16 %v293, 1045249613
      %v422 = vmul.bf16 %v294, 1045249613
      %v423 = vmul.bf16 %v295, 1045249613
      %v424 = vmul.bf16 %v296, 1045249613
      %v425 = vmul.bf16 %v297, 1045249613
      %v426 = vmul.bf16 %v298, 1045249613
      %v427 = vmul.bf16 %v299, 1045249613
      %v428 = vmul.bf16 %v300, 1045249613
      %v429 = vmul.bf16 %v301, 1045249613
      %v430 = vmul.bf16 %v302, 1045249613
      %v431 = vmul.bf16 %v303, 1045249613
      %v432 = vmul.bf16 %v304, 1045249613
      %v433 = vmul.bf16 %v305, 1045249613
      %v434 = vmul.bf16 %v306, 1045249613
      %v435 = vmul.bf16 %v307, 1045249613
      %v436 = vmul.bf16 %v308, 1045249613
      %v437 = vmul.bf16 %v309, 1045249613
      %v438 = vmul.bf16 %v310, 1045249613
      %v439 = vmul.bf16 %v311, 1045249613
      %v440 = vmul.bf16 %v312, 1045249613
      %v441 = vmul.bf16 %v313, 1045249613
      %v442 = vmul.bf16 %v314, 1045249613
      %v443 = vmul.bf16 %v315, 1045249613
      %v444 = vmul.bf16 %v316, 1045249613
      %v445 = vmul.bf16 %v317, 1045249613
      %v446 = vmul.bf16 %v318, 1045249613
      %v447 = vmul.bf16 %v319, 1045249613
      %v448 = vmul.bf16 %v320, 1045249613
      %v449 = vmul.bf16 %v321, 1045249613
      %v450 = vmul.bf16 %v322, 1045249613
      %v451 = vmul.bf16 %v323, 1045249613
      %v452 = vmul.bf16 %v324, 1045249613
      %v453 = vmul.bf16 %v325, 1045249613
      %v454 = vmul.bf16 %v326, 1045249613
      %v455 = vmul.bf16 %v327, 1045249613
      %v456 = vmul.bf16 %v328, 1045249613
      %v457 = vmul.bf16 %v329, 1045249613
      %v458 = vmul.bf16 %v330, 1045249613
      %v459 = vmul.bf16 %v331, 1045249613
      %v460 = vsel %vm332, %v268, %v396
      %v461 = vsel %vm333, %v269, %v397
      %v462 = vsel %vm334, %v270, %v398
      %v463 = vsel %vm335, %v271, %v399
      %v464 = vsel %vm336, %v272, %v400
      %v465 = vsel %vm337, %v273, %v401
      %v466 = vsel %vm338, %v274, %v402
      %v467 = vsel %vm339, %v275, %v403
      %v468 = vsel %vm340, %v276, %v404
      %v469 = vsel %vm341, %v277, %v405
      %v470 = vsel %vm342, %v278, %v406
      %v471 = vsel %vm343, %v279, %v407
      %v472 = vsel %vm344, %v280, %v408
      %v473 = vsel %vm345, %v281, %v409
      %v474 = vsel %vm346, %v282, %v410
      %v475 = vsel %vm347, %v283, %v411
      %v476 = vsel %vm348, %v284, %v412
      %v477 = vsel %vm349, %v285, %v413
      %v478 = vsel %vm350, %v286, %v414
      %v479 = vsel %vm351, %v287, %v415
      %v480 = vsel %vm352, %v288, %v416
      %v481 = vsel %vm353, %v289, %v417
      %v482 = vsel %vm354, %v290, %v418
      %v483 = vsel %vm355, %v291, %v419
      %v484 = vsel %vm356, %v292, %v420
      %v485 = vsel %vm357, %v293, %v421
      %v486 = vsel %vm358, %v294, %v422
      %v487 = vsel %vm359, %v295, %v423
      %v488 = vsel %vm360, %v296, %v424
      %v489 = vsel %vm361, %v297, %v425
      %v490 = vsel %vm362, %v298, %v426
      %v491 = vsel %vm363, %v299, %v427
      %v492 = vsel %vm364, %v300, %v428
      %v493 = vsel %vm365, %v301, %v429
      %v494 = vsel %vm366, %v302, %v430
      %v495 = vsel %vm367, %v303, %v431
      %v496 = vsel %vm368, %v304, %v432
      %v497 = vsel %vm369, %v305, %v433
      %v498 = vsel %vm370, %v306, %v434
      %v499 = vsel %vm371, %v307, %v435
      %v500 = vsel %vm372, %v308, %v436
      %v501 = vsel %vm373, %v309, %v437
      %v502 = vsel %vm374, %v310, %v438
      %v503 = vsel %vm375, %v311, %v439
      %v504 = vsel %vm376, %v312, %v440
      %v505 = vsel %vm377, %v313, %v441
      %v506 = vsel %vm378, %v314, %v442
      %v507 = vsel %vm379, %v315, %v443
      %v508 = vsel %vm380, %v316, %v444
      %v509 = vsel %vm381, %v317, %v445
      %v510 = vsel %vm382, %v318, %v446
      %v511 = vsel %vm383, %v319, %v447
      %v512 = vsel %vm384, %v320, %v448
      %v513 = vsel %vm385, %v321, %v449
      %v514 = vsel %vm386, %v322, %v450
      %v515 = vsel %vm387, %v323, %v451
      %v516 = vsel %vm388, %v324, %v452
      %v517 = vsel %vm389, %v325, %v453
      %v518 = vsel %vm390, %v326, %v454
      %v519 = vsel %vm391, %v327, %v455
      %v520 = vsel %vm392, %v328, %v456
      %v521 = vsel %vm393, %v329, %v457
      %v522 = vsel %vm394, %v330, %v458
      %v523 = vsel %vm395, %v331, %v459
      %v524 = vld [vmem:[%s250] sm:$0xf]
      %v525 = vld [vmem:[%s250 + $0x4] sm:$0xf]
      %v526 = vld [vmem:[%s250 + $0x8] sm:$0xf]
      %v527 = vld [vmem:[%s250 + $0xc] sm:$0xf]
      %v528 = vld [vmem:[%s250 + $0x10] sm:$0xf]
      %v529 = vld [vmem:[%s250 + $0x14] sm:$0xf]
      %v530 = vld [vmem:[%s250 + $0x18] sm:$0xf]
      %v531 = vld [vmem:[%s250 + $0x1c] sm:$0xf]
      %v532 = vld [vmem:[%s250 + $0x20] sm:$0xf]
      %v533 = vld [vmem:[%s250 + $0x24] sm:$0xf]
      %v534 = vld [vmem:[%s250 + $0x28] sm:$0xf]
      %v535 = vld [vmem:[%s250 + $0x2c] sm:$0xf]
      %v536 = vld [vmem:[%s250 + $0x30] sm:$0xf]
      %v537 = vld [vmem:[%s250 + $0x34] sm:$0xf]
      %v538 = vld [vmem:[%s250 + $0x38] sm:$0xf]
      %v539 = vld [vmem:[%s250 + $0x3c] sm:$0xf]
      %v604 = vunpack.c.l.b16 %v460
      %v605 = vunpack.c.l.b16 %v461
      %v606 = vunpack.c.l.b16 %v462
      %v607 = vunpack.c.l.b16 %v463
      %v608 = vunpack.c.l.b16 %v464
      %v609 = vunpack.c.l.b16 %v465
      %v610 = vunpack.c.l.b16 %v466
      %v611 = vunpack.c.l.b16 %v467
      %v612 = vunpack.c.l.b16 %v468
      %v613 = vunpack.c.l.b16 %v469
      %v614 = vunpack.c.l.b16 %v470
      %v615 = vunpack.c.l.b16 %v471
      %v616 = vunpack.c.l.b16 %v472
      %v617 = vunpack.c.l.b16 %v473
      %v618 = vunpack.c.l.b16 %v474
      %v619 = vunpack.c.l.b16 %v475
      %v620 = vunpack.c.l.b16 %v476
      %v621 = vunpack.c.l.b16 %v477
      %v622 = vunpack.c.l.b16 %v478
      %v623 = vunpack.c.l.b16 %v479
      %v624 = vunpack.c.l.b16 %v480
      %v625 = vunpack.c.l.b16 %v481
      %v626 = vunpack.c.l.b16 %v482
      %v627 = vunpack.c.l.b16 %v483
      %v628 = vunpack.c.l.b16 %v484
      %v629 = vunpack.c.l.b16 %v485
      %v630 = vunpack.c.l.b16 %v486
      %v631 = vunpack.c.l.b16 %v487
      %v632 = vunpack.c.l.b16 %v488
      %v633 = vunpack.c.l.b16 %v489
      %v634 = vunpack.c.l.b16 %v490
      %v635 = vunpack.c.l.b16 %v491
      %v636 = vunpack.c.l.b16 %v492
      %v637 = vunpack.c.l.b16 %v493
      %v638 = vunpack.c.l.b16 %v494
      %v639 = vunpack.c.l.b16 %v495
      %v640 = vunpack.c.l.b16 %v496
      %v641 = vunpack.c.l.b16 %v497
      %v642 = vunpack.c.l.b16 %v498
      %v643 = vunpack.c.l.b16 %v499
      %v644 = vunpack.c.l.b16 %v500
      %v645 = vunpack.c.l.b16 %v501
      %v646 = vunpack.c.l.b16 %v502
      %v647 = vunpack.c.l.b16 %v503
      %v648 = vunpack.c.l.b16 %v504
      %v649 = vunpack.c.l.b16 %v505
      %v650 = vunpack.c.l.b16 %v506
      %v651 = vunpack.c.l.b16 %v507
      %v652 = vunpack.c.l.b16 %v508
      %v653 = vunpack.c.l.b16 %v509
      %v654 = vunpack.c.l.b16 %v510
      %v655 = vunpack.c.l.b16 %v511
      %v656 = vunpack.c.l.b16 %v512
      %v657 = vunpack.c.l.b16 %v513
      %v658 = vunpack.c.l.b16 %v514
      %v659 = vunpack.c.l.b16 %v515
      %v660 = vunpack.c.l.b16 %v516
      %v661 = vunpack.c.l.b16 %v517
      %v662 = vunpack.c.l.b16 %v518
      %v663 = vunpack.c.l.b16 %v519
      %v664 = vunpack.c.l.b16 %v520
      %v665 = vunpack.c.l.b16 %v521
      %v666 = vunpack.c.l.b16 %v522
      %v667 = vunpack.c.l.b16 %v523
      %v668 = vpack.c.b16 %v605, %v604
      %v669 = vpack.c.b16 %v607, %v606
      %v670 = vpack.c.b16 %v609, %v608
      %v671 = vpack.c.b16 %v611, %v610
      %v672 = vpack.c.b16 %v613, %v612
      %v673 = vpack.c.b16 %v615, %v614
      %v674 = vpack.c.b16 %v617, %v616
      %v675 = vpack.c.b16 %v619, %v618
      %v676 = vpack.c.b16 %v621, %v620
      %v677 = vpack.c.b16 %v623, %v622
      %v678 = vpack.c.b16 %v625, %v624
      %v679 = vpack.c.b16 %v627, %v626
      %v680 = vpack.c.b16 %v629, %v628
      %v681 = vpack.c.b16 %v631, %v630
      %v682 = vpack.c.b16 %v633, %v632
      %v683 = vpack.c.b16 %v635, %v634
      %v684 = vpack.c.b16 %v637, %v636
      %v685 = vpack.c.b16 %v639, %v638
      %v686 = vpack.c.b16 %v641, %v640
      %v687 = vpack.c.b16 %v643, %v642
      %v688 = vpack.c.b16 %v645, %v644
      %v689 = vpack.c.b16 %v647, %v646
      %v690 = vpack.c.b16 %v649, %v648
      %v691 = vpack.c.b16 %v651, %v650
      %v692 = vpack.c.b16 %v653, %v652
      %v693 = vpack.c.b16 %v655, %v654
      %v694 = vpack.c.b16 %v657, %v656
      %v695 = vpack.c.b16 %v659, %v658
      %v696 = vpack.c.b16 %v661, %v660
      %v697 = vpack.c.b16 %v663, %v662
      %v698 = vpack.c.b16 %v665, %v664
      %v699 = vpack.c.b16 %v667, %v666
      %v748 = vunpack.c.l.b16 %v524
      %v749 = vunpack.c.l.b16 %v525
      %v750 = vunpack.c.l.b16 %v526
      %v751 = vunpack.c.l.b16 %v527
      %v752 = vunpack.c.l.b16 %v528
      %v753 = vunpack.c.l.b16 %v529
      %v754 = vunpack.c.l.b16 %v530
      %v755 = vunpack.c.l.b16 %v531
      %v756 = vunpack.c.l.b16 %v532
      %v757 = vunpack.c.l.b16 %v533
      %v758 = vunpack.c.l.b16 %v534
      %v759 = vunpack.c.l.b16 %v535
      %v760 = vunpack.c.l.b16 %v536
      %v761 = vunpack.c.l.b16 %v537
      %v762 = vunpack.c.l.b16 %v538
      %v763 = vunpack.c.l.b16 %v539
      %v764 = vpack.c.b16 %v749, %v748
      %v765 = vpack.c.b16 %v751, %v750
      %v766 = vpack.c.b16 %v753, %v752
      %v767 = vpack.c.b16 %v755, %v754
      %v768 = vpack.c.b16 %v757, %v756
      %v769 = vpack.c.b16 %v759, %v758
      %v770 = vpack.c.b16 %v761, %v760
      %v771 = vpack.c.b16 %v763, %v762
      %780 = vmatprep.subr.bf16.mxu0 0
      %781 = vmatpush1.bf16.msra.mxu0 %v764
      %782 = vmatprep.subr.bf16.mxu0 0
      %783 = vmatpush1.bf16.msra.mxu0 %v765
      %784 = vmatprep.subr.bf16.mxu0 0
      %785 = vmatpush1.bf16.msra.mxu0 %v766
      %786 = vmatprep.subr.bf16.mxu0 0
      %787 = vmatpush1.bf16.msra.mxu0 %v767
      %788 = vmatprep.subr.bf16.mxu0 0
      %789 = vmatpush1.bf16.msra.mxu0 %v768
      %790 = vmatprep.subr.bf16.mxu0 0
      %791 = vmatpush1.bf16.msra.mxu0 %v769
      %792 = vmatprep.subr.bf16.mxu0 0
      %793 = vmatpush1.bf16.msra.mxu0 %v770
      %794 = vmatprep.subr.bf16.mxu0 0
      %795 = vmatpush1.bf16.msra.mxu0 %v771
      %796 = vmatprep.subr.bf16.mxu0 0
      %797 = vmatpush1.bf16.msra.mxu0 0
      %798 = vmatprep.subr.bf16.mxu0 0
      %799 = vmatpush1.bf16.msra.mxu0 0
      %800 = vmatprep.subr.bf16.mxu0 0
      %801 = vmatpush1.bf16.msra.mxu0 0
      %802 = vmatprep.subr.bf16.mxu0 0
      %803 = vmatpush1.bf16.msra.mxu0 0
      %804 = vmatprep.subr.bf16.mxu0 0
      %805 = vmatpush1.bf16.msra.mxu0 0
      %806 = vmatprep.subr.bf16.mxu0 0
      %807 = vmatpush1.bf16.msra.mxu0 0
      %808 = vmatprep.subr.bf16.mxu0 0
      %809 = vmatpush1.bf16.msra.mxu0 0
      %810 = vmatprep.subr.bf16.mxu0 0
      %811 = vmatpush1.bf16.msra.mxu0 0
      %812 = vmatprep.mubr.bf16.mxu0 0
      %813 = vmatmul.mubr.bf16.gmra.mrb[0].mxu0 %v668
      %v814 = vpop.f32.mrb[0].mxu0
      %v815 = vadd.f32 0.0, %v814
      %v816 = vpop.f32.mrb[0].mxu0
      %v817 = vpop.f32.mrb[0].mxu0
      %v818 = vadd.f32 0.0, %v817
      %v819 = vpop.f32.mrb[0].mxu0
      %820 = vmatprep.mubr.bf16.mxu0 0
      %821 = vmatmul.mubr.bf16.gmra.mrb[0].mxu0 %v669
      %v822 = vpop.f32.mrb[0].mxu0
      %v823 = vadd.f32 0.0, %v822
      %v824 = vpop.f32.mrb[0].mxu0
      %v825 = vpop.f32.mrb[0].mxu0
      %v826 = vadd.f32 0.0, %v825
      %v827 = vpop.f32.mrb[0].mxu0
      %828 = vmatprep.mubr.bf16.mxu0 0
      %829 = vmatmul.mubr.bf16.gmra.mrb[0].mxu0 %v670
      %v830 = vpop.f32.mrb[0].mxu0
      %v831 = vadd.f32 0.0, %v830
      %v832 = vpop.f32.mrb[0].mxu0
      %v833 = vpop.f32.mrb[0].mxu0
      %v834 = vadd.f32 0.0, %v833
      %v835 = vpop.f32.mrb[0].mxu0
      %836 = vmatprep.mubr.bf16.mxu0 0
      %837 = vmatmul.mubr.bf16.gmra.mrb[0].mxu0 %v671
      %v838 = vpop.f32.mrb[0].mxu0
      %v839 = vadd.f32 0.0, %v838
      %v840 = vpop.f32.mrb[0].mxu0
      %v841 = vpop.f32.mrb[0].mxu0
      %v842 = vadd.f32 0.0, %v841
      %v843 = vpop.f32.mrb[0].mxu0
      %844 = vmatprep.mubr.bf16.mxu0 0
      %845 = vmatmul.mubr.bf16.gmra.mrb[0].mxu0 %v672
      %v846 = vpop.f32.mrb[0].mxu0
      %v847 = vadd.f32 0.0, %v846
      %v848 = vpop.f32.mrb[0].mxu0
      %v849 = vpop.f32.mrb[0].mxu0
      %v850 = vadd.f32 0.0, %v849
      %v851 = vpop.f32.mrb[0].mxu0
      %852 = vmatprep.mubr.bf16.mxu0 0
      %853 = vmatmul.mubr.bf16.gmra.mrb[0].mxu0 %v673
      %v854 = vpop.f32.mrb[0].mxu0
      %v855 = vadd.f32 0.0, %v854
      %v856 = vpop.f32.mrb[0].mxu0
      %v857 = vpop.f32.mrb[0].mxu0
      %v858 = vadd.f32 0.0, %v857
      %v859 = vpop.f32.mrb[0].mxu0
      %860 = vmatprep.mubr.bf16.mxu0 0
      %861 = vmatmul.mubr.bf16.gmra.mrb[0].mxu0 %v674
      %v862 = vpop.f32.mrb[0].mxu0
      %v863 = vadd.f32 0.0, %v862
      %v864 = vpop.f32.mrb[0].mxu0
      %v865 = vpop.f32.mrb[0].mxu0
      %v866 = vadd.f32 0.0, %v865
      %v867 = vpop.f32.mrb[0].mxu0
      %868 = vmatprep.mubr.bf16.mxu0 0
      %869 = vmatmul.mubr.bf16.gmra.mrb[0].mxu0 %v675
      %v870 = vpop.f32.mrb[0].mxu0
      %v871 = vadd.f32 0.0, %v870
      %v872 = vpop.f32.mrb[0].mxu0
      %v873 = vpop.f32.mrb[0].mxu0
      %v874 = vadd.f32 0.0, %v873
      %v875 = vpop.f32.mrb[0].mxu0
      %876 = vmatprep.mubr.bf16.mxu0 0
      %877 = vmatmul.mubr.bf16.gmra.mrb[0].mxu0 %v676
      %v878 = vpop.f32.mrb[0].mxu0
      %v879 = vadd.f32 0.0, %v878
      %v880 = vpop.f32.mrb[0].mxu0
      %v881 = vpop.f32.mrb[0].mxu0
      %v882 = vadd.f32 0.0, %v881
      %v883 = vpop.f32.mrb[0].mxu0
      %884 = vmatprep.mubr.bf16.mxu0 0
      %885 = vmatmul.mubr.bf16.gmra.mrb[0].mxu0 %v677
      %v886 = vpop.f32.mrb[0].mxu0
      %v887 = vadd.f32 0.0, %v886
      %v888 = vpop.f32.mrb[0].mxu0
      %v889 = vpop.f32.mrb[0].mxu0
      %v890 = vadd.f32 0.0, %v889
      %v891 = vpop.f32.mrb[0].mxu0
      %892 = vmatprep.mubr.bf16.mxu0 0
      %893 = vmatmul.mubr.bf16.gmra.mrb[0].mxu0 %v678
      %v894 = vpop.f32.mrb[0].mxu0
      %v895 = vadd.f32 0.0, %v894
      %v896 = vpop.f32.mrb[0].mxu0
      %v897 = vpop.f32.mrb[0].mxu0
      %v898 = vadd.f32 0.0, %v897
      %v899 = vpop.f32.mrb[0].mxu0
      %900 = vmatprep.mubr.bf16.mxu0 0
      %901 = vmatmul.mubr.bf16.gmra.mrb[0].mxu0 %v679
      %v902 = vpop.f32.mrb[0].mxu0
      %v903 = vadd.f32 0.0, %v902
      %v904 = vpop.f32.mrb[0].mxu0
      %v905 = vpop.f32.mrb[0].mxu0
      %v906 = vadd.f32 0.0, %v905
      %v907 = vpop.f32.mrb[0].mxu0
      %908 = vmatprep.mubr.bf16.mxu0 0
      %909 = vmatmul.mubr.bf16.gmra.mrb[0].mxu0 %v680
      %v910 = vpop.f32.mrb[0].mxu0
      %v911 = vadd.f32 0.0, %v910
      %v912 = vpop.f32.mrb[0].mxu0
      %v913 = vpop.f32.mrb[0].mxu0
      %v914 = vadd.f32 0.0, %v913
      %v915 = vpop.f32.mrb[0].mxu0
      %916 = vmatprep.mubr.bf16.mxu0 0
      %917 = vmatmul.mubr.bf16.gmra.mrb[0].mxu0 %v681
      %v918 = vpop.f32.mrb[0].mxu0
      %v919 = vadd.f32 0.0, %v918
      %v920 = vpop.f32.mrb[0].mxu0
      %v921 = vpop.f32.mrb[0].mxu0
      %v922 = vadd.f32 0.0, %v921
      %v923 = vpop.f32.mrb[0].mxu0
      %924 = vmatprep.mubr.bf16.mxu0 0
      %925 = vmatmul.mubr.bf16.gmra.mrb[0].mxu0 %v682
      %v926 = vpop.f32.mrb[0].mxu0
      %v927 = vadd.f32 0.0, %v926
      %v928 = vpop.f32.mrb[0].mxu0
      %v929 = vpop.f32.mrb[0].mxu0
      %v930 = vadd.f32 0.0, %v929
      %v931 = vpop.f32.mrb[0].mxu0
      %932 = vmatprep.mubr.bf16.mxu0 0
      %933 = vmatmul.mubr.bf16.gmra.mrb[0].mxu0 %v683
      %v934 = vpop.f32.mrb[0].mxu0
      %v935 = vadd.f32 0.0, %v934
      %v936 = vpop.f32.mrb[0].mxu0
      %v937 = vpop.f32.mrb[0].mxu0
      %v938 = vadd.f32 0.0, %v937
      %v939 = vpop.f32.mrb[0].mxu0
      %940 = vmatprep.mubr.bf16.mxu0 0
      %941 = vmatmul.mubr.bf16.gmra.mrb[0].mxu0 %v684
      %v942 = vpop.f32.mrb[0].mxu0
      %v943 = vadd.f32 0.0, %v942
      %v944 = vpop.f32.mrb[0].mxu0
      %v945 = vpop.f32.mrb[0].mxu0
      %v946 = vadd.f32 0.0, %v945
      %v947 = vpop.f32.mrb[0].mxu0
      %948 = vmatprep.mubr.bf16.mxu0 0
      %949 = vmatmul.mubr.bf16.gmra.mrb[0].mxu0 %v685
      %v950 = vpop.f32.mrb[0].mxu0
      %v951 = vadd.f32 0.0, %v950
      %v952 = vpop.f32.mrb[0].mxu0
      %v953 = vpop.f32.mrb[0].mxu0
      %v954 = vadd.f32 0.0, %v953
      %v955 = vpop.f32.mrb[0].mxu0
      %956 = vmatprep.mubr.bf16.mxu0 0
      %957 = vmatmul.mubr.bf16.gmra.mrb[0].mxu0 %v686
      %v958 = vpop.f32.mrb[0].mxu0
      %v959 = vadd.f32 0.0, %v958
      %v960 = vpop.f32.mrb[0].mxu0
      %v961 = vpop.f32.mrb[0].mxu0
      %v962 = vadd.f32 0.0, %v961
      %v963 = vpop.f32.mrb[0].mxu0
      %964 = vmatprep.mubr.bf16.mxu0 0
      %965 = vmatmul.mubr.bf16.gmra.mrb[0].mxu0 %v687
      %v966 = vpop.f32.mrb[0].mxu0
      %v967 = vadd.f32 0.0, %v966
      %v968 = vpop.f32.mrb[0].mxu0
      %v969 = vpop.f32.mrb[0].mxu0
      %v970 = vadd.f32 0.0, %v969
      %v971 = vpop.f32.mrb[0].mxu0
      %972 = vmatprep.mubr.bf16.mxu0 0
      %973 = vmatmul.mubr.bf16.gmra.mrb[0].mxu0 %v688
      %v974 = vpop.f32.mrb[0].mxu0
      %v975 = vadd.f32 0.0, %v974
      %v976 = vpop.f32.mrb[0].mxu0
      %v977 = vpop.f32.mrb[0].mxu0
      %v978 = vadd.f32 0.0, %v977
      %v979 = vpop.f32.mrb[0].mxu0
      %980 = vmatprep.mubr.bf16.mxu0 0
      %981 = vmatmul.mubr.bf16.gmra.mrb[0].mxu0 %v689
      %v982 = vpop.f32.mrb[0].mxu0
      %v983 = vadd.f32 0.0, %v982
      %v984 = vpop.f32.mrb[0].mxu0
      %v985 = vpop.f32.mrb[0].mxu0
      %v986 = vadd.f32 0.0, %v985
      %v987 = vpop.f32.mrb[0].mxu0
      %988 = vmatprep.mubr.bf16.mxu0 0
      %989 = vmatmul.mubr.bf16.gmra.mrb[0].mxu0 %v690
      %v990 = vpop.f32.mrb[0].mxu0
      %v991 = vadd.f32 0.0, %v990
      %v992 = vpop.f32.mrb[0].mxu0
      %v993 = vpop.f32.mrb[0].mxu0
      %v994 = vadd.f32 0.0, %v993
      %v995 = vpop.f32.mrb[0].mxu0
      %996 = vmatprep.mubr.bf16.mxu0 0
      %997 = vmatmul.mubr.bf16.gmra.mrb[0].mxu0 %v691
      %v998 = vpop.f32.mrb[0].mxu0
      %v999 = vadd.f32 0.0, %v998
      %v1000 = vpop.f32.mrb[0].mxu0
      %v1001 = vpop.f32.mrb[0].mxu0
      %v1002 = vadd.f32 0.0, %v1001
      %v1003 = vpop.f32.mrb[0].mxu0
      %1004 = vmatprep.mubr.bf16.mxu0 0
      %1005 = vmatmul.mubr.bf16.gmra.mrb[0].mxu0 %v692
      %v1006 = vpop.f32.mrb[0].mxu0
      %v1007 = vadd.f32 0.0, %v1006
      %v1008 = vpop.f32.mrb[0].mxu0
      %v1009 = vpop.f32.mrb[0].mxu0
      %v1010 = vadd.f32 0.0, %v1009
      %v1011 = vpop.f32.mrb[0].mxu0
      %1012 = vmatprep.mubr.bf16.mxu0 0
      %1013 = vmatmul.mubr.bf16.gmra.mrb[0].mxu0 %v693
      %v1014 = vpop.f32.mrb[0].mxu0
      %v1015 = vadd.f32 0.0, %v1014
      %v1016 = vpop.f32.mrb[0].mxu0
      %v1017 = vpop.f32.mrb[0].mxu0
      %v1018 = vadd.f32 0.0, %v1017
      %v1019 = vpop.f32.mrb[0].mxu0
      %1020 = vmatprep.mubr.bf16.mxu0 0
      %1021 = vmatmul.mubr.bf16.gmra.mrb[0].mxu0 %v694
      %v1022 = vpop.f32.mrb[0].mxu0
      %v1023 = vadd.f32 0.0, %v1022
      %v1024 = vpop.f32.mrb[0].mxu0
      %v1025 = vpop.f32.mrb[0].mxu0
      %v1026 = vadd.f32 0.0, %v1025
      %v1027 = vpop.f32.mrb[0].mxu0
      %1028 = vmatprep.mubr.bf16.mxu0 0
      %1029 = vmatmul.mubr.bf16.gmra.mrb[0].mxu0 %v695
      %v1030 = vpop.f32.mrb[0].mxu0
      %v1031 = vadd.f32 0.0, %v1030
      %v1032 = vpop.f32.mrb[0].mxu0
      %v1033 = vpop.f32.mrb[0].mxu0
      %v1034 = vadd.f32 0.0, %v1033
      %v1035 = vpop.f32.mrb[0].mxu0
      %1036 = vmatprep.mubr.bf16.mxu0 0
      %1037 = vmatmul.mubr.bf16.gmra.mrb[0].mxu0 %v696
      %v1038 = vpop.f32.mrb[0].mxu0
      %v1039 = vadd.f32 0.0, %v1038
      %v1040 = vpop.f32.mrb[0].mxu0
      %v1041 = vpop.f32.mrb[0].mxu0
      %v1042 = vadd.f32 0.0, %v1041
      %v1043 = vpop.f32.mrb[0].mxu0
      %1044 = vmatprep.mubr.bf16.mxu0 0
      %1045 = vmatmul.mubr.bf16.gmra.mrb[0].mxu0 %v697
      %v1046 = vpop.f32.mrb[0].mxu0
      %v1047 = vadd.f32 0.0, %v1046
      %v1048 = vpop.f32.mrb[0].mxu0
      %v1049 = vpop.f32.mrb[0].mxu0
      %v1050 = vadd.f32 0.0, %v1049
      %v1051 = vpop.f32.mrb[0].mxu0
      %1052 = vmatprep.mubr.bf16.mxu0 0
      %1053 = vmatmul.mubr.bf16.gmra.mrb[0].mxu0 %v698
      %v1054 = vpop.f32.mrb[0].mxu0
      %v1055 = vadd.f32 0.0, %v1054
      %v1056 = vpop.f32.mrb[0].mxu0
      %v1057 = vpop.f32.mrb[0].mxu0
      %v1058 = vadd.f32 0.0, %v1057
      %v1059 = vpop.f32.mrb[0].mxu0
      %1060 = vmatprep.mubr.bf16.mxu0 0
      %1061 = vmatmul.mubr.bf16.gmra.mrb[0].mxu0 %v699
      %v1062 = vpop.f32.mrb[0].mxu0
      %v1063 = vadd.f32 0.0, %v1062
      %v1064 = vpop.f32.mrb[0].mxu0
      %v1065 = vpop.f32.mrb[0].mxu0
      %v1066 = vadd.f32 0.0, %v1065
      %v1067 = vpop.f32.mrb[0].mxu0
      %1068 = vdwg.mxu0
      %v1069 = vld [vmem:[%s253] sm:$0x1]
      %v1071 = vlaneseq
      %v1072 = vshrl.u32 %v1071, 7
      %v1073 = vsub.s32 0, %v1072
      %v1074 = vrot.slane %v1069, %v1073
      %v1076 = vmul.f32 %v815, %v1074
      %v1077 = vmul.f32 %v818, %v1074
      %v1078 = vmul.f32 %v823, %v1074
      %v1079 = vmul.f32 %v826, %v1074
      %v1080 = vmul.f32 %v831, %v1074
      %v1081 = vmul.f32 %v834, %v1074
      %v1082 = vmul.f32 %v839, %v1074
      %v1083 = vmul.f32 %v842, %v1074
      %v1084 = vmul.f32 %v847, %v1074
      %v1085 = vmul.f32 %v850, %v1074
      %v1086 = vmul.f32 %v855, %v1074
      %v1087 = vmul.f32 %v858, %v1074
      %v1088 = vmul.f32 %v863, %v1074
      %v1089 = vmul.f32 %v866, %v1074
      %v1090 = vmul.f32 %v871, %v1074
      %v1091 = vmul.f32 %v874, %v1074
      %v1092 = vmul.f32 %v879, %v1074
      %v1093 = vmul.f32 %v882, %v1074
      %v1094 = vmul.f32 %v887, %v1074
      %v1095 = vmul.f32 %v890, %v1074
      %v1096 = vmul.f32 %v895, %v1074
      %v1097 = vmul.f32 %v898, %v1074
      %v1098 = vmul.f32 %v903, %v1074
      %v1099 = vmul.f32 %v906, %v1074
      %v1100 = vmul.f32 %v911, %v1074
      %v1101 = vmul.f32 %v914, %v1074
      %v1102 = vmul.f32 %v919, %v1074
      %v1103 = vmul.f32 %v922, %v1074
      %v1104 = vmul.f32 %v927, %v1074
      %v1105 = vmul.f32 %v930, %v1074
      %v1106 = vmul.f32 %v935, %v1074
      %v1107 = vmul.f32 %v938, %v1074
      %v1108 = vmul.f32 %v943, %v1074
      %v1109 = vmul.f32 %v946, %v1074
      %v1110 = vmul.f32 %v951, %v1074
      %v1111 = vmul.f32 %v954, %v1074
      %v1112 = vmul.f32 %v959, %v1074
      %v1113 = vmul.f32 %v962, %v1074
      %v1114 = vmul.f32 %v967, %v1074
      %v1115 = vmul.f32 %v970, %v1074
      %v1116 = vmul.f32 %v975, %v1074
      %v1117 = vmul.f32 %v978, %v1074
      %v1118 = vmul.f32 %v983, %v1074
      %v1119 = vmul.f32 %v986, %v1074
      %v1120 = vmul.f32 %v991, %v1074
      %v1121 = vmul.f32 %v994, %v1074
      %v1122 = vmul.f32 %v999, %v1074
      %v1123 = vmul.f32 %v1002, %v1074
      %v1124 = vmul.f32 %v1007, %v1074
      %v1125 = vmul.f32 %v1010, %v1074
      %v1126 = vmul.f32 %v1015, %v1074
      %v1127 = vmul.f32 %v1018, %v1074
      %v1128 = vmul.f32 %v1023, %v1074
      %v1129 = vmul.f32 %v1026, %v1074
      %v1130 = vmul.f32 %v1031, %v1074
      %v1131 = vmul.f32 %v1034, %v1074
      %v1132 = vmul.f32 %v1039, %v1074
      %v1133 = vmul.f32 %v1042, %v1074
      %v1134 = vmul.f32 %v1047, %v1074
      %v1135 = vmul.f32 %v1050, %v1074
      %v1136 = vmul.f32 %v1055, %v1074
      %v1137 = vmul.f32 %v1058, %v1074
      %v1138 = vmul.f32 %v1063, %v1074
      %v1139 = vmul.f32 %v1066, %v1074
      %v1140 = vld [vmem:[%s256] sm:$0x1]
      %v1142 = vlaneseq
      %v1143 = vshrl.u32 %v1142, 7
      %v1144 = vsub.s32 0, %v1143
      %v1145 = vrot.slane %v1140, %v1144
      %v1147 = vadd.f32 %v1076, %v1145
      %v1148 = vadd.f32 %v1077, %v1145
      %v1149 = vadd.f32 %v1078, %v1145
      %v1150 = vadd.f32 %v1079, %v1145
      %v1151 = vadd.f32 %v1080, %v1145
      %v1152 = vadd.f32 %v1081, %v1145
      %v1153 = vadd.f32 %v1082, %v1145
      %v1154 = vadd.f32 %v1083, %v1145
      %v1155 = vadd.f32 %v1084, %v1145
      %v1156 = vadd.f32 %v1085, %v1145
      %v1157 = vadd.f32 %v1086, %v1145
      %v1158 = vadd.f32 %v1087, %v1145
      %v1159 = vadd.f32 %v1088, %v1145
      %v1160 = vadd.f32 %v1089, %v1145
      %v1161 = vadd.f32 %v1090, %v1145
      %v1162 = vadd.f32 %v1091, %v1145
      %v1163 = vadd.f32 %v1092, %v1145
      %v1164 = vadd.f32 %v1093, %v1145
      %v1165 = vadd.f32 %v1094, %v1145
      %v1166 = vadd.f32 %v1095, %v1145
      %v1167 = vadd.f32 %v1096, %v1145
      %v1168 = vadd.f32 %v1097, %v1145
      %v1169 = vadd.f32 %v1098, %v1145
      %v1170 = vadd.f32 %v1099, %v1145
      %v1171 = vadd.f32 %v1100, %v1145
      %v1172 = vadd.f32 %v1101, %v1145
      %v1173 = vadd.f32 %v1102, %v1145
      %v1174 = vadd.f32 %v1103, %v1145
      %v1175 = vadd.f32 %v1104, %v1145
      %v1176 = vadd.f32 %v1105, %v1145
      %v1177 = vadd.f32 %v1106, %v1145
      %v1178 = vadd.f32 %v1107, %v1145
      %v1179 = vadd.f32 %v1108, %v1145
      %v1180 = vadd.f32 %v1109, %v1145
      %v1181 = vadd.f32 %v1110, %v1145
      %v1182 = vadd.f32 %v1111, %v1145
      %v1183 = vadd.f32 %v1112, %v1145
      %v1184 = vadd.f32 %v1113, %v1145
      %v1185 = vadd.f32 %v1114, %v1145
      %v1186 = vadd.f32 %v1115, %v1145
      %v1187 = vadd.f32 %v1116, %v1145
      %v1188 = vadd.f32 %v1117, %v1145
      %v1189 = vadd.f32 %v1118, %v1145
      %v1190 = vadd.f32 %v1119, %v1145
      %v1191 = vadd.f32 %v1120, %v1145
      %v1192 = vadd.f32 %v1121, %v1145
      %v1193 = vadd.f32 %v1122, %v1145
      %v1194 = vadd.f32 %v1123, %v1145
      %v1195 = vadd.f32 %v1124, %v1145
      %v1196 = vadd.f32 %v1125, %v1145
      %v1197 = vadd.f32 %v1126, %v1145
      %v1198 = vadd.f32 %v1127, %v1145
      %v1199 = vadd.f32 %v1128, %v1145
      %v1200 = vadd.f32 %v1129, %v1145
      %v1201 = vadd.f32 %v1130, %v1145
      %v1202 = vadd.f32 %v1131, %v1145
      %v1203 = vadd.f32 %v1132, %v1145
      %v1204 = vadd.f32 %v1133, %v1145
      %v1205 = vadd.f32 %v1134, %v1145
      %v1206 = vadd.f32 %v1135, %v1145
      %v1207 = vadd.f32 %v1136, %v1145
      %v1208 = vadd.f32 %v1137, %v1145
      %v1209 = vadd.f32 %v1138, %v1145
      %v1210 = vadd.f32 %v1139, %v1145
      %v1211 = vpack.c.bf16 %v1148, %v1147
      %v1212 = vpack.c.bf16 %v1150, %v1149
      %v1213 = vpack.c.bf16 %v1152, %v1151
      %v1214 = vpack.c.bf16 %v1154, %v1153
      %v1215 = vpack.c.bf16 %v1156, %v1155
      %v1216 = vpack.c.bf16 %v1158, %v1157
      %v1217 = vpack.c.bf16 %v1160, %v1159
      %v1218 = vpack.c.bf16 %v1162, %v1161
      %v1219 = vpack.c.bf16 %v1164, %v1163
      %v1220 = vpack.c.bf16 %v1166, %v1165
      %v1221 = vpack.c.bf16 %v1168, %v1167
      %v1222 = vpack.c.bf16 %v1170, %v1169
      %v1223 = vpack.c.bf16 %v1172, %v1171
      %v1224 = vpack.c.bf16 %v1174, %v1173
      %v1225 = vpack.c.bf16 %v1176, %v1175
      %v1226 = vpack.c.bf16 %v1178, %v1177
      %v1227 = vpack.c.bf16 %v1180, %v1179
      %v1228 = vpack.c.bf16 %v1182, %v1181
      %v1229 = vpack.c.bf16 %v1184, %v1183
      %v1230 = vpack.c.bf16 %v1186, %v1185
      %v1231 = vpack.c.bf16 %v1188, %v1187
      %v1232 = vpack.c.bf16 %v1190, %v1189
      %v1233 = vpack.c.bf16 %v1192, %v1191
      %v1234 = vpack.c.bf16 %v1194, %v1193
      %v1235 = vpack.c.bf16 %v1196, %v1195
      %v1236 = vpack.c.bf16 %v1198, %v1197
      %v1237 = vpack.c.bf16 %v1200, %v1199
      %v1238 = vpack.c.bf16 %v1202, %v1201
      %v1239 = vpack.c.bf16 %v1204, %v1203
      %v1240 = vpack.c.bf16 %v1206, %v1205
      %v1241 = vpack.c.bf16 %v1208, %v1207
      %v1242 = vpack.c.bf16 %v1210, %v1209
      %v1275 = vunpack.c.l.b16 %v1211
      %v1276 = vunpack.c.h.b16 %v1211
      %v1277 = vunpack.c.l.b16 %v1212
      %v1278 = vunpack.c.h.b16 %v1212
      %v1279 = vunpack.c.l.b16 %v1213
      %v1280 = vunpack.c.h.b16 %v1213
      %v1281 = vunpack.c.l.b16 %v1214
      %v1282 = vunpack.c.h.b16 %v1214
      %v1283 = vunpack.c.l.b16 %v1215
      %v1284 = vunpack.c.h.b16 %v1215
      %v1285 = vunpack.c.l.b16 %v1216
      %v1286 = vunpack.c.h.b16 %v1216
      %v1287 = vunpack.c.l.b16 %v1217
      %v1288 = vunpack.c.h.b16 %v1217
      %v1289 = vunpack.c.l.b16 %v1218
      %v1290 = vunpack.c.h.b16 %v1218
      %v1291 = vunpack.c.l.b16 %v1219
      %v1292 = vunpack.c.h.b16 %v1219
      %v1293 = vunpack.c.l.b16 %v1220
      %v1294 = vunpack.c.h.b16 %v1220
      %v1295 = vunpack.c.l.b16 %v1221
      %v1296 = vunpack.c.h.b16 %v1221
      %v1297 = vunpack.c.l.b16 %v1222
      %v1298 = vunpack.c.h.b16 %v1222
      %v1299 = vunpack.c.l.b16 %v1223
      %v1300 = vunpack.c.h.b16 %v1223
      %v1301 = vunpack.c.l.b16 %v1224
      %v1302 = vunpack.c.h.b16 %v1224
      %v1303 = vunpack.c.l.b16 %v1225
      %v1304 = vunpack.c.h.b16 %v1225
      %v1305 = vunpack.c.l.b16 %v1226
      %v1306 = vunpack.c.h.b16 %v1226
      %v1307 = vunpack.c.l.b16 %v1227
      %v1308 = vunpack.c.h.b16 %v1227
      %v1309 = vunpack.c.l.b16 %v1228
      %v1310 = vunpack.c.h.b16 %v1228
      %v1311 = vunpack.c.l.b16 %v1229
      %v1312 = vunpack.c.h.b16 %v1229
      %v1313 = vunpack.c.l.b16 %v1230
      %v1314 = vunpack.c.h.b16 %v1230
      %v1315 = vunpack.c.l.b16 %v1231
      %v1316 = vunpack.c.h.b16 %v1231
      %v1317 = vunpack.c.l.b16 %v1232
      %v1318 = vunpack.c.h.b16 %v1232
      %v1319 = vunpack.c.l.b16 %v1233
      %v1320 = vunpack.c.h.b16 %v1233
      %v1321 = vunpack.c.l.b16 %v1234
      %v1322 = vunpack.c.h.b16 %v1234
      %v1323 = vunpack.c.l.b16 %v1235
      %v1324 = vunpack.c.h.b16 %v1235
      %v1325 = vunpack.c.l.b16 %v1236
      %v1326 = vunpack.c.h.b16 %v1236
      %v1327 = vunpack.c.l.b16 %v1237
      %v1328 = vunpack.c.h.b16 %v1237
      %v1329 = vunpack.c.l.b16 %v1238
      %v1330 = vunpack.c.h.b16 %v1238
      %v1331 = vunpack.c.l.b16 %v1239
      %v1332 = vunpack.c.h.b16 %v1239
      %v1333 = vunpack.c.l.b16 %v1240
      %v1334 = vunpack.c.h.b16 %v1240
      %v1335 = vunpack.c.l.b16 %v1241
      %v1336 = vunpack.c.h.b16 %v1241
      %v1337 = vunpack.c.l.b16 %v1242
      %v1338 = vunpack.c.h.b16 %v1242
      %v1339 = vpack.c.b16 %v1275, %v1275
      %v1340 = vpack.c.b16 %v1276, %v1276
      %v1341 = vpack.c.b16 %v1277, %v1277
      %v1342 = vpack.c.b16 %v1278, %v1278
      %v1343 = vpack.c.b16 %v1279, %v1279
      %v1344 = vpack.c.b16 %v1280, %v1280
      %v1345 = vpack.c.b16 %v1281, %v1281
      %v1346 = vpack.c.b16 %v1282, %v1282
      %v1347 = vpack.c.b16 %v1283, %v1283
      %v1348 = vpack.c.b16 %v1284, %v1284
      %v1349 = vpack.c.b16 %v1285, %v1285
      %v1350 = vpack.c.b16 %v1286, %v1286
      %v1351 = vpack.c.b16 %v1287, %v1287
      %v1352 = vpack.c.b16 %v1288, %v1288
      %v1353 = vpack.c.b16 %v1289, %v1289
      %v1354 = vpack.c.b16 %v1290, %v1290
      %v1355 = vpack.c.b16 %v1291, %v1291
      %v1356 = vpack.c.b16 %v1292, %v1292
      %v1357 = vpack.c.b16 %v1293, %v1293
      %v1358 = vpack.c.b16 %v1294, %v1294
      %v1359 = vpack.c.b16 %v1295, %v1295
      %v1360 = vpack.c.b16 %v1296, %v1296
      %v1361 = vpack.c.b16 %v1297, %v1297
      %v1362 = vpack.c.b16 %v1298, %v1298
      %v1363 = vpack.c.b16 %v1299, %v1299
      %v1364 = vpack.c.b16 %v1300, %v1300
      %v1365 = vpack.c.b16 %v1301, %v1301
      %v1366 = vpack.c.b16 %v1302, %v1302
      %v1367 = vpack.c.b16 %v1303, %v1303
      %v1368 = vpack.c.b16 %v1304, %v1304
      %v1369 = vpack.c.b16 %v1305, %v1305
      %v1370 = vpack.c.b16 %v1306, %v1306
      %v1371 = vpack.c.b16 %v1307, %v1307
      %v1372 = vpack.c.b16 %v1308, %v1308
      %v1373 = vpack.c.b16 %v1309, %v1309
      %v1374 = vpack.c.b16 %v1310, %v1310
      %v1375 = vpack.c.b16 %v1311, %v1311
      %v1376 = vpack.c.b16 %v1312, %v1312
      %v1377 = vpack.c.b16 %v1313, %v1313
      %v1378 = vpack.c.b16 %v1314, %v1314
      %v1379 = vpack.c.b16 %v1315, %v1315
      %v1380 = vpack.c.b16 %v1316, %v1316
      %v1381 = vpack.c.b16 %v1317, %v1317
      %v1382 = vpack.c.b16 %v1318, %v1318
      %v1383 = vpack.c.b16 %v1319, %v1319
      %v1384 = vpack.c.b16 %v1320, %v1320
      %v1385 = vpack.c.b16 %v1321, %v1321
      %v1386 = vpack.c.b16 %v1322, %v1322
      %v1387 = vpack.c.b16 %v1323, %v1323
      %v1388 = vpack.c.b16 %v1324, %v1324
      %v1389 = vpack.c.b16 %v1325, %v1325
      %v1390 = vpack.c.b16 %v1326, %v1326
      %v1391 = vpack.c.b16 %v1327, %v1327
      %v1392 = vpack.c.b16 %v1328, %v1328
      %v1393 = vpack.c.b16 %v1329, %v1329
      %v1394 = vpack.c.b16 %v1330, %v1330
      %v1395 = vpack.c.b16 %v1331, %v1331
      %v1396 = vpack.c.b16 %v1332, %v1332
      %v1397 = vpack.c.b16 %v1333, %v1333
      %v1398 = vpack.c.b16 %v1334, %v1334
      %v1399 = vpack.c.b16 %v1335, %v1335
      %v1400 = vpack.c.b16 %v1336, %v1336
      %v1401 = vpack.c.b16 %v1337, %v1337
      %v1402 = vpack.c.b16 %v1338, %v1338
      %1467 = vst [vmem:[%s264] sm:$0xf] %v1339
      %1468 = vst [vmem:[%s264 + $0x4] sm:$0xf] %v1340
      %1469 = vst [vmem:[%s264 + $0x8] sm:$0xf] %v1341
      %1470 = vst [vmem:[%s264 + $0xc] sm:$0xf] %v1342
      %1471 = vst [vmem:[%s264 + $0x10] sm:$0xf] %v1343
      %1472 = vst [vmem:[%s264 + $0x14] sm:$0xf] %v1344
      %1473 = vst [vmem:[%s264 + $0x18] sm:$0xf] %v1345
      %1474 = vst [vmem:[%s264 + $0x1c] sm:$0xf] %v1346
      %1475 = vst [vmem:[%s264 + $0x20] sm:$0xf] %v1347
      %1476 = vst [vmem:[%s264 + $0x24] sm:$0xf] %v1348
      %1477 = vst [vmem:[%s264 + $0x28] sm:$0xf] %v1349
      %1478 = vst [vmem:[%s264 + $0x2c] sm:$0xf] %v1350
      %1479 = vst [vmem:[%s264 + $0x30] sm:$0xf] %v1351
      %1480 = vst [vmem:[%s264 + $0x34] sm:$0xf] %v1352
      %1481 = vst [vmem:[%s264 + $0x38] sm:$0xf] %v1353
      %1482 = vst [vmem:[%s264 + $0x3c] sm:$0xf] %v1354
      %1483 = vst [vmem:[%s264 + $0x40] sm:$0xf] %v1355
      %1484 = vst [vmem:[%s264 + $0x44] sm:$0xf] %v1356
      %1485 = vst [vmem:[%s264 + $0x48] sm:$0xf] %v1357
      %1486 = vst [vmem:[%s264 + $0x4c] sm:$0xf] %v1358
      %1487 = vst [vmem:[%s264 + $0x50] sm:$0xf] %v1359
      %1488 = vst [vmem:[%s264 + $0x54] sm:$0xf] %v1360
      %1489 = vst [vmem:[%s264 + $0x58] sm:$0xf] %v1361
      %1490 = vst [vmem:[%s264 + $0x5c] sm:$0xf] %v1362
      %1491 = vst [vmem:[%s264 + $0x60] sm:$0xf] %v1363
      %1492 = vst [vmem:[%s264 + $0x64] sm:$0xf] %v1364
      %1493 = vst [vmem:[%s264 + $0x68] sm:$0xf] %v1365
      %1494 = vst [vmem:[%s264 + $0x6c] sm:$0xf] %v1366
      %1495 = vst [vmem:[%s264 + $0x70] sm:$0xf] %v1367
      %1496 = vst [vmem:[%s264 + $0x74] sm:$0xf] %v1368
      %1497 = vst [vmem:[%s264 + $0x78] sm:$0xf] %v1369
      %1498 = vst [vmem:[%s264 + $0x7c] sm:$0xf] %v1370
      %1499 = vst [vmem:[%s264 + $0x80] sm:$0xf] %v1371
      %1500 = vst [vmem:[%s264 + $0x84] sm:$0xf] %v1372
      %1501 = vst [vmem:[%s264 + $0x88] sm:$0xf] %v1373
      %1502 = vst [vmem:[%s264 + $0x8c] sm:$0xf] %v1374
      %1503 = vst [vmem:[%s264 + $0x90] sm:$0xf] %v1375
      %1504 = vst [vmem:[%s264 + $0x94] sm:$0xf] %v1376
      %1505 = vst [vmem:[%s264 + $0x98] sm:$0xf] %v1377
      %1506 = vst [vmem:[%s264 + $0x9c] sm:$0xf] %v1378
      %1507 = vst [vmem:[%s264 + $0xa0] sm:$0xf] %v1379
      %1508 = vst [vmem:[%s264 + $0xa4] sm:$0xf] %v1380
      %1509 = vst [vmem:[%s264 + $0xa8] sm:$0xf] %v1381
      %1510 = vst [vmem:[%s264 + $0xac] sm:$0xf] %v1382
      %1511 = vst [vmem:[%s264 + $0xb0] sm:$0xf] %v1383
      %1512 = vst [vmem:[%s264 + $0xb4] sm:$0xf] %v1384
      %1513 = vst [vmem:[%s264 + $0xb8] sm:$0xf] %v1385
      %1514 = vst [vmem:[%s264 + $0xbc] sm:$0xf] %v1386
      %1515 = vst [vmem:[%s264 + $0xc0] sm:$0xf] %v1387
      %1516 = vst [vmem:[%s264 + $0xc4] sm:$0xf] %v1388
      %1517 = vst [vmem:[%s264 + $0xc8] sm:$0xf] %v1389
      %1518 = vst [vmem:[%s264 + $0xcc] sm:$0xf] %v1390
      %1519 = vst [vmem:[%s264 + $0xd0] sm:$0xf] %v1391
      %1520 = vst [vmem:[%s264 + $0xd4] sm:$0xf] %v1392
      %1521 = vst [vmem:[%s264 + $0xd8] sm:$0xf] %v1393
      %1522 = vst [vmem:[%s264 + $0xdc] sm:$0xf] %v1394
      %1523 = vst [vmem:[%s264 + $0xe0] sm:$0xf] %v1395
      %1524 = vst [vmem:[%s264 + $0xe4] sm:$0xf] %v1396
      %1525 = vst [vmem:[%s264 + $0xe8] sm:$0xf] %v1397
      %1526 = vst [vmem:[%s264 + $0xec] sm:$0xf] %v1398
      %1527 = vst [vmem:[%s264 + $0xf0] sm:$0xf] %v1399
      %1528 = vst [vmem:[%s264 + $0xf4] sm:$0xf] %v1400
      %1529 = vst [vmem:[%s264 + $0xf8] sm:$0xf] %v1401
      %1530 = vst [vmem:[%s264 + $0xfc] sm:$0xf] %v1402
      %s1531 = smul.u32 64, %s19
      %p1532 = scmp.lt.s32.totalorder %s1531, 511
      %s1533 = scalar_select %p1532, %s1531, 511
      %p1534 = scmp.lt.s32.totalorder %s20, 0
      %s1535 = scalar_select %p1534, %s20, 0
      %s1536 = sadd.s32 %s1535, %s1533
      %s1537 = smul.addr %s1536, 4
      %s1538 = scalar_lea.vmem %s4, %s1537
      // Predicated region
      $region37: #{generator_forward.9} parent=35 // pred_check
        %p1539 = pneg %p151
      $region38: #{generator_forward.9} parent=35 // pred_check_branch
        %1541 = sbr.rel (%p1539) target = $region40
      $region39: #{generator_forward.9} parent=35 // pred_region
        %s1542 = smul.u32 64, %s19
      $region40: #{generator_forward.9} parent=35 // pred_fallthru
        _
    $region36: #{generator_forward.9} parent=5 // pred_fallthru
      _
    %p1543 = scmp.le.s32.totalorder 2, %s10
    // Predicated region
    $region41: #{generator_forward.9} parent=5 // pred_check
      %p1544 = pneg %p1543
    $region42: #{generator_forward.9} parent=5 // pred_check_branch
      %1546 = sbr.rel (%p1544) target = $region44
    $region43: #{generator_forward.9} parent=5 // pred_region
      %s1547 = ssub.s32 %s10, 2
      // Predicated region
      $region45: #{generator_forward.9} parent=43 // pred_check
        %p1548 = pneg %p157
      $region46: #{generator_forward.9} parent=43 // pred_check_branch
        %1550 = sbr.rel (%p1548) target = $region48
      $region47: #{generator_forward.9} parent=43 // pred_region
        %s1551 = smul.u32 64, %s21
        %p1552 = scmp.lt.s32.totalorder %s1551, 511
        %s1553 = scalar_select %p1552, %s1551, 511
        %p1554 = scmp.lt.s32.totalorder %s22, 0
        %s1555 = scalar_select %p1554, %s22, 0
        %s1556 = sadd.s32 %s1555, %s1553
        %s1557 = smul.addr %s1556, 4
        %s1558 = scalar_lea.vmem %s4, %s1557
      $region48: #{generator_forward.9} parent=43 // pred_fallthru
        _
    $region44: #{generator_forward.9} parent=5 // pred_fallthru
      _
  $region6: #{generator_forward.9} parent=0 // loop_footer
    %s14 = sadd.s32 1, %s10
  $region7: #{generator_forward.9} parent=0 // loop_footer_branch
    %9 = sbr.rel target = $region3
  $region8: #{generator_forward.9} parent=0 // loop_exit
    _

// kernel: generator_forward.10
$region0: #{generator_forward.10}
  #allocation0 [shape = 'u32[]', space=smem, size = 0x4, offset = 0x4, fixed_abs, tag = 'smem constant byte address 0x4 - core index']
  #allocation1 [shape = 'u32[144,128]{1,0:T(1,128)}', space=vmem, size = 0x12000, scoped, tag = 'internal scratch']
  %s0 = inlined_call_operand.vmem [shape: bf16[1024,256], index: 0, kind: input, shape index: {}]
  %s1 = inlined_call_operand.vmem [shape: bf16[256,128], index: 1, kind: input, shape index: {}]
  %s2 = inlined_call_operand.vmem [shape: f32[1,128], index: 2, kind: input, shape index: {}]
  %s3 = inlined_call_operand.vmem [shape: f32[1,128], index: 3, kind: input, shape index: {}]
  %s4 = inlined_call_operand.vmem [shape: bf16[1024,128], index: 4, kind: output, shape index: {}]
  %s5 = sld [smem:[#allocation0]]
  $region26: #{generator_forward.10} parent=0
    _
  %s7 = ssub.s32 1, %s5
  %s8 = scalar_select 0, %s7, %s5
  // Predicated region
  $region2: #{generator_forward.10} parent=0 // pred_check
    _
  $region3: #{generator_forward.10} parent=0 // pred_check_branch
    %10 = sbr.rel (0) target = $region5
  $region4: #{generator_forward.10} parent=0 // pred_region
    _
  $region5: #{generator_forward.10} parent=0 // pred_fallthru
    _
  // Predicated region
  $region6: #{generator_forward.10} parent=0 // pred_check
    _
  $region7: #{generator_forward.10} parent=0 // pred_check_branch
    %12 = sbr.rel (0) target = $region9
  $region8: #{generator_forward.10} parent=0 // pred_region
    _
  $region9: #{generator_forward.10} parent=0 // pred_fallthru
    _
  // Predicated region
  $region10: #{generator_forward.10} parent=0 // pred_check
    _
  $region11: #{generator_forward.10} parent=0 // pred_check_branch
    %14 = sbr.rel (0) target = $region13
  $region12: #{generator_forward.10} parent=0 // pred_region
    _
  $region13: #{generator_forward.10} parent=0 // pred_fallthru
    _
  // Predicated region
  $region14: #{generator_forward.10} parent=0 // pred_check
    _
  $region15: #{generator_forward.10} parent=0 // pred_check_branch
    %16 = sbr.rel (0) target = $region17
  $region16: #{generator_forward.10} parent=0 // pred_region
    _
  $region17: #{generator_forward.10} parent=0 // pred_fallthru
    _
  %v19 = vld [vmem:[%s0] sm:$0xff]
  %v20 = vld [vmem:[%s0 + $0x8] sm:$0xff]
  %v21 = vld [vmem:[%s0 + $0x10] sm:$0xff]
  %v22 = vld [vmem:[%s0 + $0x18] sm:$0xff]
  %v23 = vld [vmem:[%s0 + $0x20] sm:$0xff]
  %v24 = vld [vmem:[%s0 + $0x28] sm:$0xff]
  %v25 = vld [vmem:[%s0 + $0x30] sm:$0xff]
  %v26 = vld [vmem:[%s0 + $0x38] sm:$0xff]
  %v27 = vld [vmem:[%s0 + $0x40] sm:$0xff]
  %v28 = vld [vmem:[%s0 + $0x48] sm:$0xff]
  %v29 = vld [vmem:[%s0 + $0x50] sm:$0xff]
  %v30 = vld [vmem:[%s0 + $0x58] sm:$0xff]
  %v31 = vld [vmem:[%s0 + $0x60] sm:$0xff]
  %v32 = vld [vmem:[%s0 + $0x68] sm:$0xff]
  %v33 = vld [vmem:[%s0 + $0x70] sm:$0xff]
  %v34 = vld [vmem:[%s0 + $0x78] sm:$0xff]
  %v35 = vld [vmem:[%s0 + $0x80] sm:$0xff]
  %v36 = vld [vmem:[%s0 + $0x88] sm:$0xff]
  %v37 = vld [vmem:[%s0 + $0x90] sm:$0xff]
  %v38 = vld [vmem:[%s0 + $0x98] sm:$0xff]
  %v39 = vld [vmem:[%s0 + $0xa0] sm:$0xff]
  %v40 = vld [vmem:[%s0 + $0xa8] sm:$0xff]
  %v41 = vld [vmem:[%s0 + $0xb0] sm:$0xff]
  %v42 = vld [vmem:[%s0 + $0xb8] sm:$0xff]
  %v43 = vld [vmem:[%s0 + $0xc0] sm:$0xff]
  %v44 = vld [vmem:[%s0 + $0xc8] sm:$0xff]
  %v45 = vld [vmem:[%s0 + $0xd0] sm:$0xff]
  %v46 = vld [vmem:[%s0 + $0xd8] sm:$0xff]
  %v47 = vld [vmem:[%s0 + $0xe0] sm:$0xff]
  %v48 = vld [vmem:[%s0 + $0xe8] sm:$0xff]
  %v49 = vld [vmem:[%s0 + $0xf0] sm:$0xff]
  %v50 = vld [vmem:[%s0 + $0xf8] sm:$0xff]
  %v51 = vld [vmem:[%s0 + $0x100] sm:$0xff]
  %v52 = vld [vmem:[%s0 + $0x108] sm:$0xff]
  %v53 = vld [vmem:[%s0 + $0x110] sm:$0xff]
  %v54 = vld [vmem:[%s0 + $0x118] sm:$0xff]
  %v55 = vld [vmem:[%s0 + $0x120] sm:$0xff]
  %v56 = vld [vmem:[%s0 + $0x128] sm:$0xff]
  %v57 = vld [vmem:[%s0 + $0x130] sm:$0xff]
  %v58 = vld [vmem:[%s0 + $0x138] sm:$0xff]
  %v59 = vld [vmem:[%s0 + $0x140] sm:$0xff]
  %v60 = vld [vmem:[%s0 + $0x148] sm:$0xff]
  %v61 = vld [vmem:[%s0 + $0x150] sm:$0xff]
  %v62 = vld [vmem:[%s0 + $0x158] sm:$0xff]
  %v63 = vld [vmem:[%s0 + $0x160] sm:$0xff]
  %v64 = vld [vmem:[%s0 + $0x168] sm:$0xff]
  %v65 = vld [vmem:[%s0 + $0x170] sm:$0xff]
  %v66 = vld [vmem:[%s0 + $0x178] sm:$0xff]
  %v67 = vld [vmem:[%s0 + $0x180] sm:$0xff]
  %v68 = vld [vmem:[%s0 + $0x188] sm:$0xff]
  %v69 = vld [vmem:[%s0 + $0x190] sm:$0xff]
  %v70 = vld [vmem:[%s0 + $0x198] sm:$0xff]
  %v71 = vld [vmem:[%s0 + $0x1a0] sm:$0xff]
  %v72 = vld [vmem:[%s0 + $0x1a8] sm:$0xff]
  %v73 = vld [vmem:[%s0 + $0x1b0] sm:$0xff]
  %v74 = vld [vmem:[%s0 + $0x1b8] sm:$0xff]
  %v75 = vld [vmem:[%s0 + $0x1c0] sm:$0xff]
  %v76 = vld [vmem:[%s0 + $0x1c8] sm:$0xff]
  %v77 = vld [vmem:[%s0 + $0x1d0] sm:$0xff]
  %v78 = vld [vmem:[%s0 + $0x1d8] sm:$0xff]
  %v79 = vld [vmem:[%s0 + $0x1e0] sm:$0xff]
  %v80 = vld [vmem:[%s0 + $0x1e8] sm:$0xff]
  %v81 = vld [vmem:[%s0 + $0x1f0] sm:$0xff]
  %v82 = vld [vmem:[%s0 + $0x1f8] sm:$0xff]
  %v83 = vld [vmem:[%s0 + $0x200] sm:$0xff]
  %v84 = vld [vmem:[%s0 + $0x208] sm:$0xff]
  %v85 = vld [vmem:[%s0 + $0x210] sm:$0xff]
  %v86 = vld [vmem:[%s0 + $0x218] sm:$0xff]
  %v87 = vld [vmem:[%s0 + $0x220] sm:$0xff]
  %v88 = vld [vmem:[%s0 + $0x228] sm:$0xff]
  %v89 = vld [vmem:[%s0 + $0x230] sm:$0xff]
  %v90 = vld [vmem:[%s0 + $0x238] sm:$0xff]
  %v91 = vld [vmem:[%s0 + $0x240] sm:$0xff]
  %v92 = vld [vmem:[%s0 + $0x248] sm:$0xff]
  %v93 = vld [vmem:[%s0 + $0x250] sm:$0xff]
  %v94 = vld [vmem:[%s0 + $0x258] sm:$0xff]
  %v95 = vld [vmem:[%s0 + $0x260] sm:$0xff]
  %v96 = vld [vmem:[%s0 + $0x268] sm:$0xff]
  %v97 = vld [vmem:[%s0 + $0x270] sm:$0xff]
  %v98 = vld [vmem:[%s0 + $0x278] sm:$0xff]
  %v99 = vld [vmem:[%s0 + $0x280] sm:$0xff]
  %v100 = vld [vmem:[%s0 + $0x288] sm:$0xff]
  %v101 = vld [vmem:[%s0 + $0x290] sm:$0xff]
  %v102 = vld [vmem:[%s0 + $0x298] sm:$0xff]
  %v103 = vld [vmem:[%s0 + $0x2a0] sm:$0xff]
  %v104 = vld [vmem:[%s0 + $0x2a8] sm:$0xff]
  %v105 = vld [vmem:[%s0 + $0x2b0] sm:$0xff]
  %v106 = vld [vmem:[%s0 + $0x2b8] sm:$0xff]
  %v107 = vld [vmem:[%s0 + $0x2c0] sm:$0xff]
  %v108 = vld [vmem:[%s0 + $0x2c8] sm:$0xff]
  %v109 = vld [vmem:[%s0 + $0x2d0] sm:$0xff]
  %v110 = vld [vmem:[%s0 + $0x2d8] sm:$0xff]
  %v111 = vld [vmem:[%s0 + $0x2e0] sm:$0xff]
  %v112 = vld [vmem:[%s0 + $0x2e8] sm:$0xff]
  %v113 = vld [vmem:[%s0 + $0x2f0] sm:$0xff]
  %v114 = vld [vmem:[%s0 + $0x2f8] sm:$0xff]
  %v115 = vld [vmem:[%s0 + $0x300] sm:$0xff]
  %v116 = vld [vmem:[%s0 + $0x308] sm:$0xff]
  %v117 = vld [vmem:[%s0 + $0x310] sm:$0xff]
  %v118 = vld [vmem:[%s0 + $0x318] sm:$0xff]
  %v119 = vld [vmem:[%s0 + $0x320] sm:$0xff]
  %v120 = vld [vmem:[%s0 + $0x328] sm:$0xff]
  %v121 = vld [vmem:[%s0 + $0x330] sm:$0xff]
  %v122 = vld [vmem:[%s0 + $0x338] sm:$0xff]
  %v123 = vld [vmem:[%s0 + $0x340] sm:$0xff]
  %v124 = vld [vmem:[%s0 + $0x348] sm:$0xff]
  %v125 = vld [vmem:[%s0 + $0x350] sm:$0xff]
  %v126 = vld [vmem:[%s0 + $0x358] sm:$0xff]
  %v127 = vld [vmem:[%s0 + $0x360] sm:$0xff]
  %v128 = vld [vmem:[%s0 + $0x368] sm:$0xff]
  %v129 = vld [vmem:[%s0 + $0x370] sm:$0xff]
  %v130 = vld [vmem:[%s0 + $0x378] sm:$0xff]
  %v131 = vld [vmem:[%s0 + $0x380] sm:$0xff]
  %v132 = vld [vmem:[%s0 + $0x388] sm:$0xff]
  %v133 = vld [vmem:[%s0 + $0x390] sm:$0xff]
  %v134 = vld [vmem:[%s0 + $0x398] sm:$0xff]
  %v135 = vld [vmem:[%s0 + $0x3a0] sm:$0xff]
  %v136 = vld [vmem:[%s0 + $0x3a8] sm:$0xff]
  %v137 = vld [vmem:[%s0 + $0x3b0] sm:$0xff]
  %v138 = vld [vmem:[%s0 + $0x3b8] sm:$0xff]
  %v139 = vld [vmem:[%s0 + $0x3c0] sm:$0xff]
  %v140 = vld [vmem:[%s0 + $0x3c8] sm:$0xff]
  %v141 = vld [vmem:[%s0 + $0x3d0] sm:$0xff]
  %v142 = vld [vmem:[%s0 + $0x3d8] sm:$0xff]
  %v143 = vld [vmem:[%s0 + $0x3e0] sm:$0xff]
  %v144 = vld [vmem:[%s0 + $0x3e8] sm:$0xff]
  %v145 = vld [vmem:[%s0 + $0x3f0] sm:$0xff]
  %v146 = vld [vmem:[%s0 + $0x3f8] sm:$0xff]
  %vm147 = vcmp.gt.bf16.partialorder %v19, 0
  %vm148 = vcmp.gt.bf16.partialorder %v20, 0
  %vm149 = vcmp.gt.bf16.partialorder %v21, 0
  %vm150 = vcmp.gt.bf16.partialorder %v22, 0
  %vm151 = vcmp.gt.bf16.partialorder %v23, 0
  %vm152 = vcmp.gt.bf16.partialorder %v24, 0
  %vm153 = vcmp.gt.bf16.partialorder %v25, 0
  %vm154 = vcmp.gt.bf16.partialorder %v26, 0
  %vm155 = vcmp.gt.bf16.partialorder %v27, 0
  %vm156 = vcmp.gt.bf16.partialorder %v28, 0
  %vm157 = vcmp.gt.bf16.partialorder %v29, 0
  %vm158 = vcmp.gt.bf16.partialorder %v30, 0
  %vm159 = vcmp.gt.bf16.partialorder %v31, 0
  %vm160 = vcmp.gt.bf16.partialorder %v32, 0
  %vm161 = vcmp.gt.bf16.partialorder %v33, 0
  %vm162 = vcmp.gt.bf16.partialorder %v34, 0
  %vm163 = vcmp.gt.bf16.partialorder %v35, 0
  %vm164 = vcmp.gt.bf16.partialorder %v36, 0
  %vm165 = vcmp.gt.bf16.partialorder %v37, 0
  %vm166 = vcmp.gt.bf16.partialorder %v38, 0
  %vm167 = vcmp.gt.bf16.partialorder %v39, 0
  %vm168 = vcmp.gt.bf16.partialorder %v40, 0
  %vm169 = vcmp.gt.bf16.partialorder %v41, 0
  %vm170 = vcmp.gt.bf16.partialorder %v42, 0
  %vm171 = vcmp.gt.bf16.partialorder %v43, 0
  %vm172 = vcmp.gt.bf16.partialorder %v44, 0
  %vm173 = vcmp.gt.bf16.partialorder %v45, 0
  %vm174 = vcmp.gt.bf16.partialorder %v46, 0
  %vm175 = vcmp.gt.bf16.partialorder %v47, 0
  %vm176 = vcmp.gt.bf16.partialorder %v48, 0
  %vm177 = vcmp.gt.bf16.partialorder %v49, 0
  %vm178 = vcmp.gt.bf16.partialorder %v50, 0
  %vm179 = vcmp.gt.bf16.partialorder %v51, 0
  %vm180 = vcmp.gt.bf16.partialorder %v52, 0
  %vm181 = vcmp.gt.bf16.partialorder %v53, 0
  %vm182 = vcmp.gt.bf16.partialorder %v54, 0
  %vm183 = vcmp.gt.bf16.partialorder %v55, 0
  %vm184 = vcmp.gt.bf16.partialorder %v56, 0
  %vm185 = vcmp.gt.bf16.partialorder %v57, 0
  %vm186 = vcmp.gt.bf16.partialorder %v58, 0
  %vm187 = vcmp.gt.bf16.partialorder %v59, 0
  %vm188 = vcmp.gt.bf16.partialorder %v60, 0
  %vm189 = vcmp.gt.bf16.partialorder %v61, 0
  %vm190 = vcmp.gt.bf16.partialorder %v62, 0
  %vm191 = vcmp.gt.bf16.partialorder %v63, 0
  %vm192 = vcmp.gt.bf16.partialorder %v64, 0
  %vm193 = vcmp.gt.bf16.partialorder %v65, 0
  %vm194 = vcmp.gt.bf16.partialorder %v66, 0
  %vm195 = vcmp.gt.bf16.partialorder %v67, 0
  %vm196 = vcmp.gt.bf16.partialorder %v68, 0
  %vm197 = vcmp.gt.bf16.partialorder %v69, 0
  %vm198 = vcmp.gt.bf16.partialorder %v70, 0
  %vm199 = vcmp.gt.bf16.partialorder %v71, 0
  %vm200 = vcmp.gt.bf16.partialorder %v72, 0
  %vm201 = vcmp.gt.bf16.partialorder %v73, 0
  %vm202 = vcmp.gt.bf16.partialorder %v74, 0
  %vm203 = vcmp.gt.bf16.partialorder %v75, 0
  %vm204 = vcmp.gt.bf16.partialorder %v76, 0
  %vm205 = vcmp.gt.bf16.partialorder %v77, 0
  %vm206 = vcmp.gt.bf16.partialorder %v78, 0
  %vm207 = vcmp.gt.bf16.partialorder %v79, 0
  %vm208 = vcmp.gt.bf16.partialorder %v80, 0
  %vm209 = vcmp.gt.bf16.partialorder %v81, 0
  %vm210 = vcmp.gt.bf16.partialorder %v82, 0
  %vm211 = vcmp.gt.bf16.partialorder %v83, 0
  %vm212 = vcmp.gt.bf16.partialorder %v84, 0
  %vm213 = vcmp.gt.bf16.partialorder %v85, 0
  %vm214 = vcmp.gt.bf16.partialorder %v86, 0
  %vm215 = vcmp.gt.bf16.partialorder %v87, 0
  %vm216 = vcmp.gt.bf16.partialorder %v88, 0
  %vm217 = vcmp.gt.bf16.partialorder %v89, 0
  %vm218 = vcmp.gt.bf16.partialorder %v90, 0
  %vm219 = vcmp.gt.bf16.partialorder %v91, 0
  %vm220 = vcmp.gt.bf16.partialorder %v92, 0
  %vm221 = vcmp.gt.bf16.partialorder %v93, 0
  %vm222 = vcmp.gt.bf16.partialorder %v94, 0
  %vm223 = vcmp.gt.bf16.partialorder %v95, 0
  %vm224 = vcmp.gt.bf16.partialorder %v96, 0
  %vm225 = vcmp.gt.bf16.partialorder %v97, 0
  %vm226 = vcmp.gt.bf16.partialorder %v98, 0
  %vm227 = vcmp.gt.bf16.partialorder %v99, 0
  %vm228 = vcmp.gt.bf16.partialorder %v100, 0
  %vm229 = vcmp.gt.bf16.partialorder %v101, 0
  %vm230 = vcmp.gt.bf16.partialorder %v102, 0
  %vm231 = vcmp.gt.bf16.partialorder %v103, 0
  %vm232 = vcmp.gt.bf16.partialorder %v104, 0
  %vm233 = vcmp.gt.bf16.partialorder %v105, 0
  %vm234 = vcmp.gt.bf16.partialorder %v106, 0
  %vm235 = vcmp.gt.bf16.partialorder %v107, 0
  %vm236 = vcmp.gt.bf16.partialorder %v108, 0
  %vm237 = vcmp.gt.bf16.partialorder %v109, 0
  %vm238 = vcmp.gt.bf16.partialorder %v110, 0
  %vm239 = vcmp.gt.bf16.partialorder %v111, 0
  %vm240 = vcmp.gt.bf16.partialorder %v112, 0
  %vm241 = vcmp.gt.bf16.partialorder %v113, 0
  %vm242 = vcmp.gt.bf16.partialorder %v114, 0
  %vm243 = vcmp.gt.bf16.partialorder %v115, 0
  %vm244 = vcmp.gt.bf16.partialorder %v116, 0
  %vm245 = vcmp.gt.bf16.partialorder %v117, 0
  %vm246 = vcmp.gt.bf16.partialorder %v118, 0
  %vm247 = vcmp.gt.bf16.partialorder %v119, 0
  %vm248 = vcmp.gt.bf16.partialorder %v120, 0
  %vm249 = vcmp.gt.bf16.partialorder %v121, 0
  %vm250 = vcmp.gt.bf16.partialorder %v122, 0
  %vm251 = vcmp.gt.bf16.partialorder %v123, 0
  %vm252 = vcmp.gt.bf16.partialorder %v124, 0
  %vm253 = vcmp.gt.bf16.partialorder %v125, 0
  %vm254 = vcmp.gt.bf16.partialorder %v126, 0
  %vm255 = vcmp.gt.bf16.partialorder %v127, 0
  %vm256 = vcmp.gt.bf16.partialorder %v128, 0
  %vm257 = vcmp.gt.bf16.partialorder %v129, 0
  %vm258 = vcmp.gt.bf16.partialorder %v130, 0
  %vm259 = vcmp.gt.bf16.partialorder %v131, 0
  %vm260 = vcmp.gt.bf16.partialorder %v132, 0
  %vm261 = vcmp.gt.bf16.partialorder %v133, 0
  %vm262 = vcmp.gt.bf16.partialorder %v134, 0
  %vm263 = vcmp.gt.bf16.partialorder %v135, 0
  %vm264 = vcmp.gt.bf16.partialorder %v136, 0
  %vm265 = vcmp.gt.bf16.partialorder %v137, 0
  %vm266 = vcmp.gt.bf16.partialorder %v138, 0
  %vm267 = vcmp.gt.bf16.partialorder %v139, 0
  %vm268 = vcmp.gt.bf16.partialorder %v140, 0
  %vm269 = vcmp.gt.bf16.partialorder %v141, 0
  %vm270 = vcmp.gt.bf16.partialorder %v142, 0
  %vm271 = vcmp.gt.bf16.partialorder %v143, 0
  %vm272 = vcmp.gt.bf16.partialorder %v144, 0
  %vm273 = vcmp.gt.bf16.partialorder %v145, 0
  %vm274 = vcmp.gt.bf16.partialorder %v146, 0
  %v275 = vmul.bf16 %v19, 1045249613
  %v276 = vmul.bf16 %v20, 1045249613
  %v277 = vmul.bf16 %v21, 1045249613
  %v278 = vmul.bf16 %v22, 1045249613
  %v279 = vmul.bf16 %v23, 1045249613
  %v280 = vmul.bf16 %v24, 1045249613
  %v281 = vmul.bf16 %v25, 1045249613
  %v282 = vmul.bf16 %v26, 1045249613
  %v283 = vmul.bf16 %v27, 1045249613
  %v284 = vmul.bf16 %v28, 1045249613
  %v285 = vmul.bf16 %v29, 1045249613
  %v286 = vmul.bf16 %v30, 1045249613
  %v287 = vmul.bf16 %v31, 1045249613
  %v288 = vmul.bf16 %v32, 1045249613
  %v289 = vmul.bf16 %v33, 1045249613
  %v290 = vmul.bf16 %v34, 1045249613
  %v291 = vmul.bf16 %v35, 1045249613
  %v292 = vmul.bf16 %v36, 1045249613
  %v293 = vmul.bf16 %v37, 1045249613
  %v294 = vmul.bf16 %v38, 1045249613
  %v295 = vmul.bf16 %v39, 1045249613
  %v296 = vmul.bf16 %v40, 1045249613
  %v297 = vmul.bf16 %v41, 1045249613
  %v298 = vmul.bf16 %v42, 1045249613
  %v299 = vmul.bf16 %v43, 1045249613
  %v300 = vmul.bf16 %v44, 1045249613
  %v301 = vmul.bf16 %v45, 1045249613
  %v302 = vmul.bf16 %v46, 1045249613
  %v303 = vmul.bf16 %v47, 1045249613
  %v304 = vmul.bf16 %v48, 1045249613
  %v305 = vmul.bf16 %v49, 1045249613
  %v306 = vmul.bf16 %v50, 1045249613
  %v307 = vmul.bf16 %v51, 1045249613
  %v308 = vmul.bf16 %v52, 1045249613
  %v309 = vmul.bf16 %v53, 1045249613
  %v310 = vmul.bf16 %v54, 1045249613
  %v311 = vmul.bf16 %v55, 1045249613
  %v312 = vmul.bf16 %v56, 1045249613
  %v313 = vmul.bf16 %v57, 1045249613
  %v314 = vmul.bf16 %v58, 1045249613
  %v315 = vmul.bf16 %v59, 1045249613
  %v316 = vmul.bf16 %v60, 1045249613
  %v317 = vmul.bf16 %v61, 1045249613
  %v318 = vmul.bf16 %v62, 1045249613
  %v319 = vmul.bf16 %v63, 1045249613
  %v320 = vmul.bf16 %v64, 1045249613
  %v321 = vmul.bf16 %v65, 1045249613
  %v322 = vmul.bf16 %v66, 1045249613
  %v323 = vmul.bf16 %v67, 1045249613
  %v324 = vmul.bf16 %v68, 1045249613
  %v325 = vmul.bf16 %v69, 1045249613
  %v326 = vmul.bf16 %v70, 1045249613
  %v327 = vmul.bf16 %v71, 1045249613
  %v328 = vmul.bf16 %v72, 1045249613
  %v329 = vmul.bf16 %v73, 1045249613
  %v330 = vmul.bf16 %v74, 1045249613
  %v331 = vmul.bf16 %v75, 1045249613
  %v332 = vmul.bf16 %v76, 1045249613
  %v333 = vmul.bf16 %v77, 1045249613
  %v334 = vmul.bf16 %v78, 1045249613
  %v335 = vmul.bf16 %v79, 1045249613
  %v336 = vmul.bf16 %v80, 1045249613
  %v337 = vmul.bf16 %v81, 1045249613
  %v338 = vmul.bf16 %v82, 1045249613
  %v339 = vmul.bf16 %v83, 1045249613
  %v340 = vmul.bf16 %v84, 1045249613
  %v341 = vmul.bf16 %v85, 1045249613
  %v342 = vmul.bf16 %v86, 1045249613
  %v343 = vmul.bf16 %v87, 1045249613
  %v344 = vmul.bf16 %v88, 1045249613
  %v345 = vmul.bf16 %v89, 1045249613
  %v346 = vmul.bf16 %v90, 1045249613
  %v347 = vmul.bf16 %v91, 1045249613
  %v348 = vmul.bf16 %v92, 1045249613
  %v349 = vmul.bf16 %v93, 1045249613
  %v350 = vmul.bf16 %v94, 1045249613
  %v351 = vmul.bf16 %v95, 1045249613
  %v352 = vmul.bf16 %v96, 1045249613
  %v353 = vmul.bf16 %v97, 1045249613
  %v354 = vmul.bf16 %v98, 1045249613
  %v355 = vmul.bf16 %v99, 1045249613
  %v356 = vmul.bf16 %v100, 1045249613
  %v357 = vmul.bf16 %v101, 1045249613
  %v358 = vmul.bf16 %v102, 1045249613
  %v359 = vmul.bf16 %v103, 1045249613
  %v360 = vmul.bf16 %v104, 1045249613
  %v361 = vmul.bf16 %v105, 1045249613
  %v362 = vmul.bf16 %v106, 1045249613
  %v363 = vmul.bf16 %v107, 1045249613
  %v364 = vmul.bf16 %v108, 1045249613
  %v365 = vmul.bf16 %v109, 1045249613
  %v366 = vmul.bf16 %v110, 1045249613
  %v367 = vmul.bf16 %v111, 1045249613
  %v368 = vmul.bf16 %v112, 1045249613
  %v369 = vmul.bf16 %v113, 1045249613
  %v370 = vmul.bf16 %v114, 1045249613
  %v371 = vmul.bf16 %v115, 1045249613
  %v372 = vmul.bf16 %v116, 1045249613
  %v373 = vmul.bf16 %v117, 1045249613
  %v374 = vmul.bf16 %v118, 1045249613
  %v375 = vmul.bf16 %v119, 1045249613
  %v376 = vmul.bf16 %v120, 1045249613
  %v377 = vmul.bf16 %v121, 1045249613
  %v378 = vmul.bf16 %v122, 1045249613
  %v379 = vmul.bf16 %v123, 1045249613
  %v380 = vmul.bf16 %v124, 1045249613
  %v381 = vmul.bf16 %v125, 1045249613
  %v382 = vmul.bf16 %v126, 1045249613
  %v383 = vmul.bf16 %v127, 1045249613
  %v384 = vmul.bf16 %v128, 1045249613
  %v385 = vmul.bf16 %v129, 1045249613
  %v386 = vmul.bf16 %v130, 1045249613
  %v387 = vmul.bf16 %v131, 1045249613
  %v388 = vmul.bf16 %v132, 1045249613
  %v389 = vmul.bf16 %v133, 1045249613
  %v390 = vmul.bf16 %v134, 1045249613
  %v391 = vmul.bf16 %v135, 1045249613
  %v392 = vmul.bf16 %v136, 1045249613
  %v393 = vmul.bf16 %v137, 1045249613
  %v394 = vmul.bf16 %v138, 1045249613
  %v395 = vmul.bf16 %v139, 1045249613
  %v396 = vmul.bf16 %v140, 1045249613
  %v397 = vmul.bf16 %v141, 1045249613
  %v398 = vmul.bf16 %v142, 1045249613
  %v399 = vmul.bf16 %v143, 1045249613
  %v400 = vmul.bf16 %v144, 1045249613
  %v401 = vmul.bf16 %v145, 1045249613
  %v402 = vmul.bf16 %v146, 1045249613
  %v403 = vsel %vm147, %v19, %v275
  %v404 = vsel %vm148, %v20, %v276
  %v405 = vsel %vm149, %v21, %v277
  %v406 = vsel %vm150, %v22, %v278
  %v407 = vsel %vm151, %v23, %v279
  %v408 = vsel %vm152, %v24, %v280
  %v409 = vsel %vm153, %v25, %v281
  %v410 = vsel %vm154, %v26, %v282
  %v411 = vsel %vm155, %v27, %v283
  %v412 = vsel %vm156, %v28, %v284
  %v413 = vsel %vm157, %v29, %v285
  %v414 = vsel %vm158, %v30, %v286
  %v415 = vsel %vm159, %v31, %v287
  %v416 = vsel %vm160, %v32, %v288
  %v417 = vsel %vm161, %v33, %v289
  %v418 = vsel %vm162, %v34, %v290
  %v419 = vsel %vm163, %v35, %v291
  %v420 = vsel %vm164, %v36, %v292
  %v421 = vsel %vm165, %v37, %v293
  %v422 = vsel %vm166, %v38, %v294
  %v423 = vsel %vm167, %v39, %v295
  %v424 = vsel %vm168, %v40, %v296
  %v425 = vsel %vm169, %v41, %v297
  %v426 = vsel %vm170, %v42, %v298
  %v427 = vsel %vm171, %v43, %v299
  %v428 = vsel %vm172, %v44, %v300
  %v429 = vsel %vm173, %v45, %v301
  %v430 = vsel %vm174, %v46, %v302
  %v431 = vsel %vm175, %v47, %v303
  %v432 = vsel %vm176, %v48, %v304
  %v433 = vsel %vm177, %v49, %v305
  %v434 = vsel %vm178, %v50, %v306
  %v435 = vsel %vm179, %v51, %v307
  %v436 = vsel %vm180, %v52, %v308
  %v437 = vsel %vm181, %v53, %v309
  %v438 = vsel %vm182, %v54, %v310
  %v439 = vsel %vm183, %v55, %v311
  %v440 = vsel %vm184, %v56, %v312
  %v441 = vsel %vm185, %v57, %v313
  %v442 = vsel %vm186, %v58, %v314
  %v443 = vsel %vm187, %v59, %v315
  %v444 = vsel %vm188, %v60, %v316
  %v445 = vsel %vm189, %v61, %v317
  %v446 = vsel %vm190, %v62, %v318
  %v447 = vsel %vm191, %v63, %v319
  %v448 = vsel %vm192, %v64, %v320
  %v449 = vsel %vm193, %v65, %v321
  %v450 = vsel %vm194, %v66, %v322
  %v451 = vsel %vm195, %v67, %v323
  %v452 = vsel %vm196, %v68, %v324
  %v453 = vsel %vm197, %v69, %v325
  %v454 = vsel %vm198, %v70, %v326
  %v455 = vsel %vm199, %v71, %v327
  %v456 = vsel %vm200, %v72, %v328
  %v457 = vsel %vm201, %v73, %v329
  %v458 = vsel %vm202, %v74, %v330
  %v459 = vsel %vm203, %v75, %v331
  %v460 = vsel %vm204, %v76, %v332
  %v461 = vsel %vm205, %v77, %v333
  %v462 = vsel %vm206, %v78, %v334
  %v463 = vsel %vm207, %v79, %v335
  %v464 = vsel %vm208, %v80, %v336
  %v465 = vsel %vm209, %v81, %v337
  %v466 = vsel %vm210, %v82, %v338
  %v467 = vsel %vm211, %v83, %v339
  %v468 = vsel %vm212, %v84, %v340
  %v469 = vsel %vm213, %v85, %v341
  %v470 = vsel %vm214, %v86, %v342
  %v471 = vsel %vm215, %v87, %v343
  %v472 = vsel %vm216, %v88, %v344
  %v473 = vsel %vm217, %v89, %v345
  %v474 = vsel %vm218, %v90, %v346
  %v475 = vsel %vm219, %v91, %v347
  %v476 = vsel %vm220, %v92, %v348
  %v477 = vsel %vm221, %v93, %v349
  %v478 = vsel %vm222, %v94, %v350
  %v479 = vsel %vm223, %v95, %v351
  %v480 = vsel %vm224, %v96, %v352
  %v481 = vsel %vm225, %v97, %v353
  %v482 = vsel %vm226, %v98, %v354
  %v483 = vsel %vm227, %v99, %v355
  %v484 = vsel %vm228, %v100, %v356
  %v485 = vsel %vm229, %v101, %v357
  %v486 = vsel %vm230, %v102, %v358
  %v487 = vsel %vm231, %v103, %v359
  %v488 = vsel %vm232, %v104, %v360
  %v489 = vsel %vm233, %v105, %v361
  %v490 = vsel %vm234, %v106, %v362
  %v491 = vsel %vm235, %v107, %v363
  %v492 = vsel %vm236, %v108, %v364
  %v493 = vsel %vm237, %v109, %v365
  %v494 = vsel %vm238, %v110, %v366
  %v495 = vsel %vm239, %v111, %v367
  %v496 = vsel %vm240, %v112, %v368
  %v497 = vsel %vm241, %v113, %v369
  %v498 = vsel %vm242, %v114, %v370
  %v499 = vsel %vm243, %v115, %v371
  %v500 = vsel %vm244, %v116, %v372
  %v501 = vsel %vm245, %v117, %v373
  %v502 = vsel %vm246, %v118, %v374
  %v503 = vsel %vm247, %v119, %v375
  %v504 = vsel %vm248, %v120, %v376
  %v505 = vsel %vm249, %v121, %v377
  %v506 = vsel %vm250, %v122, %v378
  %v507 = vsel %vm251, %v123, %v379
  %v508 = vsel %vm252, %v124, %v380
  %v509 = vsel %vm253, %v125, %v381
  %v510 = vsel %vm254, %v126, %v382
  %v511 = vsel %vm255, %v127, %v383
  %v512 = vsel %vm256, %v128, %v384
  %v513 = vsel %vm257, %v129, %v385
  %v514 = vsel %vm258, %v130, %v386
  %v515 = vsel %vm259, %v131, %v387
  %v516 = vsel %vm260, %v132, %v388
  %v517 = vsel %vm261, %v133, %v389
  %v518 = vsel %vm262, %v134, %v390
  %v519 = vsel %vm263, %v135, %v391
  %v520 = vsel %vm264, %v136, %v392
  %v521 = vsel %vm265, %v137, %v393
  %v522 = vsel %vm266, %v138, %v394
  %v523 = vsel %vm267, %v139, %v395
  %v524 = vsel %vm268, %v140, %v396
  %v525 = vsel %vm269, %v141, %v397
  %v526 = vsel %vm270, %v142, %v398
  %v527 = vsel %vm271, %v143, %v399
  %v528 = vsel %vm272, %v144, %v400
  %v529 = vsel %vm273, %v145, %v401
  %v530 = vsel %vm274, %v146, %v402
  %v531 = vld [vmem:[%s1] sm:$0xf]
  %v532 = vld [vmem:[%s1 + $0x4] sm:$0xf]
  %v533 = vld [vmem:[%s1 + $0x8] sm:$0xf]
  %v534 = vld [vmem:[%s1 + $0xc] sm:$0xf]
  %v535 = vld [vmem:[%s1 + $0x10] sm:$0xf]
  %v536 = vld [vmem:[%s1 + $0x14] sm:$0xf]
  %v537 = vld [vmem:[%s1 + $0x18] sm:$0xf]
  %v538 = vld [vmem:[%s1 + $0x1c] sm:$0xf]
  %v539 = vld [vmem:[%s1 + $0x20] sm:$0xf]
  %v540 = vld [vmem:[%s1 + $0x24] sm:$0xf]
  %v541 = vld [vmem:[%s1 + $0x28] sm:$0xf]
  %v542 = vld [vmem:[%s1 + $0x2c] sm:$0xf]
  %v543 = vld [vmem:[%s1 + $0x30] sm:$0xf]
  %v544 = vld [vmem:[%s1 + $0x34] sm:$0xf]
  %v545 = vld [vmem:[%s1 + $0x38] sm:$0xf]
  %v546 = vld [vmem:[%s1 + $0x3c] sm:$0xf]
  %v547 = vld [vmem:[%s1 + $0x40] sm:$0xf]
  %v548 = vld [vmem:[%s1 + $0x44] sm:$0xf]
  %v549 = vld [vmem:[%s1 + $0x48] sm:$0xf]
  %v550 = vld [vmem:[%s1 + $0x4c] sm:$0xf]
  %v551 = vld [vmem:[%s1 + $0x50] sm:$0xf]
  %v552 = vld [vmem:[%s1 + $0x54] sm:$0xf]
  %v553 = vld [vmem:[%s1 + $0x58] sm:$0xf]
  %v554 = vld [vmem:[%s1 + $0x5c] sm:$0xf]
  %v555 = vld [vmem:[%s1 + $0x60] sm:$0xf]
  %v556 = vld [vmem:[%s1 + $0x64] sm:$0xf]
  %v557 = vld [vmem:[%s1 + $0x68] sm:$0xf]
  %v558 = vld [vmem:[%s1 + $0x6c] sm:$0xf]
  %v559 = vld [vmem:[%s1 + $0x70] sm:$0xf]
  %v560 = vld [vmem:[%s1 + $0x74] sm:$0xf]
  %v561 = vld [vmem:[%s1 + $0x78] sm:$0xf]
  %v562 = vld [vmem:[%s1 + $0x7c] sm:$0xf]
  %v691 = vunpack.c.l.b16 %v403
  %v692 = vunpack.c.h.b16 %v403
  %v693 = vunpack.c.l.b16 %v404
  %v694 = vunpack.c.h.b16 %v404
  %v695 = vunpack.c.l.b16 %v405
  %v696 = vunpack.c.h.b16 %v405
  %v697 = vunpack.c.l.b16 %v406
  %v698 = vunpack.c.h.b16 %v406
  %v699 = vunpack.c.l.b16 %v407
  %v700 = vunpack.c.h.b16 %v407
  %v701 = vunpack.c.l.b16 %v408
  %v702 = vunpack.c.h.b16 %v408
  %v703 = vunpack.c.l.b16 %v409
  %v704 = vunpack.c.h.b16 %v409
  %v705 = vunpack.c.l.b16 %v410
  %v706 = vunpack.c.h.b16 %v410
  %v707 = vunpack.c.l.b16 %v411
  %v708 = vunpack.c.h.b16 %v411
  %v709 = vunpack.c.l.b16 %v412
  %v710 = vunpack.c.h.b16 %v412
  %v711 = vunpack.c.l.b16 %v413
  %v712 = vunpack.c.h.b16 %v413
  %v713 = vunpack.c.l.b16 %v414
  %v714 = vunpack.c.h.b16 %v414
  %v715 = vunpack.c.l.b16 %v415
  %v716 = vunpack.c.h.b16 %v415
  %v717 = vunpack.c.l.b16 %v416
  %v718 = vunpack.c.h.b16 %v416
  %v719 = vunpack.c.l.b16 %v417
  %v720 = vunpack.c.h.b16 %v417
  %v721 = vunpack.c.l.b16 %v418
  %v722 = vunpack.c.h.b16 %v418
  %v723 = vunpack.c.l.b16 %v419
  %v724 = vunpack.c.h.b16 %v419
  %v725 = vunpack.c.l.b16 %v420
  %v726 = vunpack.c.h.b16 %v420
  %v727 = vunpack.c.l.b16 %v421
  %v728 = vunpack.c.h.b16 %v421
  %v729 = vunpack.c.l.b16 %v422
  %v730 = vunpack.c.h.b16 %v422
  %v731 = vunpack.c.l.b16 %v423
  %v732 = vunpack.c.h.b16 %v423
  %v733 = vunpack.c.l.b16 %v424
  %v734 = vunpack.c.h.b16 %v424
  %v735 = vunpack.c.l.b16 %v425
  %v736 = vunpack.c.h.b16 %v425
  %v737 = vunpack.c.l.b16 %v426
  %v738 = vunpack.c.h.b16 %v426
  %v739 = vunpack.c.l.b16 %v427
  %v740 = vunpack.c.h.b16 %v427
  %v741 = vunpack.c.l.b16 %v428
  %v742 = vunpack.c.h.b16 %v428
  %v743 = vunpack.c.l.b16 %v429
  %v744 = vunpack.c.h.b16 %v429
  %v745 = vunpack.c.l.b16 %v430
  %v746 = vunpack.c.h.b16 %v430
  %v747 = vunpack.c.l.b16 %v431
  %v748 = vunpack.c.h.b16 %v431
  %v749 = vunpack.c.l.b16 %v432
  %v750 = vunpack.c.h.b16 %v432
  %v751 = vunpack.c.l.b16 %v433
  %v752 = vunpack.c.h.b16 %v433
  %v753 = vunpack.c.l.b16 %v434
  %v754 = vunpack.c.h.b16 %v434
  %v755 = vunpack.c.l.b16 %v435
  %v756 = vunpack.c.h.b16 %v435
  %v757 = vunpack.c.l.b16 %v436
  %v758 = vunpack.c.h.b16 %v436
  %v759 = vunpack.c.l.b16 %v437
  %v760 = vunpack.c.h.b16 %v437
  %v761 = vunpack.c.l.b16 %v438
  %v762 = vunpack.c.h.b16 %v438
  %v763 = vunpack.c.l.b16 %v439
  %v764 = vunpack.c.h.b16 %v439
  %v765 = vunpack.c.l.b16 %v440
  %v766 = vunpack.c.h.b16 %v440
  %v767 = vunpack.c.l.b16 %v441
  %v768 = vunpack.c.h.b16 %v441
  %v769 = vunpack.c.l.b16 %v442
  %v770 = vunpack.c.h.b16 %v442
  %v771 = vunpack.c.l.b16 %v443
  %v772 = vunpack.c.h.b16 %v443
  %v773 = vunpack.c.l.b16 %v444
  %v774 = vunpack.c.h.b16 %v444
  %v775 = vunpack.c.l.b16 %v445
  %v776 = vunpack.c.h.b16 %v445
  %v777 = vunpack.c.l.b16 %v446
  %v778 = vunpack.c.h.b16 %v446
  %v779 = vunpack.c.l.b16 %v447
  %v780 = vunpack.c.h.b16 %v447
  %v781 = vunpack.c.l.b16 %v448
  %v782 = vunpack.c.h.b16 %v448
  %v783 = vunpack.c.l.b16 %v449
  %v784 = vunpack.c.h.b16 %v449
  %v785 = vunpack.c.l.b16 %v450
  %v786 = vunpack.c.h.b16 %v450
  %v787 = vunpack.c.l.b16 %v451
  %v788 = vunpack.c.h.b16 %v451
  %v789 = vunpack.c.l.b16 %v452
  %v790 = vunpack.c.h.b16 %v452
  %v791 = vunpack.c.l.b16 %v453
  %v792 = vunpack.c.h.b16 %v453
  %v793 = vunpack.c.l.b16 %v454
  %v794 = vunpack.c.h.b16 %v454
  %v795 = vunpack.c.l.b16 %v455
  %v796 = vunpack.c.h.b16 %v455
  %v797 = vunpack.c.l.b16 %v456
  %v798 = vunpack.c.h.b16 %v456
  %v799 = vunpack.c.l.b16 %v457
  %v800 = vunpack.c.h.b16 %v457
  %v801 = vunpack.c.l.b16 %v458
  %v802 = vunpack.c.h.b16 %v458
  %v803 = vunpack.c.l.b16 %v459
  %v804 = vunpack.c.h.b16 %v459
  %v805 = vunpack.c.l.b16 %v460
  %v806 = vunpack.c.h.b16 %v460
  %v807 = vunpack.c.l.b16 %v461
  %v808 = vunpack.c.h.b16 %v461
  %v809 = vunpack.c.l.b16 %v462
  %v810 = vunpack.c.h.b16 %v462
  %v811 = vunpack.c.l.b16 %v463
  %v812 = vunpack.c.h.b16 %v463
  %v813 = vunpack.c.l.b16 %v464
  %v814 = vunpack.c.h.b16 %v464
  %v815 = vunpack.c.l.b16 %v465
  %v816 = vunpack.c.h.b16 %v465
  %v817 = vunpack.c.l.b16 %v466
  %v818 = vunpack.c.h.b16 %v466
  %v819 = vunpack.c.l.b16 %v467
  %v820 = vunpack.c.h.b16 %v467
  %v821 = vunpack.c.l.b16 %v468
  %v822 = vunpack.c.h.b16 %v468
  %v823 = vunpack.c.l.b16 %v469
  %v824 = vunpack.c.h.b16 %v469
  %v825 = vunpack.c.l.b16 %v470
  %v826 = vunpack.c.h.b16 %v470
  %v827 = vunpack.c.l.b16 %v471
  %v828 = vunpack.c.h.b16 %v471
  %v829 = vunpack.c.l.b16 %v472
  %v830 = vunpack.c.h.b16 %v472
  %v831 = vunpack.c.l.b16 %v473
  %v832 = vunpack.c.h.b16 %v473
  %v833 = vunpack.c.l.b16 %v474
  %v834 = vunpack.c.h.b16 %v474
  %v835 = vunpack.c.l.b16 %v475
  %v836 = vunpack.c.h.b16 %v475
  %v837 = vunpack.c.l.b16 %v476
  %v838 = vunpack.c.h.b16 %v476
  %v839 = vunpack.c.l.b16 %v477
  %v840 = vunpack.c.h.b16 %v477
  %v841 = vunpack.c.l.b16 %v478
  %v842 = vunpack.c.h.b16 %v478
  %v843 = vunpack.c.l.b16 %v479
  %v844 = vunpack.c.h.b16 %v479
  %v845 = vunpack.c.l.b16 %v480
  %v846 = vunpack.c.h.b16 %v480
  %v847 = vunpack.c.l.b16 %v481
  %v848 = vunpack.c.h.b16 %v481
  %v849 = vunpack.c.l.b16 %v482
  %v850 = vunpack.c.h.b16 %v482
  %v851 = vunpack.c.l.b16 %v483
  %v852 = vunpack.c.h.b16 %v483
  %v853 = vunpack.c.l.b16 %v484
  %v854 = vunpack.c.h.b16 %v484
  %v855 = vunpack.c.l.b16 %v485
  %v856 = vunpack.c.h.b16 %v485
  %v857 = vunpack.c.l.b16 %v486
  %v858 = vunpack.c.h.b16 %v486
  %v859 = vunpack.c.l.b16 %v487
  %v860 = vunpack.c.h.b16 %v487
  %v861 = vunpack.c.l.b16 %v488
  %v862 = vunpack.c.h.b16 %v488
  %v863 = vunpack.c.l.b16 %v489
  %v864 = vunpack.c.h.b16 %v489
  %v865 = vunpack.c.l.b16 %v490
  %v866 = vunpack.c.h.b16 %v490
  %v867 = vunpack.c.l.b16 %v491
  %v868 = vunpack.c.h.b16 %v491
  %v869 = vunpack.c.l.b16 %v492
  %v870 = vunpack.c.h.b16 %v492
  %v871 = vunpack.c.l.b16 %v493
  %v872 = vunpack.c.h.b16 %v493
  %v873 = vunpack.c.l.b16 %v494
  %v874 = vunpack.c.h.b16 %v494
  %v875 = vunpack.c.l.b16 %v495
  %v876 = vunpack.c.h.b16 %v495
  %v877 = vunpack.c.l.b16 %v496
  %v878 = vunpack.c.h.b16 %v496
  %v879 = vunpack.c.l.b16 %v497
  %v880 = vunpack.c.h.b16 %v497
  %v881 = vunpack.c.l.b16 %v498
  %v882 = vunpack.c.h.b16 %v498
  %v883 = vunpack.c.l.b16 %v499
  %v884 = vunpack.c.h.b16 %v499
  %v885 = vunpack.c.l.b16 %v500
  %v886 = vunpack.c.h.b16 %v500
  %v887 = vunpack.c.l.b16 %v501
  %v888 = vunpack.c.h.b16 %v501
  %v889 = vunpack.c.l.b16 %v502
  %v890 = vunpack.c.h.b16 %v502
  %v891 = vunpack.c.l.b16 %v503
  %v892 = vunpack.c.h.b16 %v503
  %v893 = vunpack.c.l.b16 %v504
  %v894 = vunpack.c.h.b16 %v504
  %v895 = vunpack.c.l.b16 %v505
  %v896 = vunpack.c.h.b16 %v505
  %v897 = vunpack.c.l.b16 %v506
  %v898 = vunpack.c.h.b16 %v506
  %v899 = vunpack.c.l.b16 %v507
  %v900 = vunpack.c.h.b16 %v507
  %v901 = vunpack.c.l.b16 %v508
  %v902 = vunpack.c.h.b16 %v508
  %v903 = vunpack.c.l.b16 %v509
  %v904 = vunpack.c.h.b16 %v509
  %v905 = vunpack.c.l.b16 %v510
  %v906 = vunpack.c.h.b16 %v510
  %v907 = vunpack.c.l.b16 %v511
  %v908 = vunpack.c.h.b16 %v511
  %v909 = vunpack.c.l.b16 %v512
  %v910 = vunpack.c.h.b16 %v512
  %v911 = vunpack.c.l.b16 %v513
  %v912 = vunpack.c.h.b16 %v513
  %v913 = vunpack.c.l.b16 %v514
  %v914 = vunpack.c.h.b16 %v514
  %v915 = vunpack.c.l.b16 %v515
  %v916 = vunpack.c.h.b16 %v515
  %v917 = vunpack.c.l.b16 %v516
  %v918 = vunpack.c.h.b16 %v516
  %v919 = vunpack.c.l.b16 %v517
  %v920 = vunpack.c.h.b16 %v517
  %v921 = vunpack.c.l.b16 %v518
  %v922 = vunpack.c.h.b16 %v518
  %v923 = vunpack.c.l.b16 %v519
  %v924 = vunpack.c.h.b16 %v519
  %v925 = vunpack.c.l.b16 %v520
  %v926 = vunpack.c.h.b16 %v520
  %v927 = vunpack.c.l.b16 %v521
  %v928 = vunpack.c.h.b16 %v521
  %v929 = vunpack.c.l.b16 %v522
  %v930 = vunpack.c.h.b16 %v522
  %v931 = vunpack.c.l.b16 %v523
  %v932 = vunpack.c.h.b16 %v523
  %v933 = vunpack.c.l.b16 %v524
  %v934 = vunpack.c.h.b16 %v524
  %v935 = vunpack.c.l.b16 %v525
  %v936 = vunpack.c.h.b16 %v525
  %v937 = vunpack.c.l.b16 %v526
  %v938 = vunpack.c.h.b16 %v526
  %v939 = vunpack.c.l.b16 %v527
  %v940 = vunpack.c.h.b16 %v527
  %v941 = vunpack.c.l.b16 %v528
  %v942 = vunpack.c.h.b16 %v528
  %v943 = vunpack.c.l.b16 %v529
  %v944 = vunpack.c.h.b16 %v529
  %v945 = vunpack.c.l.b16 %v530
  %v946 = vunpack.c.h.b16 %v530
  %v947 = vpack.c.b16 %v693, %v691
  %v948 = vpack.c.b16 %v694, %v692
  %v949 = vpack.c.b16 %v697, %v695
  %v950 = vpack.c.b16 %v698, %v696
  %v951 = vpack.c.b16 %v701, %v699
  %v952 = vpack.c.b16 %v702, %v700
  %v953 = vpack.c.b16 %v705, %v703
  %v954 = vpack.c.b16 %v706, %v704
  %v955 = vpack.c.b16 %v709, %v707
  %v956 = vpack.c.b16 %v710, %v708
  %v957 = vpack.c.b16 %v713, %v711
  %v958 = vpack.c.b16 %v714, %v712
  %v959 = vpack.c.b16 %v717, %v715
  %v960 = vpack.c.b16 %v718, %v716
  %v961 = vpack.c.b16 %v721, %v719
  %v962 = vpack.c.b16 %v722, %v720
  %v963 = vpack.c.b16 %v725, %v723
  %v964 = vpack.c.b16 %v726, %v724
  %v965 = vpack.c.b16 %v729, %v727
  %v966 = vpack.c.b16 %v730, %v728
  %v967 = vpack.c.b16 %v733, %v731
  %v968 = vpack.c.b16 %v734, %v732
  %v969 = vpack.c.b16 %v737, %v735
  %v970 = vpack.c.b16 %v738, %v736
  %v971 = vpack.c.b16 %v741, %v739
  %v972 = vpack.c.b16 %v742, %v740
  %v973 = vpack.c.b16 %v745, %v743
  %v974 = vpack.c.b16 %v746, %v744
  %v975 = vpack.c.b16 %v749, %v747
  %v976 = vpack.c.b16 %v750, %v748
  %v977 = vpack.c.b16 %v753, %v751
  %v978 = vpack.c.b16 %v754, %v752
  %v979 = vpack.c.b16 %v757, %v755
  %v980 = vpack.c.b16 %v758, %v756
  %v981 = vpack.c.b16 %v761, %v759
  %v982 = vpack.c.b16 %v762, %v760
  %v983 = vpack.c.b16 %v765, %v763
  %v984 = vpack.c.b16 %v766, %v764
  %v985 = vpack.c.b16 %v769, %v767
  %v986 = vpack.c.b16 %v770, %v768
  %v987 = vpack.c.b16 %v773, %v771
  %v988 = vpack.c.b16 %v774, %v772
  %v989 = vpack.c.b16 %v777, %v775
  %v990 = vpack.c.b16 %v778, %v776
  %v991 = vpack.c.b16 %v781, %v779
  %v992 = vpack.c.b16 %v782, %v780
  %v993 = vpack.c.b16 %v785, %v783
  %v994 = vpack.c.b16 %v786, %v784
  %v995 = vpack.c.b16 %v789, %v787
  %v996 = vpack.c.b16 %v790, %v788
  %v997 = vpack.c.b16 %v793, %v791
  %v998 = vpack.c.b16 %v794, %v792
  %v999 = vpack.c.b16 %v797, %v795
  %v1000 = vpack.c.b16 %v798, %v796
  %v1001 = vpack.c.b16 %v801, %v799
  %v1002 = vpack.c.b16 %v802, %v800
  %v1003 = vpack.c.b16 %v805, %v803
  %v1004 = vpack.c.b16 %v806, %v804
  %v1005 = vpack.c.b16 %v809, %v807
  %v1006 = vpack.c.b16 %v810, %v808
  %v1007 = vpack.c.b16 %v813, %v811
  %v1008 = vpack.c.b16 %v814, %v812
  %v1009 = vpack.c.b16 %v817, %v815
  %v1010 = vpack.c.b16 %v818, %v816
  %v1011 = vpack.c.b16 %v821, %v819
  %v1012 = vpack.c.b16 %v822, %v820
  %v1013 = vpack.c.b16 %v825, %v823
  %v1014 = vpack.c.b16 %v826, %v824
  %v1015 = vpack.c.b16 %v829, %v827
  %v1016 = vpack.c.b16 %v830, %v828
  %v1017 = vpack.c.b16 %v833, %v831
  %v1018 = vpack.c.b16 %v834, %v832
  %v1019 = vpack.c.b16 %v837, %v835
  %v1020 = vpack.c.b16 %v838, %v836
  %v1021 = vpack.c.b16 %v841, %v839
  %v1022 = vpack.c.b16 %v842, %v840
  %v1023 = vpack.c.b16 %v845, %v843
  %v1024 = vpack.c.b16 %v846, %v844
  %v1025 = vpack.c.b16 %v849, %v847
  %v1026 = vpack.c.b16 %v850, %v848
  %v1027 = vpack.c.b16 %v853, %v851
  %v1028 = vpack.c.b16 %v854, %v852
  %v1029 = vpack.c.b16 %v857, %v855
  %v1030 = vpack.c.b16 %v858, %v856
  %v1031 = vpack.c.b16 %v861, %v859
  %v1032 = vpack.c.b16 %v862, %v860
  %v1033 = vpack.c.b16 %v865, %v863
  %v1034 = vpack.c.b16 %v866, %v864
  %v1035 = vpack.c.b16 %v869, %v867
  %v1036 = vpack.c.b16 %v870, %v868
  %v1037 = vpack.c.b16 %v873, %v871
  %v1038 = vpack.c.b16 %v874, %v872
  %v1039 = vpack.c.b16 %v877, %v875
  %v1040 = vpack.c.b16 %v878, %v876
  %v1041 = vpack.c.b16 %v881, %v879
  %v1042 = vpack.c.b16 %v882, %v880
  %v1043 = vpack.c.b16 %v885, %v883
  %v1044 = vpack.c.b16 %v886, %v884
  %v1045 = vpack.c.b16 %v889, %v887
  %v1046 = vpack.c.b16 %v890, %v888
  %v1047 = vpack.c.b16 %v893, %v891
  %v1048 = vpack.c.b16 %v894, %v892
  %v1049 = vpack.c.b16 %v897, %v895
  %v1050 = vpack.c.b16 %v898, %v896
  %v1051 = vpack.c.b16 %v901, %v899
  %v1052 = vpack.c.b16 %v902, %v900
  %v1053 = vpack.c.b16 %v905, %v903
  %v1054 = vpack.c.b16 %v906, %v904
  %v1055 = vpack.c.b16 %v909, %v907
  %v1056 = vpack.c.b16 %v910, %v908
  %v1057 = vpack.c.b16 %v913, %v911
  %v1058 = vpack.c.b16 %v914, %v912
  %v1059 = vpack.c.b16 %v917, %v915
  %v1060 = vpack.c.b16 %v918, %v916
  %v1061 = vpack.c.b16 %v921, %v919
  %v1062 = vpack.c.b16 %v922, %v920
  %v1063 = vpack.c.b16 %v925, %v923
  %v1064 = vpack.c.b16 %v926, %v924
  %v1065 = vpack.c.b16 %v929, %v927
  %v1066 = vpack.c.b16 %v930, %v928
  %v1067 = vpack.c.b16 %v933, %v931
  %v1068 = vpack.c.b16 %v934, %v932
  %v1069 = vpack.c.b16 %v937, %v935
  %v1070 = vpack.c.b16 %v938, %v936
  %v1071 = vpack.c.b16 %v941, %v939
  %v1072 = vpack.c.b16 %v942, %v940
  %v1073 = vpack.c.b16 %v945, %v943
  %v1074 = vpack.c.b16 %v946, %v944
  %v1235 = vunpack.c.l.b16 %v531
  %v1236 = vunpack.c.l.b16 %v532
  %v1237 = vunpack.c.l.b16 %v533
  %v1238 = vunpack.c.l.b16 %v534
  %v1239 = vunpack.c.l.b16 %v535
  %v1240 = vunpack.c.l.b16 %v536
  %v1241 = vunpack.c.l.b16 %v537
  %v1242 = vunpack.c.l.b16 %v538
  %v1243 = vunpack.c.l.b16 %v539
  %v1244 = vunpack.c.l.b16 %v540
  %v1245 = vunpack.c.l.b16 %v541
  %v1246 = vunpack.c.l.b16 %v542
  %v1247 = vunpack.c.l.b16 %v543
  %v1248 = vunpack.c.l.b16 %v544
  %v1249 = vunpack.c.l.b16 %v545
  %v1250 = vunpack.c.l.b16 %v546
  %v1251 = vunpack.c.l.b16 %v547
  %v1252 = vunpack.c.l.b16 %v548
  %v1253 = vunpack.c.l.b16 %v549
  %v1254 = vunpack.c.l.b16 %v550
  %v1255 = vunpack.c.l.b16 %v551
  %v1256 = vunpack.c.l.b16 %v552
  %v1257 = vunpack.c.l.b16 %v553
  %v1258 = vunpack.c.l.b16 %v554
  %v1259 = vunpack.c.l.b16 %v555
  %v1260 = vunpack.c.l.b16 %v556
  %v1261 = vunpack.c.l.b16 %v557
  %v1262 = vunpack.c.l.b16 %v558
  %v1263 = vunpack.c.l.b16 %v559
  %v1264 = vunpack.c.l.b16 %v560
  %v1265 = vunpack.c.l.b16 %v561
  %v1266 = vunpack.c.l.b16 %v562
  %v1267 = vpack.c.b16 %v1236, %v1235
  %v1268 = vpack.c.b16 %v1238, %v1237
  %v1269 = vpack.c.b16 %v1240, %v1239
  %v1270 = vpack.c.b16 %v1242, %v1241
  %v1271 = vpack.c.b16 %v1244, %v1243
  %v1272 = vpack.c.b16 %v1246, %v1245
  %v1273 = vpack.c.b16 %v1248, %v1247
  %v1274 = vpack.c.b16 %v1250, %v1249
  %v1275 = vpack.c.b16 %v1252, %v1251
  %v1276 = vpack.c.b16 %v1254, %v1253
  %v1277 = vpack.c.b16 %v1256, %v1255
  %v1278 = vpack.c.b16 %v1258, %v1257
  %v1279 = vpack.c.b16 %v1260, %v1259
  %v1280 = vpack.c.b16 %v1262, %v1261
  %v1281 = vpack.c.b16 %v1264, %v1263
  %v1282 = vpack.c.b16 %v1266, %v1265
  %1299 = vmatprep.subr.bf16.mxu0 0
  %1300 = vmatpush1.bf16.msra.mxu0 %v1267
  %1301 = vmatprep.subr.bf16.mxu0 0
  %1302 = vmatpush1.bf16.msra.mxu0 %v1268
  %1303 = vmatprep.subr.bf16.mxu0 0
  %1304 = vmatpush1.bf16.msra.mxu0 %v1269
  %1305 = vmatprep.subr.bf16.mxu0 0
  %1306 = vmatpush1.bf16.msra.mxu0 %v1270
  %1307 = vmatprep.subr.bf16.mxu0 0
  %1308 = vmatpush1.bf16.msra.mxu0 %v1271
  %1309 = vmatprep.subr.bf16.mxu0 0
  %1310 = vmatpush1.bf16.msra.mxu0 %v1272
  %1311 = vmatprep.subr.bf16.mxu0 0
  %1312 = vmatpush1.bf16.msra.mxu0 %v1273
  %1313 = vmatprep.subr.bf16.mxu0 0
  %1314 = vmatpush1.bf16.msra.mxu0 %v1274
  %1315 = vmatprep.subr.bf16.mxu0 0
  %1316 = vmatpush1.bf16.msra.mxu0 %v1275
  %1317 = vmatprep.subr.bf16.mxu0 0
  %1318 = vmatpush1.bf16.msra.mxu0 %v1276
  %1319 = vmatprep.subr.bf16.mxu0 0
  %1320 = vmatpush1.bf16.msra.mxu0 %v1277
  %1321 = vmatprep.subr.bf16.mxu0 0
  %1322 = vmatpush1.bf16.msra.mxu0 %v1278
  %1323 = vmatprep.subr.bf16.mxu0 0
  %1324 = vmatpush1.bf16.msra.mxu0 %v1279
  %1325 = vmatprep.subr.bf16.mxu0 0
  %1326 = vmatpush1.bf16.msra.mxu0 %v1280
  %1327 = vmatprep.subr.bf16.mxu0 0
  %1328 = vmatpush1.bf16.msra.mxu0 %v1281
  %1329 = vmatprep.subr.bf16.mxu0 0
  %1330 = vmatpush1.bf16.msra.mxu0 %v1282
  %1331 = vmatprep.mubr.bf16.mxu0 %v948
  %1332 = vmatmul.mubr.bf16.gmra.mrb[0].mxu0 %v947
  %v1333 = vpop.f32.mrb[0].mxu0
  %v1334 = vadd.f32 0.0, %v1333
  %v1335 = vpop.f32.mrb[0].mxu0
  %v1336 = vpop.f32.mrb[0].mxu0
  %v1337 = vadd.f32 0.0, %v1336
  %v1338 = vpop.f32.mrb[0].mxu0
  %1339 = vmatprep.mubr.bf16.mxu0 %v950
  %1340 = vmatmul.mubr.bf16.gmra.mrb[0].mxu0 %v949
  %v1341 = vpop.f32.mrb[0].mxu0
  %v1342 = vadd.f32 0.0, %v1341
  %v1343 = vpop.f32.mrb[0].mxu0
  %v1344 = vpop.f32.mrb[0].mxu0
  %v1345 = vadd.f32 0.0, %v1344
  %v1346 = vpop.f32.mrb[0].mxu0
  %1347 = vmatprep.mubr.bf16.mxu0 %v952
  %1348 = vmatmul.mubr.bf16.gmra.mrb[0].mxu0 %v951
  %v1349 = vpop.f32.mrb[0].mxu0
  %v1350 = vadd.f32 0.0, %v1349
  %v1351 = vpop.f32.mrb[0].mxu0
  %v1352 = vpop.f32.mrb[0].mxu0
  %v1353 = vadd.f32 0.0, %v1352
  %v1354 = vpop.f32.mrb[0].mxu0
  %1355 = vmatprep.mubr.bf16.mxu0 %v954
  %1356 = vmatmul.mubr.bf16.gmra.mrb[0].mxu0 %v953
  %v1357 = vpop.f32.mrb[0].mxu0
  %v1358 = vadd.f32 0.0, %v1357
  %v1359 = vpop.f32.mrb[0].mxu0
  %v1360 = vpop.f32.mrb[0].mxu0
  %v1361 = vadd.f32 0.0, %v1360
  %v1362 = vpop.f32.mrb[0].mxu0
  %1363 = vmatprep.mubr.bf16.mxu0 %v956
  %1364 = vmatmul.mubr.bf16.gmra.mrb[0].mxu0 %v955
  %v1365 = vpop.f32.mrb[0].mxu0
  %v1366 = vadd.f32 0.0, %v1365
  %v1367 = vpop.f32.mrb[0].mxu0
  %v1368 = vpop.f32.mrb[0].mxu0
  %v1369 = vadd.f32 0.0, %v1368
  %v1370 = vpop.f32.mrb[0].mxu0
  %1371 = vmatprep.mubr.bf16.mxu0 %v958
  %1372 = vmatmul.mubr.bf16.gmra.mrb[0].mxu0 %v957
  %v1373 = vpop.f32.mrb[0].mxu0
  %v1374 = vadd.f32 0.0, %v1373
  %v1375 = vpop.f32.mrb[0].mxu0
  %v1376 = vpop.f32.mrb[0].mxu0
  %v1377 = vadd.f32 0.0, %v1376
  %v1378 = vpop.f32.mrb[0].mxu0
  %1379 = vmatprep.mubr.bf16.mxu0 %v960
  %1380 = vmatmul.mubr.bf16.gmra.mrb[0].mxu0 %v959
  %v1381 = vpop.f32.mrb[0].mxu0
  %v1382 = vadd.f32 0.0, %v1381
  %v1383 = vpop.f32.mrb[0].mxu0
  %v1384 = vpop.f32.mrb[0].mxu0
  %v1385 = vadd.f32 0.0, %v1384
  %v1386 = vpop.f32.mrb[0].mxu0
  %1387 = vmatprep.mubr.bf16.mxu0 %v962
  %1388 = vmatmul.mubr.bf16.gmra.mrb[0].mxu0 %v961
  %v1389 = vpop.f32.mrb[0].mxu0
  %v1390 = vadd.f32 0.0, %v1389
  %v1391 = vpop.f32.mrb[0].mxu0
  %v1392 = vpop.f32.mrb[0].mxu0
  %v1393 = vadd.f32 0.0, %v1392
  %v1394 = vpop.f32.mrb[0].mxu0
  %1395 = vmatprep.mubr.bf16.mxu0 %v964
  %1396 = vmatmul.mubr.bf16.gmra.mrb[0].mxu0 %v963
  %v1397 = vpop.f32.mrb[0].mxu0
  %v1398 = vadd.f32 0.0, %v1397
  %v1399 = vpop.f32.mrb[0].mxu0
  %v1400 = vpop.f32.mrb[0].mxu0
  %v1401 = vadd.f32 0.0, %v1400
  %v1402 = vpop.f32.mrb[0].mxu0
  %1403 = vmatprep.mubr.bf16.mxu0 %v966
  %1404 = vmatmul.mubr.bf16.gmra.mrb[0].mxu0 %v965
  %v1405 = vpop.f32.mrb[0].mxu0
  %v1406 = vadd.f32 0.0, %v1405
  %v1407 = vpop.f32.mrb[0].mxu0
  %v1408 = vpop.f32.mrb[0].mxu0
  %v1409 = vadd.f32 0.0, %v1408
  %v1410 = vpop.f32.mrb[0].mxu0
  %1411 = vmatprep.mubr.bf16.mxu0 %v968
  %1412 = vmatmul.mubr.bf16.gmra.mrb[0].mxu0 %v967
  %v1413 = vpop.f32.mrb[0].mxu0
  %v1414 = vadd.f32 0.0, %v1413
  %v1415 = vpop.f32.mrb[0].mxu0
  %v1416 = vpop.f32.mrb[0].mxu0
  %v1417 = vadd.f32 0.0, %v1416
  %v1418 = vpop.f32.mrb[0].mxu0
  %1419 = vmatprep.mubr.bf16.mxu0 %v970
  %1420 = vmatmul.mubr.bf16.gmra.mrb[0].mxu0 %v969
  %v1421 = vpop.f32.mrb[0].mxu0
  %v1422 = vadd.f32 0.0, %v1421
  %v1423 = vpop.f32.mrb[0].mxu0
  %v1424 = vpop.f32.mrb[0].mxu0
  %v1425 = vadd.f32 0.0, %v1424
  %v1426 = vpop.f32.mrb[0].mxu0
  %1427 = vmatprep.mubr.bf16.mxu0 %v972
  %1428 = vmatmul.mubr.bf16.gmra.mrb[0].mxu0 %v971
  %v1429 = vpop.f32.mrb[0].mxu0
  %v1430 = vadd.f32 0.0, %v1429
  %v1431 = vpop.f32.mrb[0].mxu0
  %v1432 = vpop.f32.mrb[0].mxu0
  %v1433 = vadd.f32 0.0, %v1432
  %v1434 = vpop.f32.mrb[0].mxu0
  %1435 = vmatprep.mubr.bf16.mxu0 %v974
  %1436 = vmatmul.mubr.bf16.gmra.mrb[0].mxu0 %v973
  %v1437 = vpop.f32.mrb[0].mxu0
  %v1438 = vadd.f32 0.0, %v1437
  %v1439 = vpop.f32.mrb[0].mxu0
  %v1440 = vpop.f32.mrb[0].mxu0
  %v1441 = vadd.f32 0.0, %v1440
  %v1442 = vpop.f32.mrb[0].mxu0
  %1443 = vmatprep.mubr.bf16.mxu0 %v976
  %1444 = vmatmul.mubr.bf16.gmra.mrb[0].mxu0 %v975
  %v1445 = vpop.f32.mrb[0].mxu0
  %v1446 = vadd.f32 0.0, %v1445
  %v1447 = vpop.f32.mrb[0].mxu0
  %v1448 = vpop.f32.mrb[0].mxu0
  %v1449 = vadd.f32 0.0, %v1448
  %v1450 = vpop.f32.mrb[0].mxu0
  %1451 = vmatprep.mubr.bf16.mxu0 %v978
  %1452 = vmatmul.mubr.bf16.gmra.mrb[0].mxu0 %v977
  %v1453 = vpop.f32.mrb[0].mxu0
  %v1454 = vadd.f32 0.0, %v1453
  %v1455 = vpop.f32.mrb[0].mxu0
  %v1456 = vpop.f32.mrb[0].mxu0
  %v1457 = vadd.f32 0.0, %v1456
  %v1458 = vpop.f32.mrb[0].mxu0
  %1459 = vmatprep.mubr.bf16.mxu0 %v980
  %1460 = vmatmul.mubr.bf16.gmra.mrb[0].mxu0 %v979
  %v1461 = vpop.f32.mrb[0].mxu0
  %v1462 = vadd.f32 0.0, %v1461
  %v1463 = vpop.f32.mrb[0].mxu0
  %v1464 = vpop.f32.mrb[0].mxu0
  %v1465 = vadd.f32 0.0, %v1464
  %v1466 = vpop.f32.mrb[0].mxu0
  %1467 = vmatprep.mubr.bf16.mxu0 %v982
  %1468 = vmatmul.mubr.bf16.gmra.mrb[0].mxu0 %v981
  %v1469 = vpop.f32.mrb[0].mxu0
  %v1470 = vadd.f32 0.0, %v1469
  %v1471 = vpop.f32.mrb[0].mxu0
  %v1472 = vpop.f32.mrb[0].mxu0
  %v1473 = vadd.f32 0.0, %v1472
  %v1474 = vpop.f32.mrb[0].mxu0
  %1475 = vmatprep.mubr.bf16.mxu0 %v984
  %1476 = vmatmul.mubr.bf16.gmra.mrb[0].mxu0 %v983
  %v1477 = vpop.f32.mrb[0].mxu0
  %v1478 = vadd.f32 0.0, %v1477
  %v1479 = vpop.f32.mrb[0].mxu0
  %v1480 = vpop.f32.mrb[0].mxu0
  %v1481 = vadd.f32 0.0, %v1480
  %v1482 = vpop.f32.mrb[0].mxu0
  %1483 = vmatprep.mubr.bf16.mxu0 %v986
  %1484 = vmatmul.mubr.bf16.gmra.mrb[0].mxu0 %v985
  %v1485 = vpop.f32.mrb[0].mxu0
  %v1486 = vadd.f32 0.0, %v1485
  %v1487 = vpop.f32.mrb[0].mxu0
  %v1488 = vpop.f32.mrb[0].mxu0
  %v1489 = vadd.f32 0.0, %v1488
  %v1490 = vpop.f32.mrb[0].mxu0
  %1491 = vmatprep.mubr.bf16.mxu0 %v988
  %1492 = vmatmul.mubr.bf16.gmra.mrb[0].mxu0 %v987
  %v1493 = vpop.f32.mrb[0].mxu0
  %v1494 = vadd.f32 0.0, %v1493
  %v1495 = vpop.f32.mrb[0].mxu0
  %v1496 = vpop.f32.mrb[0].mxu0
  %v1497 = vadd.f32 0.0, %v1496
  %v1498 = vpop.f32.mrb[0].mxu0
  %1499 = vmatprep.mubr.bf16.mxu0 %v990
  %1500 = vmatmul.mubr.bf16.gmra.mrb[0].mxu0 %v989
  %v1501 = vpop.f32.mrb[0].mxu0
  %v1502 = vadd.f32 0.0, %v1501
  %v1503 = vpop.f32.mrb[0].mxu0
  %v1504 = vpop.f32.mrb[0].mxu0
  %v1505 = vadd.f32 0.0, %v1504
  %v1506 = vpop.f32.mrb[0].mxu0
  %1507 = vmatprep.mubr.bf16.mxu0 %v992
  %1508 = vmatmul.mubr.bf16.gmra.mrb[0].mxu0 %v991
  %v1509 = vpop.f32.mrb[0].mxu0
  %v1510 = vadd.f32 0.0, %v1509
  %v1511 = vpop.f32.mrb[0].mxu0
  %v1512 = vpop.f32.mrb[0].mxu0
  %v1513 = vadd.f32 0.0, %v1512
  %v1514 = vpop.f32.mrb[0].mxu0
  %1515 = vmatprep.mubr.bf16.mxu0 %v994
  %1516 = vmatmul.mubr.bf16.gmra.mrb[0].mxu0 %v993
  %v1517 = vpop.f32.mrb[0].mxu0
  %v1518 = vadd.f32 0.0, %v1517
  %v1519 = vpop.f32.mrb[0].mxu0
  %v1520 = vpop.f32.mrb[0].mxu0
  %v1521 = vadd.f32 0.0, %v1520
  %v1522 = vpop.f32.mrb[0].mxu0
  %1523 = vmatprep.mubr.bf16.mxu0 %v996
  %1524 = vmatmul.mubr.bf16.gmra.mrb[0].mxu0 %v995
  %v1525 = vpop.f32.mrb[0].mxu0
  %v1526 = vadd.f32 0.0, %v1525
  %v1527 = vpop.f32.mrb[0].mxu0
  %v1528 = vpop.f32.mrb[0].mxu0
  %v1529 = vadd.f32 0.0, %v1528
  %v1530 = vpop.f32.mrb[0].mxu0
  %1531 = vmatprep.mubr.bf16.mxu0 %v998
  %1532 = vmatmul.mubr.bf16.gmra.mrb[0].mxu0 %v997
  %v1533 = vpop.f32.mrb[0].mxu0
  %v1534 = vadd.f32 0.0, %v1533
  %v1535 = vpop.f32.mrb[0].mxu0
  %v1536 = vpop.f32.mrb[0].mxu0
  %v1537 = vadd.f32 0.0, %v1536
  %v1538 = vpop.f32.mrb[0].mxu0
  %1539 = vmatprep.mubr.bf16.mxu0 %v1000
  %1540 = vmatmul.mubr.bf16.gmra.mrb[0].mxu0 %v999
  %v1541 = vpop.f32.mrb[0].mxu0
  %v1542 = vadd.f32 0.0, %v1541
  %v1543 = vpop.f32.mrb[0].mxu0
  %v1544 = vpop.f32.mrb[0].mxu0
  %v1545 = vadd.f32 0.0, %v1544
  %v1546 = vpop.f32.mrb[0].mxu0
  %1547 = vmatprep.mubr.bf16.mxu0 %v1002
  %1548 = vmatmul.mubr.bf16.gmra.mrb[0].mxu0 %v1001
  %v1549 = vpop.f32.mrb[0].mxu0
  %v1550 = vadd.f32 0.0, %v1549
  %v1551 = vpop.f32.mrb[0].mxu0
  %v1552 = vpop.f32.mrb[0].mxu0
  %v1553 = vadd.f32 0.0, %v1552
  %v1554 = vpop.f32.mrb[0].mxu0
  %1555 = vmatprep.mubr.bf16.mxu0 %v1004
  %1556 = vmatmul.mubr.bf16.gmra.mrb[0].mxu0 %v1003
  %v1557 = vpop.f32.mrb[0].mxu0
  %v1558 = vadd.f32 0.0, %v1557
  %v1559 = vpop.f32.mrb[0].mxu0
  %v1560 = vpop.f32.mrb[0].mxu0
  %v1561 = vadd.f32 0.0, %v1560
  %v1562 = vpop.f32.mrb[0].mxu0
  %1563 = vmatprep.mubr.bf16.mxu0 %v1006
  %1564 = vmatmul.mubr.bf16.gmra.mrb[0].mxu0 %v1005
  %v1565 = vpop.f32.mrb[0].mxu0
  %v1566 = vadd.f32 0.0, %v1565
  %v1567 = vpop.f32.mrb[0].mxu0
  %v1568 = vpop.f32.mrb[0].mxu0
  %v1569 = vadd.f32 0.0, %v1568
  %v1570 = vpop.f32.mrb[0].mxu0
  %1571 = vmatprep.mubr.bf16.mxu0 %v1008
  %1572 = vmatmul.mubr.bf16.gmra.mrb[0].mxu0 %v1007
  %v1573 = vpop.f32.mrb[0].mxu0
  %v1574 = vadd.f32 0.0, %v1573
  %v1575 = vpop.f32.mrb[0].mxu0
  %v1576 = vpop.f32.mrb[0].mxu0
  %v1577 = vadd.f32 0.0, %v1576
  %v1578 = vpop.f32.mrb[0].mxu0
  %1579 = vmatprep.mubr.bf16.mxu0 %v1010
  %1580 = vmatmul.mubr.bf16.gmra.mrb[0].mxu0 %v1009
  %v1581 = vpop.f32.mrb[0].mxu0
  %v1582 = vadd.f32 0.0, %v1581
  %v1583 = vpop.f32.mrb[0].mxu0
  %v1584 = vpop.f32.mrb[0].mxu0
  %v1585 = vadd.f32 0.0, %v1584
  %v1586 = vpop.f32.mrb[0].mxu0
  %1587 = vmatprep.mubr.bf16.mxu0 %v1012
  %1588 = vmatmul.mubr.bf16.gmra.mrb[0].mxu0 %v1011
  %v1589 = vpop.f32.mrb[0].mxu0
  %v1590 = vadd.f32 0.0, %v1589
  %v1591 = vpop.f32.mrb[0].mxu0
  %v1592 = vpop.f32.mrb[0].mxu0
  %v1593 = vadd.f32 0.0, %v1592
  %v1594 = vpop.f32.mrb[0].mxu0
  %1595 = vmatprep.mubr.bf16.mxu0 %v1014
  %1596 = vmatmul.mubr.bf16.gmra.mrb[0].mxu0 %v1013
  %v1597 = vpop.f32.mrb[0].mxu0
  %v1598 = vadd.f32 0.0, %v1597
  %v1599 = vpop.f32.mrb[0].mxu0
  %v1600 = vpop.f32.mrb[0].mxu0
  %v1601 = vadd.f32 0.0, %v1600
  %v1602 = vpop.f32.mrb[0].mxu0
  %1603 = vmatprep.mubr.bf16.mxu0 %v1016
  %1604 = vmatmul.mubr.bf16.gmra.mrb[0].mxu0 %v1015
  %v1605 = vpop.f32.mrb[0].mxu0
  %v1606 = vadd.f32 0.0, %v1605
  %v1607 = vpop.f32.mrb[0].mxu0
  %v1608 = vpop.f32.mrb[0].mxu0
  %v1609 = vadd.f32 0.0, %v1608
  %v1610 = vpop.f32.mrb[0].mxu0
  %1611 = vmatprep.mubr.bf16.mxu0 %v1018
  %1612 = vmatmul.mubr.bf16.gmra.mrb[0].mxu0 %v1017
  %v1613 = vpop.f32.mrb[0].mxu0
  %v1614 = vadd.f32 0.0, %v1613
  %v1615 = vpop.f32.mrb[0].mxu0
  %v1616 = vpop.f32.mrb[0].mxu0
  %v1617 = vadd.f32 0.0, %v1616
  %v1618 = vpop.f32.mrb[0].mxu0
  %1619 = vmatprep.mubr.bf16.mxu0 %v1020
  %1620 = vmatmul.mubr.bf16.gmra.mrb[0].mxu0 %v1019
  %v1621 = vpop.f32.mrb[0].mxu0
  %v1622 = vadd.f32 0.0, %v1621
  %v1623 = vpop.f32.mrb[0].mxu0
  %v1624 = vpop.f32.mrb[0].mxu0
  %v1625 = vadd.f32 0.0, %v1624
  %v1626 = vpop.f32.mrb[0].mxu0
  %1627 = vmatprep.mubr.bf16.mxu0 %v1022
  %1628 = vmatmul.mubr.bf16.gmra.mrb[0].mxu0 %v1021
  %v1629 = vpop.f32.mrb[0].mxu0
  %v1630 = vadd.f32 0.0, %v1629
  %v1631 = vpop.f32.mrb[0].mxu0
  %v1632 = vpop.f32.mrb[0].mxu0
  %v1633 = vadd.f32 0.0, %v1632
  %v1634 = vpop.f32.mrb[0].mxu0
  %1635 = vmatprep.mubr.bf16.mxu0 %v1024
  %1636 = vmatmul.mubr.bf16.gmra.mrb[0].mxu0 %v1023
  %v1637 = vpop.f32.mrb[0].mxu0
  %v1638 = vadd.f32 0.0, %v1637
  %v1639 = vpop.f32.mrb[0].mxu0
  %v1640 = vpop.f32.mrb[0].mxu0
  %v1641 = vadd.f32 0.0, %v1640
  %v1642 = vpop.f32.mrb[0].mxu0
  %1643 = vmatprep.mubr.bf16.mxu0 %v1026
  %1644 = vmatmul.mubr.bf16.gmra.mrb[0].mxu0 %v1025
  %v1645 = vpop.f32.mrb[0].mxu0
  %v1646 = vadd.f32 0.0, %v1645
  %v1647 = vpop.f32.mrb[0].mxu0
  %v1648 = vpop.f32.mrb[0].mxu0
  %v1649 = vadd.f32 0.0, %v1648
  %v1650 = vpop.f32.mrb[0].mxu0
  %1651 = vmatprep.mubr.bf16.mxu0 %v1028
  %1652 = vmatmul.mubr.bf16.gmra.mrb[0].mxu0 %v1027
  %v1653 = vpop.f32.mrb[0].mxu0
  %v1654 = vadd.f32 0.0, %v1653
  %v1655 = vpop.f32.mrb[0].mxu0
  %v1656 = vpop.f32.mrb[0].mxu0
  %v1657 = vadd.f32 0.0, %v1656
  %v1658 = vpop.f32.mrb[0].mxu0
  %1659 = vmatprep.mubr.bf16.mxu0 %v1030
  %1660 = vmatmul.mubr.bf16.gmra.mrb[0].mxu0 %v1029
  %v1661 = vpop.f32.mrb[0].mxu0
  %v1662 = vadd.f32 0.0, %v1661
  %v1663 = vpop.f32.mrb[0].mxu0
  %v1664 = vpop.f32.mrb[0].mxu0
  %v1665 = vadd.f32 0.0, %v1664
  %v1666 = vpop.f32.mrb[0].mxu0
  %1667 = vmatprep.mubr.bf16.mxu0 %v1032
  %1668 = vmatmul.mubr.bf16.gmra.mrb[0].mxu0 %v1031
  %v1669 = vpop.f32.mrb[0].mxu0
  %v1670 = vadd.f32 0.0, %v1669
  %v1671 = vpop.f32.mrb[0].mxu0
  %v1672 = vpop.f32.mrb[0].mxu0
  %v1673 = vadd.f32 0.0, %v1672
  %v1674 = vpop.f32.mrb[0].mxu0
  %1675 = vmatprep.mubr.bf16.mxu0 %v1034
  %1676 = vmatmul.mubr.bf16.gmra.mrb[0].mxu0 %v1033
  %v1677 = vpop.f32.mrb[0].mxu0
  %v1678 = vadd.f32 0.0, %v1677
  %v1679 = vpop.f32.mrb[0].mxu0
  %v1680 = vpop.f32.mrb[0].mxu0
  %v1681 = vadd.f32 0.0, %v1680
  %v1682 = vpop.f32.mrb[0].mxu0
  %1683 = vmatprep.mubr.bf16.mxu0 %v1036
  %1684 = vmatmul.mubr.bf16.gmra.mrb[0].mxu0 %v1035
  %v1685 = vpop.f32.mrb[0].mxu0
  %v1686 = vadd.f32 0.0, %v1685
  %v1687 = vpop.f32.mrb[0].mxu0
  %v1688 = vpop.f32.mrb[0].mxu0
  %v1689 = vadd.f32 0.0, %v1688
  %v1690 = vpop.f32.mrb[0].mxu0
  %1691 = vmatprep.mubr.bf16.mxu0 %v1038
  %1692 = vmatmul.mubr.bf16.gmra.mrb[0].mxu0 %v1037
  %v1693 = vpop.f32.mrb[0].mxu0
  %v1694 = vadd.f32 0.0, %v1693
  %v1695 = vpop.f32.mrb[0].mxu0
  %v1696 = vpop.f32.mrb[0].mxu0
  %v1697 = vadd.f32 0.0, %v1696
  %v1698 = vpop.f32.mrb[0].mxu0
  %1699 = vmatprep.mubr.bf16.mxu0 %v1040
  %1700 = vmatmul.mubr.bf16.gmra.mrb[0].mxu0 %v1039
  %v1701 = vpop.f32.mrb[0].mxu0
  %v1702 = vadd.f32 0.0, %v1701
  %v1703 = vpop.f32.mrb[0].mxu0
  %v1704 = vpop.f32.mrb[0].mxu0
  %v1705 = vadd.f32 0.0, %v1704
  %v1706 = vpop.f32.mrb[0].mxu0
  %1707 = vmatprep.mubr.bf16.mxu0 %v1042
  %1708 = vmatmul.mubr.bf16.gmra.mrb[0].mxu0 %v1041
  %v1709 = vpop.f32.mrb[0].mxu0
  %v1710 = vadd.f32 0.0, %v1709
  %v1711 = vpop.f32.mrb[0].mxu0
  %v1712 = vpop.f32.mrb[0].mxu0
  %v1713 = vadd.f32 0.0, %v1712
  %v1714 = vpop.f32.mrb[0].mxu0
  %1715 = vmatprep.mubr.bf16.mxu0 %v1044
  %1716 = vmatmul.mubr.bf16.gmra.mrb[0].mxu0 %v1043
  %v1717 = vpop.f32.mrb[0].mxu0
  %v1718 = vadd.f32 0.0, %v1717
  %v1719 = vpop.f32.mrb[0].mxu0
  %v1720 = vpop.f32.mrb[0].mxu0
  %v1721 = vadd.f32 0.0, %v1720
  %v1722 = vpop.f32.mrb[0].mxu0
  %1723 = vmatprep.mubr.bf16.mxu0 %v1046
  %1724 = vmatmul.mubr.bf16.gmra.mrb[0].mxu0 %v1045
  %v1725 = vpop.f32.mrb[0].mxu0
  %v1726 = vadd.f32 0.0, %v1725
  %v1727 = vpop.f32.mrb[0].mxu0
  %v1728 = vpop.f32.mrb[0].mxu0
  %v1729 = vadd.f32 0.0, %v1728
  %v1730 = vpop.f32.mrb[0].mxu0
  %1731 = vmatprep.mubr.bf16.mxu0 %v1048
  %1732 = vmatmul.mubr.bf16.gmra.mrb[0].mxu0 %v1047
  %v1733 = vpop.f32.mrb[0].mxu0
  %v1734 = vadd.f32 0.0, %v1733
  %v1735 = vpop.f32.mrb[0].mxu0
  %v1736 = vpop.f32.mrb[0].mxu0
  %v1737 = vadd.f32 0.0, %v1736
  %v1738 = vpop.f32.mrb[0].mxu0
  %1739 = vmatprep.mubr.bf16.mxu0 %v1050
  %1740 = vmatmul.mubr.bf16.gmra.mrb[0].mxu0 %v1049
  %v1741 = vpop.f32.mrb[0].mxu0
  %v1742 = vadd.f32 0.0, %v1741
  %v1743 = vpop.f32.mrb[0].mxu0
  %v1744 = vpop.f32.mrb[0].mxu0
  %v1745 = vadd.f32 0.0, %v1744
  %v1746 = vpop.f32.mrb[0].mxu0
  %1747 = vmatprep.mubr.bf16.mxu0 %v1052
  %1748 = vmatmul.mubr.bf16.gmra.mrb[0].mxu0 %v1051
  %v1749 = vpop.f32.mrb[0].mxu0
  %v1750 = vadd.f32 0.0, %v1749
  %v1751 = vpop.f32.mrb[0].mxu0
  %v1752 = vpop.f32.mrb[0].mxu0
  %v1753 = vadd.f32 0.0, %v1752
  %v1754 = vpop.f32.mrb[0].mxu0
  %1755 = vmatprep.mubr.bf16.mxu0 %v1054
  %1756 = vmatmul.mubr.bf16.gmra.mrb[0].mxu0 %v1053
  %v1757 = vpop.f32.mrb[0].mxu0
  %v1758 = vadd.f32 0.0, %v1757
  %v1759 = vpop.f32.mrb[0].mxu0
  %v1760 = vpop.f32.mrb[0].mxu0
  %v1761 = vadd.f32 0.0, %v1760
  %v1762 = vpop.f32.mrb[0].mxu0
  %1763 = vmatprep.mubr.bf16.mxu0 %v1056
  %1764 = vmatmul.mubr.bf16.gmra.mrb[0].mxu0 %v1055
  %v1765 = vpop.f32.mrb[0].mxu0
  %v1766 = vadd.f32 0.0, %v1765
  %v1767 = vpop.f32.mrb[0].mxu0
  %v1768 = vpop.f32.mrb[0].mxu0
  %v1769 = vadd.f32 0.0, %v1768
  %v1770 = vpop.f32.mrb[0].mxu0
  %1771 = vmatprep.mubr.bf16.mxu0 %v1058
  %1772 = vmatmul.mubr.bf16.gmra.mrb[0].mxu0 %v1057
  %v1773 = vpop.f32.mrb[0].mxu0
  %v1774 = vadd.f32 0.0, %v1773
  %v1775 = vpop.f32.mrb[0].mxu0
  %v1776 = vpop.f32.mrb[0].mxu0
  %v1777 = vadd.f32 0.0, %v1776
  %v1778 = vpop.f32.mrb[0].mxu0
  %1779 = vmatprep.mubr.bf16.mxu0 %v1060
  %1780 = vmatmul.mubr.bf16.gmra.mrb[0].mxu0 %v1059
  %v1781 = vpop.f32.mrb[0].mxu0
  %v1782 = vadd.f32 0.0, %v1781
  %v1783 = vpop.f32.mrb[0].mxu0
  %v1784 = vpop.f32.mrb[0].mxu0
  %v1785 = vadd.f32 0.0, %v1784
  %v1786 = vpop.f32.mrb[0].mxu0
  %1787 = vmatprep.mubr.bf16.mxu0 %v1062
  %1788 = vmatmul.mubr.bf16.gmra.mrb[0].mxu0 %v1061
  %v1789 = vpop.f32.mrb[0].mxu0
  %v1790 = vadd.f32 0.0, %v1789
  %v1791 = vpop.f32.mrb[0].mxu0
  %v1792 = vpop.f32.mrb[0].mxu0
  %v1793 = vadd.f32 0.0, %v1792
  %v1794 = vpop.f32.mrb[0].mxu0
  %1795 = vmatprep.mubr.bf16.mxu0 %v1064
  %1796 = vmatmul.mubr.bf16.gmra.mrb[0].mxu0 %v1063
  %v1797 = vpop.f32.mrb[0].mxu0
  %v1798 = vadd.f32 0.0, %v1797
  %v1799 = vpop.f32.mrb[0].mxu0
  %v1800 = vpop.f32.mrb[0].mxu0
  %v1801 = vadd.f32 0.0, %v1800
  %v1802 = vpop.f32.mrb[0].mxu0
  %1803 = vmatprep.mubr.bf16.mxu0 %v1066
  %1804 = vmatmul.mubr.bf16.gmra.mrb[0].mxu0 %v1065
  %v1805 = vpop.f32.mrb[0].mxu0
  %v1806 = vadd.f32 0.0, %v1805
  %v1807 = vpop.f32.mrb[0].mxu0
  %v1808 = vpop.f32.mrb[0].mxu0
  %v1809 = vadd.f32 0.0, %v1808
  %v1810 = vpop.f32.mrb[0].mxu0
  %1811 = vmatprep.mubr.bf16.mxu0 %v1068
  %1812 = vmatmul.mubr.bf16.gmra.mrb[0].mxu0 %v1067
  %v1813 = vpop.f32.mrb[0].mxu0
  %v1814 = vadd.f32 0.0, %v1813
  %v1815 = vpop.f32.mrb[0].mxu0
  %v1816 = vpop.f32.mrb[0].mxu0
  %v1817 = vadd.f32 0.0, %v1816
  %v1818 = vpop.f32.mrb[0].mxu0
  %1819 = vmatprep.mubr.bf16.mxu0 %v1070
  %1820 = vmatmul.mubr.bf16.gmra.mrb[0].mxu0 %v1069
  %v1821 = vpop.f32.mrb[0].mxu0
  %v1822 = vadd.f32 0.0, %v1821
  %v1823 = vpop.f32.mrb[0].mxu0
  %v1824 = vpop.f32.mrb[0].mxu0
  %v1825 = vadd.f32 0.0, %v1824
  %v1826 = vpop.f32.mrb[0].mxu0
  %1827 = vmatprep.mubr.bf16.mxu0 %v1072
  %1828 = vmatmul.mubr.bf16.gmra.mrb[0].mxu0 %v1071
  %v1829 = vpop.f32.mrb[0].mxu0
  %v1830 = vadd.f32 0.0, %v1829
  %v1831 = vpop.f32.mrb[0].mxu0
  %v1832 = vpop.f32.mrb[0].mxu0
  %v1833 = vadd.f32 0.0, %v1832
  %v1834 = vpop.f32.mrb[0].mxu0
  %1835 = vmatprep.mubr.bf16.mxu0 %v1074
  %1836 = vmatmul.mubr.bf16.gmra.mrb[0].mxu0 %v1073
  %v1837 = vpop.f32.mrb[0].mxu0
  %v1838 = vadd.f32 0.0, %v1837
  %v1839 = vpop.f32.mrb[0].mxu0
  %v1840 = vpop.f32.mrb[0].mxu0
  %v1841 = vadd.f32 0.0, %v1840
  %v1842 = vpop.f32.mrb[0].mxu0
  %1843 = vdwg.mxu0
  %v1844 = vld [vmem:[%s2] sm:$0x1]
  %v1846 = vlaneseq
  %v1847 = vshrl.u32 %v1846, 7
  %v1848 = vsub.s32 0, %v1847
  %v1849 = vrot.slane %v1844, %v1848
  %v1851 = vmul.f32 %v1334, %v1849
  %v1852 = vmul.f32 %v1337, %v1849
  %v1853 = vmul.f32 %v1342, %v1849
  %v1854 = vmul.f32 %v1345, %v1849
  %v1855 = vmul.f32 %v1350, %v1849
  %v1856 = vmul.f32 %v1353, %v1849
  %v1857 = vmul.f32 %v1358, %v1849
  %v1858 = vmul.f32 %v1361, %v1849
  %v1859 = vmul.f32 %v1366, %v1849
  %v1860 = vmul.f32 %v1369, %v1849
  %v1861 = vmul.f32 %v1374, %v1849
  %v1862 = vmul.f32 %v1377, %v1849
  %v1863 = vmul.f32 %v1382, %v1849
  %v1864 = vmul.f32 %v1385, %v1849
  %v1865 = vmul.f32 %v1390, %v1849
  %v1866 = vmul.f32 %v1393, %v1849
  %v1867 = vmul.f32 %v1398, %v1849
  %v1868 = vmul.f32 %v1401, %v1849
  %v1869 = vmul.f32 %v1406, %v1849
  %v1870 = vmul.f32 %v1409, %v1849
  %v1871 = vmul.f32 %v1414, %v1849
  %v1872 = vmul.f32 %v1417, %v1849
  %v1873 = vmul.f32 %v1422, %v1849
  %v1874 = vmul.f32 %v1425, %v1849
  %v1875 = vmul.f32 %v1430, %v1849
  %v1876 = vmul.f32 %v1433, %v1849
  %v1877 = vmul.f32 %v1438, %v1849
  %v1878 = vmul.f32 %v1441, %v1849
  %v1879 = vmul.f32 %v1446, %v1849
  %v1880 = vmul.f32 %v1449, %v1849
  %v1881 = vmul.f32 %v1454, %v1849
  %v1882 = vmul.f32 %v1457, %v1849
  %v1883 = vmul.f32 %v1462, %v1849
  %v1884 = vmul.f32 %v1465, %v1849
  %v1885 = vmul.f32 %v1470, %v1849
  %v1886 = vmul.f32 %v1473, %v1849
  %v1887 = vmul.f32 %v1478, %v1849
  %v1888 = vmul.f32 %v1481, %v1849
  %v1889 = vmul.f32 %v1486, %v1849
  %v1890 = vmul.f32 %v1489, %v1849
  %v1891 = vmul.f32 %v1494, %v1849
  %v1892 = vmul.f32 %v1497, %v1849
  %v1893 = vmul.f32 %v1502, %v1849
  %v1894 = vmul.f32 %v1505, %v1849
  %v1895 = vmul.f32 %v1510, %v1849
  %v1896 = vmul.f32 %v1513, %v1849
  %v1897 = vmul.f32 %v1518, %v1849
  %v1898 = vmul.f32 %v1521, %v1849
  %v1899 = vmul.f32 %v1526, %v1849
  %v1900 = vmul.f32 %v1529, %v1849
  %v1901 = vmul.f32 %v1534, %v1849
  %v1902 = vmul.f32 %v1537, %v1849
  %v1903 = vmul.f32 %v1542, %v1849
  %v1904 = vmul.f32 %v1545, %v1849
  %v1905 = vmul.f32 %v1550, %v1849
  %v1906 = vmul.f32 %v1553, %v1849
  %v1907 = vmul.f32 %v1558, %v1849
  %v1908 = vmul.f32 %v1561, %v1849
  %v1909 = vmul.f32 %v1566, %v1849
  %v1910 = vmul.f32 %v1569, %v1849
  %v1911 = vmul.f32 %v1574, %v1849
  %v1912 = vmul.f32 %v1577, %v1849
  %v1913 = vmul.f32 %v1582, %v1849
  %v1914 = vmul.f32 %v1585, %v1849
  %v1915 = vmul.f32 %v1590, %v1849
  %v1916 = vmul.f32 %v1593, %v1849
  %v1917 = vmul.f32 %v1598, %v1849
  %v1918 = vmul.f32 %v1601, %v1849
  %v1919 = vmul.f32 %v1606, %v1849
  %v1920 = vmul.f32 %v1609, %v1849
  %v1921 = vmul.f32 %v1614, %v1849
  %v1922 = vmul.f32 %v1617, %v1849
  %v1923 = vmul.f32 %v1622, %v1849
  %v1924 = vmul.f32 %v1625, %v1849
  %v1925 = vmul.f32 %v1630, %v1849
  %v1926 = vmul.f32 %v1633, %v1849
  %v1927 = vmul.f32 %v1638, %v1849
  %v1928 = vmul.f32 %v1641, %v1849
  %v1929 = vmul.f32 %v1646, %v1849
  %v1930 = vmul.f32 %v1649, %v1849
  %v1931 = vmul.f32 %v1654, %v1849
  %v1932 = vmul.f32 %v1657, %v1849
  %v1933 = vmul.f32 %v1662, %v1849
  %v1934 = vmul.f32 %v1665, %v1849
  %v1935 = vmul.f32 %v1670, %v1849
  %v1936 = vmul.f32 %v1673, %v1849
  %v1937 = vmul.f32 %v1678, %v1849
  %v1938 = vmul.f32 %v1681, %v1849
  %v1939 = vmul.f32 %v1686, %v1849
  %v1940 = vmul.f32 %v1689, %v1849
  %v1941 = vmul.f32 %v1694, %v1849
  %v1942 = vmul.f32 %v1697, %v1849
  %v1943 = vmul.f32 %v1702, %v1849
  %v1944 = vmul.f32 %v1705, %v1849
  %v1945 = vmul.f32 %v1710, %v1849
  %v1946 = vmul.f32 %v1713, %v1849
  %v1947 = vmul.f32 %v1718, %v1849
  %v1948 = vmul.f32 %v1721, %v1849
  %v1949 = vmul.f32 %v1726, %v1849
  %v1950 = vmul.f32 %v1729, %v1849
  %v1951 = vmul.f32 %v1734, %v1849
  %v1952 = vmul.f32 %v1737, %v1849
  %v1953 = vmul.f32 %v1742, %v1849
  %v1954 = vmul.f32 %v1745, %v1849
  %v1955 = vmul.f32 %v1750, %v1849
  %v1956 = vmul.f32 %v1753, %v1849
  %v1957 = vmul.f32 %v1758, %v1849
  %v1958 = vmul.f32 %v1761, %v1849
  %v1959 = vmul.f32 %v1766, %v1849
  %v1960 = vmul.f32 %v1769, %v1849
  %v1961 = vmul.f32 %v1774, %v1849
  %v1962 = vmul.f32 %v1777, %v1849
  %v1963 = vmul.f32 %v1782, %v1849
  %v1964 = vmul.f32 %v1785, %v1849
  %v1965 = vmul.f32 %v1790, %v1849
  %v1966 = vmul.f32 %v1793, %v1849
  %v1967 = vmul.f32 %v1798, %v1849
  %v1968 = vmul.f32 %v1801, %v1849
  %v1969 = vmul.f32 %v1806, %v1849
  %v1970 = vmul.f32 %v1809, %v1849
  %v1971 = vmul.f32 %v1814, %v1849
  %v1972 = vmul.f32 %v1817, %v1849
  %v1973 = vmul.f32 %v1822, %v1849
  %v1974 = vmul.f32 %v1825, %v1849
  %v1975 = vmul.f32 %v1830, %v1849
  %v1976 = vmul.f32 %v1833, %v1849
  %v1977 = vmul.f32 %v1838, %v1849
  %v1978 = vmul.f32 %v1841, %v1849
  %v1979 = vld [vmem:[%s3] sm:$0x1]
  %v1981 = vlaneseq
  %v1982 = vshrl.u32 %v1981, 7
  %v1983 = vsub.s32 0, %v1982
  %v1984 = vrot.slane %v1979, %v1983
  %v1986 = vadd.f32 %v1851, %v1984
  %v1987 = vadd.f32 %v1852, %v1984
  %v1988 = vadd.f32 %v1853, %v1984
  %v1989 = vadd.f32 %v1854, %v1984
  %v1990 = vadd.f32 %v1855, %v1984
  %v1991 = vadd.f32 %v1856, %v1984
  %v1992 = vadd.f32 %v1857, %v1984
  %v1993 = vadd.f32 %v1858, %v1984
  %v1994 = vadd.f32 %v1859, %v1984
  %v1995 = vadd.f32 %v1860, %v1984
  %v1996 = vadd.f32 %v1861, %v1984
  %v1997 = vadd.f32 %v1862, %v1984
  %v1998 = vadd.f32 %v1863, %v1984
  %v1999 = vadd.f32 %v1864, %v1984
  %v2000 = vadd.f32 %v1865, %v1984
  %v2001 = vadd.f32 %v1866, %v1984
  %v2002 = vadd.f32 %v1867, %v1984
  %v2003 = vadd.f32 %v1868, %v1984
  %v2004 = vadd.f32 %v1869, %v1984
  %v2005 = vadd.f32 %v1870, %v1984
  %v2006 = vadd.f32 %v1871, %v1984
  %v2007 = vadd.f32 %v1872, %v1984
  %v2008 = vadd.f32 %v1873, %v1984
  %v2009 = vadd.f32 %v1874, %v1984
  %v2010 = vadd.f32 %v1875, %v1984
  %v2011 = vadd.f32 %v1876, %v1984
  %v2012 = vadd.f32 %v1877, %v1984
  %v2013 = vadd.f32 %v1878, %v1984
  %v2014 = vadd.f32 %v1879, %v1984
  %v2015 = vadd.f32 %v1880, %v1984
  %v2016 = vadd.f32 %v1881, %v1984
  %v2017 = vadd.f32 %v1882, %v1984
  %v2018 = vadd.f32 %v1883, %v1984
  %v2019 = vadd.f32 %v1884, %v1984
  %v2020 = vadd.f32 %v1885, %v1984
  %v2021 = vadd.f32 %v1886, %v1984
  %v2022 = vadd.f32 %v1887, %v1984
  %v2023 = vadd.f32 %v1888, %v1984
  %v2024 = vadd.f32 %v1889, %v1984
  %v2025 = vadd.f32 %v1890, %v1984
  %v2026 = vadd.f32 %v1891, %v1984
  %v2027 = vadd.f32 %v1892, %v1984
  %v2028 = vadd.f32 %v1893, %v1984
  %v2029 = vadd.f32 %v1894, %v1984
  %v2030 = vadd.f32 %v1895, %v1984
  %v2031 = vadd.f32 %v1896, %v1984
  %v2032 = vadd.f32 %v1897, %v1984
  %v2033 = vadd.f32 %v1898, %v1984
  %v2034 = vadd.f32 %v1899, %v1984
  %v2035 = vadd.f32 %v1900, %v1984
  %v2036 = vadd.f32 %v1901, %v1984
  %v2037 = vadd.f32 %v1902, %v1984
  %v2038 = vadd.f32 %v1903, %v1984
  %v2039 = vadd.f32 %v1904, %v1984
  %v2040 = vadd.f32 %v1905, %v1984
  %v2041 = vadd.f32 %v1906, %v1984
  %v2042 = vadd.f32 %v1907, %v1984
  %v2043 = vadd.f32 %v1908, %v1984
  %v2044 = vadd.f32 %v1909, %v1984
  %v2045 = vadd.f32 %v1910, %v1984
  %v2046 = vadd.f32 %v1911, %v1984
  %v2047 = vadd.f32 %v1912, %v1984
  %v2048 = vadd.f32 %v1913, %v1984
  %v2049 = vadd.f32 %v1914, %v1984
  %v2050 = vadd.f32 %v1915, %v1984
  %v2051 = vadd.f32 %v1916, %v1984
  %v2052 = vadd.f32 %v1917, %v1984
  %v2053 = vadd.f32 %v1918, %v1984
  %v2054 = vadd.f32 %v1919, %v1984
  %v2055 = vadd.f32 %v1920, %v1984
  %v2056 = vadd.f32 %v1921, %v1984
  %v2057 = vadd.f32 %v1922, %v1984
  %v2058 = vadd.f32 %v1923, %v1984
  %v2059 = vadd.f32 %v1924, %v1984
  %v2060 = vadd.f32 %v1925, %v1984
  %v2061 = vadd.f32 %v1926, %v1984
  %v2062 = vadd.f32 %v1927, %v1984
  %v2063 = vadd.f32 %v1928, %v1984
  %v2064 = vadd.f32 %v1929, %v1984
  %v2065 = vadd.f32 %v1930, %v1984
  %v2066 = vadd.f32 %v1931, %v1984
  %v2067 = vadd.f32 %v1932, %v1984
  %v2068 = vadd.f32 %v1933, %v1984
  %v2069 = vadd.f32 %v1934, %v1984
  %v2070 = vadd.f32 %v1935, %v1984
  %v2071 = vadd.f32 %v1936, %v1984
  %v2072 = vadd.f32 %v1937, %v1984
  %v2073 = vadd.f32 %v1938, %v1984
  %v2074 = vadd.f32 %v1939, %v1984
  %v2075 = vadd.f32 %v1940, %v1984
  %v2076 = vadd.f32 %v1941, %v1984
  %v2077 = vadd.f32 %v1942, %v1984
  %v2078 = vadd.f32 %v1943, %v1984
  %v2079 = vadd.f32 %v1944, %v1984
  %v2080 = vadd.f32 %v1945, %v1984
  %v2081 = vadd.f32 %v1946, %v1984
  %v2082 = vadd.f32 %v1947, %v1984
  %v2083 = vadd.f32 %v1948, %v1984
  %v2084 = vadd.f32 %v1949, %v1984
  %v2085 = vadd.f32 %v1950, %v1984
  %v2086 = vadd.f32 %v1951, %v1984
  %v2087 = vadd.f32 %v1952, %v1984
  %v2088 = vadd.f32 %v1953, %v1984
  %v2089 = vadd.f32 %v1954, %v1984
  %v2090 = vadd.f32 %v1955, %v1984
  %v2091 = vadd.f32 %v1956, %v1984
  %v2092 = vadd.f32 %v1957, %v1984
  %v2093 = vadd.f32 %v1958, %v1984
  %v2094 = vadd.f32 %v1959, %v1984
  %v2095 = vadd.f32 %v1960, %v1984
  %v2096 = vadd.f32 %v1961, %v1984
  %v2097 = vadd.f32 %v1962, %v1984
  %v2098 = vadd.f32 %v1963, %v1984
  %v2099 = vadd.f32 %v1964, %v1984
  %v2100 = vadd.f32 %v1965, %v1984
  %v2101 = vadd.f32 %v1966, %v1984
  %v2102 = vadd.f32 %v1967, %v1984
  %v2103 = vadd.f32 %v1968, %v1984
  %v2104 = vadd.f32 %v1969, %v1984
  %v2105 = vadd.f32 %v1970, %v1984
  %v2106 = vadd.f32 %v1971, %v1984
  %v2107 = vadd.f32 %v1972, %v1984
  %v2108 = vadd.f32 %v1973, %v1984
  %v2109 = vadd.f32 %v1974, %v1984
  %v2110 = vadd.f32 %v1975, %v1984
  %v2111 = vadd.f32 %v1976, %v1984
  %v2112 = vadd.f32 %v1977, %v1984
  %v2113 = vadd.f32 %v1978, %v1984
  %v2114 = vpack.c.bf16 %v1987, %v1986
  %v2115 = vpack.c.bf16 %v1989, %v1988
  %v2116 = vpack.c.bf16 %v1991, %v1990
  %v2117 = vpack.c.bf16 %v1993, %v1992
  %v2118 = vpack.c.bf16 %v1995, %v1994
  %v2119 = vpack.c.bf16 %v1997, %v1996
  %v2120 = vpack.c.bf16 %v1999, %v1998
  %v2121 = vpack.c.bf16 %v2001, %v2000
  %v2122 = vpack.c.bf16 %v2003, %v2002
  %v2123 = vpack.c.bf16 %v2005, %v2004
  %v2124 = vpack.c.bf16 %v2007, %v2006
  %v2125 = vpack.c.bf16 %v2009, %v2008
  %v2126 = vpack.c.bf16 %v2011, %v2010
  %v2127 = vpack.c.bf16 %v2013, %v2012
  %v2128 = vpack.c.bf16 %v2015, %v2014
  %v2129 = vpack.c.bf16 %v2017, %v2016
  %v2130 = vpack.c.bf16 %v2019, %v2018
  %v2131 = vpack.c.bf16 %v2021, %v2020
  %v2132 = vpack.c.bf16 %v2023, %v2022
  %v2133 = vpack.c.bf16 %v2025, %v2024
  %v2134 = vpack.c.bf16 %v2027, %v2026
  %v2135 = vpack.c.bf16 %v2029, %v2028
  %v2136 = vpack.c.bf16 %v2031, %v2030
  %v2137 = vpack.c.bf16 %v2033, %v2032
  %v2138 = vpack.c.bf16 %v2035, %v2034
  %v2139 = vpack.c.bf16 %v2037, %v2036
  %v2140 = vpack.c.bf16 %v2039, %v2038
  %v2141 = vpack.c.bf16 %v2041, %v2040
  %v2142 = vpack.c.bf16 %v2043, %v2042
  %v2143 = vpack.c.bf16 %v2045, %v2044
  %v2144 = vpack.c.bf16 %v2047, %v2046
  %v2145 = vpack.c.bf16 %v2049, %v2048
  %v2146 = vpack.c.bf16 %v2051, %v2050
  %v2147 = vpack.c.bf16 %v2053, %v2052
  %v2148 = vpack.c.bf16 %v2055, %v2054
  %v2149 = vpack.c.bf16 %v2057, %v2056
  %v2150 = vpack.c.bf16 %v2059, %v2058
  %v2151 = vpack.c.bf16 %v2061, %v2060
  %v2152 = vpack.c.bf16 %v2063, %v2062
  %v2153 = vpack.c.bf16 %v2065, %v2064
  %v2154 = vpack.c.bf16 %v2067, %v2066
  %v2155 = vpack.c.bf16 %v2069, %v2068
  %v2156 = vpack.c.bf16 %v2071, %v2070
  %v2157 = vpack.c.bf16 %v2073, %v2072
  %v2158 = vpack.c.bf16 %v2075, %v2074
  %v2159 = vpack.c.bf16 %v2077, %v2076
  %v2160 = vpack.c.bf16 %v2079, %v2078
  %v2161 = vpack.c.bf16 %v2081, %v2080
  %v2162 = vpack.c.bf16 %v2083, %v2082
  %v2163 = vpack.c.bf16 %v2085, %v2084
  %v2164 = vpack.c.bf16 %v2087, %v2086
  %v2165 = vpack.c.bf16 %v2089, %v2088
  %v2166 = vpack.c.bf16 %v2091, %v2090
  %v2167 = vpack.c.bf16 %v2093, %v2092
  %v2168 = vpack.c.bf16 %v2095, %v2094
  %v2169 = vpack.c.bf16 %v2097, %v2096
  %v2170 = vpack.c.bf16 %v2099, %v2098
  %v2171 = vpack.c.bf16 %v2101, %v2100
  %v2172 = vpack.c.bf16 %v2103, %v2102
  %v2173 = vpack.c.bf16 %v2105, %v2104
  %v2174 = vpack.c.bf16 %v2107, %v2106
  %v2175 = vpack.c.bf16 %v2109, %v2108
  %v2176 = vpack.c.bf16 %v2111, %v2110
  %v2177 = vpack.c.bf16 %v2113, %v2112
  %v2242 = vunpack.c.l.b16 %v2114
  %v2243 = vunpack.c.h.b16 %v2114
  %v2244 = vunpack.c.l.b16 %v2115
  %v2245 = vunpack.c.h.b16 %v2115
  %v2246 = vunpack.c.l.b16 %v2116
  %v2247 = vunpack.c.h.b16 %v2116
  %v2248 = vunpack.c.l.b16 %v2117
  %v2249 = vunpack.c.h.b16 %v2117
  %v2250 = vunpack.c.l.b16 %v2118
  %v2251 = vunpack.c.h.b16 %v2118
  %v2252 = vunpack.c.l.b16 %v2119
  %v2253 = vunpack.c.h.b16 %v2119
  %v2254 = vunpack.c.l.b16 %v2120
  %v2255 = vunpack.c.h.b16 %v2120
  %v2256 = vunpack.c.l.b16 %v2121
  %v2257 = vunpack.c.h.b16 %v2121
  %v2258 = vunpack.c.l.b16 %v2122
  %v2259 = vunpack.c.h.b16 %v2122
  %v2260 = vunpack.c.l.b16 %v2123
  %v2261 = vunpack.c.h.b16 %v2123
  %v2262 = vunpack.c.l.b16 %v2124
  %v2263 = vunpack.c.h.b16 %v2124
  %v2264 = vunpack.c.l.b16 %v2125
  %v2265 = vunpack.c.h.b16 %v2125
  %v2266 = vunpack.c.l.b16 %v2126
  %v2267 = vunpack.c.h.b16 %v2126
  %v2268 = vunpack.c.l.b16 %v2127
  %v2269 = vunpack.c.h.b16 %v2127
  %v2270 = vunpack.c.l.b16 %v2128
  %v2271 = vunpack.c.h.b16 %v2128
  %v2272 = vunpack.c.l.b16 %v2129
  %v2273 = vunpack.c.h.b16 %v2129
  %v2274 = vunpack.c.l.b16 %v2130
  %v2275 = vunpack.c.h.b16 %v2130
  %v2276 = vunpack.c.l.b16 %v2131
  %v2277 = vunpack.c.h.b16 %v2131
  %v2278 = vunpack.c.l.b16 %v2132
  %v2279 = vunpack.c.h.b16 %v2132
  %v2280 = vunpack.c.l.b16 %v2133
  %v2281 = vunpack.c.h.b16 %v2133
  %v2282 = vunpack.c.l.b16 %v2134
  %v2283 = vunpack.c.h.b16 %v2134
  %v2284 = vunpack.c.l.b16 %v2135
  %v2285 = vunpack.c.h.b16 %v2135
  %v2286 = vunpack.c.l.b16 %v2136
  %v2287 = vunpack.c.h.b16 %v2136
  %v2288 = vunpack.c.l.b16 %v2137
  %v2289 = vunpack.c.h.b16 %v2137
  %v2290 = vunpack.c.l.b16 %v2138
  %v2291 = vunpack.c.h.b16 %v2138
  %v2292 = vunpack.c.l.b16 %v2139
  %v2293 = vunpack.c.h.b16 %v2139
  %v2294 = vunpack.c.l.b16 %v2140
  %v2295 = vunpack.c.h.b16 %v2140
  %v2296 = vunpack.c.l.b16 %v2141
  %v2297 = vunpack.c.h.b16 %v2141
  %v2298 = vunpack.c.l.b16 %v2142
  %v2299 = vunpack.c.h.b16 %v2142
  %v2300 = vunpack.c.l.b16 %v2143
  %v2301 = vunpack.c.h.b16 %v2143
  %v2302 = vunpack.c.l.b16 %v2144
  %v2303 = vunpack.c.h.b16 %v2144
  %v2304 = vunpack.c.l.b16 %v2145
  %v2305 = vunpack.c.h.b16 %v2145
  %v2306 = vunpack.c.l.b16 %v2146
  %v2307 = vunpack.c.h.b16 %v2146
  %v2308 = vunpack.c.l.b16 %v2147
  %v2309 = vunpack.c.h.b16 %v2147
  %v2310 = vunpack.c.l.b16 %v2148
  %v2311 = vunpack.c.h.b16 %v2148
  %v2312 = vunpack.c.l.b16 %v2149
  %v2313 = vunpack.c.h.b16 %v2149
  %v2314 = vunpack.c.l.b16 %v2150
  %v2315 = vunpack.c.h.b16 %v2150
  %v2316 = vunpack.c.l.b16 %v2151
  %v2317 = vunpack.c.h.b16 %v2151
  %v2318 = vunpack.c.l.b16 %v2152
  %v2319 = vunpack.c.h.b16 %v2152
  %v2320 = vunpack.c.l.b16 %v2153
  %v2321 = vunpack.c.h.b16 %v2153
  %v2322 = vunpack.c.l.b16 %v2154
  %v2323 = vunpack.c.h.b16 %v2154
  %v2324 = vunpack.c.l.b16 %v2155
  %v2325 = vunpack.c.h.b16 %v2155
  %v2326 = vunpack.c.l.b16 %v2156
  %v2327 = vunpack.c.h.b16 %v2156
  %v2328 = vunpack.c.l.b16 %v2157
  %v2329 = vunpack.c.h.b16 %v2157
  %v2330 = vunpack.c.l.b16 %v2158
  %v2331 = vunpack.c.h.b16 %v2158
  %v2332 = vunpack.c.l.b16 %v2159
  %v2333 = vunpack.c.h.b16 %v2159
  %v2334 = vunpack.c.l.b16 %v2160
  %v2335 = vunpack.c.h.b16 %v2160
  %v2336 = vunpack.c.l.b16 %v2161
  %v2337 = vunpack.c.h.b16 %v2161
  %v2338 = vunpack.c.l.b16 %v2162
  %v2339 = vunpack.c.h.b16 %v2162
  %v2340 = vunpack.c.l.b16 %v2163
  %v2341 = vunpack.c.h.b16 %v2163
  %v2342 = vunpack.c.l.b16 %v2164
  %v2343 = vunpack.c.h.b16 %v2164
  %v2344 = vunpack.c.l.b16 %v2165
  %v2345 = vunpack.c.h.b16 %v2165
  %v2346 = vunpack.c.l.b16 %v2166
  %v2347 = vunpack.c.h.b16 %v2166
  %v2348 = vunpack.c.l.b16 %v2167
  %v2349 = vunpack.c.h.b16 %v2167
  %v2350 = vunpack.c.l.b16 %v2168
  %v2351 = vunpack.c.h.b16 %v2168
  %v2352 = vunpack.c.l.b16 %v2169
  %v2353 = vunpack.c.h.b16 %v2169
  %v2354 = vunpack.c.l.b16 %v2170
  %v2355 = vunpack.c.h.b16 %v2170
  %v2356 = vunpack.c.l.b16 %v2171
  %v2357 = vunpack.c.h.b16 %v2171
  %v2358 = vunpack.c.l.b16 %v2172
  %v2359 = vunpack.c.h.b16 %v2172
  %v2360 = vunpack.c.l.b16 %v2173
  %v2361 = vunpack.c.h.b16 %v2173
  %v2362 = vunpack.c.l.b16 %v2174
  %v2363 = vunpack.c.h.b16 %v2174
  %v2364 = vunpack.c.l.b16 %v2175
  %v2365 = vunpack.c.h.b16 %v2175
  %v2366 = vunpack.c.l.b16 %v2176
  %v2367 = vunpack.c.h.b16 %v2176
  %v2368 = vunpack.c.l.b16 %v2177
  %v2369 = vunpack.c.h.b16 %v2177
  %v2370 = vpack.c.b16 %v2242, %v2242
  %v2371 = vpack.c.b16 %v2243, %v2243
  %v2372 = vpack.c.b16 %v2244, %v2244
  %v2373 = vpack.c.b16 %v2245, %v2245
  %v2374 = vpack.c.b16 %v2246, %v2246
  %v2375 = vpack.c.b16 %v2247, %v2247
  %v2376 = vpack.c.b16 %v2248, %v2248
  %v2377 = vpack.c.b16 %v2249, %v2249
  %v2378 = vpack.c.b16 %v2250, %v2250
  %v2379 = vpack.c.b16 %v2251, %v2251
  %v2380 = vpack.c.b16 %v2252, %v2252
  %v2381 = vpack.c.b16 %v2253, %v2253
  %v2382 = vpack.c.b16 %v2254, %v2254
  %v2383 = vpack.c.b16 %v2255, %v2255
  %v2384 = vpack.c.b16 %v2256, %v2256
  %v2385 = vpack.c.b16 %v2257, %v2257
  %v2386 = vpack.c.b16 %v2258, %v2258
  %v2387 = vpack.c.b16 %v2259, %v2259
  %v2388 = vpack.c.b16 %v2260, %v2260
  %v2389 = vpack.c.b16 %v2261, %v2261
  %v2390 = vpack.c.b16 %v2262, %v2262
  %v2391 = vpack.c.b16 %v2263, %v2263
  %v2392 = vpack.c.b16 %v2264, %v2264
  %v2393 = vpack.c.b16 %v2265, %v2265
  %v2394 = vpack.c.b16 %v2266, %v2266
  %v2395 = vpack.c.b16 %v2267, %v2267
  %v2396 = vpack.c.b16 %v2268, %v2268
  %v2397 = vpack.c.b16 %v2269, %v2269
  %v2398 = vpack.c.b16 %v2270, %v2270
  %v2399 = vpack.c.b16 %v2271, %v2271
  %v2400 = vpack.c.b16 %v2272, %v2272
  %v2401 = vpack.c.b16 %v2273, %v2273
  %v2402 = vpack.c.b16 %v2274, %v2274
  %v2403 = vpack.c.b16 %v2275, %v2275
  %v2404 = vpack.c.b16 %v2276, %v2276
  %v2405 = vpack.c.b16 %v2277, %v2277
  %v2406 = vpack.c.b16 %v2278, %v2278
  %v2407 = vpack.c.b16 %v2279, %v2279
  %v2408 = vpack.c.b16 %v2280, %v2280
  %v2409 = vpack.c.b16 %v2281, %v2281
  %v2410 = vpack.c.b16 %v2282, %v2282
  %v2411 = vpack.c.b16 %v2283, %v2283
  %v2412 = vpack.c.b16 %v2284, %v2284
  %v2413 = vpack.c.b16 %v2285, %v2285
  %v2414 = vpack.c.b16 %v2286, %v2286
  %v2415 = vpack.c.b16 %v2287, %v2287
  %v2416 = vpack.c.b16 %v2288, %v2288
  %v2417 = vpack.c.b16 %v2289, %v2289
  %v2418 = vpack.c.b16 %v2290, %v2290
  %v2419 = vpack.c.b16 %v2291, %v2291
  %v2420 = vpack.c.b16 %v2292, %v2292
  %v2421 = vpack.c.b16 %v2293, %v2293
  %v2422 = vpack.c.b16 %v2294, %v2294
  %v2423 = vpack.c.b16 %v2295, %v2295
  %v2424 = vpack.c.b16 %v2296, %v2296
  %v2425 = vpack.c.b16 %v2297, %v2297
  %v2426 = vpack.c.b16 %v2298, %v2298
  %v2427 = vpack.c.b16 %v2299, %v2299
  %v2428 = vpack.c.b16 %v2300, %v2300
  %v2429 = vpack.c.b16 %v2301, %v2301
  %v2430 = vpack.c.b16 %v2302, %v2302
  %v2431 = vpack.c.b16 %v2303, %v2303
  %v2432 = vpack.c.b16 %v2304, %v2304
  %v2433 = vpack.c.b16 %v2305, %v2305
  %v2434 = vpack.c.b16 %v2306, %v2306
  %v2435 = vpack.c.b16 %v2307, %v2307
  %v2436 = vpack.c.b16 %v2308, %v2308
  %v2437 = vpack.c.b16 %v2309, %v2309
  %v2438 = vpack.c.b16 %v2310, %v2310
  %v2439 = vpack.c.b16 %v2311, %v2311
  %v2440 = vpack.c.b16 %v2312, %v2312
  %v2441 = vpack.c.b16 %v2313, %v2313
  %v2442 = vpack.c.b16 %v2314, %v2314
  %v2443 = vpack.c.b16 %v2315, %v2315
  %v2444 = vpack.c.b16 %v2316, %v2316
  %v2445 = vpack.c.b16 %v2317, %v2317
  %v2446 = vpack.c.b16 %v2318, %v2318
  %v2447 = vpack.c.b16 %v2319, %v2319
  %v2448 = vpack.c.b16 %v2320, %v2320
  %v2449 = vpack.c.b16 %v2321, %v2321
  %v2450 = vpack.c.b16 %v2322, %v2322
  %v2451 = vpack.c.b16 %v2323, %v2323
  %v2452 = vpack.c.b16 %v2324, %v2324
  %v2453 = vpack.c.b16 %v2325, %v2325
  %v2454 = vpack.c.b16 %v2326, %v2326
  %v2455 = vpack.c.b16 %v2327, %v2327
  %v2456 = vpack.c.b16 %v2328, %v2328
  %v2457 = vpack.c.b16 %v2329, %v2329
  %v2458 = vpack.c.b16 %v2330, %v2330
  %v2459 = vpack.c.b16 %v2331, %v2331
  %v2460 = vpack.c.b16 %v2332, %v2332
  %v2461 = vpack.c.b16 %v2333, %v2333
  %v2462 = vpack.c.b16 %v2334, %v2334
  %v2463 = vpack.c.b16 %v2335, %v2335
  %v2464 = vpack.c.b16 %v2336, %v2336
  %v2465 = vpack.c.b16 %v2337, %v2337
  %v2466 = vpack.c.b16 %v2338, %v2338
  %v2467 = vpack.c.b16 %v2339, %v2339
  %v2468 = vpack.c.b16 %v2340, %v2340
  %v2469 = vpack.c.b16 %v2341, %v2341
  %v2470 = vpack.c.b16 %v2342, %v2342
  %v2471 = vpack.c.b16 %v2343, %v2343
  %v2472 = vpack.c.b16 %v2344, %v2344
  %v2473 = vpack.c.b16 %v2345, %v2345
  %v2474 = vpack.c.b16 %v2346, %v2346
  %v2475 = vpack.c.b16 %v2347, %v2347
  %v2476 = vpack.c.b16 %v2348, %v2348
  %v2477 = vpack.c.b16 %v2349, %v2349
  %v2478 = vpack.c.b16 %v2350, %v2350
  %v2479 = vpack.c.b16 %v2351, %v2351
  %v2480 = vpack.c.b16 %v2352, %v2352
  %v2481 = vpack.c.b16 %v2353, %v2353
  %v2482 = vpack.c.b16 %v2354, %v2354
  %v2483 = vpack.c.b16 %v2355, %v2355
  %v2484 = vpack.c.b16 %v2356, %v2356
  %v2485 = vpack.c.b16 %v2357, %v2357
  %v2486 = vpack.c.b16 %v2358, %v2358
  %v2487 = vpack.c.b16 %v2359, %v2359
  %v2488 = vpack.c.b16 %v2360, %v2360
  %v2489 = vpack.c.b16 %v2361, %v2361
  %v2490 = vpack.c.b16 %v2362, %v2362
  %v2491 = vpack.c.b16 %v2363, %v2363
  %v2492 = vpack.c.b16 %v2364, %v2364
  %v2493 = vpack.c.b16 %v2365, %v2365
  %v2494 = vpack.c.b16 %v2366, %v2366
  %v2495 = vpack.c.b16 %v2367, %v2367
  %v2496 = vpack.c.b16 %v2368, %v2368
  %v2497 = vpack.c.b16 %v2369, %v2369
  %2626 = vst [vmem:[%s4] sm:$0xf] %v2370
  %2627 = vst [vmem:[%s4 + $0x4] sm:$0xf] %v2371
  %2628 = vst [vmem:[%s4 + $0x8] sm:$0xf] %v2372
  %2629 = vst [vmem:[%s4 + $0xc] sm:$0xf] %v2373
  %2630 = vst [vmem:[%s4 + $0x10] sm:$0xf] %v2374
  %2631 = vst [vmem:[%s4 + $0x14] sm:$0xf] %v2375
  %2632 = vst [vmem:[%s4 + $0x18] sm:$0xf] %v2376
  %2633 = vst [vmem:[%s4 + $0x1c] sm:$0xf] %v2377
  %2634 = vst [vmem:[%s4 + $0x20] sm:$0xf] %v2378
  %2635 = vst [vmem:[%s4 + $0x24] sm:$0xf] %v2379
  %2636 = vst [vmem:[%s4 + $0x28] sm:$0xf] %v2380
  %2637 = vst [vmem:[%s4 + $0x2c] sm:$0xf] %v2381
  %2638 = vst [vmem:[%s4 + $0x30] sm:$0xf] %v2382
  %2639 = vst [vmem:[%s4 + $0x34] sm:$0xf] %v2383
  %2640 = vst [vmem:[%s4 + $0x38] sm:$0xf] %v2384
  %2641 = vst [vmem:[%s4 + $0x3c] sm:$0xf] %v2385
  %2642 = vst [vmem:[%s4 + $0x40] sm:$0xf] %v2386
  %2643 = vst [vmem:[%s4 + $0x44] sm:$0xf] %v2387
  %2644 = vst [vmem:[%s4 + $0x48] sm:$0xf] %v2388
  %2645 = vst [vmem:[%s4 + $0x4c] sm:$0xf] %v2389
  %2646 = vst [vmem:[%s4 + $0x50] sm:$0xf] %v2390
  %2647 = vst [vmem:[%s4 + $0x54] sm:$0xf] %v2391
  %2648 = vst [vmem:[%s4 + $0x58] sm:$0xf] %v2392
  %2649 = vst [vmem:[%s4 + $0x5c] sm:$0xf] %v2393
  %2650 = vst [vmem:[%s4 + $0x60] sm:$0xf] %v2394
  %2651 = vst [vmem:[%s4 + $0x64] sm:$0xf] %v2395
  %2652 = vst [vmem:[%s4 + $0x68] sm:$0xf] %v2396
  %2653 = vst [vmem:[%s4 + $0x6c] sm:$0xf] %v2397
  %2654 = vst [vmem:[%s4 + $0x70] sm:$0xf] %v2398
  %2655 = vst [vmem:[%s4 + $0x74] sm:$0xf] %v2399
  %2656 = vst [vmem:[%s4 + $0x78] sm:$0xf] %v2400
  %2657 = vst [vmem:[%s4 + $0x7c] sm:$0xf] %v2401
  %2658 = vst [vmem:[%s4 + $0x80] sm:$0xf] %v2402
  %2659 = vst [vmem:[%s4 + $0x84] sm:$0xf] %v2403
  %2660 = vst [vmem:[%s4 + $0x88] sm:$0xf] %v2404
  %2661 = vst [vmem:[%s4 + $0x8c] sm:$0xf] %v2405
  %2662 = vst [vmem:[%s4 + $0x90] sm:$0xf] %v2406
  %2663 = vst [vmem:[%s4 + $0x94] sm:$0xf] %v2407
  %2664 = vst [vmem:[%s4 + $0x98] sm:$0xf] %v2408
  %2665 = vst [vmem:[%s4 + $0x9c] sm:$0xf] %v2409
  %2666 = vst [vmem:[%s4 + $0xa0] sm:$0xf] %v2410
  %2667 = vst [vmem:[%s4 + $0xa4] sm:$0xf] %v2411
  %2668 = vst [vmem:[%s4 + $0xa8] sm:$0xf] %v2412
  %2669 = vst [vmem:[%s4 + $0xac] sm:$0xf] %v2413
  %2670 = vst [vmem:[%s4 + $0xb0] sm:$0xf] %v2414
  %2671 = vst [vmem:[%s4 + $0xb4] sm:$0xf] %v2415
  %2672 = vst [vmem:[%s4 + $0xb8] sm:$0xf] %v2416
  %2673 = vst [vmem:[%s4 + $0xbc] sm:$0xf] %v2417
  %2674 = vst [vmem:[%s4 + $0xc0] sm:$0xf] %v2418
  %2675 = vst [vmem:[%s4 + $0xc4] sm:$0xf] %v2419
  %2676 = vst [vmem:[%s4 + $0xc8] sm:$0xf] %v2420
  %2677 = vst [vmem:[%s4 + $0xcc] sm:$0xf] %v2421
  %2678 = vst [vmem:[%s4 + $0xd0] sm:$0xf] %v2422
  %2679 = vst [vmem:[%s4 + $0xd4] sm:$0xf] %v2423
  %2680 = vst [vmem:[%s4 + $0xd8] sm:$0xf] %v2424
  %2681 = vst [vmem:[%s4 + $0xdc] sm:$0xf] %v2425
  %2682 = vst [vmem:[%s4 + $0xe0] sm:$0xf] %v2426
  %2683 = vst [vmem:[%s4 + $0xe4] sm:$0xf] %v2427
  %2684 = vst [vmem:[%s4 + $0xe8] sm:$0xf] %v2428
  %2685 = vst [vmem:[%s4 + $0xec] sm:$0xf] %v2429
  %2686 = vst [vmem:[%s4 + $0xf0] sm:$0xf] %v2430
  %2687 = vst [vmem:[%s4 + $0xf4] sm:$0xf] %v2431
  %2688 = vst [vmem:[%s4 + $0xf8] sm:$0xf] %v2432
  %2689 = vst [vmem:[%s4 + $0xfc] sm:$0xf] %v2433
  %2690 = vst [vmem:[%s4 + $0x100] sm:$0xf] %v2434
  %2691 = vst [vmem:[%s4 + $0x104] sm:$0xf] %v2435
  %2692 = vst [vmem:[%s4 + $0x108] sm:$0xf] %v2436
  %2693 = vst [vmem:[%s4 + $0x10c] sm:$0xf] %v2437
  %2694 = vst [vmem:[%s4 + $0x110] sm:$0xf] %v2438
  %2695 = vst [vmem:[%s4 + $0x114] sm:$0xf] %v2439
  %2696 = vst [vmem:[%s4 + $0x118] sm:$0xf] %v2440
  %2697 = vst [vmem:[%s4 + $0x11c] sm:$0xf] %v2441
  %2698 = vst [vmem:[%s4 + $0x120] sm:$0xf] %v2442
  %2699 = vst [vmem:[%s4 + $0x124] sm:$0xf] %v2443
  %2700 = vst [vmem:[%s4 + $0x128] sm:$0xf] %v2444
  %2701 = vst [vmem:[%s4 + $0x12c] sm:$0xf] %v2445
  %2702 = vst [vmem:[%s4 + $0x130] sm:$0xf] %v2446
  %2703 = vst [vmem:[%s4 + $0x134] sm:$0xf] %v2447
  %2704 = vst [vmem:[%s4 + $0x138] sm:$0xf] %v2448
  %2705 = vst [vmem:[%s4 + $0x13c] sm:$0xf] %v2449
  %2706 = vst [vmem:[%s4 + $0x140] sm:$0xf] %v2450
  %2707 = vst [vmem:[%s4 + $0x144] sm:$0xf] %v2451
  %2708 = vst [vmem:[%s4 + $0x148] sm:$0xf] %v2452
  %2709 = vst [vmem:[%s4 + $0x14c] sm:$0xf] %v2453
  %2710 = vst [vmem:[%s4 + $0x150] sm:$0xf] %v2454
  %2711 = vst [vmem:[%s4 + $0x154] sm:$0xf] %v2455
  %2712 = vst [vmem:[%s4 + $0x158] sm:$0xf] %v2456
  %2713 = vst [vmem:[%s4 + $0x15c] sm:$0xf] %v2457
  %2714 = vst [vmem:[%s4 + $0x160] sm:$0xf] %v2458
  %2715 = vst [vmem:[%s4 + $0x164] sm:$0xf] %v2459
  %2716 = vst [vmem:[%s4 + $0x168] sm:$0xf] %v2460
  %2717 = vst [vmem:[%s4 + $0x16c] sm:$0xf] %v2461
  %2718 = vst [vmem:[%s4 + $0x170] sm:$0xf] %v2462
  %2719 = vst [vmem:[%s4 + $0x174] sm:$0xf] %v2463
  %2720 = vst [vmem:[%s4 + $0x178] sm:$0xf] %v2464
  %2721 = vst [vmem:[%s4 + $0x17c] sm:$0xf] %v2465
  %2722 = vst [vmem:[%s4 + $0x180] sm:$0xf] %v2466
  %2723 = vst [vmem:[%s4 + $0x184] sm:$0xf] %v2467
  %2724 = vst [vmem:[%s4 + $0x188] sm:$0xf] %v2468
  %2725 = vst [vmem:[%s4 + $0x18c] sm:$0xf] %v2469
  %2726 = vst [vmem:[%s4 + $0x190] sm:$0xf] %v2470
  %2727 = vst [vmem:[%s4 + $0x194] sm:$0xf] %v2471
  %2728 = vst [vmem:[%s4 + $0x198] sm:$0xf] %v2472
  %2729 = vst [vmem:[%s4 + $0x19c] sm:$0xf] %v2473
  %2730 = vst [vmem:[%s4 + $0x1a0] sm:$0xf] %v2474
  %2731 = vst [vmem:[%s4 + $0x1a4] sm:$0xf] %v2475
  %2732 = vst [vmem:[%s4 + $0x1a8] sm:$0xf] %v2476
  %2733 = vst [vmem:[%s4 + $0x1ac] sm:$0xf] %v2477
  %2734 = vst [vmem:[%s4 + $0x1b0] sm:$0xf] %v2478
  %2735 = vst [vmem:[%s4 + $0x1b4] sm:$0xf] %v2479
  %2736 = vst [vmem:[%s4 + $0x1b8] sm:$0xf] %v2480
  %2737 = vst [vmem:[%s4 + $0x1bc] sm:$0xf] %v2481
  %2738 = vst [vmem:[%s4 + $0x1c0] sm:$0xf] %v2482
  %2739 = vst [vmem:[%s4 + $0x1c4] sm:$0xf] %v2483
  %2740 = vst [vmem:[%s4 + $0x1c8] sm:$0xf] %v2484
  %2741 = vst [vmem:[%s4 + $0x1cc] sm:$0xf] %v2485
  %2742 = vst [vmem:[%s4 + $0x1d0] sm:$0xf] %v2486
  %2743 = vst [vmem:[%s4 + $0x1d4] sm:$0xf] %v2487
  %2744 = vst [vmem:[%s4 + $0x1d8] sm:$0xf] %v2488
  %2745 = vst [vmem:[%s4 + $0x1dc] sm:$0xf] %v2489
  %2746 = vst [vmem:[%s4 + $0x1e0] sm:$0xf] %v2490
  %2747 = vst [vmem:[%s4 + $0x1e4] sm:$0xf] %v2491
  %2748 = vst [vmem:[%s4 + $0x1e8] sm:$0xf] %v2492
  %2749 = vst [vmem:[%s4 + $0x1ec] sm:$0xf] %v2493
  %2750 = vst [vmem:[%s4 + $0x1f0] sm:$0xf] %v2494
  %2751 = vst [vmem:[%s4 + $0x1f4] sm:$0xf] %v2495
  %2752 = vst [vmem:[%s4 + $0x1f8] sm:$0xf] %v2496
  %2753 = vst [vmem:[%s4 + $0x1fc] sm:$0xf] %v2497
  // Predicated region
  $region18: #{generator_forward.10} parent=0 // pred_check
    _
  $region19: #{generator_forward.10} parent=0 // pred_check_branch
    %2755 = sbr.rel (0) target = $region21
  $region20: #{generator_forward.10} parent=0 // pred_region
    _
  $region21: #{generator_forward.10} parent=0 // pred_fallthru
    _
  // Predicated region
  $region22: #{generator_forward.10} parent=0 // pred_check
    _
  $region23: #{generator_forward.10} parent=0 // pred_check_branch
    %2757 = sbr.rel (0) target = $region25
  $region24: #{generator_forward.10} parent=0 // pred_region
    _
  $region25: #{generator_forward.10} parent=0 // pred_fallthru
    _

// kernel: generator_forward.11
$region0: #{generator_forward.11}
  #allocation0 [shape = 'u32[]', space=smem, size = 0x4, offset = 0x4, fixed_abs, tag = 'smem constant byte address 0x4 - core index']
  #allocation1 [shape = 'u32[144,128]{1,0:T(1,128)}', space=vmem, size = 0x12000, scoped, tag = 'internal scratch']
  %s0 = inlined_call_operand.vmem [shape: bf16[256,512], index: 0, kind: input, shape index: {}]
  %s1 = inlined_call_operand.vmem [shape: bf16[512,128], index: 1, kind: input, shape index: {}]
  %s2 = inlined_call_operand.vmem [shape: f32[1,128], index: 2, kind: input, shape index: {}]
  %s3 = inlined_call_operand.vmem [shape: f32[1,128], index: 3, kind: input, shape index: {}]
  %s4 = inlined_call_operand.vmem [shape: bf16[256,128], index: 4, kind: output, shape index: {}]
  %s5 = sld [smem:[#allocation0]]
  $region26: #{generator_forward.11} parent=0
    _
  %s7 = ssub.s32 1, %s5
  %s8 = scalar_select 0, %s7, %s5
  // Predicated region
  $region2: #{generator_forward.11} parent=0 // pred_check
    _
  $region3: #{generator_forward.11} parent=0 // pred_check_branch
    %10 = sbr.rel (0) target = $region5
  $region4: #{generator_forward.11} parent=0 // pred_region
    _
  $region5: #{generator_forward.11} parent=0 // pred_fallthru
    _
  // Predicated region
  $region6: #{generator_forward.11} parent=0 // pred_check
    _
  $region7: #{generator_forward.11} parent=0 // pred_check_branch
    %12 = sbr.rel (0) target = $region9
  $region8: #{generator_forward.11} parent=0 // pred_region
    _
  $region9: #{generator_forward.11} parent=0 // pred_fallthru
    _
  // Predicated region
  $region10: #{generator_forward.11} parent=0 // pred_check
    _
  $region11: #{generator_forward.11} parent=0 // pred_check_branch
    %14 = sbr.rel (0) target = $region13
  $region12: #{generator_forward.11} parent=0 // pred_region
    _
  $region13: #{generator_forward.11} parent=0 // pred_fallthru
    _
  // Predicated region
  $region14: #{generator_forward.11} parent=0 // pred_check
    _
  $region15: #{generator_forward.11} parent=0 // pred_check_branch
    %16 = sbr.rel (0) target = $region17
  $region16: #{generator_forward.11} parent=0 // pred_region
    _
  $region17: #{generator_forward.11} parent=0 // pred_fallthru
    _
  %v19 = vld [vmem:[%s0] sm:$0xff]
  %v20 = vld [vmem:[%s0 + $0x8] sm:$0xff]
  %v21 = vld [vmem:[%s0 + $0x10] sm:$0xff]
  %v22 = vld [vmem:[%s0 + $0x18] sm:$0xff]
  %v23 = vld [vmem:[%s0 + $0x20] sm:$0xff]
  %v24 = vld [vmem:[%s0 + $0x28] sm:$0xff]
  %v25 = vld [vmem:[%s0 + $0x30] sm:$0xff]
  %v26 = vld [vmem:[%s0 + $0x38] sm:$0xff]
  %v27 = vld [vmem:[%s0 + $0x40] sm:$0xff]
  %v28 = vld [vmem:[%s0 + $0x48] sm:$0xff]
  %v29 = vld [vmem:[%s0 + $0x50] sm:$0xff]
  %v30 = vld [vmem:[%s0 + $0x58] sm:$0xff]
  %v31 = vld [vmem:[%s0 + $0x60] sm:$0xff]
  %v32 = vld [vmem:[%s0 + $0x68] sm:$0xff]
  %v33 = vld [vmem:[%s0 + $0x70] sm:$0xff]
  %v34 = vld [vmem:[%s0 + $0x78] sm:$0xff]
  %v35 = vld [vmem:[%s0 + $0x80] sm:$0xff]
  %v36 = vld [vmem:[%s0 + $0x88] sm:$0xff]
  %v37 = vld [vmem:[%s0 + $0x90] sm:$0xff]
  %v38 = vld [vmem:[%s0 + $0x98] sm:$0xff]
  %v39 = vld [vmem:[%s0 + $0xa0] sm:$0xff]
  %v40 = vld [vmem:[%s0 + $0xa8] sm:$0xff]
  %v41 = vld [vmem:[%s0 + $0xb0] sm:$0xff]
  %v42 = vld [vmem:[%s0 + $0xb8] sm:$0xff]
  %v43 = vld [vmem:[%s0 + $0xc0] sm:$0xff]
  %v44 = vld [vmem:[%s0 + $0xc8] sm:$0xff]
  %v45 = vld [vmem:[%s0 + $0xd0] sm:$0xff]
  %v46 = vld [vmem:[%s0 + $0xd8] sm:$0xff]
  %v47 = vld [vmem:[%s0 + $0xe0] sm:$0xff]
  %v48 = vld [vmem:[%s0 + $0xe8] sm:$0xff]
  %v49 = vld [vmem:[%s0 + $0xf0] sm:$0xff]
  %v50 = vld [vmem:[%s0 + $0xf8] sm:$0xff]
  %v51 = vld [vmem:[%s0 + $0x100] sm:$0xff]
  %v52 = vld [vmem:[%s0 + $0x108] sm:$0xff]
  %v53 = vld [vmem:[%s0 + $0x110] sm:$0xff]
  %v54 = vld [vmem:[%s0 + $0x118] sm:$0xff]
  %v55 = vld [vmem:[%s0 + $0x120] sm:$0xff]
  %v56 = vld [vmem:[%s0 + $0x128] sm:$0xff]
  %v57 = vld [vmem:[%s0 + $0x130] sm:$0xff]
  %v58 = vld [vmem:[%s0 + $0x138] sm:$0xff]
  %v59 = vld [vmem:[%s0 + $0x140] sm:$0xff]
  %v60 = vld [vmem:[%s0 + $0x148] sm:$0xff]
  %v61 = vld [vmem:[%s0 + $0x150] sm:$0xff]
  %v62 = vld [vmem:[%s0 + $0x158] sm:$0xff]
  %v63 = vld [vmem:[%s0 + $0x160] sm:$0xff]
  %v64 = vld [vmem:[%s0 + $0x168] sm:$0xff]
  %v65 = vld [vmem:[%s0 + $0x170] sm:$0xff]
  %v66 = vld [vmem:[%s0 + $0x178] sm:$0xff]
  %v67 = vld [vmem:[%s0 + $0x180] sm:$0xff]
  %v68 = vld [vmem:[%s0 + $0x188] sm:$0xff]
  %v69 = vld [vmem:[%s0 + $0x190] sm:$0xff]
  %v70 = vld [vmem:[%s0 + $0x198] sm:$0xff]
  %v71 = vld [vmem:[%s0 + $0x1a0] sm:$0xff]
  %v72 = vld [vmem:[%s0 + $0x1a8] sm:$0xff]
  %v73 = vld [vmem:[%s0 + $0x1b0] sm:$0xff]
  %v74 = vld [vmem:[%s0 + $0x1b8] sm:$0xff]
  %v75 = vld [vmem:[%s0 + $0x1c0] sm:$0xff]
  %v76 = vld [vmem:[%s0 + $0x1c8] sm:$0xff]
  %v77 = vld [vmem:[%s0 + $0x1d0] sm:$0xff]
  %v78 = vld [vmem:[%s0 + $0x1d8] sm:$0xff]
  %v79 = vld [vmem:[%s0 + $0x1e0] sm:$0xff]
  %v80 = vld [vmem:[%s0 + $0x1e8] sm:$0xff]
  %v81 = vld [vmem:[%s0 + $0x1f0] sm:$0xff]
  %v82 = vld [vmem:[%s0 + $0x1f8] sm:$0xff]
  %vm83 = vcmp.gt.bf16.partialorder %v19, 0
  %vm84 = vcmp.gt.bf16.partialorder %v20, 0
  %vm85 = vcmp.gt.bf16.partialorder %v21, 0
  %vm86 = vcmp.gt.bf16.partialorder %v22, 0
  %vm87 = vcmp.gt.bf16.partialorder %v23, 0
  %vm88 = vcmp.gt.bf16.partialorder %v24, 0
  %vm89 = vcmp.gt.bf16.partialorder %v25, 0
  %vm90 = vcmp.gt.bf16.partialorder %v26, 0
  %vm91 = vcmp.gt.bf16.partialorder %v27, 0
  %vm92 = vcmp.gt.bf16.partialorder %v28, 0
  %vm93 = vcmp.gt.bf16.partialorder %v29, 0
  %vm94 = vcmp.gt.bf16.partialorder %v30, 0
  %vm95 = vcmp.gt.bf16.partialorder %v31, 0
  %vm96 = vcmp.gt.bf16.partialorder %v32, 0
  %vm97 = vcmp.gt.bf16.partialorder %v33, 0
  %vm98 = vcmp.gt.bf16.partialorder %v34, 0
  %vm99 = vcmp.gt.bf16.partialorder %v35, 0
  %vm100 = vcmp.gt.bf16.partialorder %v36, 0
  %vm101 = vcmp.gt.bf16.partialorder %v37, 0
  %vm102 = vcmp.gt.bf16.partialorder %v38, 0
  %vm103 = vcmp.gt.bf16.partialorder %v39, 0
  %vm104 = vcmp.gt.bf16.partialorder %v40, 0
  %vm105 = vcmp.gt.bf16.partialorder %v41, 0
  %vm106 = vcmp.gt.bf16.partialorder %v42, 0
  %vm107 = vcmp.gt.bf16.partialorder %v43, 0
  %vm108 = vcmp.gt.bf16.partialorder %v44, 0
  %vm109 = vcmp.gt.bf16.partialorder %v45, 0
  %vm110 = vcmp.gt.bf16.partialorder %v46, 0
  %vm111 = vcmp.gt.bf16.partialorder %v47, 0
  %vm112 = vcmp.gt.bf16.partialorder %v48, 0
  %vm113 = vcmp.gt.bf16.partialorder %v49, 0
  %vm114 = vcmp.gt.bf16.partialorder %v50, 0
  %vm115 = vcmp.gt.bf16.partialorder %v51, 0
  %vm116 = vcmp.gt.bf16.partialorder %v52, 0
  %vm117 = vcmp.gt.bf16.partialorder %v53, 0
  %vm118 = vcmp.gt.bf16.partialorder %v54, 0
  %vm119 = vcmp.gt.bf16.partialorder %v55, 0
  %vm120 = vcmp.gt.bf16.partialorder %v56, 0
  %vm121 = vcmp.gt.bf16.partialorder %v57, 0
  %vm122 = vcmp.gt.bf16.partialorder %v58, 0
  %vm123 = vcmp.gt.bf16.partialorder %v59, 0
  %vm124 = vcmp.gt.bf16.partialorder %v60, 0
  %vm125 = vcmp.gt.bf16.partialorder %v61, 0
  %vm126 = vcmp.gt.bf16.partialorder %v62, 0
  %vm127 = vcmp.gt.bf16.partialorder %v63, 0
  %vm128 = vcmp.gt.bf16.partialorder %v64, 0
  %vm129 = vcmp.gt.bf16.partialorder %v65, 0
  %vm130 = vcmp.gt.bf16.partialorder %v66, 0
  %vm131 = vcmp.gt.bf16.partialorder %v67, 0
  %vm132 = vcmp.gt.bf16.partialorder %v68, 0
  %vm133 = vcmp.gt.bf16.partialorder %v69, 0
  %vm134 = vcmp.gt.bf16.partialorder %v70, 0
  %vm135 = vcmp.gt.bf16.partialorder %v71, 0
  %vm136 = vcmp.gt.bf16.partialorder %v72, 0
  %vm137 = vcmp.gt.bf16.partialorder %v73, 0
  %vm138 = vcmp.gt.bf16.partialorder %v74, 0
  %vm139 = vcmp.gt.bf16.partialorder %v75, 0
  %vm140 = vcmp.gt.bf16.partialorder %v76, 0
  %vm141 = vcmp.gt.bf16.partialorder %v77, 0
  %vm142 = vcmp.gt.bf16.partialorder %v78, 0
  %vm143 = vcmp.gt.bf16.partialorder %v79, 0
  %vm144 = vcmp.gt.bf16.partialorder %v80, 0
  %vm145 = vcmp.gt.bf16.partialorder %v81, 0
  %vm146 = vcmp.gt.bf16.partialorder %v82, 0
  %v147 = vmul.bf16 %v19, 1045249613
  %v148 = vmul.bf16 %v20, 1045249613
  %v149 = vmul.bf16 %v21, 1045249613
  %v150 = vmul.bf16 %v22, 1045249613
  %v151 = vmul.bf16 %v23, 1045249613
  %v152 = vmul.bf16 %v24, 1045249613
  %v153 = vmul.bf16 %v25, 1045249613
  %v154 = vmul.bf16 %v26, 1045249613
  %v155 = vmul.bf16 %v27, 1045249613
  %v156 = vmul.bf16 %v28, 1045249613
  %v157 = vmul.bf16 %v29, 1045249613
  %v158 = vmul.bf16 %v30, 1045249613
  %v159 = vmul.bf16 %v31, 1045249613
  %v160 = vmul.bf16 %v32, 1045249613
  %v161 = vmul.bf16 %v33, 1045249613
  %v162 = vmul.bf16 %v34, 1045249613
  %v163 = vmul.bf16 %v35, 1045249613
  %v164 = vmul.bf16 %v36, 1045249613
  %v165 = vmul.bf16 %v37, 1045249613
  %v166 = vmul.bf16 %v38, 1045249613
  %v167 = vmul.bf16 %v39, 1045249613
  %v168 = vmul.bf16 %v40, 1045249613
  %v169 = vmul.bf16 %v41, 1045249613
  %v170 = vmul.bf16 %v42, 1045249613
  %v171 = vmul.bf16 %v43, 1045249613
  %v172 = vmul.bf16 %v44, 1045249613
  %v173 = vmul.bf16 %v45, 1045249613
  %v174 = vmul.bf16 %v46, 1045249613
  %v175 = vmul.bf16 %v47, 1045249613
  %v176 = vmul.bf16 %v48, 1045249613
  %v177 = vmul.bf16 %v49, 1045249613
  %v178 = vmul.bf16 %v50, 1045249613
  %v179 = vmul.bf16 %v51, 1045249613
  %v180 = vmul.bf16 %v52, 1045249613
  %v181 = vmul.bf16 %v53, 1045249613
  %v182 = vmul.bf16 %v54, 1045249613
  %v183 = vmul.bf16 %v55, 1045249613
  %v184 = vmul.bf16 %v56, 1045249613
  %v185 = vmul.bf16 %v57, 1045249613
  %v186 = vmul.bf16 %v58, 1045249613
  %v187 = vmul.bf16 %v59, 1045249613
  %v188 = vmul.bf16 %v60, 1045249613
  %v189 = vmul.bf16 %v61, 1045249613
  %v190 = vmul.bf16 %v62, 1045249613
  %v191 = vmul.bf16 %v63, 1045249613
  %v192 = vmul.bf16 %v64, 1045249613
  %v193 = vmul.bf16 %v65, 1045249613
  %v194 = vmul.bf16 %v66, 1045249613
  %v195 = vmul.bf16 %v67, 1045249613
  %v196 = vmul.bf16 %v68, 1045249613
  %v197 = vmul.bf16 %v69, 1045249613
  %v198 = vmul.bf16 %v70, 1045249613
  %v199 = vmul.bf16 %v71, 1045249613
  %v200 = vmul.bf16 %v72, 1045249613
  %v201 = vmul.bf16 %v73, 1045249613
  %v202 = vmul.bf16 %v74, 1045249613
  %v203 = vmul.bf16 %v75, 1045249613
  %v204 = vmul.bf16 %v76, 1045249613
  %v205 = vmul.bf16 %v77, 1045249613
  %v206 = vmul.bf16 %v78, 1045249613
  %v207 = vmul.bf16 %v79, 1045249613
  %v208 = vmul.bf16 %v80, 1045249613
  %v209 = vmul.bf16 %v81, 1045249613
  %v210 = vmul.bf16 %v82, 1045249613
  %v211 = vsel %vm83, %v19, %v147
  %v212 = vsel %vm84, %v20, %v148
  %v213 = vsel %vm85, %v21, %v149
  %v214 = vsel %vm86, %v22, %v150
  %v215 = vsel %vm87, %v23, %v151
  %v216 = vsel %vm88, %v24, %v152
  %v217 = vsel %vm89, %v25, %v153
  %v218 = vsel %vm90, %v26, %v154
  %v219 = vsel %vm91, %v27, %v155
  %v220 = vsel %vm92, %v28, %v156
  %v221 = vsel %vm93, %v29, %v157
  %v222 = vsel %vm94, %v30, %v158
  %v223 = vsel %vm95, %v31, %v159
  %v224 = vsel %vm96, %v32, %v160
  %v225 = vsel %vm97, %v33, %v161
  %v226 = vsel %vm98, %v34, %v162
  %v227 = vsel %vm99, %v35, %v163
  %v228 = vsel %vm100, %v36, %v164
  %v229 = vsel %vm101, %v37, %v165
  %v230 = vsel %vm102, %v38, %v166
  %v231 = vsel %vm103, %v39, %v167
  %v232 = vsel %vm104, %v40, %v168
  %v233 = vsel %vm105, %v41, %v169
  %v234 = vsel %vm106, %v42, %v170
  %v235 = vsel %vm107, %v43, %v171
  %v236 = vsel %vm108, %v44, %v172
  %v237 = vsel %vm109, %v45, %v173
  %v238 = vsel %vm110, %v46, %v174
  %v239 = vsel %vm111, %v47, %v175
  %v240 = vsel %vm112, %v48, %v176
  %v241 = vsel %vm113, %v49, %v177
  %v242 = vsel %vm114, %v50, %v178
  %v243 = vsel %vm115, %v51, %v179
  %v244 = vsel %vm116, %v52, %v180
  %v245 = vsel %vm117, %v53, %v181
  %v246 = vsel %vm118, %v54, %v182
  %v247 = vsel %vm119, %v55, %v183
  %v248 = vsel %vm120, %v56, %v184
  %v249 = vsel %vm121, %v57, %v185
  %v250 = vsel %vm122, %v58, %v186
  %v251 = vsel %vm123, %v59, %v187
  %v252 = vsel %vm124, %v60, %v188
  %v253 = vsel %vm125, %v61, %v189
  %v254 = vsel %vm126, %v62, %v190
  %v255 = vsel %vm127, %v63, %v191
  %v256 = vsel %vm128, %v64, %v192
  %v257 = vsel %vm129, %v65, %v193
  %v258 = vsel %vm130, %v66, %v194
  %v259 = vsel %vm131, %v67, %v195
  %v260 = vsel %vm132, %v68, %v196
  %v261 = vsel %vm133, %v69, %v197
  %v262 = vsel %vm134, %v70, %v198
  %v263 = vsel %vm135, %v71, %v199
  %v264 = vsel %vm136, %v72, %v200
  %v265 = vsel %vm137, %v73, %v201
  %v266 = vsel %vm138, %v74, %v202
  %v267 = vsel %vm139, %v75, %v203
  %v268 = vsel %vm140, %v76, %v204
  %v269 = vsel %vm141, %v77, %v205
  %v270 = vsel %vm142, %v78, %v206
  %v271 = vsel %vm143, %v79, %v207
  %v272 = vsel %vm144, %v80, %v208
  %v273 = vsel %vm145, %v81, %v209
  %v274 = vsel %vm146, %v82, %v210
  %v275 = vld [vmem:[%s1] sm:$0xf]
  %v276 = vld [vmem:[%s1 + $0x4] sm:$0xf]
  %v277 = vld [vmem:[%s1 + $0x8] sm:$0xf]
  %v278 = vld [vmem:[%s1 + $0xc] sm:$0xf]
  %v279 = vld [vmem:[%s1 + $0x10] sm:$0xf]
  %v280 = vld [vmem:[%s1 + $0x14] sm:$0xf]
  %v281 = vld [vmem:[%s1 + $0x18] sm:$0xf]
  %v282 = vld [vmem:[%s1 + $0x1c] sm:$0xf]
  %v283 = vld [vmem:[%s1 + $0x20] sm:$0xf]
  %v284 = vld [vmem:[%s1 + $0x24] sm:$0xf]
  %v285 = vld [vmem:[%s1 + $0x28] sm:$0xf]
  %v286 = vld [vmem:[%s1 + $0x2c] sm:$0xf]
  %v287 = vld [vmem:[%s1 + $0x30] sm:$0xf]
  %v288 = vld [vmem:[%s1 + $0x34] sm:$0xf]
  %v289 = vld [vmem:[%s1 + $0x38] sm:$0xf]
  %v290 = vld [vmem:[%s1 + $0x3c] sm:$0xf]
  %v291 = vld [vmem:[%s1 + $0x40] sm:$0xf]
  %v292 = vld [vmem:[%s1 + $0x44] sm:$0xf]
  %v293 = vld [vmem:[%s1 + $0x48] sm:$0xf]
  %v294 = vld [vmem:[%s1 + $0x4c] sm:$0xf]
  %v295 = vld [vmem:[%s1 + $0x50] sm:$0xf]
  %v296 = vld [vmem:[%s1 + $0x54] sm:$0xf]
  %v297 = vld [vmem:[%s1 + $0x58] sm:$0xf]
  %v298 = vld [vmem:[%s1 + $0x5c] sm:$0xf]
  %v299 = vld [vmem:[%s1 + $0x60] sm:$0xf]
  %v300 = vld [vmem:[%s1 + $0x64] sm:$0xf]
  %v301 = vld [vmem:[%s1 + $0x68] sm:$0xf]
  %v302 = vld [vmem:[%s1 + $0x6c] sm:$0xf]
  %v303 = vld [vmem:[%s1 + $0x70] sm:$0xf]
  %v304 = vld [vmem:[%s1 + $0x74] sm:$0xf]
  %v305 = vld [vmem:[%s1 + $0x78] sm:$0xf]
  %v306 = vld [vmem:[%s1 + $0x7c] sm:$0xf]
  %v307 = vld [vmem:[%s1 + $0x80] sm:$0xf]
  %v308 = vld [vmem:[%s1 + $0x84] sm:$0xf]
  %v309 = vld [vmem:[%s1 + $0x88] sm:$0xf]
  %v310 = vld [vmem:[%s1 + $0x8c] sm:$0xf]
  %v311 = vld [vmem:[%s1 + $0x90] sm:$0xf]
  %v312 = vld [vmem:[%s1 + $0x94] sm:$0xf]
  %v313 = vld [vmem:[%s1 + $0x98] sm:$0xf]
  %v314 = vld [vmem:[%s1 + $0x9c] sm:$0xf]
  %v315 = vld [vmem:[%s1 + $0xa0] sm:$0xf]
  %v316 = vld [vmem:[%s1 + $0xa4] sm:$0xf]
  %v317 = vld [vmem:[%s1 + $0xa8] sm:$0xf]
  %v318 = vld [vmem:[%s1 + $0xac] sm:$0xf]
  %v319 = vld [vmem:[%s1 + $0xb0] sm:$0xf]
  %v320 = vld [vmem:[%s1 + $0xb4] sm:$0xf]
  %v321 = vld [vmem:[%s1 + $0xb8] sm:$0xf]
  %v322 = vld [vmem:[%s1 + $0xbc] sm:$0xf]
  %v323 = vld [vmem:[%s1 + $0xc0] sm:$0xf]
  %v324 = vld [vmem:[%s1 + $0xc4] sm:$0xf]
  %v325 = vld [vmem:[%s1 + $0xc8] sm:$0xf]
  %v326 = vld [vmem:[%s1 + $0xcc] sm:$0xf]
  %v327 = vld [vmem:[%s1 + $0xd0] sm:$0xf]
  %v328 = vld [vmem:[%s1 + $0xd4] sm:$0xf]
  %v329 = vld [vmem:[%s1 + $0xd8] sm:$0xf]
  %v330 = vld [vmem:[%s1 + $0xdc] sm:$0xf]
  %v331 = vld [vmem:[%s1 + $0xe0] sm:$0xf]
  %v332 = vld [vmem:[%s1 + $0xe4] sm:$0xf]
  %v333 = vld [vmem:[%s1 + $0xe8] sm:$0xf]
  %v334 = vld [vmem:[%s1 + $0xec] sm:$0xf]
  %v335 = vld [vmem:[%s1 + $0xf0] sm:$0xf]
  %v336 = vld [vmem:[%s1 + $0xf4] sm:$0xf]
  %v337 = vld [vmem:[%s1 + $0xf8] sm:$0xf]
  %v338 = vld [vmem:[%s1 + $0xfc] sm:$0xf]
  %v403 = vunpack.c.l.b16 %v211
  %v404 = vunpack.c.h.b16 %v211
  %v405 = vunpack.c.l.b16 %v212
  %v406 = vunpack.c.h.b16 %v212
  %v407 = vunpack.c.l.b16 %v213
  %v408 = vunpack.c.h.b16 %v213
  %v409 = vunpack.c.l.b16 %v214
  %v410 = vunpack.c.h.b16 %v214
  %v411 = vunpack.c.l.b16 %v215
  %v412 = vunpack.c.h.b16 %v215
  %v413 = vunpack.c.l.b16 %v216
  %v414 = vunpack.c.h.b16 %v216
  %v415 = vunpack.c.l.b16 %v217
  %v416 = vunpack.c.h.b16 %v217
  %v417 = vunpack.c.l.b16 %v218
  %v418 = vunpack.c.h.b16 %v218
  %v419 = vunpack.c.l.b16 %v219
  %v420 = vunpack.c.h.b16 %v219
  %v421 = vunpack.c.l.b16 %v220
  %v422 = vunpack.c.h.b16 %v220
  %v423 = vunpack.c.l.b16 %v221
  %v424 = vunpack.c.h.b16 %v221
  %v425 = vunpack.c.l.b16 %v222
  %v426 = vunpack.c.h.b16 %v222
  %v427 = vunpack.c.l.b16 %v223
  %v428 = vunpack.c.h.b16 %v223
  %v429 = vunpack.c.l.b16 %v224
  %v430 = vunpack.c.h.b16 %v224
  %v431 = vunpack.c.l.b16 %v225
  %v432 = vunpack.c.h.b16 %v225
  %v433 = vunpack.c.l.b16 %v226
  %v434 = vunpack.c.h.b16 %v226
  %v435 = vunpack.c.l.b16 %v227
  %v436 = vunpack.c.h.b16 %v227
  %v437 = vunpack.c.l.b16 %v228
  %v438 = vunpack.c.h.b16 %v228
  %v439 = vunpack.c.l.b16 %v229
  %v440 = vunpack.c.h.b16 %v229
  %v441 = vunpack.c.l.b16 %v230
  %v442 = vunpack.c.h.b16 %v230
  %v443 = vunpack.c.l.b16 %v231
  %v444 = vunpack.c.h.b16 %v231
  %v445 = vunpack.c.l.b16 %v232
  %v446 = vunpack.c.h.b16 %v232
  %v447 = vunpack.c.l.b16 %v233
  %v448 = vunpack.c.h.b16 %v233
  %v449 = vunpack.c.l.b16 %v234
  %v450 = vunpack.c.h.b16 %v234
  %v451 = vunpack.c.l.b16 %v235
  %v452 = vunpack.c.h.b16 %v235
  %v453 = vunpack.c.l.b16 %v236
  %v454 = vunpack.c.h.b16 %v236
  %v455 = vunpack.c.l.b16 %v237
  %v456 = vunpack.c.h.b16 %v237
  %v457 = vunpack.c.l.b16 %v238
  %v458 = vunpack.c.h.b16 %v238
  %v459 = vunpack.c.l.b16 %v239
  %v460 = vunpack.c.h.b16 %v239
  %v461 = vunpack.c.l.b16 %v240
  %v462 = vunpack.c.h.b16 %v240
  %v463 = vunpack.c.l.b16 %v241
  %v464 = vunpack.c.h.b16 %v241
  %v465 = vunpack.c.l.b16 %v242
  %v466 = vunpack.c.h.b16 %v242
  %v467 = vunpack.c.l.b16 %v243
  %v468 = vunpack.c.h.b16 %v243
  %v469 = vunpack.c.l.b16 %v244
  %v470 = vunpack.c.h.b16 %v244
  %v471 = vunpack.c.l.b16 %v245
  %v472 = vunpack.c.h.b16 %v245
  %v473 = vunpack.c.l.b16 %v246
  %v474 = vunpack.c.h.b16 %v246
  %v475 = vunpack.c.l.b16 %v247
  %v476 = vunpack.c.h.b16 %v247
  %v477 = vunpack.c.l.b16 %v248
  %v478 = vunpack.c.h.b16 %v248
  %v479 = vunpack.c.l.b16 %v249
  %v480 = vunpack.c.h.b16 %v249
  %v481 = vunpack.c.l.b16 %v250
  %v482 = vunpack.c.h.b16 %v250
  %v483 = vunpack.c.l.b16 %v251
  %v484 = vunpack.c.h.b16 %v251
  %v485 = vunpack.c.l.b16 %v252
  %v486 = vunpack.c.h.b16 %v252
  %v487 = vunpack.c.l.b16 %v253
  %v488 = vunpack.c.h.b16 %v253
  %v489 = vunpack.c.l.b16 %v254
  %v490 = vunpack.c.h.b16 %v254
  %v491 = vunpack.c.l.b16 %v255
  %v492 = vunpack.c.h.b16 %v255
  %v493 = vunpack.c.l.b16 %v256
  %v494 = vunpack.c.h.b16 %v256
  %v495 = vunpack.c.l.b16 %v257
  %v496 = vunpack.c.h.b16 %v257
  %v497 = vunpack.c.l.b16 %v258
  %v498 = vunpack.c.h.b16 %v258
  %v499 = vunpack.c.l.b16 %v259
  %v500 = vunpack.c.h.b16 %v259
  %v501 = vunpack.c.l.b16 %v260
  %v502 = vunpack.c.h.b16 %v260
  %v503 = vunpack.c.l.b16 %v261
  %v504 = vunpack.c.h.b16 %v261
  %v505 = vunpack.c.l.b16 %v262
  %v506 = vunpack.c.h.b16 %v262
  %v507 = vunpack.c.l.b16 %v263
  %v508 = vunpack.c.h.b16 %v263
  %v509 = vunpack.c.l.b16 %v264
  %v510 = vunpack.c.h.b16 %v264
  %v511 = vunpack.c.l.b16 %v265
  %v512 = vunpack.c.h.b16 %v265
  %v513 = vunpack.c.l.b16 %v266
  %v514 = vunpack.c.h.b16 %v266
  %v515 = vunpack.c.l.b16 %v267
  %v516 = vunpack.c.h.b16 %v267
  %v517 = vunpack.c.l.b16 %v268
  %v518 = vunpack.c.h.b16 %v268
  %v519 = vunpack.c.l.b16 %v269
  %v520 = vunpack.c.h.b16 %v269
  %v521 = vunpack.c.l.b16 %v270
  %v522 = vunpack.c.h.b16 %v270
  %v523 = vunpack.c.l.b16 %v271
  %v524 = vunpack.c.h.b16 %v271
  %v525 = vunpack.c.l.b16 %v272
  %v526 = vunpack.c.h.b16 %v272
  %v527 = vunpack.c.l.b16 %v273
  %v528 = vunpack.c.h.b16 %v273
  %v529 = vunpack.c.l.b16 %v274
  %v530 = vunpack.c.h.b16 %v274
  %v531 = vpack.c.b16 %v407, %v403
  %v532 = vpack.c.b16 %v408, %v404
  %v533 = vpack.c.b16 %v409, %v405
  %v534 = vpack.c.b16 %v410, %v406
  %v535 = vpack.c.b16 %v415, %v411
  %v536 = vpack.c.b16 %v416, %v412
  %v537 = vpack.c.b16 %v417, %v413
  %v538 = vpack.c.b16 %v418, %v414
  %v539 = vpack.c.b16 %v423, %v419
  %v540 = vpack.c.b16 %v424, %v420
  %v541 = vpack.c.b16 %v425, %v421
  %v542 = vpack.c.b16 %v426, %v422
  %v543 = vpack.c.b16 %v431, %v427
  %v544 = vpack.c.b16 %v432, %v428
  %v545 = vpack.c.b16 %v433, %v429
  %v546 = vpack.c.b16 %v434, %v430
  %v547 = vpack.c.b16 %v439, %v435
  %v548 = vpack.c.b16 %v440, %v436
  %v549 = vpack.c.b16 %v441, %v437
  %v550 = vpack.c.b16 %v442, %v438
  %v551 = vpack.c.b16 %v447, %v443
  %v552 = vpack.c.b16 %v448, %v444
  %v553 = vpack.c.b16 %v449, %v445
  %v554 = vpack.c.b16 %v450, %v446
  %v555 = vpack.c.b16 %v455, %v451
  %v556 = vpack.c.b16 %v456, %v452
  %v557 = vpack.c.b16 %v457, %v453
  %v558 = vpack.c.b16 %v458, %v454
  %v559 = vpack.c.b16 %v463, %v459
  %v560 = vpack.c.b16 %v464, %v460
  %v561 = vpack.c.b16 %v465, %v461
  %v562 = vpack.c.b16 %v466, %v462
  %v563 = vpack.c.b16 %v471, %v467
  %v564 = vpack.c.b16 %v472, %v468
  %v565 = vpack.c.b16 %v473, %v469
  %v566 = vpack.c.b16 %v474, %v470
  %v567 = vpack.c.b16 %v479, %v475
  %v568 = vpack.c.b16 %v480, %v476
  %v569 = vpack.c.b16 %v481, %v477
  %v570 = vpack.c.b16 %v482, %v478
  %v571 = vpack.c.b16 %v487, %v483
  %v572 = vpack.c.b16 %v488, %v484
  %v573 = vpack.c.b16 %v489, %v485
  %v574 = vpack.c.b16 %v490, %v486
  %v575 = vpack.c.b16 %v495, %v491
  %v576 = vpack.c.b16 %v496, %v492
  %v577 = vpack.c.b16 %v497, %v493
  %v578 = vpack.c.b16 %v498, %v494
  %v579 = vpack.c.b16 %v503, %v499
  %v580 = vpack.c.b16 %v504, %v500
  %v581 = vpack.c.b16 %v505, %v501
  %v582 = vpack.c.b16 %v506, %v502
  %v583 = vpack.c.b16 %v511, %v507
  %v584 = vpack.c.b16 %v512, %v508
  %v585 = vpack.c.b16 %v513, %v509
  %v586 = vpack.c.b16 %v514, %v510
  %v587 = vpack.c.b16 %v519, %v515
  %v588 = vpack.c.b16 %v520, %v516
  %v589 = vpack.c.b16 %v521, %v517
  %v590 = vpack.c.b16 %v522, %v518
  %v591 = vpack.c.b16 %v527, %v523
  %v592 = vpack.c.b16 %v528, %v524
  %v593 = vpack.c.b16 %v529, %v525
  %v594 = vpack.c.b16 %v530, %v526
  %v723 = vunpack.c.l.b16 %v275
  %v724 = vunpack.c.l.b16 %v276
  %v725 = vunpack.c.l.b16 %v277
  %v726 = vunpack.c.l.b16 %v278
  %v727 = vunpack.c.l.b16 %v279
  %v728 = vunpack.c.l.b16 %v280
  %v729 = vunpack.c.l.b16 %v281
  %v730 = vunpack.c.l.b16 %v282
  %v731 = vunpack.c.l.b16 %v283
  %v732 = vunpack.c.l.b16 %v284
  %v733 = vunpack.c.l.b16 %v285
  %v734 = vunpack.c.l.b16 %v286
  %v735 = vunpack.c.l.b16 %v287
  %v736 = vunpack.c.l.b16 %v288
  %v737 = vunpack.c.l.b16 %v289
  %v738 = vunpack.c.l.b16 %v290
  %v739 = vunpack.c.l.b16 %v291
  %v740 = vunpack.c.l.b16 %v292
  %v741 = vunpack.c.l.b16 %v293
  %v742 = vunpack.c.l.b16 %v294
  %v743 = vunpack.c.l.b16 %v295
  %v744 = vunpack.c.l.b16 %v296
  %v745 = vunpack.c.l.b16 %v297
  %v746 = vunpack.c.l.b16 %v298
  %v747 = vunpack.c.l.b16 %v299
  %v748 = vunpack.c.l.b16 %v300
  %v749 = vunpack.c.l.b16 %v301
  %v750 = vunpack.c.l.b16 %v302
  %v751 = vunpack.c.l.b16 %v303
  %v752 = vunpack.c.l.b16 %v304
  %v753 = vunpack.c.l.b16 %v305
  %v754 = vunpack.c.l.b16 %v306
  %v755 = vunpack.c.l.b16 %v307
  %v756 = vunpack.c.l.b16 %v308
  %v757 = vunpack.c.l.b16 %v309
  %v758 = vunpack.c.l.b16 %v310
  %v759 = vunpack.c.l.b16 %v311
  %v760 = vunpack.c.l.b16 %v312
  %v761 = vunpack.c.l.b16 %v313
  %v762 = vunpack.c.l.b16 %v314
  %v763 = vunpack.c.l.b16 %v315
  %v764 = vunpack.c.l.b16 %v316
  %v765 = vunpack.c.l.b16 %v317
  %v766 = vunpack.c.l.b16 %v318
  %v767 = vunpack.c.l.b16 %v319
  %v768 = vunpack.c.l.b16 %v320
  %v769 = vunpack.c.l.b16 %v321
  %v770 = vunpack.c.l.b16 %v322
  %v771 = vunpack.c.l.b16 %v323
  %v772 = vunpack.c.l.b16 %v324
  %v773 = vunpack.c.l.b16 %v325
  %v774 = vunpack.c.l.b16 %v326
  %v775 = vunpack.c.l.b16 %v327
  %v776 = vunpack.c.l.b16 %v328
  %v777 = vunpack.c.l.b16 %v329
  %v778 = vunpack.c.l.b16 %v330
  %v779 = vunpack.c.l.b16 %v331
  %v780 = vunpack.c.l.b16 %v332
  %v781 = vunpack.c.l.b16 %v333
  %v782 = vunpack.c.l.b16 %v334
  %v783 = vunpack.c.l.b16 %v335
  %v784 = vunpack.c.l.b16 %v336
  %v785 = vunpack.c.l.b16 %v337
  %v786 = vunpack.c.l.b16 %v338
  %v787 = vpack.c.b16 %v724, %v723
  %v788 = vpack.c.b16 %v726, %v725
  %v789 = vpack.c.b16 %v728, %v727
  %v790 = vpack.c.b16 %v730, %v729
  %v791 = vpack.c.b16 %v732, %v731
  %v792 = vpack.c.b16 %v734, %v733
  %v793 = vpack.c.b16 %v736, %v735
  %v794 = vpack.c.b16 %v738, %v737
  %v795 = vpack.c.b16 %v740, %v739
  %v796 = vpack.c.b16 %v742, %v741
  %v797 = vpack.c.b16 %v744, %v743
  %v798 = vpack.c.b16 %v746, %v745
  %v799 = vpack.c.b16 %v748, %v747
  %v800 = vpack.c.b16 %v750, %v749
  %v801 = vpack.c.b16 %v752, %v751
  %v802 = vpack.c.b16 %v754, %v753
  %v803 = vpack.c.b16 %v756, %v755
  %v804 = vpack.c.b16 %v758, %v757
  %v805 = vpack.c.b16 %v760, %v759
  %v806 = vpack.c.b16 %v762, %v761
  %v807 = vpack.c.b16 %v764, %v763
  %v808 = vpack.c.b16 %v766, %v765
  %v809 = vpack.c.b16 %v768, %v767
  %v810 = vpack.c.b16 %v770, %v769
  %v811 = vpack.c.b16 %v772, %v771
  %v812 = vpack.c.b16 %v774, %v773
  %v813 = vpack.c.b16 %v776, %v775
  %v814 = vpack.c.b16 %v778, %v777
  %v815 = vpack.c.b16 %v780, %v779
  %v816 = vpack.c.b16 %v782, %v781
  %v817 = vpack.c.b16 %v784, %v783
  %v818 = vpack.c.b16 %v786, %v785
  %851 = vmatprep.subr.bf16.mxu0 0
  %852 = vmatpush1.bf16.msra.mxu0 %v787
  %853 = vmatprep.subr.bf16.mxu0 0
  %854 = vmatpush1.bf16.msra.mxu0 %v788
  %855 = vmatprep.subr.bf16.mxu0 0
  %856 = vmatpush1.bf16.msra.mxu0 %v789
  %857 = vmatprep.subr.bf16.mxu0 0
  %858 = vmatpush1.bf16.msra.mxu0 %v790
  %859 = vmatprep.subr.bf16.mxu0 0
  %860 = vmatpush1.bf16.msra.mxu0 %v791
  %861 = vmatprep.subr.bf16.mxu0 0
  %862 = vmatpush1.bf16.msra.mxu0 %v792
  %863 = vmatprep.subr.bf16.mxu0 0
  %864 = vmatpush1.bf16.msra.mxu0 %v793
  %865 = vmatprep.subr.bf16.mxu0 0
  %866 = vmatpush1.bf16.msra.mxu0 %v794
  %867 = vmatprep.subr.bf16.mxu0 0
  %868 = vmatpush1.bf16.msra.mxu0 %v795
  %869 = vmatprep.subr.bf16.mxu0 0
  %870 = vmatpush1.bf16.msra.mxu0 %v796
  %871 = vmatprep.subr.bf16.mxu0 0
  %872 = vmatpush1.bf16.msra.mxu0 %v797
  %873 = vmatprep.subr.bf16.mxu0 0
  %874 = vmatpush1.bf16.msra.mxu0 %v798
  %875 = vmatprep.subr.bf16.mxu0 0
  %876 = vmatpush1.bf16.msra.mxu0 %v799
  %877 = vmatprep.subr.bf16.mxu0 0
  %878 = vmatpush1.bf16.msra.mxu0 %v800
  %879 = vmatprep.subr.bf16.mxu0 0
  %880 = vmatpush1.bf16.msra.mxu0 %v801
  %881 = vmatprep.subr.bf16.mxu0 0
  %882 = vmatpush1.bf16.msra.mxu0 %v802
  %883 = vmatprep.mubr.bf16.mxu0 %v532
  %884 = vmatmul.mubr.bf16.gmra.mrb[0].mxu0 %v531
  %v885 = vpop.f32.mrb[0].mxu0
  %v886 = vadd.f32 0.0, %v885
  %v887 = vpop.f32.mrb[0].mxu0
  %v888 = vpop.f32.mrb[0].mxu0
  %v889 = vadd.f32 0.0, %v888
  %v890 = vpop.f32.mrb[0].mxu0
  %891 = vmatprep.mubr.bf16.mxu0 %v536
  %892 = vmatmul.mubr.bf16.gmra.mrb[0].mxu0 %v535
  %v893 = vpop.f32.mrb[0].mxu0
  %v894 = vadd.f32 0.0, %v893
  %v895 = vpop.f32.mrb[0].mxu0
  %v896 = vpop.f32.mrb[0].mxu0
  %v897 = vadd.f32 0.0, %v896
  %v898 = vpop.f32.mrb[0].mxu0
  %899 = vmatprep.mubr.bf16.mxu0 %v540
  %900 = vmatmul.mubr.bf16.gmra.mrb[0].mxu0 %v539
  %v901 = vpop.f32.mrb[0].mxu0
  %v902 = vadd.f32 0.0, %v901
  %v903 = vpop.f32.mrb[0].mxu0
  %v904 = vpop.f32.mrb[0].mxu0
  %v905 = vadd.f32 0.0, %v904
  %v906 = vpop.f32.mrb[0].mxu0
  %907 = vmatprep.mubr.bf16.mxu0 %v544
  %908 = vmatmul.mubr.bf16.gmra.mrb[0].mxu0 %v543
  %v909 = vpop.f32.mrb[0].mxu0
  %v910 = vadd.f32 0.0, %v909
  %v911 = vpop.f32.mrb[0].mxu0
  %v912 = vpop.f32.mrb[0].mxu0
  %v913 = vadd.f32 0.0, %v912
  %v914 = vpop.f32.mrb[0].mxu0
  %915 = vmatprep.mubr.bf16.mxu0 %v548
  %916 = vmatmul.mubr.bf16.gmra.mrb[0].mxu0 %v547
  %v917 = vpop.f32.mrb[0].mxu0
  %v918 = vadd.f32 0.0, %v917
  %v919 = vpop.f32.mrb[0].mxu0
  %v920 = vpop.f32.mrb[0].mxu0
  %v921 = vadd.f32 0.0, %v920
  %v922 = vpop.f32.mrb[0].mxu0
  %923 = vmatprep.mubr.bf16.mxu0 %v552
  %924 = vmatmul.mubr.bf16.gmra.mrb[0].mxu0 %v551
  %v925 = vpop.f32.mrb[0].mxu0
  %v926 = vadd.f32 0.0, %v925
  %v927 = vpop.f32.mrb[0].mxu0
  %v928 = vpop.f32.mrb[0].mxu0
  %v929 = vadd.f32 0.0, %v928
  %v930 = vpop.f32.mrb[0].mxu0
  %931 = vmatprep.mubr.bf16.mxu0 %v556
  %932 = vmatmul.mubr.bf16.gmra.mrb[0].mxu0 %v555
  %v933 = vpop.f32.mrb[0].mxu0
  %v934 = vadd.f32 0.0, %v933
  %v935 = vpop.f32.mrb[0].mxu0
  %v936 = vpop.f32.mrb[0].mxu0
  %v937 = vadd.f32 0.0, %v936
  %v938 = vpop.f32.mrb[0].mxu0
  %939 = vmatprep.mubr.bf16.mxu0 %v560
  %940 = vmatmul.mubr.bf16.gmra.mrb[0].mxu0 %v559
  %v941 = vpop.f32.mrb[0].mxu0
  %v942 = vadd.f32 0.0, %v941
  %v943 = vpop.f32.mrb[0].mxu0
  %v944 = vpop.f32.mrb[0].mxu0
  %v945 = vadd.f32 0.0, %v944
  %v946 = vpop.f32.mrb[0].mxu0
  %947 = vmatprep.mubr.bf16.mxu0 %v564
  %948 = vmatmul.mubr.bf16.gmra.mrb[0].mxu0 %v563
  %v949 = vpop.f32.mrb[0].mxu0
  %v950 = vadd.f32 0.0, %v949
  %v951 = vpop.f32.mrb[0].mxu0
  %v952 = vpop.f32.mrb[0].mxu0
  %v953 = vadd.f32 0.0, %v952
  %v954 = vpop.f32.mrb[0].mxu0
  %955 = vmatprep.mubr.bf16.mxu0 %v568
  %956 = vmatmul.mubr.bf16.gmra.mrb[0].mxu0 %v567
  %v957 = vpop.f32.mrb[0].mxu0
  %v958 = vadd.f32 0.0, %v957
  %v959 = vpop.f32.mrb[0].mxu0
  %v960 = vpop.f32.mrb[0].mxu0
  %v961 = vadd.f32 0.0, %v960
  %v962 = vpop.f32.mrb[0].mxu0
  %963 = vmatprep.mubr.bf16.mxu0 %v572
  %964 = vmatmul.mubr.bf16.gmra.mrb[0].mxu0 %v571
  %v965 = vpop.f32.mrb[0].mxu0
  %v966 = vadd.f32 0.0, %v965
  %v967 = vpop.f32.mrb[0].mxu0
  %v968 = vpop.f32.mrb[0].mxu0
  %v969 = vadd.f32 0.0, %v968
  %v970 = vpop.f32.mrb[0].mxu0
  %971 = vmatprep.mubr.bf16.mxu0 %v576
  %972 = vmatmul.mubr.bf16.gmra.mrb[0].mxu0 %v575
  %v973 = vpop.f32.mrb[0].mxu0
  %v974 = vadd.f32 0.0, %v973
  %v975 = vpop.f32.mrb[0].mxu0
  %v976 = vpop.f32.mrb[0].mxu0
  %v977 = vadd.f32 0.0, %v976
  %v978 = vpop.f32.mrb[0].mxu0
  %979 = vmatprep.mubr.bf16.mxu0 %v580
  %980 = vmatmul.mubr.bf16.gmra.mrb[0].mxu0 %v579
  %v981 = vpop.f32.mrb[0].mxu0
  %v982 = vadd.f32 0.0, %v981
  %v983 = vpop.f32.mrb[0].mxu0
  %v984 = vpop.f32.mrb[0].mxu0
  %v985 = vadd.f32 0.0, %v984
  %v986 = vpop.f32.mrb[0].mxu0
  %987 = vmatprep.mubr.bf16.mxu0 %v584
  %988 = vmatmul.mubr.bf16.gmra.mrb[0].mxu0 %v583
  %v989 = vpop.f32.mrb[0].mxu0
  %v990 = vadd.f32 0.0, %v989
  %v991 = vpop.f32.mrb[0].mxu0
  %v992 = vpop.f32.mrb[0].mxu0
  %v993 = vadd.f32 0.0, %v992
  %v994 = vpop.f32.mrb[0].mxu0
  %995 = vmatprep.mubr.bf16.mxu0 %v588
  %996 = vmatmul.mubr.bf16.gmra.mrb[0].mxu0 %v587
  %v997 = vpop.f32.mrb[0].mxu0
  %v998 = vadd.f32 0.0, %v997
  %v999 = vpop.f32.mrb[0].mxu0
  %v1000 = vpop.f32.mrb[0].mxu0
  %v1001 = vadd.f32 0.0, %v1000
  %v1002 = vpop.f32.mrb[0].mxu0
  %1003 = vmatprep.mubr.bf16.mxu0 %v592
  %1004 = vmatmul.mubr.bf16.gmra.mrb[0].mxu0 %v591
  %v1005 = vpop.f32.mrb[0].mxu0
  %v1006 = vadd.f32 0.0, %v1005
  %v1007 = vpop.f32.mrb[0].mxu0
  %v1008 = vpop.f32.mrb[0].mxu0
  %v1009 = vadd.f32 0.0, %v1008
  %v1010 = vpop.f32.mrb[0].mxu0
  %1011 = vdwg.mxu0
  %1012 = vmatprep.subr.bf16.mxu0 0
  %1013 = vmatpush1.bf16.msra.mxu0 %v803
  %1014 = vmatprep.subr.bf16.mxu0 0
  %1015 = vmatpush1.bf16.msra.mxu0 %v804
  %1016 = vmatprep.subr.bf16.mxu0 0
  %1017 = vmatpush1.bf16.msra.mxu0 %v805
  %1018 = vmatprep.subr.bf16.mxu0 0
  %1019 = vmatpush1.bf16.msra.mxu0 %v806
  %1020 = vmatprep.subr.bf16.mxu0 0
  %1021 = vmatpush1.bf16.msra.mxu0 %v807
  %1022 = vmatprep.subr.bf16.mxu0 0
  %1023 = vmatpush1.bf16.msra.mxu0 %v808
  %1024 = vmatprep.subr.bf16.mxu0 0
  %1025 = vmatpush1.bf16.msra.mxu0 %v809
  %1026 = vmatprep.subr.bf16.mxu0 0
  %1027 = vmatpush1.bf16.msra.mxu0 %v810
  %1028 = vmatprep.subr.bf16.mxu0 0
  %1029 = vmatpush1.bf16.msra.mxu0 %v811
  %1030 = vmatprep.subr.bf16.mxu0 0
  %1031 = vmatpush1.bf16.msra.mxu0 %v812
  %1032 = vmatprep.subr.bf16.mxu0 0
  %1033 = vmatpush1.bf16.msra.mxu0 %v813
  %1034 = vmatprep.subr.bf16.mxu0 0
  %1035 = vmatpush1.bf16.msra.mxu0 %v814
  %1036 = vmatprep.subr.bf16.mxu0 0
  %1037 = vmatpush1.bf16.msra.mxu0 %v815
  %1038 = vmatprep.subr.bf16.mxu0 0
  %1039 = vmatpush1.bf16.msra.mxu0 %v816
  %1040 = vmatprep.subr.bf16.mxu0 0
  %1041 = vmatpush1.bf16.msra.mxu0 %v817
  %1042 = vmatprep.subr.bf16.mxu0 0
  %1043 = vmatpush1.bf16.msra.mxu0 %v818
  %1044 = vmatprep.mubr.bf16.mxu0 %v534
  %1045 = vmatmul.mubr.bf16.gmra.mrb[0].mxu0 %v533
  %v1046 = vpop.f32.mrb[0].mxu0
  %v1047 = vadd.f32 %v886, %v1046
  %v1048 = vpop.f32.mrb[0].mxu0
  %v1049 = vpop.f32.mrb[0].mxu0
  %v1050 = vadd.f32 %v889, %v1049
  %v1051 = vpop.f32.mrb[0].mxu0
  %1052 = vmatprep.mubr.bf16.mxu0 %v538
  %1053 = vmatmul.mubr.bf16.gmra.mrb[0].mxu0 %v537
  %v1054 = vpop.f32.mrb[0].mxu0
  %v1055 = vadd.f32 %v894, %v1054
  %v1056 = vpop.f32.mrb[0].mxu0
  %v1057 = vpop.f32.mrb[0].mxu0
  %v1058 = vadd.f32 %v897, %v1057
  %v1059 = vpop.f32.mrb[0].mxu0
  %1060 = vmatprep.mubr.bf16.mxu0 %v542
  %1061 = vmatmul.mubr.bf16.gmra.mrb[0].mxu0 %v541
  %v1062 = vpop.f32.mrb[0].mxu0
  %v1063 = vadd.f32 %v902, %v1062
  %v1064 = vpop.f32.mrb[0].mxu0
  %v1065 = vpop.f32.mrb[0].mxu0
  %v1066 = vadd.f32 %v905, %v1065
  %v1067 = vpop.f32.mrb[0].mxu0
  %1068 = vmatprep.mubr.bf16.mxu0 %v546
  %1069 = vmatmul.mubr.bf16.gmra.mrb[0].mxu0 %v545
  %v1070 = vpop.f32.mrb[0].mxu0
  %v1071 = vadd.f32 %v910, %v1070
  %v1072 = vpop.f32.mrb[0].mxu0
  %v1073 = vpop.f32.mrb[0].mxu0
  %v1074 = vadd.f32 %v913, %v1073
  %v1075 = vpop.f32.mrb[0].mxu0
  %1076 = vmatprep.mubr.bf16.mxu0 %v550
  %1077 = vmatmul.mubr.bf16.gmra.mrb[0].mxu0 %v549
  %v1078 = vpop.f32.mrb[0].mxu0
  %v1079 = vadd.f32 %v918, %v1078
  %v1080 = vpop.f32.mrb[0].mxu0
  %v1081 = vpop.f32.mrb[0].mxu0
  %v1082 = vadd.f32 %v921, %v1081
  %v1083 = vpop.f32.mrb[0].mxu0
  %1084 = vmatprep.mubr.bf16.mxu0 %v554
  %1085 = vmatmul.mubr.bf16.gmra.mrb[0].mxu0 %v553
  %v1086 = vpop.f32.mrb[0].mxu0
  %v1087 = vadd.f32 %v926, %v1086
  %v1088 = vpop.f32.mrb[0].mxu0
  %v1089 = vpop.f32.mrb[0].mxu0
  %v1090 = vadd.f32 %v929, %v1089
  %v1091 = vpop.f32.mrb[0].mxu0
  %1092 = vmatprep.mubr.bf16.mxu0 %v558
  %1093 = vmatmul.mubr.bf16.gmra.mrb[0].mxu0 %v557
  %v1094 = vpop.f32.mrb[0].mxu0
  %v1095 = vadd.f32 %v934, %v1094
  %v1096 = vpop.f32.mrb[0].mxu0
  %v1097 = vpop.f32.mrb[0].mxu0
  %v1098 = vadd.f32 %v937, %v1097
  %v1099 = vpop.f32.mrb[0].mxu0
  %1100 = vmatprep.mubr.bf16.mxu0 %v562
  %1101 = vmatmul.mubr.bf16.gmra.mrb[0].mxu0 %v561
  %v1102 = vpop.f32.mrb[0].mxu0
  %v1103 = vadd.f32 %v942, %v1102
  %v1104 = vpop.f32.mrb[0].mxu0
  %v1105 = vpop.f32.mrb[0].mxu0
  %v1106 = vadd.f32 %v945, %v1105
  %v1107 = vpop.f32.mrb[0].mxu0
  %1108 = vmatprep.mubr.bf16.mxu0 %v566
  %1109 = vmatmul.mubr.bf16.gmra.mrb[0].mxu0 %v565
  %v1110 = vpop.f32.mrb[0].mxu0
  %v1111 = vadd.f32 %v950, %v1110
  %v1112 = vpop.f32.mrb[0].mxu0
  %v1113 = vpop.f32.mrb[0].mxu0
  %v1114 = vadd.f32 %v953, %v1113
  %v1115 = vpop.f32.mrb[0].mxu0
  %1116 = vmatprep.mubr.bf16.mxu0 %v570
  %1117 = vmatmul.mubr.bf16.gmra.mrb[0].mxu0 %v569
  %v1118 = vpop.f32.mrb[0].mxu0
  %v1119 = vadd.f32 %v958, %v1118
  %v1120 = vpop.f32.mrb[0].mxu0
  %v1121 = vpop.f32.mrb[0].mxu0
  %v1122 = vadd.f32 %v961, %v1121
  %v1123 = vpop.f32.mrb[0].mxu0
  %1124 = vmatprep.mubr.bf16.mxu0 %v574
  %1125 = vmatmul.mubr.bf16.gmra.mrb[0].mxu0 %v573
  %v1126 = vpop.f32.mrb[0].mxu0
  %v1127 = vadd.f32 %v966, %v1126
  %v1128 = vpop.f32.mrb[0].mxu0
  %v1129 = vpop.f32.mrb[0].mxu0
  %v1130 = vadd.f32 %v969, %v1129
  %v1131 = vpop.f32.mrb[0].mxu0
  %1132 = vmatprep.mubr.bf16.mxu0 %v578
  %1133 = vmatmul.mubr.bf16.gmra.mrb[0].mxu0 %v577
  %v1134 = vpop.f32.mrb[0].mxu0
  %v1135 = vadd.f32 %v974, %v1134
  %v1136 = vpop.f32.mrb[0].mxu0
  %v1137 = vpop.f32.mrb[0].mxu0
  %v1138 = vadd.f32 %v977, %v1137
  %v1139 = vpop.f32.mrb[0].mxu0
  %1140 = vmatprep.mubr.bf16.mxu0 %v582
  %1141 = vmatmul.mubr.bf16.gmra.mrb[0].mxu0 %v581
  %v1142 = vpop.f32.mrb[0].mxu0
  %v1143 = vadd.f32 %v982, %v1142
  %v1144 = vpop.f32.mrb[0].mxu0
  %v1145 = vpop.f32.mrb[0].mxu0
  %v1146 = vadd.f32 %v985, %v1145
  %v1147 = vpop.f32.mrb[0].mxu0
  %1148 = vmatprep.mubr.bf16.mxu0 %v586
  %1149 = vmatmul.mubr.bf16.gmra.mrb[0].mxu0 %v585
  %v1150 = vpop.f32.mrb[0].mxu0
  %v1151 = vadd.f32 %v990, %v1150
  %v1152 = vpop.f32.mrb[0].mxu0
  %v1153 = vpop.f32.mrb[0].mxu0
  %v1154 = vadd.f32 %v993, %v1153
  %v1155 = vpop.f32.mrb[0].mxu0
  %1156 = vmatprep.mubr.bf16.mxu0 %v590
  %1157 = vmatmul.mubr.bf16.gmra.mrb[0].mxu0 %v589
  %v1158 = vpop.f32.mrb[0].mxu0
  %v1159 = vadd.f32 %v998, %v1158
  %v1160 = vpop.f32.mrb[0].mxu0
  %v1161 = vpop.f32.mrb[0].mxu0
  %v1162 = vadd.f32 %v1001, %v1161
  %v1163 = vpop.f32.mrb[0].mxu0
  %1164 = vmatprep.mubr.bf16.mxu0 %v594
  %1165 = vmatmul.mubr.bf16.gmra.mrb[0].mxu0 %v593
  %v1166 = vpop.f32.mrb[0].mxu0
  %v1167 = vadd.f32 %v1006, %v1166
  %v1168 = vpop.f32.mrb[0].mxu0
  %v1169 = vpop.f32.mrb[0].mxu0
  %v1170 = vadd.f32 %v1009, %v1169
  %v1171 = vpop.f32.mrb[0].mxu0
  %1172 = vdwg.mxu0
  %v1173 = vld [vmem:[%s2] sm:$0x1]
  %v1175 = vlaneseq
  %v1176 = vshrl.u32 %v1175, 7
  %v1177 = vsub.s32 0, %v1176
  %v1178 = vrot.slane %v1173, %v1177
  %v1180 = vmul.f32 %v1047, %v1178
  %v1181 = vmul.f32 %v1050, %v1178
  %v1182 = vmul.f32 %v1055, %v1178
  %v1183 = vmul.f32 %v1058, %v1178
  %v1184 = vmul.f32 %v1063, %v1178
  %v1185 = vmul.f32 %v1066, %v1178
  %v1186 = vmul.f32 %v1071, %v1178
  %v1187 = vmul.f32 %v1074, %v1178
  %v1188 = vmul.f32 %v1079, %v1178
  %v1189 = vmul.f32 %v1082, %v1178
  %v1190 = vmul.f32 %v1087, %v1178
  %v1191 = vmul.f32 %v1090, %v1178
  %v1192 = vmul.f32 %v1095, %v1178
  %v1193 = vmul.f32 %v1098, %v1178
  %v1194 = vmul.f32 %v1103, %v1178
  %v1195 = vmul.f32 %v1106, %v1178
  %v1196 = vmul.f32 %v1111, %v1178
  %v1197 = vmul.f32 %v1114, %v1178
  %v1198 = vmul.f32 %v1119, %v1178
  %v1199 = vmul.f32 %v1122, %v1178
  %v1200 = vmul.f32 %v1127, %v1178
  %v1201 = vmul.f32 %v1130, %v1178
  %v1202 = vmul.f32 %v1135, %v1178
  %v1203 = vmul.f32 %v1138, %v1178
  %v1204 = vmul.f32 %v1143, %v1178
  %v1205 = vmul.f32 %v1146, %v1178
  %v1206 = vmul.f32 %v1151, %v1178
  %v1207 = vmul.f32 %v1154, %v1178
  %v1208 = vmul.f32 %v1159, %v1178
  %v1209 = vmul.f32 %v1162, %v1178
  %v1210 = vmul.f32 %v1167, %v1178
  %v1211 = vmul.f32 %v1170, %v1178
  %v1212 = vld [vmem:[%s3] sm:$0x1]
  %v1214 = vlaneseq
  %v1215 = vshrl.u32 %v1214, 7
  %v1216 = vsub.s32 0, %v1215
  %v1217 = vrot.slane %v1212, %v1216
  %v1219 = vadd.f32 %v1180, %v1217
  %v1220 = vadd.f32 %v1181, %v1217
  %v1221 = vadd.f32 %v1182, %v1217
  %v1222 = vadd.f32 %v1183, %v1217
  %v1223 = vadd.f32 %v1184, %v1217
  %v1224 = vadd.f32 %v1185, %v1217
  %v1225 = vadd.f32 %v1186, %v1217
  %v1226 = vadd.f32 %v1187, %v1217
  %v1227 = vadd.f32 %v1188, %v1217
  %v1228 = vadd.f32 %v1189, %v1217
  %v1229 = vadd.f32 %v1190, %v1217
  %v1230 = vadd.f32 %v1191, %v1217
  %v1231 = vadd.f32 %v1192, %v1217
  %v1232 = vadd.f32 %v1193, %v1217
  %v1233 = vadd.f32 %v1194, %v1217
  %v1234 = vadd.f32 %v1195, %v1217
  %v1235 = vadd.f32 %v1196, %v1217
  %v1236 = vadd.f32 %v1197, %v1217
  %v1237 = vadd.f32 %v1198, %v1217
  %v1238 = vadd.f32 %v1199, %v1217
  %v1239 = vadd.f32 %v1200, %v1217
  %v1240 = vadd.f32 %v1201, %v1217
  %v1241 = vadd.f32 %v1202, %v1217
  %v1242 = vadd.f32 %v1203, %v1217
  %v1243 = vadd.f32 %v1204, %v1217
  %v1244 = vadd.f32 %v1205, %v1217
  %v1245 = vadd.f32 %v1206, %v1217
  %v1246 = vadd.f32 %v1207, %v1217
  %v1247 = vadd.f32 %v1208, %v1217
  %v1248 = vadd.f32 %v1209, %v1217
  %v1249 = vadd.f32 %v1210, %v1217
  %v1250 = vadd.f32 %v1211, %v1217
  %v1251 = vpack.c.bf16 %v1220, %v1219
  %v1252 = vpack.c.bf16 %v1222, %v1221
  %v1253 = vpack.c.bf16 %v1224, %v1223
  %v1254 = vpack.c.bf16 %v1226, %v1225
  %v1255 = vpack.c.bf16 %v1228, %v1227
  %v1256 = vpack.c.bf16 %v1230, %v1229
  %v1257 = vpack.c.bf16 %v1232, %v1231
  %v1258 = vpack.c.bf16 %v1234, %v1233
  %v1259 = vpack.c.bf16 %v1236, %v1235
  %v1260 = vpack.c.bf16 %v1238, %v1237
  %v1261 = vpack.c.bf16 %v1240, %v1239
  %v1262 = vpack.c.bf16 %v1242, %v1241
  %v1263 = vpack.c.bf16 %v1244, %v1243
  %v1264 = vpack.c.bf16 %v1246, %v1245
  %v1265 = vpack.c.bf16 %v1248, %v1247
  %v1266 = vpack.c.bf16 %v1250, %v1249
  %v1283 = vunpack.c.l.b16 %v1251
  %v1284 = vunpack.c.h.b16 %v1251
  %v1285 = vunpack.c.l.b16 %v1252
  %v1286 = vunpack.c.h.b16 %v1252
  %v1287 = vunpack.c.l.b16 %v1253
  %v1288 = vunpack.c.h.b16 %v1253
  %v1289 = vunpack.c.l.b16 %v1254
  %v1290 = vunpack.c.h.b16 %v1254
  %v1291 = vunpack.c.l.b16 %v1255
  %v1292 = vunpack.c.h.b16 %v1255
  %v1293 = vunpack.c.l.b16 %v1256
  %v1294 = vunpack.c.h.b16 %v1256
  %v1295 = vunpack.c.l.b16 %v1257
  %v1296 = vunpack.c.h.b16 %v1257
  %v1297 = vunpack.c.l.b16 %v1258
  %v1298 = vunpack.c.h.b16 %v1258
  %v1299 = vunpack.c.l.b16 %v1259
  %v1300 = vunpack.c.h.b16 %v1259
  %v1301 = vunpack.c.l.b16 %v1260
  %v1302 = vunpack.c.h.b16 %v1260
  %v1303 = vunpack.c.l.b16 %v1261
  %v1304 = vunpack.c.h.b16 %v1261
  %v1305 = vunpack.c.l.b16 %v1262
  %v1306 = vunpack.c.h.b16 %v1262
  %v1307 = vunpack.c.l.b16 %v1263
  %v1308 = vunpack.c.h.b16 %v1263
  %v1309 = vunpack.c.l.b16 %v1264
  %v1310 = vunpack.c.h.b16 %v1264
  %v1311 = vunpack.c.l.b16 %v1265
  %v1312 = vunpack.c.h.b16 %v1265
  %v1313 = vunpack.c.l.b16 %v1266
  %v1314 = vunpack.c.h.b16 %v1266
  %v1315 = vpack.c.b16 %v1283, %v1283
  %v1316 = vpack.c.b16 %v1284, %v1284
  %v1317 = vpack.c.b16 %v1285, %v1285
  %v1318 = vpack.c.b16 %v1286, %v1286
  %v1319 = vpack.c.b16 %v1287, %v1287
  %v1320 = vpack.c.b16 %v1288, %v1288
  %v1321 = vpack.c.b16 %v1289, %v1289
  %v1322 = vpack.c.b16 %v1290, %v1290
  %v1323 = vpack.c.b16 %v1291, %v1291
  %v1324 = vpack.c.b16 %v1292, %v1292
  %v1325 = vpack.c.b16 %v1293, %v1293
  %v1326 = vpack.c.b16 %v1294, %v1294
  %v1327 = vpack.c.b16 %v1295, %v1295
  %v1328 = vpack.c.b16 %v1296, %v1296
  %v1329 = vpack.c.b16 %v1297, %v1297
  %v1330 = vpack.c.b16 %v1298, %v1298
  %v1331 = vpack.c.b16 %v1299, %v1299
  %v1332 = vpack.c.b16 %v1300, %v1300
  %v1333 = vpack.c.b16 %v1301, %v1301
  %v1334 = vpack.c.b16 %v1302, %v1302
  %v1335 = vpack.c.b16 %v1303, %v1303
  %v1336 = vpack.c.b16 %v1304, %v1304
  %v1337 = vpack.c.b16 %v1305, %v1305
  %v1338 = vpack.c.b16 %v1306, %v1306
  %v1339 = vpack.c.b16 %v1307, %v1307
  %v1340 = vpack.c.b16 %v1308, %v1308
  %v1341 = vpack.c.b16 %v1309, %v1309
  %v1342 = vpack.c.b16 %v1310, %v1310
  %v1343 = vpack.c.b16 %v1311, %v1311
  %v1344 = vpack.c.b16 %v1312, %v1312
  %v1345 = vpack.c.b16 %v1313, %v1313
  %v1346 = vpack.c.b16 %v1314, %v1314
  %1379 = vst [vmem:[%s4] sm:$0xf] %v1315
  %1380 = vst [vmem:[%s4 + $0x4] sm:$0xf] %v1316
  %1381 = vst [vmem:[%s4 + $0x8] sm:$0xf] %v1317
  %1382 = vst [vmem:[%s4 + $0xc] sm:$0xf] %v1318
  %1383 = vst [vmem:[%s4 + $0x10] sm:$0xf] %v1319
  %1384 = vst [vmem:[%s4 + $0x14] sm:$0xf] %v1320
  %1385 = vst [vmem:[%s4 + $0x18] sm:$0xf] %v1321
  %1386 = vst [vmem:[%s4 + $0x1c] sm:$0xf] %v1322
  %1387 = vst [vmem:[%s4 + $0x20] sm:$0xf] %v1323
  %1388 = vst [vmem:[%s4 + $0x24] sm:$0xf] %v1324
  %1389 = vst [vmem:[%s4 + $0x28] sm:$0xf] %v1325
  %1390 = vst [vmem:[%s4 + $0x2c] sm:$0xf] %v1326
  %1391 = vst [vmem:[%s4 + $0x30] sm:$0xf] %v1327
  %1392 = vst [vmem:[%s4 + $0x34] sm:$0xf] %v1328
  %1393 = vst [vmem:[%s4 + $0x38] sm:$0xf] %v1329
  %1394 = vst [vmem:[%s4 + $0x3c] sm:$0xf] %v1330
  %1395 = vst [vmem:[%s4 + $0x40] sm:$0xf] %v1331
  %1396 = vst [vmem:[%s4 + $0x44] sm:$0xf] %v1332
  %1397 = vst [vmem:[%s4 + $0x48] sm:$0xf] %v1333
  %1398 = vst [vmem:[%s4 + $0x4c] sm:$0xf] %v1334
  %1399 = vst [vmem:[%s4 + $0x50] sm:$0xf] %v1335
  %1400 = vst [vmem:[%s4 + $0x54] sm:$0xf] %v1336
  %1401 = vst [vmem:[%s4 + $0x58] sm:$0xf] %v1337
  %1402 = vst [vmem:[%s4 + $0x5c] sm:$0xf] %v1338
  %1403 = vst [vmem:[%s4 + $0x60] sm:$0xf] %v1339
  %1404 = vst [vmem:[%s4 + $0x64] sm:$0xf] %v1340
  %1405 = vst [vmem:[%s4 + $0x68] sm:$0xf] %v1341
  %1406 = vst [vmem:[%s4 + $0x6c] sm:$0xf] %v1342
  %1407 = vst [vmem:[%s4 + $0x70] sm:$0xf] %v1343
  %1408 = vst [vmem:[%s4 + $0x74] sm:$0xf] %v1344
  %1409 = vst [vmem:[%s4 + $0x78] sm:$0xf] %v1345
  %1410 = vst [vmem:[%s4 + $0x7c] sm:$0xf] %v1346
  // Predicated region
  $region18: #{generator_forward.11} parent=0 // pred_check
    _
  $region19: #{generator_forward.11} parent=0 // pred_check_branch
    %1412 = sbr.rel (0) target = $region21
  $region20: #{generator_forward.11} parent=0 // pred_region
    _
  $region21: #{generator_forward.11} parent=0 // pred_fallthru
    _
  // Predicated region
  $region22: #{generator_forward.11} parent=0 // pred_check
    _
  $region23: #{generator_forward.11} parent=0 // pred_check_branch
    %1414 = sbr.rel (0) target = $region25
  $region24: #{generator_forward.11} parent=0 // pred_region
    _
  $region25: #{generator_forward.11} parent=0 // pred_fallthru
    _

// kernel: generator_forward.12
$region0: #{generator_forward.12}
  #allocation0 [shape = 'u32[]', space=smem, size = 0x4, offset = 0x4, fixed_abs, tag = 'smem constant byte address 0x4 - core index']
  #allocation1 [shape = 'u32[144,128]{1,0:T(1,128)}', space=vmem, size = 0x12000, scoped, tag = 'internal scratch']
  %s0 = inlined_call_operand.vmem [shape: bf16[304,512], index: 0, kind: input, shape index: {}]
  %s1 = inlined_call_operand.vmem [shape: bf16[512,128], index: 1, kind: input, shape index: {}]
  %s2 = inlined_call_operand.vmem [shape: f32[1,128], index: 2, kind: input, shape index: {}]
  %s3 = inlined_call_operand.vmem [shape: f32[1,128], index: 3, kind: input, shape index: {}]
  %s4 = inlined_call_operand.vmem [shape: bf16[304,128], index: 4, kind: output, shape index: {}]
  %s5 = sld [smem:[#allocation0]]
  $region26: #{generator_forward.12} parent=0
    _
  %s7 = ssub.s32 1, %s5
  %s8 = scalar_select 0, %s7, %s5
  // Predicated region
  $region2: #{generator_forward.12} parent=0 // pred_check
    _
  $region3: #{generator_forward.12} parent=0 // pred_check_branch
    %10 = sbr.rel (0) target = $region5
  $region4: #{generator_forward.12} parent=0 // pred_region
    _
  $region5: #{generator_forward.12} parent=0 // pred_fallthru
    _
  // Predicated region
  $region6: #{generator_forward.12} parent=0 // pred_check
    _
  $region7: #{generator_forward.12} parent=0 // pred_check_branch
    %12 = sbr.rel (0) target = $region9
  $region8: #{generator_forward.12} parent=0 // pred_region
    _
  $region9: #{generator_forward.12} parent=0 // pred_fallthru
    _
  // Predicated region
  $region10: #{generator_forward.12} parent=0 // pred_check
    _
  $region11: #{generator_forward.12} parent=0 // pred_check_branch
    %14 = sbr.rel (0) target = $region13
  $region12: #{generator_forward.12} parent=0 // pred_region
    _
  $region13: #{generator_forward.12} parent=0 // pred_fallthru
    _
  // Predicated region
  $region14: #{generator_forward.12} parent=0 // pred_check
    _
  $region15: #{generator_forward.12} parent=0 // pred_check_branch
    %16 = sbr.rel (0) target = $region17
  $region16: #{generator_forward.12} parent=0 // pred_region
    _
  $region17: #{generator_forward.12} parent=0 // pred_fallthru
    _
  %v18 = vld [vmem:[%s0] sm:$0xff]
  %v19 = vld [vmem:[%s0 + $0x8] sm:$0xff]
  %v20 = vld [vmem:[%s0 + $0x10] sm:$0xff]
  %v21 = vld [vmem:[%s0 + $0x18] sm:$0xff]
  %v22 = vld [vmem:[%s0 + $0x20] sm:$0xff]
  %v23 = vld [vmem:[%s0 + $0x28] sm:$0xff]
  %v24 = vld [vmem:[%s0 + $0x30] sm:$0xff]
  %v25 = vld [vmem:[%s0 + $0x38] sm:$0xff]
  %v26 = vld [vmem:[%s0 + $0x40] sm:$0xff]
  %v27 = vld [vmem:[%s0 + $0x48] sm:$0xff]
  %v28 = vld [vmem:[%s0 + $0x50] sm:$0xff]
  %v29 = vld [vmem:[%s0 + $0x58] sm:$0xff]
  %v30 = vld [vmem:[%s0 + $0x60] sm:$0xff]
  %v31 = vld [vmem:[%s0 + $0x68] sm:$0xff]
  %v32 = vld [vmem:[%s0 + $0x70] sm:$0xff]
  %v33 = vld [vmem:[%s0 + $0x78] sm:$0xff]
  %v34 = vld [vmem:[%s0 + $0x80] sm:$0xff]
  %v35 = vld [vmem:[%s0 + $0x88] sm:$0xff]
  %v36 = vld [vmem:[%s0 + $0x90] sm:$0xff]
  %v37 = vld [vmem:[%s0 + $0x98] sm:$0xff]
  %v38 = vld [vmem:[%s0 + $0xa0] sm:$0xff]
  %v39 = vld [vmem:[%s0 + $0xa8] sm:$0xff]
  %v40 = vld [vmem:[%s0 + $0xb0] sm:$0xff]
  %v41 = vld [vmem:[%s0 + $0xb8] sm:$0xff]
  %v42 = vld [vmem:[%s0 + $0xc0] sm:$0xff]
  %v43 = vld [vmem:[%s0 + $0xc8] sm:$0xff]
  %v44 = vld [vmem:[%s0 + $0xd0] sm:$0xff]
  %v45 = vld [vmem:[%s0 + $0xd8] sm:$0xff]
  %v46 = vld [vmem:[%s0 + $0xe0] sm:$0xff]
  %v47 = vld [vmem:[%s0 + $0xe8] sm:$0xff]
  %v48 = vld [vmem:[%s0 + $0xf0] sm:$0xff]
  %v49 = vld [vmem:[%s0 + $0xf8] sm:$0xff]
  %v50 = vld [vmem:[%s0 + $0x100] sm:$0xff]
  %v51 = vld [vmem:[%s0 + $0x108] sm:$0xff]
  %v52 = vld [vmem:[%s0 + $0x110] sm:$0xff]
  %v53 = vld [vmem:[%s0 + $0x118] sm:$0xff]
  %v54 = vld [vmem:[%s0 + $0x120] sm:$0xff]
  %v55 = vld [vmem:[%s0 + $0x128] sm:$0xff]
  %v56 = vld [vmem:[%s0 + $0x130] sm:$0xff]
  %v57 = vld [vmem:[%s0 + $0x138] sm:$0xff]
  %v58 = vld [vmem:[%s0 + $0x140] sm:$0xff]
  %v59 = vld [vmem:[%s0 + $0x148] sm:$0xff]
  %v60 = vld [vmem:[%s0 + $0x150] sm:$0xff]
  %v61 = vld [vmem:[%s0 + $0x158] sm:$0xff]
  %v62 = vld [vmem:[%s0 + $0x160] sm:$0xff]
  %v63 = vld [vmem:[%s0 + $0x168] sm:$0xff]
  %v64 = vld [vmem:[%s0 + $0x170] sm:$0xff]
  %v65 = vld [vmem:[%s0 + $0x178] sm:$0xff]
  %v66 = vld [vmem:[%s0 + $0x180] sm:$0xff]
  %v67 = vld [vmem:[%s0 + $0x188] sm:$0xff]
  %v68 = vld [vmem:[%s0 + $0x190] sm:$0xff]
  %v69 = vld [vmem:[%s0 + $0x198] sm:$0xff]
  %v70 = vld [vmem:[%s0 + $0x1a0] sm:$0xff]
  %v71 = vld [vmem:[%s0 + $0x1a8] sm:$0xff]
  %v72 = vld [vmem:[%s0 + $0x1b0] sm:$0xff]
  %v73 = vld [vmem:[%s0 + $0x1b8] sm:$0xff]
  %v74 = vld [vmem:[%s0 + $0x1c0] sm:$0xff]
  %v75 = vld [vmem:[%s0 + $0x1c8] sm:$0xff]
  %v76 = vld [vmem:[%s0 + $0x1d0] sm:$0xff]
  %v77 = vld [vmem:[%s0 + $0x1d8] sm:$0xff]
  %v78 = vld [vmem:[%s0 + $0x1e0] sm:$0xff]
  %v79 = vld [vmem:[%s0 + $0x1e8] sm:$0xff]
  %v80 = vld [vmem:[%s0 + $0x1f0] sm:$0xff]
  %v81 = vld [vmem:[%s0 + $0x1f8] sm:$0xff]
  %v82 = vld [vmem:[%s0 + $0x200] sm:$0xff]
  %v83 = vld [vmem:[%s0 + $0x208] sm:$0xff]
  %v84 = vld [vmem:[%s0 + $0x210] sm:$0xff]
  %v85 = vld [vmem:[%s0 + $0x218] sm:$0xff]
  %v86 = vld [vmem:[%s0 + $0x220] sm:$0xff]
  %v87 = vld [vmem:[%s0 + $0x228] sm:$0xff]
  %v88 = vld [vmem:[%s0 + $0x230] sm:$0xff]
  %v89 = vld [vmem:[%s0 + $0x238] sm:$0xff]
  %v90 = vld [vmem:[%s0 + $0x240] sm:$0xff]
  %v91 = vld [vmem:[%s0 + $0x248] sm:$0xff]
  %v92 = vld [vmem:[%s0 + $0x250] sm:$0xff]
  %v93 = vld [vmem:[%s0 + $0x258] sm:$0xff]
  %v94 = vmax.bf16 %v18, 0
  %v95 = vmax.bf16 %v19, 0
  %v96 = vmax.bf16 %v20, 0
  %v97 = vmax.bf16 %v21, 0
  %v98 = vmax.bf16 %v22, 0
  %v99 = vmax.bf16 %v23, 0
  %v100 = vmax.bf16 %v24, 0
  %v101 = vmax.bf16 %v25, 0
  %v102 = vmax.bf16 %v26, 0
  %v103 = vmax.bf16 %v27, 0
  %v104 = vmax.bf16 %v28, 0
  %v105 = vmax.bf16 %v29, 0
  %v106 = vmax.bf16 %v30, 0
  %v107 = vmax.bf16 %v31, 0
  %v108 = vmax.bf16 %v32, 0
  %v109 = vmax.bf16 %v33, 0
  %v110 = vmax.bf16 %v34, 0
  %v111 = vmax.bf16 %v35, 0
  %v112 = vmax.bf16 %v36, 0
  %v113 = vmax.bf16 %v37, 0
  %v114 = vmax.bf16 %v38, 0
  %v115 = vmax.bf16 %v39, 0
  %v116 = vmax.bf16 %v40, 0
  %v117 = vmax.bf16 %v41, 0
  %v118 = vmax.bf16 %v42, 0
  %v119 = vmax.bf16 %v43, 0
  %v120 = vmax.bf16 %v44, 0
  %v121 = vmax.bf16 %v45, 0
  %v122 = vmax.bf16 %v46, 0
  %v123 = vmax.bf16 %v47, 0
  %v124 = vmax.bf16 %v48, 0
  %v125 = vmax.bf16 %v49, 0
  %v126 = vmax.bf16 %v50, 0
  %v127 = vmax.bf16 %v51, 0
  %v128 = vmax.bf16 %v52, 0
  %v129 = vmax.bf16 %v53, 0
  %v130 = vmax.bf16 %v54, 0
  %v131 = vmax.bf16 %v55, 0
  %v132 = vmax.bf16 %v56, 0
  %v133 = vmax.bf16 %v57, 0
  %v134 = vmax.bf16 %v58, 0
  %v135 = vmax.bf16 %v59, 0
  %v136 = vmax.bf16 %v60, 0
  %v137 = vmax.bf16 %v61, 0
  %v138 = vmax.bf16 %v62, 0
  %v139 = vmax.bf16 %v63, 0
  %v140 = vmax.bf16 %v64, 0
  %v141 = vmax.bf16 %v65, 0
  %v142 = vmax.bf16 %v66, 0
  %v143 = vmax.bf16 %v67, 0
  %v144 = vmax.bf16 %v68, 0
  %v145 = vmax.bf16 %v69, 0
  %v146 = vmax.bf16 %v70, 0
  %v147 = vmax.bf16 %v71, 0
  %v148 = vmax.bf16 %v72, 0
  %v149 = vmax.bf16 %v73, 0
  %v150 = vmax.bf16 %v74, 0
  %v151 = vmax.bf16 %v75, 0
  %v152 = vmax.bf16 %v76, 0
  %v153 = vmax.bf16 %v77, 0
  %v154 = vmax.bf16 %v78, 0
  %v155 = vmax.bf16 %v79, 0
  %v156 = vmax.bf16 %v80, 0
  %v157 = vmax.bf16 %v81, 0
  %v158 = vmax.bf16 %v82, 0
  %v159 = vmax.bf16 %v83, 0
  %v160 = vmax.bf16 %v84, 0
  %v161 = vmax.bf16 %v85, 0
  %v162 = vmax.bf16 %v86, 0
  %v163 = vmax.bf16 %v87, 0
  %v164 = vmax.bf16 %v88, 0
  %v165 = vmax.bf16 %v89, 0
  %v166 = vmax.bf16 %v90, 0
  %v167 = vmax.bf16 %v91, 0
  %v168 = vmax.bf16 %v92, 0
  %v169 = vmax.bf16 %v93, 0
  %v170 = vld [vmem:[%s1] sm:$0xf]
  %v171 = vld [vmem:[%s1 + $0x4] sm:$0xf]
  %v172 = vld [vmem:[%s1 + $0x8] sm:$0xf]
  %v173 = vld [vmem:[%s1 + $0xc] sm:$0xf]
  %v174 = vld [vmem:[%s1 + $0x10] sm:$0xf]
  %v175 = vld [vmem:[%s1 + $0x14] sm:$0xf]
  %v176 = vld [vmem:[%s1 + $0x18] sm:$0xf]
  %v177 = vld [vmem:[%s1 + $0x1c] sm:$0xf]
  %v178 = vld [vmem:[%s1 + $0x20] sm:$0xf]
  %v179 = vld [vmem:[%s1 + $0x24] sm:$0xf]
  %v180 = vld [vmem:[%s1 + $0x28] sm:$0xf]
  %v181 = vld [vmem:[%s1 + $0x2c] sm:$0xf]
  %v182 = vld [vmem:[%s1 + $0x30] sm:$0xf]
  %v183 = vld [vmem:[%s1 + $0x34] sm:$0xf]
  %v184 = vld [vmem:[%s1 + $0x38] sm:$0xf]
  %v185 = vld [vmem:[%s1 + $0x3c] sm:$0xf]
  %v186 = vld [vmem:[%s1 + $0x40] sm:$0xf]
  %v187 = vld [vmem:[%s1 + $0x44] sm:$0xf]
  %v188 = vld [vmem:[%s1 + $0x48] sm:$0xf]
  %v189 = vld [vmem:[%s1 + $0x4c] sm:$0xf]
  %v190 = vld [vmem:[%s1 + $0x50] sm:$0xf]
  %v191 = vld [vmem:[%s1 + $0x54] sm:$0xf]
  %v192 = vld [vmem:[%s1 + $0x58] sm:$0xf]
  %v193 = vld [vmem:[%s1 + $0x5c] sm:$0xf]
  %v194 = vld [vmem:[%s1 + $0x60] sm:$0xf]
  %v195 = vld [vmem:[%s1 + $0x64] sm:$0xf]
  %v196 = vld [vmem:[%s1 + $0x68] sm:$0xf]
  %v197 = vld [vmem:[%s1 + $0x6c] sm:$0xf]
  %v198 = vld [vmem:[%s1 + $0x70] sm:$0xf]
  %v199 = vld [vmem:[%s1 + $0x74] sm:$0xf]
  %v200 = vld [vmem:[%s1 + $0x78] sm:$0xf]
  %v201 = vld [vmem:[%s1 + $0x7c] sm:$0xf]
  %v202 = vld [vmem:[%s1 + $0x80] sm:$0xf]
  %v203 = vld [vmem:[%s1 + $0x84] sm:$0xf]
  %v204 = vld [vmem:[%s1 + $0x88] sm:$0xf]
  %v205 = vld [vmem:[%s1 + $0x8c] sm:$0xf]
  %v206 = vld [vmem:[%s1 + $0x90] sm:$0xf]
  %v207 = vld [vmem:[%s1 + $0x94] sm:$0xf]
  %v208 = vld [vmem:[%s1 + $0x98] sm:$0xf]
  %v209 = vld [vmem:[%s1 + $0x9c] sm:$0xf]
  %v210 = vld [vmem:[%s1 + $0xa0] sm:$0xf]
  %v211 = vld [vmem:[%s1 + $0xa4] sm:$0xf]
  %v212 = vld [vmem:[%s1 + $0xa8] sm:$0xf]
  %v213 = vld [vmem:[%s1 + $0xac] sm:$0xf]
  %v214 = vld [vmem:[%s1 + $0xb0] sm:$0xf]
  %v215 = vld [vmem:[%s1 + $0xb4] sm:$0xf]
  %v216 = vld [vmem:[%s1 + $0xb8] sm:$0xf]
  %v217 = vld [vmem:[%s1 + $0xbc] sm:$0xf]
  %v218 = vld [vmem:[%s1 + $0xc0] sm:$0xf]
  %v219 = vld [vmem:[%s1 + $0xc4] sm:$0xf]
  %v220 = vld [vmem:[%s1 + $0xc8] sm:$0xf]
  %v221 = vld [vmem:[%s1 + $0xcc] sm:$0xf]
  %v222 = vld [vmem:[%s1 + $0xd0] sm:$0xf]
  %v223 = vld [vmem:[%s1 + $0xd4] sm:$0xf]
  %v224 = vld [vmem:[%s1 + $0xd8] sm:$0xf]
  %v225 = vld [vmem:[%s1 + $0xdc] sm:$0xf]
  %v226 = vld [vmem:[%s1 + $0xe0] sm:$0xf]
  %v227 = vld [vmem:[%s1 + $0xe4] sm:$0xf]
  %v228 = vld [vmem:[%s1 + $0xe8] sm:$0xf]
  %v229 = vld [vmem:[%s1 + $0xec] sm:$0xf]
  %v230 = vld [vmem:[%s1 + $0xf0] sm:$0xf]
  %v231 = vld [vmem:[%s1 + $0xf4] sm:$0xf]
  %v232 = vld [vmem:[%s1 + $0xf8] sm:$0xf]
  %v233 = vld [vmem:[%s1 + $0xfc] sm:$0xf]
  %v310 = vunpack.c.l.b16 %v94
  %v311 = vunpack.c.h.b16 %v94
  %v312 = vunpack.c.l.b16 %v95
  %v313 = vunpack.c.h.b16 %v95
  %v314 = vunpack.c.l.b16 %v96
  %v315 = vunpack.c.h.b16 %v96
  %v316 = vunpack.c.l.b16 %v97
  %v317 = vunpack.c.h.b16 %v97
  %v318 = vunpack.c.l.b16 %v98
  %v319 = vunpack.c.h.b16 %v98
  %v320 = vunpack.c.l.b16 %v99
  %v321 = vunpack.c.h.b16 %v99
  %v322 = vunpack.c.l.b16 %v100
  %v323 = vunpack.c.h.b16 %v100
  %v324 = vunpack.c.l.b16 %v101
  %v325 = vunpack.c.h.b16 %v101
  %v326 = vunpack.c.l.b16 %v102
  %v327 = vunpack.c.h.b16 %v102
  %v328 = vunpack.c.l.b16 %v103
  %v329 = vunpack.c.h.b16 %v103
  %v330 = vunpack.c.l.b16 %v104
  %v331 = vunpack.c.h.b16 %v104
  %v332 = vunpack.c.l.b16 %v105
  %v333 = vunpack.c.h.b16 %v105
  %v334 = vunpack.c.l.b16 %v106
  %v335 = vunpack.c.h.b16 %v106
  %v336 = vunpack.c.l.b16 %v107
  %v337 = vunpack.c.h.b16 %v107
  %v338 = vunpack.c.l.b16 %v108
  %v339 = vunpack.c.h.b16 %v108
  %v340 = vunpack.c.l.b16 %v109
  %v341 = vunpack.c.h.b16 %v109
  %v342 = vunpack.c.l.b16 %v110
  %v343 = vunpack.c.h.b16 %v110
  %v344 = vunpack.c.l.b16 %v111
  %v345 = vunpack.c.h.b16 %v111
  %v346 = vunpack.c.l.b16 %v112
  %v347 = vunpack.c.h.b16 %v112
  %v348 = vunpack.c.l.b16 %v113
  %v349 = vunpack.c.h.b16 %v113
  %v350 = vunpack.c.l.b16 %v114
  %v351 = vunpack.c.h.b16 %v114
  %v352 = vunpack.c.l.b16 %v115
  %v353 = vunpack.c.h.b16 %v115
  %v354 = vunpack.c.l.b16 %v116
  %v355 = vunpack.c.h.b16 %v116
  %v356 = vunpack.c.l.b16 %v117
  %v357 = vunpack.c.h.b16 %v117
  %v358 = vunpack.c.l.b16 %v118
  %v359 = vunpack.c.h.b16 %v118
  %v360 = vunpack.c.l.b16 %v119
  %v361 = vunpack.c.h.b16 %v119
  %v362 = vunpack.c.l.b16 %v120
  %v363 = vunpack.c.h.b16 %v120
  %v364 = vunpack.c.l.b16 %v121
  %v365 = vunpack.c.h.b16 %v121
  %v366 = vunpack.c.l.b16 %v122
  %v367 = vunpack.c.h.b16 %v122
  %v368 = vunpack.c.l.b16 %v123
  %v369 = vunpack.c.h.b16 %v123
  %v370 = vunpack.c.l.b16 %v124
  %v371 = vunpack.c.h.b16 %v124
  %v372 = vunpack.c.l.b16 %v125
  %v373 = vunpack.c.h.b16 %v125
  %v374 = vunpack.c.l.b16 %v126
  %v375 = vunpack.c.h.b16 %v126
  %v376 = vunpack.c.l.b16 %v127
  %v377 = vunpack.c.h.b16 %v127
  %v378 = vunpack.c.l.b16 %v128
  %v379 = vunpack.c.h.b16 %v128
  %v380 = vunpack.c.l.b16 %v129
  %v381 = vunpack.c.h.b16 %v129
  %v382 = vunpack.c.l.b16 %v130
  %v383 = vunpack.c.h.b16 %v130
  %v384 = vunpack.c.l.b16 %v131
  %v385 = vunpack.c.h.b16 %v131
  %v386 = vunpack.c.l.b16 %v132
  %v387 = vunpack.c.h.b16 %v132
  %v388 = vunpack.c.l.b16 %v133
  %v389 = vunpack.c.h.b16 %v133
  %v390 = vunpack.c.l.b16 %v134
  %v391 = vunpack.c.h.b16 %v134
  %v392 = vunpack.c.l.b16 %v135
  %v393 = vunpack.c.h.b16 %v135
  %v394 = vunpack.c.l.b16 %v136
  %v395 = vunpack.c.h.b16 %v136
  %v396 = vunpack.c.l.b16 %v137
  %v397 = vunpack.c.h.b16 %v137
  %v398 = vunpack.c.l.b16 %v138
  %v399 = vunpack.c.h.b16 %v138
  %v400 = vunpack.c.l.b16 %v139
  %v401 = vunpack.c.h.b16 %v139
  %v402 = vunpack.c.l.b16 %v140
  %v403 = vunpack.c.h.b16 %v140
  %v404 = vunpack.c.l.b16 %v141
  %v405 = vunpack.c.h.b16 %v141
  %v406 = vunpack.c.l.b16 %v142
  %v407 = vunpack.c.h.b16 %v142
  %v408 = vunpack.c.l.b16 %v143
  %v409 = vunpack.c.h.b16 %v143
  %v410 = vunpack.c.l.b16 %v144
  %v411 = vunpack.c.h.b16 %v144
  %v412 = vunpack.c.l.b16 %v145
  %v413 = vunpack.c.h.b16 %v145
  %v414 = vunpack.c.l.b16 %v146
  %v415 = vunpack.c.h.b16 %v146
  %v416 = vunpack.c.l.b16 %v147
  %v417 = vunpack.c.h.b16 %v147
  %v418 = vunpack.c.l.b16 %v148
  %v419 = vunpack.c.h.b16 %v148
  %v420 = vunpack.c.l.b16 %v149
  %v421 = vunpack.c.h.b16 %v149
  %v422 = vunpack.c.l.b16 %v150
  %v423 = vunpack.c.h.b16 %v150
  %v424 = vunpack.c.l.b16 %v151
  %v425 = vunpack.c.h.b16 %v151
  %v426 = vunpack.c.l.b16 %v152
  %v427 = vunpack.c.h.b16 %v152
  %v428 = vunpack.c.l.b16 %v153
  %v429 = vunpack.c.h.b16 %v153
  %v430 = vunpack.c.l.b16 %v154
  %v431 = vunpack.c.h.b16 %v154
  %v432 = vunpack.c.l.b16 %v155
  %v433 = vunpack.c.h.b16 %v155
  %v434 = vunpack.c.l.b16 %v156
  %v435 = vunpack.c.h.b16 %v156
  %v436 = vunpack.c.l.b16 %v157
  %v437 = vunpack.c.h.b16 %v157
  %v438 = vunpack.c.l.b16 %v158
  %v439 = vunpack.c.h.b16 %v158
  %v440 = vunpack.c.l.b16 %v159
  %v441 = vunpack.c.h.b16 %v159
  %v442 = vunpack.c.l.b16 %v160
  %v443 = vunpack.c.h.b16 %v160
  %v444 = vunpack.c.l.b16 %v161
  %v445 = vunpack.c.h.b16 %v161
  %v446 = vunpack.c.l.b16 %v162
  %v447 = vunpack.c.h.b16 %v162
  %v448 = vunpack.c.l.b16 %v163
  %v449 = vunpack.c.h.b16 %v163
  %v450 = vunpack.c.l.b16 %v164
  %v451 = vunpack.c.h.b16 %v164
  %v452 = vunpack.c.l.b16 %v165
  %v453 = vunpack.c.h.b16 %v165
  %v454 = vunpack.c.l.b16 %v166
  %v455 = vunpack.c.h.b16 %v166
  %v456 = vunpack.c.l.b16 %v167
  %v457 = vunpack.c.h.b16 %v167
  %v458 = vunpack.c.l.b16 %v168
  %v459 = vunpack.c.h.b16 %v168
  %v460 = vunpack.c.l.b16 %v169
  %v461 = vunpack.c.h.b16 %v169
  %v462 = vpack.c.b16 %v314, %v310
  %v463 = vpack.c.b16 %v315, %v311
  %v464 = vpack.c.b16 %v316, %v312
  %v465 = vpack.c.b16 %v317, %v313
  %v466 = vpack.c.b16 %v322, %v318
  %v467 = vpack.c.b16 %v323, %v319
  %v468 = vpack.c.b16 %v324, %v320
  %v469 = vpack.c.b16 %v325, %v321
  %v470 = vpack.c.b16 %v330, %v326
  %v471 = vpack.c.b16 %v331, %v327
  %v472 = vpack.c.b16 %v332, %v328
  %v473 = vpack.c.b16 %v333, %v329
  %v474 = vpack.c.b16 %v338, %v334
  %v475 = vpack.c.b16 %v339, %v335
  %v476 = vpack.c.b16 %v340, %v336
  %v477 = vpack.c.b16 %v341, %v337
  %v478 = vpack.c.b16 %v346, %v342
  %v479 = vpack.c.b16 %v347, %v343
  %v480 = vpack.c.b16 %v348, %v344
  %v481 = vpack.c.b16 %v349, %v345
  %v482 = vpack.c.b16 %v354, %v350
  %v483 = vpack.c.b16 %v355, %v351
  %v484 = vpack.c.b16 %v356, %v352
  %v485 = vpack.c.b16 %v357, %v353
  %v486 = vpack.c.b16 %v362, %v358
  %v487 = vpack.c.b16 %v363, %v359
  %v488 = vpack.c.b16 %v364, %v360
  %v489 = vpack.c.b16 %v365, %v361
  %v490 = vpack.c.b16 %v370, %v366
  %v491 = vpack.c.b16 %v371, %v367
  %v492 = vpack.c.b16 %v372, %v368
  %v493 = vpack.c.b16 %v373, %v369
  %v494 = vpack.c.b16 %v378, %v374
  %v495 = vpack.c.b16 %v379, %v375
  %v496 = vpack.c.b16 %v380, %v376
  %v497 = vpack.c.b16 %v381, %v377
  %v498 = vpack.c.b16 %v386, %v382
  %v499 = vpack.c.b16 %v387, %v383
  %v500 = vpack.c.b16 %v388, %v384
  %v501 = vpack.c.b16 %v389, %v385
  %v502 = vpack.c.b16 %v394, %v390
  %v503 = vpack.c.b16 %v395, %v391
  %v504 = vpack.c.b16 %v396, %v392
  %v505 = vpack.c.b16 %v397, %v393
  %v506 = vpack.c.b16 %v402, %v398
  %v507 = vpack.c.b16 %v403, %v399
  %v508 = vpack.c.b16 %v404, %v400
  %v509 = vpack.c.b16 %v405, %v401
  %v510 = vpack.c.b16 %v410, %v406
  %v511 = vpack.c.b16 %v411, %v407
  %v512 = vpack.c.b16 %v412, %v408
  %v513 = vpack.c.b16 %v413, %v409
  %v514 = vpack.c.b16 %v418, %v414
  %v515 = vpack.c.b16 %v419, %v415
  %v516 = vpack.c.b16 %v420, %v416
  %v517 = vpack.c.b16 %v421, %v417
  %v518 = vpack.c.b16 %v426, %v422
  %v519 = vpack.c.b16 %v427, %v423
  %v520 = vpack.c.b16 %v428, %v424
  %v521 = vpack.c.b16 %v429, %v425
  %v522 = vpack.c.b16 %v434, %v430
  %v523 = vpack.c.b16 %v435, %v431
  %v524 = vpack.c.b16 %v436, %v432
  %v525 = vpack.c.b16 %v437, %v433
  %v526 = vpack.c.b16 %v442, %v438
  %v527 = vpack.c.b16 %v443, %v439
  %v528 = vpack.c.b16 %v444, %v440
  %v529 = vpack.c.b16 %v445, %v441
  %v530 = vpack.c.b16 %v450, %v446
  %v531 = vpack.c.b16 %v451, %v447
  %v532 = vpack.c.b16 %v452, %v448
  %v533 = vpack.c.b16 %v453, %v449
  %v534 = vpack.c.b16 %v458, %v454
  %v535 = vpack.c.b16 %v459, %v455
  %v536 = vpack.c.b16 %v460, %v456
  %v537 = vpack.c.b16 %v461, %v457
  %v678 = vunpack.c.l.b16 %v170
  %v679 = vunpack.c.l.b16 %v171
  %v680 = vunpack.c.l.b16 %v172
  %v681 = vunpack.c.l.b16 %v173
  %v682 = vunpack.c.l.b16 %v174
  %v683 = vunpack.c.l.b16 %v175
  %v684 = vunpack.c.l.b16 %v176
  %v685 = vunpack.c.l.b16 %v177
  %v686 = vunpack.c.l.b16 %v178
  %v687 = vunpack.c.l.b16 %v179
  %v688 = vunpack.c.l.b16 %v180
  %v689 = vunpack.c.l.b16 %v181
  %v690 = vunpack.c.l.b16 %v182
  %v691 = vunpack.c.l.b16 %v183
  %v692 = vunpack.c.l.b16 %v184
  %v693 = vunpack.c.l.b16 %v185
  %v694 = vunpack.c.l.b16 %v186
  %v695 = vunpack.c.l.b16 %v187
  %v696 = vunpack.c.l.b16 %v188
  %v697 = vunpack.c.l.b16 %v189
  %v698 = vunpack.c.l.b16 %v190
  %v699 = vunpack.c.l.b16 %v191
  %v700 = vunpack.c.l.b16 %v192
  %v701 = vunpack.c.l.b16 %v193
  %v702 = vunpack.c.l.b16 %v194
  %v703 = vunpack.c.l.b16 %v195
  %v704 = vunpack.c.l.b16 %v196
  %v705 = vunpack.c.l.b16 %v197
  %v706 = vunpack.c.l.b16 %v198
  %v707 = vunpack.c.l.b16 %v199
  %v708 = vunpack.c.l.b16 %v200
  %v709 = vunpack.c.l.b16 %v201
  %v710 = vunpack.c.l.b16 %v202
  %v711 = vunpack.c.l.b16 %v203
  %v712 = vunpack.c.l.b16 %v204
  %v713 = vunpack.c.l.b16 %v205
  %v714 = vunpack.c.l.b16 %v206
  %v715 = vunpack.c.l.b16 %v207
  %v716 = vunpack.c.l.b16 %v208
  %v717 = vunpack.c.l.b16 %v209
  %v718 = vunpack.c.l.b16 %v210
  %v719 = vunpack.c.l.b16 %v211
  %v720 = vunpack.c.l.b16 %v212
  %v721 = vunpack.c.l.b16 %v213
  %v722 = vunpack.c.l.b16 %v214
  %v723 = vunpack.c.l.b16 %v215
  %v724 = vunpack.c.l.b16 %v216
  %v725 = vunpack.c.l.b16 %v217
  %v726 = vunpack.c.l.b16 %v218
  %v727 = vunpack.c.l.b16 %v219
  %v728 = vunpack.c.l.b16 %v220
  %v729 = vunpack.c.l.b16 %v221
  %v730 = vunpack.c.l.b16 %v222
  %v731 = vunpack.c.l.b16 %v223
  %v732 = vunpack.c.l.b16 %v224
  %v733 = vunpack.c.l.b16 %v225
  %v734 = vunpack.c.l.b16 %v226
  %v735 = vunpack.c.l.b16 %v227
  %v736 = vunpack.c.l.b16 %v228
  %v737 = vunpack.c.l.b16 %v229
  %v738 = vunpack.c.l.b16 %v230
  %v739 = vunpack.c.l.b16 %v231
  %v740 = vunpack.c.l.b16 %v232
  %v741 = vunpack.c.l.b16 %v233
  %v742 = vpack.c.b16 %v679, %v678
  %v743 = vpack.c.b16 %v681, %v680
  %v744 = vpack.c.b16 %v683, %v682
  %v745 = vpack.c.b16 %v685, %v684
  %v746 = vpack.c.b16 %v687, %v686
  %v747 = vpack.c.b16 %v689, %v688
  %v748 = vpack.c.b16 %v691, %v690
  %v749 = vpack.c.b16 %v693, %v692
  %v750 = vpack.c.b16 %v695, %v694
  %v751 = vpack.c.b16 %v697, %v696
  %v752 = vpack.c.b16 %v699, %v698
  %v753 = vpack.c.b16 %v701, %v700
  %v754 = vpack.c.b16 %v703, %v702
  %v755 = vpack.c.b16 %v705, %v704
  %v756 = vpack.c.b16 %v707, %v706
  %v757 = vpack.c.b16 %v709, %v708
  %v758 = vpack.c.b16 %v711, %v710
  %v759 = vpack.c.b16 %v713, %v712
  %v760 = vpack.c.b16 %v715, %v714
  %v761 = vpack.c.b16 %v717, %v716
  %v762 = vpack.c.b16 %v719, %v718
  %v763 = vpack.c.b16 %v721, %v720
  %v764 = vpack.c.b16 %v723, %v722
  %v765 = vpack.c.b16 %v725, %v724
  %v766 = vpack.c.b16 %v727, %v726
  %v767 = vpack.c.b16 %v729, %v728
  %v768 = vpack.c.b16 %v731, %v730
  %v769 = vpack.c.b16 %v733, %v732
  %v770 = vpack.c.b16 %v735, %v734
  %v771 = vpack.c.b16 %v737, %v736
  %v772 = vpack.c.b16 %v739, %v738
  %v773 = vpack.c.b16 %v741, %v740
  %806 = vmatprep.subr.bf16.mxu0 0
  %807 = vmatpush1.bf16.msra.mxu0 %v742
  %808 = vmatprep.subr.bf16.mxu0 0
  %809 = vmatpush1.bf16.msra.mxu0 %v743
  %810 = vmatprep.subr.bf16.mxu0 0
  %811 = vmatpush1.bf16.msra.mxu0 %v744
  %812 = vmatprep.subr.bf16.mxu0 0
  %813 = vmatpush1.bf16.msra.mxu0 %v745
  %814 = vmatprep.subr.bf16.mxu0 0
  %815 = vmatpush1.bf16.msra.mxu0 %v746
  %816 = vmatprep.subr.bf16.mxu0 0
  %817 = vmatpush1.bf16.msra.mxu0 %v747
  %818 = vmatprep.subr.bf16.mxu0 0
  %819 = vmatpush1.bf16.msra.mxu0 %v748
  %820 = vmatprep.subr.bf16.mxu0 0
  %821 = vmatpush1.bf16.msra.mxu0 %v749
  %822 = vmatprep.subr.bf16.mxu0 0
  %823 = vmatpush1.bf16.msra.mxu0 %v750
  %824 = vmatprep.subr.bf16.mxu0 0
  %825 = vmatpush1.bf16.msra.mxu0 %v751
  %826 = vmatprep.subr.bf16.mxu0 0
  %827 = vmatpush1.bf16.msra.mxu0 %v752
  %828 = vmatprep.subr.bf16.mxu0 0
  %829 = vmatpush1.bf16.msra.mxu0 %v753
  %830 = vmatprep.subr.bf16.mxu0 0
  %831 = vmatpush1.bf16.msra.mxu0 %v754
  %832 = vmatprep.subr.bf16.mxu0 0
  %833 = vmatpush1.bf16.msra.mxu0 %v755
  %834 = vmatprep.subr.bf16.mxu0 0
  %835 = vmatpush1.bf16.msra.mxu0 %v756
  %836 = vmatprep.subr.bf16.mxu0 0
  %837 = vmatpush1.bf16.msra.mxu0 %v757
  %838 = vmatprep.mubr.bf16.mxu0 %v463
  %839 = vmatmul.mubr.bf16.gmra.mrb[0].mxu0 %v462
  %v840 = vpop.f32.mrb[0].mxu0
  %v841 = vadd.f32 0.0, %v840
  %v842 = vpop.f32.mrb[0].mxu0
  %v843 = vpop.f32.mrb[0].mxu0
  %v844 = vadd.f32 0.0, %v843
  %v845 = vpop.f32.mrb[0].mxu0
  %846 = vmatprep.mubr.bf16.mxu0 %v467
  %847 = vmatmul.mubr.bf16.gmra.mrb[0].mxu0 %v466
  %v848 = vpop.f32.mrb[0].mxu0
  %v849 = vadd.f32 0.0, %v848
  %v850 = vpop.f32.mrb[0].mxu0
  %v851 = vpop.f32.mrb[0].mxu0
  %v852 = vadd.f32 0.0, %v851
  %v853 = vpop.f32.mrb[0].mxu0
  %854 = vmatprep.mubr.bf16.mxu0 %v471
  %855 = vmatmul.mubr.bf16.gmra.mrb[0].mxu0 %v470
  %v856 = vpop.f32.mrb[0].mxu0
  %v857 = vadd.f32 0.0, %v856
  %v858 = vpop.f32.mrb[0].mxu0
  %v859 = vpop.f32.mrb[0].mxu0
  %v860 = vadd.f32 0.0, %v859
  %v861 = vpop.f32.mrb[0].mxu0
  %862 = vmatprep.mubr.bf16.mxu0 %v475
  %863 = vmatmul.mubr.bf16.gmra.mrb[0].mxu0 %v474
  %v864 = vpop.f32.mrb[0].mxu0
  %v865 = vadd.f32 0.0, %v864
  %v866 = vpop.f32.mrb[0].mxu0
  %v867 = vpop.f32.mrb[0].mxu0
  %v868 = vadd.f32 0.0, %v867
  %v869 = vpop.f32.mrb[0].mxu0
  %870 = vmatprep.mubr.bf16.mxu0 %v479
  %871 = vmatmul.mubr.bf16.gmra.mrb[0].mxu0 %v478
  %v872 = vpop.f32.mrb[0].mxu0
  %v873 = vadd.f32 0.0, %v872
  %v874 = vpop.f32.mrb[0].mxu0
  %v875 = vpop.f32.mrb[0].mxu0
  %v876 = vadd.f32 0.0, %v875
  %v877 = vpop.f32.mrb[0].mxu0
  %878 = vmatprep.mubr.bf16.mxu0 %v483
  %879 = vmatmul.mubr.bf16.gmra.mrb[0].mxu0 %v482
  %v880 = vpop.f32.mrb[0].mxu0
  %v881 = vadd.f32 0.0, %v880
  %v882 = vpop.f32.mrb[0].mxu0
  %v883 = vpop.f32.mrb[0].mxu0
  %v884 = vadd.f32 0.0, %v883
  %v885 = vpop.f32.mrb[0].mxu0
  %886 = vmatprep.mubr.bf16.mxu0 %v487
  %887 = vmatmul.mubr.bf16.gmra.mrb[0].mxu0 %v486
  %v888 = vpop.f32.mrb[0].mxu0
  %v889 = vadd.f32 0.0, %v888
  %v890 = vpop.f32.mrb[0].mxu0
  %v891 = vpop.f32.mrb[0].mxu0
  %v892 = vadd.f32 0.0, %v891
  %v893 = vpop.f32.mrb[0].mxu0
  %894 = vmatprep.mubr.bf16.mxu0 %v491
  %895 = vmatmul.mubr.bf16.gmra.mrb[0].mxu0 %v490
  %v896 = vpop.f32.mrb[0].mxu0
  %v897 = vadd.f32 0.0, %v896
  %v898 = vpop.f32.mrb[0].mxu0
  %v899 = vpop.f32.mrb[0].mxu0
  %v900 = vadd.f32 0.0, %v899
  %v901 = vpop.f32.mrb[0].mxu0
  %902 = vmatprep.mubr.bf16.mxu0 %v495
  %903 = vmatmul.mubr.bf16.gmra.mrb[0].mxu0 %v494
  %v904 = vpop.f32.mrb[0].mxu0
  %v905 = vadd.f32 0.0, %v904
  %v906 = vpop.f32.mrb[0].mxu0
  %v907 = vpop.f32.mrb[0].mxu0
  %v908 = vadd.f32 0.0, %v907
  %v909 = vpop.f32.mrb[0].mxu0
  %910 = vmatprep.mubr.bf16.mxu0 %v499
  %911 = vmatmul.mubr.bf16.gmra.mrb[0].mxu0 %v498
  %v912 = vpop.f32.mrb[0].mxu0
  %v913 = vadd.f32 0.0, %v912
  %v914 = vpop.f32.mrb[0].mxu0
  %v915 = vpop.f32.mrb[0].mxu0
  %v916 = vadd.f32 0.0, %v915
  %v917 = vpop.f32.mrb[0].mxu0
  %918 = vmatprep.mubr.bf16.mxu0 %v503
  %919 = vmatmul.mubr.bf16.gmra.mrb[0].mxu0 %v502
  %v920 = vpop.f32.mrb[0].mxu0
  %v921 = vadd.f32 0.0, %v920
  %v922 = vpop.f32.mrb[0].mxu0
  %v923 = vpop.f32.mrb[0].mxu0
  %v924 = vadd.f32 0.0, %v923
  %v925 = vpop.f32.mrb[0].mxu0
  %926 = vmatprep.mubr.bf16.mxu0 %v507
  %927 = vmatmul.mubr.bf16.gmra.mrb[0].mxu0 %v506
  %v928 = vpop.f32.mrb[0].mxu0
  %v929 = vadd.f32 0.0, %v928
  %v930 = vpop.f32.mrb[0].mxu0
  %v931 = vpop.f32.mrb[0].mxu0
  %v932 = vadd.f32 0.0, %v931
  %v933 = vpop.f32.mrb[0].mxu0
  %934 = vmatprep.mubr.bf16.mxu0 %v511
  %935 = vmatmul.mubr.bf16.gmra.mrb[0].mxu0 %v510
  %v936 = vpop.f32.mrb[0].mxu0
  %v937 = vadd.f32 0.0, %v936
  %v938 = vpop.f32.mrb[0].mxu0
  %v939 = vpop.f32.mrb[0].mxu0
  %v940 = vadd.f32 0.0, %v939
  %v941 = vpop.f32.mrb[0].mxu0
  %942 = vmatprep.mubr.bf16.mxu0 %v515
  %943 = vmatmul.mubr.bf16.gmra.mrb[0].mxu0 %v514
  %v944 = vpop.f32.mrb[0].mxu0
  %v945 = vadd.f32 0.0, %v944
  %v946 = vpop.f32.mrb[0].mxu0
  %v947 = vpop.f32.mrb[0].mxu0
  %v948 = vadd.f32 0.0, %v947
  %v949 = vpop.f32.mrb[0].mxu0
  %950 = vmatprep.mubr.bf16.mxu0 %v519
  %951 = vmatmul.mubr.bf16.gmra.mrb[0].mxu0 %v518
  %v952 = vpop.f32.mrb[0].mxu0
  %v953 = vadd.f32 0.0, %v952
  %v954 = vpop.f32.mrb[0].mxu0
  %v955 = vpop.f32.mrb[0].mxu0
  %v956 = vadd.f32 0.0, %v955
  %v957 = vpop.f32.mrb[0].mxu0
  %958 = vmatprep.mubr.bf16.mxu0 %v523
  %959 = vmatmul.mubr.bf16.gmra.mrb[0].mxu0 %v522
  %v960 = vpop.f32.mrb[0].mxu0
  %v961 = vadd.f32 0.0, %v960
  %v962 = vpop.f32.mrb[0].mxu0
  %v963 = vpop.f32.mrb[0].mxu0
  %v964 = vadd.f32 0.0, %v963
  %v965 = vpop.f32.mrb[0].mxu0
  %966 = vmatprep.mubr.bf16.mxu0 %v527
  %967 = vmatmul.mubr.bf16.gmra.mrb[0].mxu0 %v526
  %v968 = vpop.f32.mrb[0].mxu0
  %v969 = vadd.f32 0.0, %v968
  %v970 = vpop.f32.mrb[0].mxu0
  %v971 = vpop.f32.mrb[0].mxu0
  %v972 = vadd.f32 0.0, %v971
  %v973 = vpop.f32.mrb[0].mxu0
  %974 = vmatprep.mubr.bf16.mxu0 %v531
  %975 = vmatmul.mubr.bf16.gmra.mrb[0].mxu0 %v530
  %v976 = vpop.f32.mrb[0].mxu0
  %v977 = vadd.f32 0.0, %v976
  %v978 = vpop.f32.mrb[0].mxu0
  %v979 = vpop.f32.mrb[0].mxu0
  %v980 = vadd.f32 0.0, %v979
  %v981 = vpop.f32.mrb[0].mxu0
  %982 = vmatprep.mubr.bf16.mxu0 %v535
  %983 = vmatmul.mubr.bf16.gmra.mrb[0].mxu0 %v534
  %v984 = vpop.f32.mrb[0].mxu0
  %v985 = vadd.f32 0.0, %v984
  %v986 = vpop.f32.mrb[0].mxu0
  %v987 = vpop.f32.mrb[0].mxu0
  %v988 = vadd.f32 0.0, %v987
  %v989 = vpop.f32.mrb[0].mxu0
  %990 = vdwg.mxu0
  %991 = vmatprep.subr.bf16.mxu0 0
  %992 = vmatpush1.bf16.msra.mxu0 %v758
  %993 = vmatprep.subr.bf16.mxu0 0
  %994 = vmatpush1.bf16.msra.mxu0 %v759
  %995 = vmatprep.subr.bf16.mxu0 0
  %996 = vmatpush1.bf16.msra.mxu0 %v760
  %997 = vmatprep.subr.bf16.mxu0 0
  %998 = vmatpush1.bf16.msra.mxu0 %v761
  %999 = vmatprep.subr.bf16.mxu0 0
  %1000 = vmatpush1.bf16.msra.mxu0 %v762
  %1001 = vmatprep.subr.bf16.mxu0 0
  %1002 = vmatpush1.bf16.msra.mxu0 %v763
  %1003 = vmatprep.subr.bf16.mxu0 0
  %1004 = vmatpush1.bf16.msra.mxu0 %v764
  %1005 = vmatprep.subr.bf16.mxu0 0
  %1006 = vmatpush1.bf16.msra.mxu0 %v765
  %1007 = vmatprep.subr.bf16.mxu0 0
  %1008 = vmatpush1.bf16.msra.mxu0 %v766
  %1009 = vmatprep.subr.bf16.mxu0 0
  %1010 = vmatpush1.bf16.msra.mxu0 %v767
  %1011 = vmatprep.subr.bf16.mxu0 0
  %1012 = vmatpush1.bf16.msra.mxu0 %v768
  %1013 = vmatprep.subr.bf16.mxu0 0
  %1014 = vmatpush1.bf16.msra.mxu0 %v769
  %1015 = vmatprep.subr.bf16.mxu0 0
  %1016 = vmatpush1.bf16.msra.mxu0 %v770
  %1017 = vmatprep.subr.bf16.mxu0 0
  %1018 = vmatpush1.bf16.msra.mxu0 %v771
  %1019 = vmatprep.subr.bf16.mxu0 0
  %1020 = vmatpush1.bf16.msra.mxu0 %v772
  %1021 = vmatprep.subr.bf16.mxu0 0
  %1022 = vmatpush1.bf16.msra.mxu0 %v773
  %1023 = vmatprep.mubr.bf16.mxu0 %v465
  %1024 = vmatmul.mubr.bf16.gmra.mrb[0].mxu0 %v464
  %v1025 = vpop.f32.mrb[0].mxu0
  %v1026 = vadd.f32 %v841, %v1025
  %v1027 = vpop.f32.mrb[0].mxu0
  %v1028 = vpop.f32.mrb[0].mxu0
  %v1029 = vadd.f32 %v844, %v1028
  %v1030 = vpop.f32.mrb[0].mxu0
  %1031 = vmatprep.mubr.bf16.mxu0 %v469
  %1032 = vmatmul.mubr.bf16.gmra.mrb[0].mxu0 %v468
  %v1033 = vpop.f32.mrb[0].mxu0
  %v1034 = vadd.f32 %v849, %v1033
  %v1035 = vpop.f32.mrb[0].mxu0
  %v1036 = vpop.f32.mrb[0].mxu0
  %v1037 = vadd.f32 %v852, %v1036
  %v1038 = vpop.f32.mrb[0].mxu0
  %1039 = vmatprep.mubr.bf16.mxu0 %v473
  %1040 = vmatmul.mubr.bf16.gmra.mrb[0].mxu0 %v472
  %v1041 = vpop.f32.mrb[0].mxu0
  %v1042 = vadd.f32 %v857, %v1041
  %v1043 = vpop.f32.mrb[0].mxu0
  %v1044 = vpop.f32.mrb[0].mxu0
  %v1045 = vadd.f32 %v860, %v1044
  %v1046 = vpop.f32.mrb[0].mxu0
  %1047 = vmatprep.mubr.bf16.mxu0 %v477
  %1048 = vmatmul.mubr.bf16.gmra.mrb[0].mxu0 %v476
  %v1049 = vpop.f32.mrb[0].mxu0
  %v1050 = vadd.f32 %v865, %v1049
  %v1051 = vpop.f32.mrb[0].mxu0
  %v1052 = vpop.f32.mrb[0].mxu0
  %v1053 = vadd.f32 %v868, %v1052
  %v1054 = vpop.f32.mrb[0].mxu0
  %1055 = vmatprep.mubr.bf16.mxu0 %v481
  %1056 = vmatmul.mubr.bf16.gmra.mrb[0].mxu0 %v480
  %v1057 = vpop.f32.mrb[0].mxu0
  %v1058 = vadd.f32 %v873, %v1057
  %v1059 = vpop.f32.mrb[0].mxu0
  %v1060 = vpop.f32.mrb[0].mxu0
  %v1061 = vadd.f32 %v876, %v1060
  %v1062 = vpop.f32.mrb[0].mxu0
  %1063 = vmatprep.mubr.bf16.mxu0 %v485
  %1064 = vmatmul.mubr.bf16.gmra.mrb[0].mxu0 %v484
  %v1065 = vpop.f32.mrb[0].mxu0
  %v1066 = vadd.f32 %v881, %v1065
  %v1067 = vpop.f32.mrb[0].mxu0
  %v1068 = vpop.f32.mrb[0].mxu0
  %v1069 = vadd.f32 %v884, %v1068
  %v1070 = vpop.f32.mrb[0].mxu0
  %1071 = vmatprep.mubr.bf16.mxu0 %v489
  %1072 = vmatmul.mubr.bf16.gmra.mrb[0].mxu0 %v488
  %v1073 = vpop.f32.mrb[0].mxu0
  %v1074 = vadd.f32 %v889, %v1073
  %v1075 = vpop.f32.mrb[0].mxu0
  %v1076 = vpop.f32.mrb[0].mxu0
  %v1077 = vadd.f32 %v892, %v1076
  %v1078 = vpop.f32.mrb[0].mxu0
  %1079 = vmatprep.mubr.bf16.mxu0 %v493
  %1080 = vmatmul.mubr.bf16.gmra.mrb[0].mxu0 %v492
  %v1081 = vpop.f32.mrb[0].mxu0
  %v1082 = vadd.f32 %v897, %v1081
  %v1083 = vpop.f32.mrb[0].mxu0
  %v1084 = vpop.f32.mrb[0].mxu0
  %v1085 = vadd.f32 %v900, %v1084
  %v1086 = vpop.f32.mrb[0].mxu0
  %1087 = vmatprep.mubr.bf16.mxu0 %v497
  %1088 = vmatmul.mubr.bf16.gmra.mrb[0].mxu0 %v496
  %v1089 = vpop.f32.mrb[0].mxu0
  %v1090 = vadd.f32 %v905, %v1089
  %v1091 = vpop.f32.mrb[0].mxu0
  %v1092 = vpop.f32.mrb[0].mxu0
  %v1093 = vadd.f32 %v908, %v1092
  %v1094 = vpop.f32.mrb[0].mxu0
  %1095 = vmatprep.mubr.bf16.mxu0 %v501
  %1096 = vmatmul.mubr.bf16.gmra.mrb[0].mxu0 %v500
  %v1097 = vpop.f32.mrb[0].mxu0
  %v1098 = vadd.f32 %v913, %v1097
  %v1099 = vpop.f32.mrb[0].mxu0
  %v1100 = vpop.f32.mrb[0].mxu0
  %v1101 = vadd.f32 %v916, %v1100
  %v1102 = vpop.f32.mrb[0].mxu0
  %1103 = vmatprep.mubr.bf16.mxu0 %v505
  %1104 = vmatmul.mubr.bf16.gmra.mrb[0].mxu0 %v504
  %v1105 = vpop.f32.mrb[0].mxu0
  %v1106 = vadd.f32 %v921, %v1105
  %v1107 = vpop.f32.mrb[0].mxu0
  %v1108 = vpop.f32.mrb[0].mxu0
  %v1109 = vadd.f32 %v924, %v1108
  %v1110 = vpop.f32.mrb[0].mxu0
  %1111 = vmatprep.mubr.bf16.mxu0 %v509
  %1112 = vmatmul.mubr.bf16.gmra.mrb[0].mxu0 %v508
  %v1113 = vpop.f32.mrb[0].mxu0
  %v1114 = vadd.f32 %v929, %v1113
  %v1115 = vpop.f32.mrb[0].mxu0
  %v1116 = vpop.f32.mrb[0].mxu0
  %v1117 = vadd.f32 %v932, %v1116
  %v1118 = vpop.f32.mrb[0].mxu0
  %1119 = vmatprep.mubr.bf16.mxu0 %v513
  %1120 = vmatmul.mubr.bf16.gmra.mrb[0].mxu0 %v512
  %v1121 = vpop.f32.mrb[0].mxu0
  %v1122 = vadd.f32 %v937, %v1121
  %v1123 = vpop.f32.mrb[0].mxu0
  %v1124 = vpop.f32.mrb[0].mxu0
  %v1125 = vadd.f32 %v940, %v1124
  %v1126 = vpop.f32.mrb[0].mxu0
  %1127 = vmatprep.mubr.bf16.mxu0 %v517
  %1128 = vmatmul.mubr.bf16.gmra.mrb[0].mxu0 %v516
  %v1129 = vpop.f32.mrb[0].mxu0
  %v1130 = vadd.f32 %v945, %v1129
  %v1131 = vpop.f32.mrb[0].mxu0
  %v1132 = vpop.f32.mrb[0].mxu0
  %v1133 = vadd.f32 %v948, %v1132
  %v1134 = vpop.f32.mrb[0].mxu0
  %1135 = vmatprep.mubr.bf16.mxu0 %v521
  %1136 = vmatmul.mubr.bf16.gmra.mrb[0].mxu0 %v520
  %v1137 = vpop.f32.mrb[0].mxu0
  %v1138 = vadd.f32 %v953, %v1137
  %v1139 = vpop.f32.mrb[0].mxu0
  %v1140 = vpop.f32.mrb[0].mxu0
  %v1141 = vadd.f32 %v956, %v1140
  %v1142 = vpop.f32.mrb[0].mxu0
  %1143 = vmatprep.mubr.bf16.mxu0 %v525
  %1144 = vmatmul.mubr.bf16.gmra.mrb[0].mxu0 %v524
  %v1145 = vpop.f32.mrb[0].mxu0
  %v1146 = vadd.f32 %v961, %v1145
  %v1147 = vpop.f32.mrb[0].mxu0
  %v1148 = vpop.f32.mrb[0].mxu0
  %v1149 = vadd.f32 %v964, %v1148
  %v1150 = vpop.f32.mrb[0].mxu0
  %1151 = vmatprep.mubr.bf16.mxu0 %v529
  %1152 = vmatmul.mubr.bf16.gmra.mrb[0].mxu0 %v528
  %v1153 = vpop.f32.mrb[0].mxu0
  %v1154 = vadd.f32 %v969, %v1153
  %v1155 = vpop.f32.mrb[0].mxu0
  %v1156 = vpop.f32.mrb[0].mxu0
  %v1157 = vadd.f32 %v972, %v1156
  %v1158 = vpop.f32.mrb[0].mxu0
  %1159 = vmatprep.mubr.bf16.mxu0 %v533
  %1160 = vmatmul.mubr.bf16.gmra.mrb[0].mxu0 %v532
  %v1161 = vpop.f32.mrb[0].mxu0
  %v1162 = vadd.f32 %v977, %v1161
  %v1163 = vpop.f32.mrb[0].mxu0
  %v1164 = vpop.f32.mrb[0].mxu0
  %v1165 = vadd.f32 %v980, %v1164
  %v1166 = vpop.f32.mrb[0].mxu0
  %1167 = vmatprep.mubr.bf16.mxu0 %v537
  %1168 = vmatmul.mubr.bf16.gmra.mrb[0].mxu0 %v536
  %v1169 = vpop.f32.mrb[0].mxu0
  %v1170 = vadd.f32 %v985, %v1169
  %v1171 = vpop.f32.mrb[0].mxu0
  %v1172 = vpop.f32.mrb[0].mxu0
  %v1173 = vadd.f32 %v988, %v1172
  %v1174 = vpop.f32.mrb[0].mxu0
  %1175 = vdwg.mxu0
  %v1176 = vld [vmem:[%s2] sm:$0x1]
  %v1178 = vlaneseq
  %v1179 = vshrl.u32 %v1178, 7
  %v1180 = vsub.s32 0, %v1179
  %v1181 = vrot.slane %v1176, %v1180
  %v1183 = vmul.f32 %v1026, %v1181
  %v1184 = vmul.f32 %v1029, %v1181
  %v1185 = vmul.f32 %v1034, %v1181
  %v1186 = vmul.f32 %v1037, %v1181
  %v1187 = vmul.f32 %v1042, %v1181
  %v1188 = vmul.f32 %v1045, %v1181
  %v1189 = vmul.f32 %v1050, %v1181
  %v1190 = vmul.f32 %v1053, %v1181
  %v1191 = vmul.f32 %v1058, %v1181
  %v1192 = vmul.f32 %v1061, %v1181
  %v1193 = vmul.f32 %v1066, %v1181
  %v1194 = vmul.f32 %v1069, %v1181
  %v1195 = vmul.f32 %v1074, %v1181
  %v1196 = vmul.f32 %v1077, %v1181
  %v1197 = vmul.f32 %v1082, %v1181
  %v1198 = vmul.f32 %v1085, %v1181
  %v1199 = vmul.f32 %v1090, %v1181
  %v1200 = vmul.f32 %v1093, %v1181
  %v1201 = vmul.f32 %v1098, %v1181
  %v1202 = vmul.f32 %v1101, %v1181
  %v1203 = vmul.f32 %v1106, %v1181
  %v1204 = vmul.f32 %v1109, %v1181
  %v1205 = vmul.f32 %v1114, %v1181
  %v1206 = vmul.f32 %v1117, %v1181
  %v1207 = vmul.f32 %v1122, %v1181
  %v1208 = vmul.f32 %v1125, %v1181
  %v1209 = vmul.f32 %v1130, %v1181
  %v1210 = vmul.f32 %v1133, %v1181
  %v1211 = vmul.f32 %v1138, %v1181
  %v1212 = vmul.f32 %v1141, %v1181
  %v1213 = vmul.f32 %v1146, %v1181
  %v1214 = vmul.f32 %v1149, %v1181
  %v1215 = vmul.f32 %v1154, %v1181
  %v1216 = vmul.f32 %v1157, %v1181
  %v1217 = vmul.f32 %v1162, %v1181
  %v1218 = vmul.f32 %v1165, %v1181
  %v1219 = vmul.f32 %v1170, %v1181
  %v1220 = vmul.f32 %v1173, %v1181
  %v1221 = vld [vmem:[%s3] sm:$0x1]
  %v1223 = vlaneseq
  %v1224 = vshrl.u32 %v1223, 7
  %v1225 = vsub.s32 0, %v1224
  %v1226 = vrot.slane %v1221, %v1225
  %v1228 = vadd.f32 %v1183, %v1226
  %v1229 = vadd.f32 %v1184, %v1226
  %v1230 = vadd.f32 %v1185, %v1226
  %v1231 = vadd.f32 %v1186, %v1226
  %v1232 = vadd.f32 %v1187, %v1226
  %v1233 = vadd.f32 %v1188, %v1226
  %v1234 = vadd.f32 %v1189, %v1226
  %v1235 = vadd.f32 %v1190, %v1226
  %v1236 = vadd.f32 %v1191, %v1226
  %v1237 = vadd.f32 %v1192, %v1226
  %v1238 = vadd.f32 %v1193, %v1226
  %v1239 = vadd.f32 %v1194, %v1226
  %v1240 = vadd.f32 %v1195, %v1226
  %v1241 = vadd.f32 %v1196, %v1226
  %v1242 = vadd.f32 %v1197, %v1226
  %v1243 = vadd.f32 %v1198, %v1226
  %v1244 = vadd.f32 %v1199, %v1226
  %v1245 = vadd.f32 %v1200, %v1226
  %v1246 = vadd.f32 %v1201, %v1226
  %v1247 = vadd.f32 %v1202, %v1226
  %v1248 = vadd.f32 %v1203, %v1226
  %v1249 = vadd.f32 %v1204, %v1226
  %v1250 = vadd.f32 %v1205, %v1226
  %v1251 = vadd.f32 %v1206, %v1226
  %v1252 = vadd.f32 %v1207, %v1226
  %v1253 = vadd.f32 %v1208, %v1226
  %v1254 = vadd.f32 %v1209, %v1226
  %v1255 = vadd.f32 %v1210, %v1226
  %v1256 = vadd.f32 %v1211, %v1226
  %v1257 = vadd.f32 %v1212, %v1226
  %v1258 = vadd.f32 %v1213, %v1226
  %v1259 = vadd.f32 %v1214, %v1226
  %v1260 = vadd.f32 %v1215, %v1226
  %v1261 = vadd.f32 %v1216, %v1226
  %v1262 = vadd.f32 %v1217, %v1226
  %v1263 = vadd.f32 %v1218, %v1226
  %v1264 = vadd.f32 %v1219, %v1226
  %v1265 = vadd.f32 %v1220, %v1226
  %v1266 = vpack.c.bf16 %v1229, %v1228
  %v1267 = vpack.c.bf16 %v1231, %v1230
  %v1268 = vpack.c.bf16 %v1233, %v1232
  %v1269 = vpack.c.bf16 %v1235, %v1234
  %v1270 = vpack.c.bf16 %v1237, %v1236
  %v1271 = vpack.c.bf16 %v1239, %v1238
  %v1272 = vpack.c.bf16 %v1241, %v1240
  %v1273 = vpack.c.bf16 %v1243, %v1242
  %v1274 = vpack.c.bf16 %v1245, %v1244
  %v1275 = vpack.c.bf16 %v1247, %v1246
  %v1276 = vpack.c.bf16 %v1249, %v1248
  %v1277 = vpack.c.bf16 %v1251, %v1250
  %v1278 = vpack.c.bf16 %v1253, %v1252
  %v1279 = vpack.c.bf16 %v1255, %v1254
  %v1280 = vpack.c.bf16 %v1257, %v1256
  %v1281 = vpack.c.bf16 %v1259, %v1258
  %v1282 = vpack.c.bf16 %v1261, %v1260
  %v1283 = vpack.c.bf16 %v1263, %v1262
  %v1284 = vpack.c.bf16 %v1265, %v1264
  %v1304 = vunpack.c.l.b16 %v1266
  %v1305 = vunpack.c.h.b16 %v1266
  %v1306 = vunpack.c.l.b16 %v1267
  %v1307 = vunpack.c.h.b16 %v1267
  %v1308 = vunpack.c.l.b16 %v1268
  %v1309 = vunpack.c.h.b16 %v1268
  %v1310 = vunpack.c.l.b16 %v1269
  %v1311 = vunpack.c.h.b16 %v1269
  %v1312 = vunpack.c.l.b16 %v1270
  %v1313 = vunpack.c.h.b16 %v1270
  %v1314 = vunpack.c.l.b16 %v1271
  %v1315 = vunpack.c.h.b16 %v1271
  %v1316 = vunpack.c.l.b16 %v1272
  %v1317 = vunpack.c.h.b16 %v1272
  %v1318 = vunpack.c.l.b16 %v1273
  %v1319 = vunpack.c.h.b16 %v1273
  %v1320 = vunpack.c.l.b16 %v1274
  %v1321 = vunpack.c.h.b16 %v1274
  %v1322 = vunpack.c.l.b16 %v1275
  %v1323 = vunpack.c.h.b16 %v1275
  %v1324 = vunpack.c.l.b16 %v1276
  %v1325 = vunpack.c.h.b16 %v1276
  %v1326 = vunpack.c.l.b16 %v1277
  %v1327 = vunpack.c.h.b16 %v1277
  %v1328 = vunpack.c.l.b16 %v1278
  %v1329 = vunpack.c.h.b16 %v1278
  %v1330 = vunpack.c.l.b16 %v1279
  %v1331 = vunpack.c.h.b16 %v1279
  %v1332 = vunpack.c.l.b16 %v1280
  %v1333 = vunpack.c.h.b16 %v1280
  %v1334 = vunpack.c.l.b16 %v1281
  %v1335 = vunpack.c.h.b16 %v1281
  %v1336 = vunpack.c.l.b16 %v1282
  %v1337 = vunpack.c.h.b16 %v1282
  %v1338 = vunpack.c.l.b16 %v1283
  %v1339 = vunpack.c.h.b16 %v1283
  %v1340 = vunpack.c.l.b16 %v1284
  %v1341 = vunpack.c.h.b16 %v1284
  %v1342 = vpack.c.b16 %v1304, %v1304
  %v1343 = vpack.c.b16 %v1305, %v1305
  %v1344 = vpack.c.b16 %v1306, %v1306
  %v1345 = vpack.c.b16 %v1307, %v1307
  %v1346 = vpack.c.b16 %v1308, %v1308
  %v1347 = vpack.c.b16 %v1309, %v1309
  %v1348 = vpack.c.b16 %v1310, %v1310
  %v1349 = vpack.c.b16 %v1311, %v1311
  %v1350 = vpack.c.b16 %v1312, %v1312
  %v1351 = vpack.c.b16 %v1313, %v1313
  %v1352 = vpack.c.b16 %v1314, %v1314
  %v1353 = vpack.c.b16 %v1315, %v1315
  %v1354 = vpack.c.b16 %v1316, %v1316
  %v1355 = vpack.c.b16 %v1317, %v1317
  %v1356 = vpack.c.b16 %v1318, %v1318
  %v1357 = vpack.c.b16 %v1319, %v1319
  %v1358 = vpack.c.b16 %v1320, %v1320
  %v1359 = vpack.c.b16 %v1321, %v1321
  %v1360 = vpack.c.b16 %v1322, %v1322
  %v1361 = vpack.c.b16 %v1323, %v1323
  %v1362 = vpack.c.b16 %v1324, %v1324
  %v1363 = vpack.c.b16 %v1325, %v1325
  %v1364 = vpack.c.b16 %v1326, %v1326
  %v1365 = vpack.c.b16 %v1327, %v1327
  %v1366 = vpack.c.b16 %v1328, %v1328
  %v1367 = vpack.c.b16 %v1329, %v1329
  %v1368 = vpack.c.b16 %v1330, %v1330
  %v1369 = vpack.c.b16 %v1331, %v1331
  %v1370 = vpack.c.b16 %v1332, %v1332
  %v1371 = vpack.c.b16 %v1333, %v1333
  %v1372 = vpack.c.b16 %v1334, %v1334
  %v1373 = vpack.c.b16 %v1335, %v1335
  %v1374 = vpack.c.b16 %v1336, %v1336
  %v1375 = vpack.c.b16 %v1337, %v1337
  %v1376 = vpack.c.b16 %v1338, %v1338
  %v1377 = vpack.c.b16 %v1339, %v1339
  %v1378 = vpack.c.b16 %v1340, %v1340
  %v1379 = vpack.c.b16 %v1341, %v1341
  %1418 = vst [vmem:[%s4] sm:$0xf] %v1342
  %1419 = vst [vmem:[%s4 + $0x4] sm:$0xf] %v1343
  %1420 = vst [vmem:[%s4 + $0x8] sm:$0xf] %v1344
  %1421 = vst [vmem:[%s4 + $0xc] sm:$0xf] %v1345
  %1422 = vst [vmem:[%s4 + $0x10] sm:$0xf] %v1346
  %1423 = vst [vmem:[%s4 + $0x14] sm:$0xf] %v1347
  %1424 = vst [vmem:[%s4 + $0x18] sm:$0xf] %v1348
  %1425 = vst [vmem:[%s4 + $0x1c] sm:$0xf] %v1349
  %1426 = vst [vmem:[%s4 + $0x20] sm:$0xf] %v1350
  %1427 = vst [vmem:[%s4 + $0x24] sm:$0xf] %v1351
  %1428 = vst [vmem:[%s4 + $0x28] sm:$0xf] %v1352
  %1429 = vst [vmem:[%s4 + $0x2c] sm:$0xf] %v1353
  %1430 = vst [vmem:[%s4 + $0x30] sm:$0xf] %v1354
  %1431 = vst [vmem:[%s4 + $0x34] sm:$0xf] %v1355
  %1432 = vst [vmem:[%s4 + $0x38] sm:$0xf] %v1356
  %1433 = vst [vmem:[%s4 + $0x3c] sm:$0xf] %v1357
  %1434 = vst [vmem:[%s4 + $0x40] sm:$0xf] %v1358
  %1435 = vst [vmem:[%s4 + $0x44] sm:$0xf] %v1359
  %1436 = vst [vmem:[%s4 + $0x48] sm:$0xf] %v1360
  %1437 = vst [vmem:[%s4 + $0x4c] sm:$0xf] %v1361
  %1438 = vst [vmem:[%s4 + $0x50] sm:$0xf] %v1362
  %1439 = vst [vmem:[%s4 + $0x54] sm:$0xf] %v1363
  %1440 = vst [vmem:[%s4 + $0x58] sm:$0xf] %v1364
  %1441 = vst [vmem:[%s4 + $0x5c] sm:$0xf] %v1365
  %1442 = vst [vmem:[%s4 + $0x60] sm:$0xf] %v1366
  %1443 = vst [vmem:[%s4 + $0x64] sm:$0xf] %v1367
  %1444 = vst [vmem:[%s4 + $0x68] sm:$0xf] %v1368
  %1445 = vst [vmem:[%s4 + $0x6c] sm:$0xf] %v1369
  %1446 = vst [vmem:[%s4 + $0x70] sm:$0xf] %v1370
  %1447 = vst [vmem:[%s4 + $0x74] sm:$0xf] %v1371
  %1448 = vst [vmem:[%s4 + $0x78] sm:$0xf] %v1372
  %1449 = vst [vmem:[%s4 + $0x7c] sm:$0xf] %v1373
  %1450 = vst [vmem:[%s4 + $0x80] sm:$0xf] %v1374
  %1451 = vst [vmem:[%s4 + $0x84] sm:$0xf] %v1375
  %1452 = vst [vmem:[%s4 + $0x88] sm:$0xf] %v1376
  %1453 = vst [vmem:[%s4 + $0x8c] sm:$0xf] %v1377
  %1454 = vst [vmem:[%s4 + $0x90] sm:$0xf] %v1378
  %1455 = vst [vmem:[%s4 + $0x94] sm:$0xf] %v1379
  // Predicated region
  $region18: #{generator_forward.12} parent=0 // pred_check
    _
  $region19: #{generator_forward.12} parent=0 // pred_check_branch
    %1457 = sbr.rel (0) target = $region21
  $region20: #{generator_forward.12} parent=0 // pred_region
    _
  $region21: #{generator_forward.12} parent=0 // pred_fallthru
    _
  // Predicated region
  $region22: #{generator_forward.12} parent=0 // pred_check
    _
  $region23: #{generator_forward.12} parent=0 // pred_check_branch
    %1459 = sbr.rel (0) target = $region25
  $region24: #{generator_forward.12} parent=0 // pred_region
    _
  $region25: #{generator_forward.12} parent=0 // pred_fallthru
    _

// kernel: generator_forward.13
$region0: #{generator_forward.13}
  #allocation0 [shape = 'u32[]', space=smem, size = 0x4, offset = 0x4, fixed_abs, tag = 'smem constant byte address 0x4 - core index']
  #allocation1 [shape = 'u32[144,128]{1,0:T(1,128)}', space=vmem, size = 0x12000, scoped, tag = 'internal scratch']
  %s0 = inlined_call_operand.vmem [shape: bf16[1536,256], index: 0, kind: input, shape index: {}]
  %s1 = inlined_call_operand.vmem [shape: bf16[256,128], index: 1, kind: input, shape index: {}]
  %s2 = inlined_call_operand.vmem [shape: f32[1,128], index: 2, kind: input, shape index: {}]
  %s3 = inlined_call_operand.vmem [shape: f32[1,128], index: 3, kind: input, shape index: {}]
  %s4 = inlined_call_operand.vmem [shape: bf16[1536,128], index: 4, kind: output, shape index: {}]
  %s5 = sld [smem:[#allocation0]]
  $region49: #{generator_forward.13} parent=0
    _
  %s7 = ssub.s32 1, %s5
  %s8 = scalar_select 0, %s7, %s5
  loop: start=0, step=1, limit=5
  $region2: #{generator_forward.13} parent=0 // loop_pre_header
    _
  $region3: #{generator_forward.13} parent=0 // loop_header
    %s10 = sphi 0, %s14
    %p11 = scmp.ge.s32.totalorder %s10, 5
    %s17 = sphi 0, %s29
    %s18 = sphi 0, %s25
    %s19 = sphi 0, %s17
    %s20 = sphi 0, %s18
    %s21 = sphi 0, %s19
    %s22 = sphi 0, %s20
    %s32 = sphi 0, %s34
    %s35 = sphi 0, %s32
    %s36 = sphi 0, %s35
    %s52 = sphi 0, %s36
    %s58 = sphi 0, %s60
    %s61 = sphi 0, %s58
    %s62 = sphi 0, %s61
    %s78 = sphi 0, %s62
    %s84 = sphi 0, %s86
    %s87 = sphi 0, %s84
    %s88 = sphi 0, %s87
    %s104 = sphi 0, %s88
    %s110 = sphi 0, %s112
    %s113 = sphi 0, %s110
    %s114 = sphi 0, %s113
    %s130 = sphi 0, %s114
    %s138 = sphi 0, %s140
    %s141 = sphi 0, %s138
    %s142 = sphi 0, %s141
    %s158 = sphi 0, %s142
  $region4: #{generator_forward.13} parent=0 // loop_header_branch
    %13 = sbr.rel (%p11) target = $region8
  $region5: #{generator_forward.13} parent=0 // loop_body
    %s15 = ssub.s32 %s10, 1
    %s16 = ssub.s32 %s10, 2
    %s23 = sadd.s32 1, %s18
    %p24 = scmp.ge.s32.totalorder %s23, 1
    %s25 = scalar_select %p24, 0, %s23
    %s26 = sadd.s32 1, %s17
    %s27 = scalar_select %p24, %s26, %s17
    %p28 = scmp.ge.s32.totalorder %s27, 3
    %s29 = scalar_select %p28, 0, %s27
    %s30 = ssub.s32 %s17, %s29
    %p31 = scmp.eq.s32.totalorder %s30, 0
    %s33 = sadd.s32 %s32, 1
    %s34 = scalar_select %p31, %s32, %s33
    %p37 = pneg %p31
    %p38 = scmp.eq.s32.totalorder %s10, 2
    %p39 = por %p37, %p38
    %p40 = scmp.ne.s32.totalorder %s32, %s35
    %p41 = scmp.eq.s32.totalorder %s10, 0
    %p42 = por %p40, %p41
    %p43 = scmp.ne.s32.totalorder %s32, %s35
    %p44 = scmp.eq.s32.totalorder %s15, 2
    %p45 = por %p43, %p44
    %p46 = scmp.ne.s32.totalorder %s35, %s36
    %p47 = scmp.eq.s32.totalorder %s15, 0
    %p48 = por %p46, %p47
    %p49 = scmp.ne.s32.totalorder %s35, %s36
    %p50 = scmp.eq.s32.totalorder %s16, 2
    %p51 = por %p49, %p50
    %p53 = scmp.ne.s32.totalorder %s36, %s52
    %p54 = scmp.eq.s32.totalorder %s16, 0
    %p55 = por %p53, %p54
    %s56 = ssub.s32 %s18, %s25
    %p57 = scmp.eq.s32.totalorder %s56, 0
    %s59 = sadd.s32 %s58, 1
    %s60 = scalar_select %p57, %s58, %s59
    %p63 = pneg %p57
    %p64 = scmp.eq.s32.totalorder %s10, 2
    %p65 = por %p63, %p64
    %p66 = scmp.ne.s32.totalorder %s58, %s61
    %p67 = scmp.eq.s32.totalorder %s10, 0
    %p68 = por %p66, %p67
    %p69 = scmp.ne.s32.totalorder %s58, %s61
    %p70 = scmp.eq.s32.totalorder %s15, 2
    %p71 = por %p69, %p70
    %p72 = scmp.ne.s32.totalorder %s61, %s62
    %p73 = scmp.eq.s32.totalorder %s15, 0
    %p74 = por %p72, %p73
    %p75 = scmp.ne.s32.totalorder %s61, %s62
    %p76 = scmp.eq.s32.totalorder %s16, 2
    %p77 = por %p75, %p76
    %p79 = scmp.ne.s32.totalorder %s62, %s78
    %p80 = scmp.eq.s32.totalorder %s16, 0
    %p81 = por %p79, %p80
    %s82 = ssub.s32 %s18, %s25
    %p83 = scmp.eq.s32.totalorder %s82, 0
    %s85 = sadd.s32 %s84, 1
    %s86 = scalar_select %p83, %s84, %s85
    %p89 = pneg %p83
    %p90 = scmp.eq.s32.totalorder %s10, 2
    %p91 = por %p89, %p90
    %p92 = scmp.ne.s32.totalorder %s84, %s87
    %p93 = scmp.eq.s32.totalorder %s10, 0
    %p94 = por %p92, %p93
    %p95 = scmp.ne.s32.totalorder %s84, %s87
    %p96 = scmp.eq.s32.totalorder %s15, 2
    %p97 = por %p95, %p96
    %p98 = scmp.ne.s32.totalorder %s87, %s88
    %p99 = scmp.eq.s32.totalorder %s15, 0
    %p100 = por %p98, %p99
    %p101 = scmp.ne.s32.totalorder %s87, %s88
    %p102 = scmp.eq.s32.totalorder %s16, 2
    %p103 = por %p101, %p102
    %p105 = scmp.ne.s32.totalorder %s88, %s104
    %p106 = scmp.eq.s32.totalorder %s16, 0
    %p107 = por %p105, %p106
    %s108 = ssub.s32 %s18, %s25
    %p109 = scmp.eq.s32.totalorder %s108, 0
    %s111 = sadd.s32 %s110, 1
    %s112 = scalar_select %p109, %s110, %s111
    %p115 = pneg %p109
    %p116 = scmp.eq.s32.totalorder %s10, 2
    %p117 = por %p115, %p116
    %p118 = scmp.ne.s32.totalorder %s110, %s113
    %p119 = scmp.eq.s32.totalorder %s10, 0
    %p120 = por %p118, %p119
    %p121 = scmp.ne.s32.totalorder %s110, %s113
    %p122 = scmp.eq.s32.totalorder %s15, 2
    %p123 = por %p121, %p122
    %p124 = scmp.ne.s32.totalorder %s113, %s114
    %p125 = scmp.eq.s32.totalorder %s15, 0
    %p126 = por %p124, %p125
    %p127 = scmp.ne.s32.totalorder %s113, %s114
    %p128 = scmp.eq.s32.totalorder %s16, 2
    %p129 = por %p127, %p128
    %p131 = scmp.ne.s32.totalorder %s114, %s130
    %p132 = scmp.eq.s32.totalorder %s16, 0
    %p133 = por %p131, %p132
    %s134 = ssub.s32 %s17, %s29
    %s135 = ssub.s32 %s18, %s25
    %s136 = sor.u32 %s134, %s135
    %p137 = scmp.eq.s32.totalorder %s136, 0
    %s139 = sadd.s32 %s138, 1
    %s140 = scalar_select %p137, %s138, %s139
    %p143 = pneg %p137
    %p144 = scmp.eq.s32.totalorder %s10, 2
    %p145 = por %p143, %p144
    %p146 = scmp.ne.s32.totalorder %s138, %s141
    %p147 = scmp.eq.s32.totalorder %s10, 0
    %p148 = por %p146, %p147
    %p149 = scmp.ne.s32.totalorder %s138, %s141
    %p150 = scmp.eq.s32.totalorder %s15, 2
    %p151 = por %p149, %p150
    %p152 = scmp.ne.s32.totalorder %s141, %s142
    %p153 = scmp.eq.s32.totalorder %s15, 0
    %p154 = por %p152, %p153
    %p155 = scmp.ne.s32.totalorder %s141, %s142
    %p156 = scmp.eq.s32.totalorder %s16, 2
    %p157 = por %p155, %p156
    %p159 = scmp.ne.s32.totalorder %s142, %s158
    %p160 = scmp.eq.s32.totalorder %s16, 0
    %p161 = por %p159, %p160
    %p162 = scmp.le.s32.totalorder 1, %s10
    %p163 = scmp.lt.s32.totalorder %s10, 4
    %p164 = pnand %p162, %p163
    %p165 = pneg %p164
    // Predicated region
    $region9: #{generator_forward.13} parent=5 // pred_check
      _
    $region10: #{generator_forward.13} parent=5 // pred_check_branch
      %167 = sbr.rel (%p164) target = $region12
    $region11: #{generator_forward.13} parent=5 // pred_region
      %s168 = ssub.s32 %s10, 1
      // Predicated region
      $region13: #{generator_forward.13} parent=11 // pred_check
        %p169 = pneg %p74
      $region14: #{generator_forward.13} parent=11 // pred_check_branch
        %171 = sbr.rel (%p169) target = $region16
      $region15: #{generator_forward.13} parent=11 // pred_region
        %p172 = scmp.lt.s32.totalorder %s20, 0
        %s173 = scalar_select %p172, %s20, 0
        %s174 = smul.addr %s173, 4
        %s175 = scalar_lea.vmem %s1, %s174
      $region16: #{generator_forward.13} parent=11 // pred_fallthru
        _
      // Predicated region
      $region17: #{generator_forward.13} parent=11 // pred_check
        %p176 = pneg %p100
      $region18: #{generator_forward.13} parent=11 // pred_check_branch
        %178 = sbr.rel (%p176) target = $region20
      $region19: #{generator_forward.13} parent=11 // pred_region
        %p179 = scmp.lt.s32.totalorder %s20, 0
        %s180 = scalar_select %p179, %s20, 0
        %s181 = scalar_lea.vmem %s2, %s180
      $region20: #{generator_forward.13} parent=11 // pred_fallthru
        _
      // Predicated region
      $region21: #{generator_forward.13} parent=11 // pred_check
        %p182 = pneg %p126
      $region22: #{generator_forward.13} parent=11 // pred_check_branch
        %184 = sbr.rel (%p182) target = $region24
      $region23: #{generator_forward.13} parent=11 // pred_region
        %p185 = scmp.lt.s32.totalorder %s20, 0
        %s186 = scalar_select %p185, %s20, 0
        %s187 = scalar_lea.vmem %s3, %s186
      $region24: #{generator_forward.13} parent=11 // pred_fallthru
        _
    $region12: #{generator_forward.13} parent=5 // pred_fallthru
      _
    %p188 = scmp.lt.s32.totalorder %s10, 3
    // Predicated region
    $region25: #{generator_forward.13} parent=5 // pred_check
      %p189 = pneg %p188
    $region26: #{generator_forward.13} parent=5 // pred_check_branch
      %191 = sbr.rel (%p189) target = $region28
    $region27: #{generator_forward.13} parent=5 // pred_region
      // Predicated region
      $region29: #{generator_forward.13} parent=27 // pred_check
        %p192 = pneg %p42
      $region30: #{generator_forward.13} parent=27 // pred_check_branch
        %194 = sbr.rel (%p192) target = $region32
      $region31: #{generator_forward.13} parent=27 // pred_region
        %s195 = smul.u32 64, %s17
        %p196 = scmp.lt.s32.totalorder %s195, 191
        %s197 = scalar_select %p196, %s195, 191
        %s198 = smul.addr %s197, 2
        %s199 = smul.addr %s198, 4
        %s200 = scalar_lea.vmem %s0, %s199
        %s201 = smul.u32 64, %s17
      $region32: #{generator_forward.13} parent=27 // pred_fallthru
        _
    $region28: #{generator_forward.13} parent=5 // pred_fallthru
      _
    %p202 = scmp.le.s32.totalorder 1, %s10
    %p203 = scmp.lt.s32.totalorder %s10, 4
    %p204 = pnand %p202, %p203
    %p205 = pneg %p204
    // Predicated region
    $region33: #{generator_forward.13} parent=5 // pred_check
      _
    $region34: #{generator_forward.13} parent=5 // pred_check_branch
      %207 = sbr.rel (%p204) target = $region36
    $region35: #{generator_forward.13} parent=5 // pred_region
      %s208 = ssub.s32 %s10, 1
      %s209 = smul.u32 64, %s19
      %p210 = scmp.lt.s32.totalorder %s209, 191
      %s211 = scalar_select %p210, %s209, 191
      %s212 = smul.addr %s211, 2
      %s213 = smul.addr %s212, 4
      %s214 = scalar_lea.vmem %s0, %s213
      %p215 = pneg %p48
      %p216 = pneg %p45
      %p217 = scmp.lt.s32.totalorder %s20, 0
      %s218 = scalar_select %p217, %s20, 0
      %s219 = smul.addr %s218, 4
      %s220 = scalar_lea.vmem %s1, %s219
      %p221 = pneg %p74
      %p222 = pneg %p71
      %p223 = scmp.lt.s32.totalorder %s20, 0
      %s224 = scalar_select %p223, %s20, 0
      %s225 = scalar_lea.vmem %s2, %s224
      %p226 = pneg %p100
      %p227 = pneg %p97
      %p228 = scmp.lt.s32.totalorder %s20, 0
      %s229 = scalar_select %p228, %s20, 0
      %s230 = scalar_lea.vmem %s3, %s229
      %p231 = pneg %p126
      %p232 = pneg %p123
      %p233 = pneg %p154
      %p234 = pneg %p151
      %s235 = smul.u32 64, %s19
      %p236 = scmp.lt.s32.totalorder %s235, 191
      %s237 = scalar_select %p236, %s235, 191
      %p238 = scmp.lt.s32.totalorder %s20, 0
      %s239 = scalar_select %p238, %s20, 0
      %s240 = sadd.s32 %s239, %s237
      %s241 = smul.addr %s240, 4
      %s242 = scalar_lea.vmem %s4, %s241
      %s243 = smul.u32 64, %s19
      %p244 = scmp.lt.s32.totalorder %s243, 191
      %s245 = scalar_select %p244, %s243, 191
      %s246 = smul.addr %s245, 2
      %s247 = smul.addr %s246, 4
      %s248 = scalar_lea.vmem %s0, %s247
      %s249 = smul.u32 64, %s19
      %p250 = scmp.lt.s32.totalorder %s20, 0
      %s251 = scalar_select %p250, %s20, 0
      %s252 = smul.addr %s251, 4
      %s253 = scalar_lea.vmem %s1, %s252
      %p254 = scmp.lt.s32.totalorder %s20, 0
      %s255 = scalar_select %p254, %s20, 0
      %s256 = scalar_lea.vmem %s2, %s255
      %p257 = scmp.lt.s32.totalorder %s20, 0
      %s258 = scalar_select %p257, %s20, 0
      %s259 = scalar_lea.vmem %s3, %s258
      %s260 = smul.u32 64, %s19
      %p261 = scmp.lt.s32.totalorder %s260, 191
      %s262 = scalar_select %p261, %s260, 191
      %p263 = scmp.lt.s32.totalorder %s20, 0
      %s264 = scalar_select %p263, %s20, 0
      %s265 = sadd.s32 %s264, %s262
      %s266 = smul.addr %s265, 4
      %s267 = scalar_lea.vmem %s4, %s266
      %s268 = smul.u32 64, %s19
      %v270 = vld [vmem:[%s248] sm:$0xff]
      %v271 = vld [vmem:[%s248 + $0x8] sm:$0xff]
      %v272 = vld [vmem:[%s248 + $0x10] sm:$0xff]
      %v273 = vld [vmem:[%s248 + $0x18] sm:$0xff]
      %v274 = vld [vmem:[%s248 + $0x20] sm:$0xff]
      %v275 = vld [vmem:[%s248 + $0x28] sm:$0xff]
      %v276 = vld [vmem:[%s248 + $0x30] sm:$0xff]
      %v277 = vld [vmem:[%s248 + $0x38] sm:$0xff]
      %v278 = vld [vmem:[%s248 + $0x40] sm:$0xff]
      %v279 = vld [vmem:[%s248 + $0x48] sm:$0xff]
      %v280 = vld [vmem:[%s248 + $0x50] sm:$0xff]
      %v281 = vld [vmem:[%s248 + $0x58] sm:$0xff]
      %v282 = vld [vmem:[%s248 + $0x60] sm:$0xff]
      %v283 = vld [vmem:[%s248 + $0x68] sm:$0xff]
      %v284 = vld [vmem:[%s248 + $0x70] sm:$0xff]
      %v285 = vld [vmem:[%s248 + $0x78] sm:$0xff]
      %v286 = vld [vmem:[%s248 + $0x80] sm:$0xff]
      %v287 = vld [vmem:[%s248 + $0x88] sm:$0xff]
      %v288 = vld [vmem:[%s248 + $0x90] sm:$0xff]
      %v289 = vld [vmem:[%s248 + $0x98] sm:$0xff]
      %v290 = vld [vmem:[%s248 + $0xa0] sm:$0xff]
      %v291 = vld [vmem:[%s248 + $0xa8] sm:$0xff]
      %v292 = vld [vmem:[%s248 + $0xb0] sm:$0xff]
      %v293 = vld [vmem:[%s248 + $0xb8] sm:$0xff]
      %v294 = vld [vmem:[%s248 + $0xc0] sm:$0xff]
      %v295 = vld [vmem:[%s248 + $0xc8] sm:$0xff]
      %v296 = vld [vmem:[%s248 + $0xd0] sm:$0xff]
      %v297 = vld [vmem:[%s248 + $0xd8] sm:$0xff]
      %v298 = vld [vmem:[%s248 + $0xe0] sm:$0xff]
      %v299 = vld [vmem:[%s248 + $0xe8] sm:$0xff]
      %v300 = vld [vmem:[%s248 + $0xf0] sm:$0xff]
      %v301 = vld [vmem:[%s248 + $0xf8] sm:$0xff]
      %v302 = vld [vmem:[%s248 + $0x100] sm:$0xff]
      %v303 = vld [vmem:[%s248 + $0x108] sm:$0xff]
      %v304 = vld [vmem:[%s248 + $0x110] sm:$0xff]
      %v305 = vld [vmem:[%s248 + $0x118] sm:$0xff]
      %v306 = vld [vmem:[%s248 + $0x120] sm:$0xff]
      %v307 = vld [vmem:[%s248 + $0x128] sm:$0xff]
      %v308 = vld [vmem:[%s248 + $0x130] sm:$0xff]
      %v309 = vld [vmem:[%s248 + $0x138] sm:$0xff]
      %v310 = vld [vmem:[%s248 + $0x140] sm:$0xff]
      %v311 = vld [vmem:[%s248 + $0x148] sm:$0xff]
      %v312 = vld [vmem:[%s248 + $0x150] sm:$0xff]
      %v313 = vld [vmem:[%s248 + $0x158] sm:$0xff]
      %v314 = vld [vmem:[%s248 + $0x160] sm:$0xff]
      %v315 = vld [vmem:[%s248 + $0x168] sm:$0xff]
      %v316 = vld [vmem:[%s248 + $0x170] sm:$0xff]
      %v317 = vld [vmem:[%s248 + $0x178] sm:$0xff]
      %v318 = vld [vmem:[%s248 + $0x180] sm:$0xff]
      %v319 = vld [vmem:[%s248 + $0x188] sm:$0xff]
      %v320 = vld [vmem:[%s248 + $0x190] sm:$0xff]
      %v321 = vld [vmem:[%s248 + $0x198] sm:$0xff]
      %v322 = vld [vmem:[%s248 + $0x1a0] sm:$0xff]
      %v323 = vld [vmem:[%s248 + $0x1a8] sm:$0xff]
      %v324 = vld [vmem:[%s248 + $0x1b0] sm:$0xff]
      %v325 = vld [vmem:[%s248 + $0x1b8] sm:$0xff]
      %v326 = vld [vmem:[%s248 + $0x1c0] sm:$0xff]
      %v327 = vld [vmem:[%s248 + $0x1c8] sm:$0xff]
      %v328 = vld [vmem:[%s248 + $0x1d0] sm:$0xff]
      %v329 = vld [vmem:[%s248 + $0x1d8] sm:$0xff]
      %v330 = vld [vmem:[%s248 + $0x1e0] sm:$0xff]
      %v331 = vld [vmem:[%s248 + $0x1e8] sm:$0xff]
      %v332 = vld [vmem:[%s248 + $0x1f0] sm:$0xff]
      %v333 = vld [vmem:[%s248 + $0x1f8] sm:$0xff]
      %v334 = vmax.bf16 %v270, 0
      %v335 = vmax.bf16 %v271, 0
      %v336 = vmax.bf16 %v272, 0
      %v337 = vmax.bf16 %v273, 0
      %v338 = vmax.bf16 %v274, 0
      %v339 = vmax.bf16 %v275, 0
      %v340 = vmax.bf16 %v276, 0
      %v341 = vmax.bf16 %v277, 0
      %v342 = vmax.bf16 %v278, 0
      %v343 = vmax.bf16 %v279, 0
      %v344 = vmax.bf16 %v280, 0
      %v345 = vmax.bf16 %v281, 0
      %v346 = vmax.bf16 %v282, 0
      %v347 = vmax.bf16 %v283, 0
      %v348 = vmax.bf16 %v284, 0
      %v349 = vmax.bf16 %v285, 0
      %v350 = vmax.bf16 %v286, 0
      %v351 = vmax.bf16 %v287, 0
      %v352 = vmax.bf16 %v288, 0
      %v353 = vmax.bf16 %v289, 0
      %v354 = vmax.bf16 %v290, 0
      %v355 = vmax.bf16 %v291, 0
      %v356 = vmax.bf16 %v292, 0
      %v357 = vmax.bf16 %v293, 0
      %v358 = vmax.bf16 %v294, 0
      %v359 = vmax.bf16 %v295, 0
      %v360 = vmax.bf16 %v296, 0
      %v361 = vmax.bf16 %v297, 0
      %v362 = vmax.bf16 %v298, 0
      %v363 = vmax.bf16 %v299, 0
      %v364 = vmax.bf16 %v300, 0
      %v365 = vmax.bf16 %v301, 0
      %v366 = vmax.bf16 %v302, 0
      %v367 = vmax.bf16 %v303, 0
      %v368 = vmax.bf16 %v304, 0
      %v369 = vmax.bf16 %v305, 0
      %v370 = vmax.bf16 %v306, 0
      %v371 = vmax.bf16 %v307, 0
      %v372 = vmax.bf16 %v308, 0
      %v373 = vmax.bf16 %v309, 0
      %v374 = vmax.bf16 %v310, 0
      %v375 = vmax.bf16 %v311, 0
      %v376 = vmax.bf16 %v312, 0
      %v377 = vmax.bf16 %v313, 0
      %v378 = vmax.bf16 %v314, 0
      %v379 = vmax.bf16 %v315, 0
      %v380 = vmax.bf16 %v316, 0
      %v381 = vmax.bf16 %v317, 0
      %v382 = vmax.bf16 %v318, 0
      %v383 = vmax.bf16 %v319, 0
      %v384 = vmax.bf16 %v320, 0
      %v385 = vmax.bf16 %v321, 0
      %v386 = vmax.bf16 %v322, 0
      %v387 = vmax.bf16 %v323, 0
      %v388 = vmax.bf16 %v324, 0
      %v389 = vmax.bf16 %v325, 0
      %v390 = vmax.bf16 %v326, 0
      %v391 = vmax.bf16 %v327, 0
      %v392 = vmax.bf16 %v328, 0
      %v393 = vmax.bf16 %v329, 0
      %v394 = vmax.bf16 %v330, 0
      %v395 = vmax.bf16 %v331, 0
      %v396 = vmax.bf16 %v332, 0
      %v397 = vmax.bf16 %v333, 0
      %v398 = vld [vmem:[%s253] sm:$0xf]
      %v399 = vld [vmem:[%s253 + $0x4] sm:$0xf]
      %v400 = vld [vmem:[%s253 + $0x8] sm:$0xf]
      %v401 = vld [vmem:[%s253 + $0xc] sm:$0xf]
      %v402 = vld [vmem:[%s253 + $0x10] sm:$0xf]
      %v403 = vld [vmem:[%s253 + $0x14] sm:$0xf]
      %v404 = vld [vmem:[%s253 + $0x18] sm:$0xf]
      %v405 = vld [vmem:[%s253 + $0x1c] sm:$0xf]
      %v406 = vld [vmem:[%s253 + $0x20] sm:$0xf]
      %v407 = vld [vmem:[%s253 + $0x24] sm:$0xf]
      %v408 = vld [vmem:[%s253 + $0x28] sm:$0xf]
      %v409 = vld [vmem:[%s253 + $0x2c] sm:$0xf]
      %v410 = vld [vmem:[%s253 + $0x30] sm:$0xf]
      %v411 = vld [vmem:[%s253 + $0x34] sm:$0xf]
      %v412 = vld [vmem:[%s253 + $0x38] sm:$0xf]
      %v413 = vld [vmem:[%s253 + $0x3c] sm:$0xf]
      %v414 = vld [vmem:[%s253 + $0x40] sm:$0xf]
      %v415 = vld [vmem:[%s253 + $0x44] sm:$0xf]
      %v416 = vld [vmem:[%s253 + $0x48] sm:$0xf]
      %v417 = vld [vmem:[%s253 + $0x4c] sm:$0xf]
      %v418 = vld [vmem:[%s253 + $0x50] sm:$0xf]
      %v419 = vld [vmem:[%s253 + $0x54] sm:$0xf]
      %v420 = vld [vmem:[%s253 + $0x58] sm:$0xf]
      %v421 = vld [vmem:[%s253 + $0x5c] sm:$0xf]
      %v422 = vld [vmem:[%s253 + $0x60] sm:$0xf]
      %v423 = vld [vmem:[%s253 + $0x64] sm:$0xf]
      %v424 = vld [vmem:[%s253 + $0x68] sm:$0xf]
      %v425 = vld [vmem:[%s253 + $0x6c] sm:$0xf]
      %v426 = vld [vmem:[%s253 + $0x70] sm:$0xf]
      %v427 = vld [vmem:[%s253 + $0x74] sm:$0xf]
      %v428 = vld [vmem:[%s253 + $0x78] sm:$0xf]
      %v429 = vld [vmem:[%s253 + $0x7c] sm:$0xf]
      %v494 = vunpack.c.l.b16 %v334
      %v495 = vunpack.c.h.b16 %v334
      %v496 = vunpack.c.l.b16 %v335
      %v497 = vunpack.c.h.b16 %v335
      %v498 = vunpack.c.l.b16 %v336
      %v499 = vunpack.c.h.b16 %v336
      %v500 = vunpack.c.l.b16 %v337
      %v501 = vunpack.c.h.b16 %v337
      %v502 = vunpack.c.l.b16 %v338
      %v503 = vunpack.c.h.b16 %v338
      %v504 = vunpack.c.l.b16 %v339
      %v505 = vunpack.c.h.b16 %v339
      %v506 = vunpack.c.l.b16 %v340
      %v507 = vunpack.c.h.b16 %v340
      %v508 = vunpack.c.l.b16 %v341
      %v509 = vunpack.c.h.b16 %v341
      %v510 = vunpack.c.l.b16 %v342
      %v511 = vunpack.c.h.b16 %v342
      %v512 = vunpack.c.l.b16 %v343
      %v513 = vunpack.c.h.b16 %v343
      %v514 = vunpack.c.l.b16 %v344
      %v515 = vunpack.c.h.b16 %v344
      %v516 = vunpack.c.l.b16 %v345
      %v517 = vunpack.c.h.b16 %v345
      %v518 = vunpack.c.l.b16 %v346
      %v519 = vunpack.c.h.b16 %v346
      %v520 = vunpack.c.l.b16 %v347
      %v521 = vunpack.c.h.b16 %v347
      %v522 = vunpack.c.l.b16 %v348
      %v523 = vunpack.c.h.b16 %v348
      %v524 = vunpack.c.l.b16 %v349
      %v525 = vunpack.c.h.b16 %v349
      %v526 = vunpack.c.l.b16 %v350
      %v527 = vunpack.c.h.b16 %v350
      %v528 = vunpack.c.l.b16 %v351
      %v529 = vunpack.c.h.b16 %v351
      %v530 = vunpack.c.l.b16 %v352
      %v531 = vunpack.c.h.b16 %v352
      %v532 = vunpack.c.l.b16 %v353
      %v533 = vunpack.c.h.b16 %v353
      %v534 = vunpack.c.l.b16 %v354
      %v535 = vunpack.c.h.b16 %v354
      %v536 = vunpack.c.l.b16 %v355
      %v537 = vunpack.c.h.b16 %v355
      %v538 = vunpack.c.l.b16 %v356
      %v539 = vunpack.c.h.b16 %v356
      %v540 = vunpack.c.l.b16 %v357
      %v541 = vunpack.c.h.b16 %v357
      %v542 = vunpack.c.l.b16 %v358
      %v543 = vunpack.c.h.b16 %v358
      %v544 = vunpack.c.l.b16 %v359
      %v545 = vunpack.c.h.b16 %v359
      %v546 = vunpack.c.l.b16 %v360
      %v547 = vunpack.c.h.b16 %v360
      %v548 = vunpack.c.l.b16 %v361
      %v549 = vunpack.c.h.b16 %v361
      %v550 = vunpack.c.l.b16 %v362
      %v551 = vunpack.c.h.b16 %v362
      %v552 = vunpack.c.l.b16 %v363
      %v553 = vunpack.c.h.b16 %v363
      %v554 = vunpack.c.l.b16 %v364
      %v555 = vunpack.c.h.b16 %v364
      %v556 = vunpack.c.l.b16 %v365
      %v557 = vunpack.c.h.b16 %v365
      %v558 = vunpack.c.l.b16 %v366
      %v559 = vunpack.c.h.b16 %v366
      %v560 = vunpack.c.l.b16 %v367
      %v561 = vunpack.c.h.b16 %v367
      %v562 = vunpack.c.l.b16 %v368
      %v563 = vunpack.c.h.b16 %v368
      %v564 = vunpack.c.l.b16 %v369
      %v565 = vunpack.c.h.b16 %v369
      %v566 = vunpack.c.l.b16 %v370
      %v567 = vunpack.c.h.b16 %v370
      %v568 = vunpack.c.l.b16 %v371
      %v569 = vunpack.c.h.b16 %v371
      %v570 = vunpack.c.l.b16 %v372
      %v571 = vunpack.c.h.b16 %v372
      %v572 = vunpack.c.l.b16 %v373
      %v573 = vunpack.c.h.b16 %v373
      %v574 = vunpack.c.l.b16 %v374
      %v575 = vunpack.c.h.b16 %v374
      %v576 = vunpack.c.l.b16 %v375
      %v577 = vunpack.c.h.b16 %v375
      %v578 = vunpack.c.l.b16 %v376
      %v579 = vunpack.c.h.b16 %v376
      %v580 = vunpack.c.l.b16 %v377
      %v581 = vunpack.c.h.b16 %v377
      %v582 = vunpack.c.l.b16 %v378
      %v583 = vunpack.c.h.b16 %v378
      %v584 = vunpack.c.l.b16 %v379
      %v585 = vunpack.c.h.b16 %v379
      %v586 = vunpack.c.l.b16 %v380
      %v587 = vunpack.c.h.b16 %v380
      %v588 = vunpack.c.l.b16 %v381
      %v589 = vunpack.c.h.b16 %v381
      %v590 = vunpack.c.l.b16 %v382
      %v591 = vunpack.c.h.b16 %v382
      %v592 = vunpack.c.l.b16 %v383
      %v593 = vunpack.c.h.b16 %v383
      %v594 = vunpack.c.l.b16 %v384
      %v595 = vunpack.c.h.b16 %v384
      %v596 = vunpack.c.l.b16 %v385
      %v597 = vunpack.c.h.b16 %v385
      %v598 = vunpack.c.l.b16 %v386
      %v599 = vunpack.c.h.b16 %v386
      %v600 = vunpack.c.l.b16 %v387
      %v601 = vunpack.c.h.b16 %v387
      %v602 = vunpack.c.l.b16 %v388
      %v603 = vunpack.c.h.b16 %v388
      %v604 = vunpack.c.l.b16 %v389
      %v605 = vunpack.c.h.b16 %v389
      %v606 = vunpack.c.l.b16 %v390
      %v607 = vunpack.c.h.b16 %v390
      %v608 = vunpack.c.l.b16 %v391
      %v609 = vunpack.c.h.b16 %v391
      %v610 = vunpack.c.l.b16 %v392
      %v611 = vunpack.c.h.b16 %v392
      %v612 = vunpack.c.l.b16 %v393
      %v613 = vunpack.c.h.b16 %v393
      %v614 = vunpack.c.l.b16 %v394
      %v615 = vunpack.c.h.b16 %v394
      %v616 = vunpack.c.l.b16 %v395
      %v617 = vunpack.c.h.b16 %v395
      %v618 = vunpack.c.l.b16 %v396
      %v619 = vunpack.c.h.b16 %v396
      %v620 = vunpack.c.l.b16 %v397
      %v621 = vunpack.c.h.b16 %v397
      %v622 = vpack.c.b16 %v496, %v494
      %v623 = vpack.c.b16 %v497, %v495
      %v624 = vpack.c.b16 %v500, %v498
      %v625 = vpack.c.b16 %v501, %v499
      %v626 = vpack.c.b16 %v504, %v502
      %v627 = vpack.c.b16 %v505, %v503
      %v628 = vpack.c.b16 %v508, %v506
      %v629 = vpack.c.b16 %v509, %v507
      %v630 = vpack.c.b16 %v512, %v510
      %v631 = vpack.c.b16 %v513, %v511
      %v632 = vpack.c.b16 %v516, %v514
      %v633 = vpack.c.b16 %v517, %v515
      %v634 = vpack.c.b16 %v520, %v518
      %v635 = vpack.c.b16 %v521, %v519
      %v636 = vpack.c.b16 %v524, %v522
      %v637 = vpack.c.b16 %v525, %v523
      %v638 = vpack.c.b16 %v528, %v526
      %v639 = vpack.c.b16 %v529, %v527
      %v640 = vpack.c.b16 %v532, %v530
      %v641 = vpack.c.b16 %v533, %v531
      %v642 = vpack.c.b16 %v536, %v534
      %v643 = vpack.c.b16 %v537, %v535
      %v644 = vpack.c.b16 %v540, %v538
      %v645 = vpack.c.b16 %v541, %v539
      %v646 = vpack.c.b16 %v544, %v542
      %v647 = vpack.c.b16 %v545, %v543
      %v648 = vpack.c.b16 %v548, %v546
      %v649 = vpack.c.b16 %v549, %v547
      %v650 = vpack.c.b16 %v552, %v550
      %v651 = vpack.c.b16 %v553, %v551
      %v652 = vpack.c.b16 %v556, %v554
      %v653 = vpack.c.b16 %v557, %v555
      %v654 = vpack.c.b16 %v560, %v558
      %v655 = vpack.c.b16 %v561, %v559
      %v656 = vpack.c.b16 %v564, %v562
      %v657 = vpack.c.b16 %v565, %v563
      %v658 = vpack.c.b16 %v568, %v566
      %v659 = vpack.c.b16 %v569, %v567
      %v660 = vpack.c.b16 %v572, %v570
      %v661 = vpack.c.b16 %v573, %v571
      %v662 = vpack.c.b16 %v576, %v574
      %v663 = vpack.c.b16 %v577, %v575
      %v664 = vpack.c.b16 %v580, %v578
      %v665 = vpack.c.b16 %v581, %v579
      %v666 = vpack.c.b16 %v584, %v582
      %v667 = vpack.c.b16 %v585, %v583
      %v668 = vpack.c.b16 %v588, %v586
      %v669 = vpack.c.b16 %v589, %v587
      %v670 = vpack.c.b16 %v592, %v590
      %v671 = vpack.c.b16 %v593, %v591
      %v672 = vpack.c.b16 %v596, %v594
      %v673 = vpack.c.b16 %v597, %v595
      %v674 = vpack.c.b16 %v600, %v598
      %v675 = vpack.c.b16 %v601, %v599
      %v676 = vpack.c.b16 %v604, %v602
      %v677 = vpack.c.b16 %v605, %v603
      %v678 = vpack.c.b16 %v608, %v606
      %v679 = vpack.c.b16 %v609, %v607
      %v680 = vpack.c.b16 %v612, %v610
      %v681 = vpack.c.b16 %v613, %v611
      %v682 = vpack.c.b16 %v616, %v614
      %v683 = vpack.c.b16 %v617, %v615
      %v684 = vpack.c.b16 %v620, %v618
      %v685 = vpack.c.b16 %v621, %v619
      %v782 = vunpack.c.l.b16 %v398
      %v783 = vunpack.c.l.b16 %v399
      %v784 = vunpack.c.l.b16 %v400
      %v785 = vunpack.c.l.b16 %v401
      %v786 = vunpack.c.l.b16 %v402
      %v787 = vunpack.c.l.b16 %v403
      %v788 = vunpack.c.l.b16 %v404
      %v789 = vunpack.c.l.b16 %v405
      %v790 = vunpack.c.l.b16 %v406
      %v791 = vunpack.c.l.b16 %v407
      %v792 = vunpack.c.l.b16 %v408
      %v793 = vunpack.c.l.b16 %v409
      %v794 = vunpack.c.l.b16 %v410
      %v795 = vunpack.c.l.b16 %v411
      %v796 = vunpack.c.l.b16 %v412
      %v797 = vunpack.c.l.b16 %v413
      %v798 = vunpack.c.l.b16 %v414
      %v799 = vunpack.c.l.b16 %v415
      %v800 = vunpack.c.l.b16 %v416
      %v801 = vunpack.c.l.b16 %v417
      %v802 = vunpack.c.l.b16 %v418
      %v803 = vunpack.c.l.b16 %v419
      %v804 = vunpack.c.l.b16 %v420
      %v805 = vunpack.c.l.b16 %v421
      %v806 = vunpack.c.l.b16 %v422
      %v807 = vunpack.c.l.b16 %v423
      %v808 = vunpack.c.l.b16 %v424
      %v809 = vunpack.c.l.b16 %v425
      %v810 = vunpack.c.l.b16 %v426
      %v811 = vunpack.c.l.b16 %v427
      %v812 = vunpack.c.l.b16 %v428
      %v813 = vunpack.c.l.b16 %v429
      %v814 = vpack.c.b16 %v783, %v782
      %v815 = vpack.c.b16 %v785, %v784
      %v816 = vpack.c.b16 %v787, %v786
      %v817 = vpack.c.b16 %v789, %v788
      %v818 = vpack.c.b16 %v791, %v790
      %v819 = vpack.c.b16 %v793, %v792
      %v820 = vpack.c.b16 %v795, %v794
      %v821 = vpack.c.b16 %v797, %v796
      %v822 = vpack.c.b16 %v799, %v798
      %v823 = vpack.c.b16 %v801, %v800
      %v824 = vpack.c.b16 %v803, %v802
      %v825 = vpack.c.b16 %v805, %v804
      %v826 = vpack.c.b16 %v807, %v806
      %v827 = vpack.c.b16 %v809, %v808
      %v828 = vpack.c.b16 %v811, %v810
      %v829 = vpack.c.b16 %v813, %v812
      %846 = vmatprep.subr.bf16.mxu0 0
      %847 = vmatpush1.bf16.msra.mxu0 %v814
      %848 = vmatprep.subr.bf16.mxu0 0
      %849 = vmatpush1.bf16.msra.mxu0 %v815
      %850 = vmatprep.subr.bf16.mxu0 0
      %851 = vmatpush1.bf16.msra.mxu0 %v816
      %852 = vmatprep.subr.bf16.mxu0 0
      %853 = vmatpush1.bf16.msra.mxu0 %v817
      %854 = vmatprep.subr.bf16.mxu0 0
      %855 = vmatpush1.bf16.msra.mxu0 %v818
      %856 = vmatprep.subr.bf16.mxu0 0
      %857 = vmatpush1.bf16.msra.mxu0 %v819
      %858 = vmatprep.subr.bf16.mxu0 0
      %859 = vmatpush1.bf16.msra.mxu0 %v820
      %860 = vmatprep.subr.bf16.mxu0 0
      %861 = vmatpush1.bf16.msra.mxu0 %v821
      %862 = vmatprep.subr.bf16.mxu0 0
      %863 = vmatpush1.bf16.msra.mxu0 %v822
      %864 = vmatprep.subr.bf16.mxu0 0
      %865 = vmatpush1.bf16.msra.mxu0 %v823
      %866 = vmatprep.subr.bf16.mxu0 0
      %867 = vmatpush1.bf16.msra.mxu0 %v824
      %868 = vmatprep.subr.bf16.mxu0 0
      %869 = vmatpush1.bf16.msra.mxu0 %v825
      %870 = vmatprep.subr.bf16.mxu0 0
      %871 = vmatpush1.bf16.msra.mxu0 %v826
      %872 = vmatprep.subr.bf16.mxu0 0
      %873 = vmatpush1.bf16.msra.mxu0 %v827
      %874 = vmatprep.subr.bf16.mxu0 0
      %875 = vmatpush1.bf16.msra.mxu0 %v828
      %876 = vmatprep.subr.bf16.mxu0 0
      %877 = vmatpush1.bf16.msra.mxu0 %v829
      %878 = vmatprep.mubr.bf16.mxu0 %v623
      %879 = vmatmul.mubr.bf16.gmra.mrb[0].mxu0 %v622
      %v880 = vpop.f32.mrb[0].mxu0
      %v881 = vadd.f32 0.0, %v880
      %v882 = vpop.f32.mrb[0].mxu0
      %v883 = vpop.f32.mrb[0].mxu0
      %v884 = vadd.f32 0.0, %v883
      %v885 = vpop.f32.mrb[0].mxu0
      %886 = vmatprep.mubr.bf16.mxu0 %v625
      %887 = vmatmul.mubr.bf16.gmra.mrb[0].mxu0 %v624
      %v888 = vpop.f32.mrb[0].mxu0
      %v889 = vadd.f32 0.0, %v888
      %v890 = vpop.f32.mrb[0].mxu0
      %v891 = vpop.f32.mrb[0].mxu0
      %v892 = vadd.f32 0.0, %v891
      %v893 = vpop.f32.mrb[0].mxu0
      %894 = vmatprep.mubr.bf16.mxu0 %v627
      %895 = vmatmul.mubr.bf16.gmra.mrb[0].mxu0 %v626
      %v896 = vpop.f32.mrb[0].mxu0
      %v897 = vadd.f32 0.0, %v896
      %v898 = vpop.f32.mrb[0].mxu0
      %v899 = vpop.f32.mrb[0].mxu0
      %v900 = vadd.f32 0.0, %v899
      %v901 = vpop.f32.mrb[0].mxu0
      %902 = vmatprep.mubr.bf16.mxu0 %v629
      %903 = vmatmul.mubr.bf16.gmra.mrb[0].mxu0 %v628
      %v904 = vpop.f32.mrb[0].mxu0
      %v905 = vadd.f32 0.0, %v904
      %v906 = vpop.f32.mrb[0].mxu0
      %v907 = vpop.f32.mrb[0].mxu0
      %v908 = vadd.f32 0.0, %v907
      %v909 = vpop.f32.mrb[0].mxu0
      %910 = vmatprep.mubr.bf16.mxu0 %v631
      %911 = vmatmul.mubr.bf16.gmra.mrb[0].mxu0 %v630
      %v912 = vpop.f32.mrb[0].mxu0
      %v913 = vadd.f32 0.0, %v912
      %v914 = vpop.f32.mrb[0].mxu0
      %v915 = vpop.f32.mrb[0].mxu0
      %v916 = vadd.f32 0.0, %v915
      %v917 = vpop.f32.mrb[0].mxu0
      %918 = vmatprep.mubr.bf16.mxu0 %v633
      %919 = vmatmul.mubr.bf16.gmra.mrb[0].mxu0 %v632
      %v920 = vpop.f32.mrb[0].mxu0
      %v921 = vadd.f32 0.0, %v920
      %v922 = vpop.f32.mrb[0].mxu0
      %v923 = vpop.f32.mrb[0].mxu0
      %v924 = vadd.f32 0.0, %v923
      %v925 = vpop.f32.mrb[0].mxu0
      %926 = vmatprep.mubr.bf16.mxu0 %v635
      %927 = vmatmul.mubr.bf16.gmra.mrb[0].mxu0 %v634
      %v928 = vpop.f32.mrb[0].mxu0
      %v929 = vadd.f32 0.0, %v928
      %v930 = vpop.f32.mrb[0].mxu0
      %v931 = vpop.f32.mrb[0].mxu0
      %v932 = vadd.f32 0.0, %v931
      %v933 = vpop.f32.mrb[0].mxu0
      %934 = vmatprep.mubr.bf16.mxu0 %v637
      %935 = vmatmul.mubr.bf16.gmra.mrb[0].mxu0 %v636
      %v936 = vpop.f32.mrb[0].mxu0
      %v937 = vadd.f32 0.0, %v936
      %v938 = vpop.f32.mrb[0].mxu0
      %v939 = vpop.f32.mrb[0].mxu0
      %v940 = vadd.f32 0.0, %v939
      %v941 = vpop.f32.mrb[0].mxu0
      %942 = vmatprep.mubr.bf16.mxu0 %v639
      %943 = vmatmul.mubr.bf16.gmra.mrb[0].mxu0 %v638
      %v944 = vpop.f32.mrb[0].mxu0
      %v945 = vadd.f32 0.0, %v944
      %v946 = vpop.f32.mrb[0].mxu0
      %v947 = vpop.f32.mrb[0].mxu0
      %v948 = vadd.f32 0.0, %v947
      %v949 = vpop.f32.mrb[0].mxu0
      %950 = vmatprep.mubr.bf16.mxu0 %v641
      %951 = vmatmul.mubr.bf16.gmra.mrb[0].mxu0 %v640
      %v952 = vpop.f32.mrb[0].mxu0
      %v953 = vadd.f32 0.0, %v952
      %v954 = vpop.f32.mrb[0].mxu0
      %v955 = vpop.f32.mrb[0].mxu0
      %v956 = vadd.f32 0.0, %v955
      %v957 = vpop.f32.mrb[0].mxu0
      %958 = vmatprep.mubr.bf16.mxu0 %v643
      %959 = vmatmul.mubr.bf16.gmra.mrb[0].mxu0 %v642
      %v960 = vpop.f32.mrb[0].mxu0
      %v961 = vadd.f32 0.0, %v960
      %v962 = vpop.f32.mrb[0].mxu0
      %v963 = vpop.f32.mrb[0].mxu0
      %v964 = vadd.f32 0.0, %v963
      %v965 = vpop.f32.mrb[0].mxu0
      %966 = vmatprep.mubr.bf16.mxu0 %v645
      %967 = vmatmul.mubr.bf16.gmra.mrb[0].mxu0 %v644
      %v968 = vpop.f32.mrb[0].mxu0
      %v969 = vadd.f32 0.0, %v968
      %v970 = vpop.f32.mrb[0].mxu0
      %v971 = vpop.f32.mrb[0].mxu0
      %v972 = vadd.f32 0.0, %v971
      %v973 = vpop.f32.mrb[0].mxu0
      %974 = vmatprep.mubr.bf16.mxu0 %v647
      %975 = vmatmul.mubr.bf16.gmra.mrb[0].mxu0 %v646
      %v976 = vpop.f32.mrb[0].mxu0
      %v977 = vadd.f32 0.0, %v976
      %v978 = vpop.f32.mrb[0].mxu0
      %v979 = vpop.f32.mrb[0].mxu0
      %v980 = vadd.f32 0.0, %v979
      %v981 = vpop.f32.mrb[0].mxu0
      %982 = vmatprep.mubr.bf16.mxu0 %v649
      %983 = vmatmul.mubr.bf16.gmra.mrb[0].mxu0 %v648
      %v984 = vpop.f32.mrb[0].mxu0
      %v985 = vadd.f32 0.0, %v984
      %v986 = vpop.f32.mrb[0].mxu0
      %v987 = vpop.f32.mrb[0].mxu0
      %v988 = vadd.f32 0.0, %v987
      %v989 = vpop.f32.mrb[0].mxu0
      %990 = vmatprep.mubr.bf16.mxu0 %v651
      %991 = vmatmul.mubr.bf16.gmra.mrb[0].mxu0 %v650
      %v992 = vpop.f32.mrb[0].mxu0
      %v993 = vadd.f32 0.0, %v992
      %v994 = vpop.f32.mrb[0].mxu0
      %v995 = vpop.f32.mrb[0].mxu0
      %v996 = vadd.f32 0.0, %v995
      %v997 = vpop.f32.mrb[0].mxu0
      %998 = vmatprep.mubr.bf16.mxu0 %v653
      %999 = vmatmul.mubr.bf16.gmra.mrb[0].mxu0 %v652
      %v1000 = vpop.f32.mrb[0].mxu0
      %v1001 = vadd.f32 0.0, %v1000
      %v1002 = vpop.f32.mrb[0].mxu0
      %v1003 = vpop.f32.mrb[0].mxu0
      %v1004 = vadd.f32 0.0, %v1003
      %v1005 = vpop.f32.mrb[0].mxu0
      %1006 = vmatprep.mubr.bf16.mxu0 %v655
      %1007 = vmatmul.mubr.bf16.gmra.mrb[0].mxu0 %v654
      %v1008 = vpop.f32.mrb[0].mxu0
      %v1009 = vadd.f32 0.0, %v1008
      %v1010 = vpop.f32.mrb[0].mxu0
      %v1011 = vpop.f32.mrb[0].mxu0
      %v1012 = vadd.f32 0.0, %v1011
      %v1013 = vpop.f32.mrb[0].mxu0
      %1014 = vmatprep.mubr.bf16.mxu0 %v657
      %1015 = vmatmul.mubr.bf16.gmra.mrb[0].mxu0 %v656
      %v1016 = vpop.f32.mrb[0].mxu0
      %v1017 = vadd.f32 0.0, %v1016
      %v1018 = vpop.f32.mrb[0].mxu0
      %v1019 = vpop.f32.mrb[0].mxu0
      %v1020 = vadd.f32 0.0, %v1019
      %v1021 = vpop.f32.mrb[0].mxu0
      %1022 = vmatprep.mubr.bf16.mxu0 %v659
      %1023 = vmatmul.mubr.bf16.gmra.mrb[0].mxu0 %v658
      %v1024 = vpop.f32.mrb[0].mxu0
      %v1025 = vadd.f32 0.0, %v1024
      %v1026 = vpop.f32.mrb[0].mxu0
      %v1027 = vpop.f32.mrb[0].mxu0
      %v1028 = vadd.f32 0.0, %v1027
      %v1029 = vpop.f32.mrb[0].mxu0
      %1030 = vmatprep.mubr.bf16.mxu0 %v661
      %1031 = vmatmul.mubr.bf16.gmra.mrb[0].mxu0 %v660
      %v1032 = vpop.f32.mrb[0].mxu0
      %v1033 = vadd.f32 0.0, %v1032
      %v1034 = vpop.f32.mrb[0].mxu0
      %v1035 = vpop.f32.mrb[0].mxu0
      %v1036 = vadd.f32 0.0, %v1035
      %v1037 = vpop.f32.mrb[0].mxu0
      %1038 = vmatprep.mubr.bf16.mxu0 %v663
      %1039 = vmatmul.mubr.bf16.gmra.mrb[0].mxu0 %v662
      %v1040 = vpop.f32.mrb[0].mxu0
      %v1041 = vadd.f32 0.0, %v1040
      %v1042 = vpop.f32.mrb[0].mxu0
      %v1043 = vpop.f32.mrb[0].mxu0
      %v1044 = vadd.f32 0.0, %v1043
      %v1045 = vpop.f32.mrb[0].mxu0
      %1046 = vmatprep.mubr.bf16.mxu0 %v665
      %1047 = vmatmul.mubr.bf16.gmra.mrb[0].mxu0 %v664
      %v1048 = vpop.f32.mrb[0].mxu0
      %v1049 = vadd.f32 0.0, %v1048
      %v1050 = vpop.f32.mrb[0].mxu0
      %v1051 = vpop.f32.mrb[0].mxu0
      %v1052 = vadd.f32 0.0, %v1051
      %v1053 = vpop.f32.mrb[0].mxu0
      %1054 = vmatprep.mubr.bf16.mxu0 %v667
      %1055 = vmatmul.mubr.bf16.gmra.mrb[0].mxu0 %v666
      %v1056 = vpop.f32.mrb[0].mxu0
      %v1057 = vadd.f32 0.0, %v1056
      %v1058 = vpop.f32.mrb[0].mxu0
      %v1059 = vpop.f32.mrb[0].mxu0
      %v1060 = vadd.f32 0.0, %v1059
      %v1061 = vpop.f32.mrb[0].mxu0
      %1062 = vmatprep.mubr.bf16.mxu0 %v669
      %1063 = vmatmul.mubr.bf16.gmra.mrb[0].mxu0 %v668
      %v1064 = vpop.f32.mrb[0].mxu0
      %v1065 = vadd.f32 0.0, %v1064
      %v1066 = vpop.f32.mrb[0].mxu0
      %v1067 = vpop.f32.mrb[0].mxu0
      %v1068 = vadd.f32 0.0, %v1067
      %v1069 = vpop.f32.mrb[0].mxu0
      %1070 = vmatprep.mubr.bf16.mxu0 %v671
      %1071 = vmatmul.mubr.bf16.gmra.mrb[0].mxu0 %v670
      %v1072 = vpop.f32.mrb[0].mxu0
      %v1073 = vadd.f32 0.0, %v1072
      %v1074 = vpop.f32.mrb[0].mxu0
      %v1075 = vpop.f32.mrb[0].mxu0
      %v1076 = vadd.f32 0.0, %v1075
      %v1077 = vpop.f32.mrb[0].mxu0
      %1078 = vmatprep.mubr.bf16.mxu0 %v673
      %1079 = vmatmul.mubr.bf16.gmra.mrb[0].mxu0 %v672
      %v1080 = vpop.f32.mrb[0].mxu0
      %v1081 = vadd.f32 0.0, %v1080
      %v1082 = vpop.f32.mrb[0].mxu0
      %v1083 = vpop.f32.mrb[0].mxu0
      %v1084 = vadd.f32 0.0, %v1083
      %v1085 = vpop.f32.mrb[0].mxu0
      %1086 = vmatprep.mubr.bf16.mxu0 %v675
      %1087 = vmatmul.mubr.bf16.gmra.mrb[0].mxu0 %v674
      %v1088 = vpop.f32.mrb[0].mxu0
      %v1089 = vadd.f32 0.0, %v1088
      %v1090 = vpop.f32.mrb[0].mxu0
      %v1091 = vpop.f32.mrb[0].mxu0
      %v1092 = vadd.f32 0.0, %v1091
      %v1093 = vpop.f32.mrb[0].mxu0
      %1094 = vmatprep.mubr.bf16.mxu0 %v677
      %1095 = vmatmul.mubr.bf16.gmra.mrb[0].mxu0 %v676
      %v1096 = vpop.f32.mrb[0].mxu0
      %v1097 = vadd.f32 0.0, %v1096
      %v1098 = vpop.f32.mrb[0].mxu0
      %v1099 = vpop.f32.mrb[0].mxu0
      %v1100 = vadd.f32 0.0, %v1099
      %v1101 = vpop.f32.mrb[0].mxu0
      %1102 = vmatprep.mubr.bf16.mxu0 %v679
      %1103 = vmatmul.mubr.bf16.gmra.mrb[0].mxu0 %v678
      %v1104 = vpop.f32.mrb[0].mxu0
      %v1105 = vadd.f32 0.0, %v1104
      %v1106 = vpop.f32.mrb[0].mxu0
      %v1107 = vpop.f32.mrb[0].mxu0
      %v1108 = vadd.f32 0.0, %v1107
      %v1109 = vpop.f32.mrb[0].mxu0
      %1110 = vmatprep.mubr.bf16.mxu0 %v681
      %1111 = vmatmul.mubr.bf16.gmra.mrb[0].mxu0 %v680
      %v1112 = vpop.f32.mrb[0].mxu0
      %v1113 = vadd.f32 0.0, %v1112
      %v1114 = vpop.f32.mrb[0].mxu0
      %v1115 = vpop.f32.mrb[0].mxu0
      %v1116 = vadd.f32 0.0, %v1115
      %v1117 = vpop.f32.mrb[0].mxu0
      %1118 = vmatprep.mubr.bf16.mxu0 %v683
      %1119 = vmatmul.mubr.bf16.gmra.mrb[0].mxu0 %v682
      %v1120 = vpop.f32.mrb[0].mxu0
      %v1121 = vadd.f32 0.0, %v1120
      %v1122 = vpop.f32.mrb[0].mxu0
      %v1123 = vpop.f32.mrb[0].mxu0
      %v1124 = vadd.f32 0.0, %v1123
      %v1125 = vpop.f32.mrb[0].mxu0
      %1126 = vmatprep.mubr.bf16.mxu0 %v685
      %1127 = vmatmul.mubr.bf16.gmra.mrb[0].mxu0 %v684
      %v1128 = vpop.f32.mrb[0].mxu0
      %v1129 = vadd.f32 0.0, %v1128
      %v1130 = vpop.f32.mrb[0].mxu0
      %v1131 = vpop.f32.mrb[0].mxu0
      %v1132 = vadd.f32 0.0, %v1131
      %v1133 = vpop.f32.mrb[0].mxu0
      %1134 = vdwg.mxu0
      %v1135 = vld [vmem:[%s256] sm:$0x1]
      %v1137 = vlaneseq
      %v1138 = vshrl.u32 %v1137, 7
      %v1139 = vsub.s32 0, %v1138
      %v1140 = vrot.slane %v1135, %v1139
      %v1142 = vmul.f32 %v881, %v1140
      %v1143 = vmul.f32 %v884, %v1140
      %v1144 = vmul.f32 %v889, %v1140
      %v1145 = vmul.f32 %v892, %v1140
      %v1146 = vmul.f32 %v897, %v1140
      %v1147 = vmul.f32 %v900, %v1140
      %v1148 = vmul.f32 %v905, %v1140
      %v1149 = vmul.f32 %v908, %v1140
      %v1150 = vmul.f32 %v913, %v1140
      %v1151 = vmul.f32 %v916, %v1140
      %v1152 = vmul.f32 %v921, %v1140
      %v1153 = vmul.f32 %v924, %v1140
      %v1154 = vmul.f32 %v929, %v1140
      %v1155 = vmul.f32 %v932, %v1140
      %v1156 = vmul.f32 %v937, %v1140
      %v1157 = vmul.f32 %v940, %v1140
      %v1158 = vmul.f32 %v945, %v1140
      %v1159 = vmul.f32 %v948, %v1140
      %v1160 = vmul.f32 %v953, %v1140
      %v1161 = vmul.f32 %v956, %v1140
      %v1162 = vmul.f32 %v961, %v1140
      %v1163 = vmul.f32 %v964, %v1140
      %v1164 = vmul.f32 %v969, %v1140
      %v1165 = vmul.f32 %v972, %v1140
      %v1166 = vmul.f32 %v977, %v1140
      %v1167 = vmul.f32 %v980, %v1140
      %v1168 = vmul.f32 %v985, %v1140
      %v1169 = vmul.f32 %v988, %v1140
      %v1170 = vmul.f32 %v993, %v1140
      %v1171 = vmul.f32 %v996, %v1140
      %v1172 = vmul.f32 %v1001, %v1140
      %v1173 = vmul.f32 %v1004, %v1140
      %v1174 = vmul.f32 %v1009, %v1140
      %v1175 = vmul.f32 %v1012, %v1140
      %v1176 = vmul.f32 %v1017, %v1140
      %v1177 = vmul.f32 %v1020, %v1140
      %v1178 = vmul.f32 %v1025, %v1140
      %v1179 = vmul.f32 %v1028, %v1140
      %v1180 = vmul.f32 %v1033, %v1140
      %v1181 = vmul.f32 %v1036, %v1140
      %v1182 = vmul.f32 %v1041, %v1140
      %v1183 = vmul.f32 %v1044, %v1140
      %v1184 = vmul.f32 %v1049, %v1140
      %v1185 = vmul.f32 %v1052, %v1140
      %v1186 = vmul.f32 %v1057, %v1140
      %v1187 = vmul.f32 %v1060, %v1140
      %v1188 = vmul.f32 %v1065, %v1140
      %v1189 = vmul.f32 %v1068, %v1140
      %v1190 = vmul.f32 %v1073, %v1140
      %v1191 = vmul.f32 %v1076, %v1140
      %v1192 = vmul.f32 %v1081, %v1140
      %v1193 = vmul.f32 %v1084, %v1140
      %v1194 = vmul.f32 %v1089, %v1140
      %v1195 = vmul.f32 %v1092, %v1140
      %v1196 = vmul.f32 %v1097, %v1140
      %v1197 = vmul.f32 %v1100, %v1140
      %v1198 = vmul.f32 %v1105, %v1140
      %v1199 = vmul.f32 %v1108, %v1140
      %v1200 = vmul.f32 %v1113, %v1140
      %v1201 = vmul.f32 %v1116, %v1140
      %v1202 = vmul.f32 %v1121, %v1140
      %v1203 = vmul.f32 %v1124, %v1140
      %v1204 = vmul.f32 %v1129, %v1140
      %v1205 = vmul.f32 %v1132, %v1140
      %v1206 = vld [vmem:[%s259] sm:$0x1]
      %v1208 = vlaneseq
      %v1209 = vshrl.u32 %v1208, 7
      %v1210 = vsub.s32 0, %v1209
      %v1211 = vrot.slane %v1206, %v1210
      %v1213 = vadd.f32 %v1142, %v1211
      %v1214 = vadd.f32 %v1143, %v1211
      %v1215 = vadd.f32 %v1144, %v1211
      %v1216 = vadd.f32 %v1145, %v1211
      %v1217 = vadd.f32 %v1146, %v1211
      %v1218 = vadd.f32 %v1147, %v1211
      %v1219 = vadd.f32 %v1148, %v1211
      %v1220 = vadd.f32 %v1149, %v1211
      %v1221 = vadd.f32 %v1150, %v1211
      %v1222 = vadd.f32 %v1151, %v1211
      %v1223 = vadd.f32 %v1152, %v1211
      %v1224 = vadd.f32 %v1153, %v1211
      %v1225 = vadd.f32 %v1154, %v1211
      %v1226 = vadd.f32 %v1155, %v1211
      %v1227 = vadd.f32 %v1156, %v1211
      %v1228 = vadd.f32 %v1157, %v1211
      %v1229 = vadd.f32 %v1158, %v1211
      %v1230 = vadd.f32 %v1159, %v1211
      %v1231 = vadd.f32 %v1160, %v1211
      %v1232 = vadd.f32 %v1161, %v1211
      %v1233 = vadd.f32 %v1162, %v1211
      %v1234 = vadd.f32 %v1163, %v1211
      %v1235 = vadd.f32 %v1164, %v1211
      %v1236 = vadd.f32 %v1165, %v1211
      %v1237 = vadd.f32 %v1166, %v1211
      %v1238 = vadd.f32 %v1167, %v1211
      %v1239 = vadd.f32 %v1168, %v1211
      %v1240 = vadd.f32 %v1169, %v1211
      %v1241 = vadd.f32 %v1170, %v1211
      %v1242 = vadd.f32 %v1171, %v1211
      %v1243 = vadd.f32 %v1172, %v1211
      %v1244 = vadd.f32 %v1173, %v1211
      %v1245 = vadd.f32 %v1174, %v1211
      %v1246 = vadd.f32 %v1175, %v1211
      %v1247 = vadd.f32 %v1176, %v1211
      %v1248 = vadd.f32 %v1177, %v1211
      %v1249 = vadd.f32 %v1178, %v1211
      %v1250 = vadd.f32 %v1179, %v1211
      %v1251 = vadd.f32 %v1180, %v1211
      %v1252 = vadd.f32 %v1181, %v1211
      %v1253 = vadd.f32 %v1182, %v1211
      %v1254 = vadd.f32 %v1183, %v1211
      %v1255 = vadd.f32 %v1184, %v1211
      %v1256 = vadd.f32 %v1185, %v1211
      %v1257 = vadd.f32 %v1186, %v1211
      %v1258 = vadd.f32 %v1187, %v1211
      %v1259 = vadd.f32 %v1188, %v1211
      %v1260 = vadd.f32 %v1189, %v1211
      %v1261 = vadd.f32 %v1190, %v1211
      %v1262 = vadd.f32 %v1191, %v1211
      %v1263 = vadd.f32 %v1192, %v1211
      %v1264 = vadd.f32 %v1193, %v1211
      %v1265 = vadd.f32 %v1194, %v1211
      %v1266 = vadd.f32 %v1195, %v1211
      %v1267 = vadd.f32 %v1196, %v1211
      %v1268 = vadd.f32 %v1197, %v1211
      %v1269 = vadd.f32 %v1198, %v1211
      %v1270 = vadd.f32 %v1199, %v1211
      %v1271 = vadd.f32 %v1200, %v1211
      %v1272 = vadd.f32 %v1201, %v1211
      %v1273 = vadd.f32 %v1202, %v1211
      %v1274 = vadd.f32 %v1203, %v1211
      %v1275 = vadd.f32 %v1204, %v1211
      %v1276 = vadd.f32 %v1205, %v1211
      %v1277 = vpack.c.bf16 %v1214, %v1213
      %v1278 = vpack.c.bf16 %v1216, %v1215
      %v1279 = vpack.c.bf16 %v1218, %v1217
      %v1280 = vpack.c.bf16 %v1220, %v1219
      %v1281 = vpack.c.bf16 %v1222, %v1221
      %v1282 = vpack.c.bf16 %v1224, %v1223
      %v1283 = vpack.c.bf16 %v1226, %v1225
      %v1284 = vpack.c.bf16 %v1228, %v1227
      %v1285 = vpack.c.bf16 %v1230, %v1229
      %v1286 = vpack.c.bf16 %v1232, %v1231
      %v1287 = vpack.c.bf16 %v1234, %v1233
      %v1288 = vpack.c.bf16 %v1236, %v1235
      %v1289 = vpack.c.bf16 %v1238, %v1237
      %v1290 = vpack.c.bf16 %v1240, %v1239
      %v1291 = vpack.c.bf16 %v1242, %v1241
      %v1292 = vpack.c.bf16 %v1244, %v1243
      %v1293 = vpack.c.bf16 %v1246, %v1245
      %v1294 = vpack.c.bf16 %v1248, %v1247
      %v1295 = vpack.c.bf16 %v1250, %v1249
      %v1296 = vpack.c.bf16 %v1252, %v1251
      %v1297 = vpack.c.bf16 %v1254, %v1253
      %v1298 = vpack.c.bf16 %v1256, %v1255
      %v1299 = vpack.c.bf16 %v1258, %v1257
      %v1300 = vpack.c.bf16 %v1260, %v1259
      %v1301 = vpack.c.bf16 %v1262, %v1261
      %v1302 = vpack.c.bf16 %v1264, %v1263
      %v1303 = vpack.c.bf16 %v1266, %v1265
      %v1304 = vpack.c.bf16 %v1268, %v1267
      %v1305 = vpack.c.bf16 %v1270, %v1269
      %v1306 = vpack.c.bf16 %v1272, %v1271
      %v1307 = vpack.c.bf16 %v1274, %v1273
      %v1308 = vpack.c.bf16 %v1276, %v1275
      %v1341 = vunpack.c.l.b16 %v1277
      %v1342 = vunpack.c.h.b16 %v1277
      %v1343 = vunpack.c.l.b16 %v1278
      %v1344 = vunpack.c.h.b16 %v1278
      %v1345 = vunpack.c.l.b16 %v1279
      %v1346 = vunpack.c.h.b16 %v1279
      %v1347 = vunpack.c.l.b16 %v1280
      %v1348 = vunpack.c.h.b16 %v1280
      %v1349 = vunpack.c.l.b16 %v1281
      %v1350 = vunpack.c.h.b16 %v1281
      %v1351 = vunpack.c.l.b16 %v1282
      %v1352 = vunpack.c.h.b16 %v1282
      %v1353 = vunpack.c.l.b16 %v1283
      %v1354 = vunpack.c.h.b16 %v1283
      %v1355 = vunpack.c.l.b16 %v1284
      %v1356 = vunpack.c.h.b16 %v1284
      %v1357 = vunpack.c.l.b16 %v1285
      %v1358 = vunpack.c.h.b16 %v1285
      %v1359 = vunpack.c.l.b16 %v1286
      %v1360 = vunpack.c.h.b16 %v1286
      %v1361 = vunpack.c.l.b16 %v1287
      %v1362 = vunpack.c.h.b16 %v1287
      %v1363 = vunpack.c.l.b16 %v1288
      %v1364 = vunpack.c.h.b16 %v1288
      %v1365 = vunpack.c.l.b16 %v1289
      %v1366 = vunpack.c.h.b16 %v1289
      %v1367 = vunpack.c.l.b16 %v1290
      %v1368 = vunpack.c.h.b16 %v1290
      %v1369 = vunpack.c.l.b16 %v1291
      %v1370 = vunpack.c.h.b16 %v1291
      %v1371 = vunpack.c.l.b16 %v1292
      %v1372 = vunpack.c.h.b16 %v1292
      %v1373 = vunpack.c.l.b16 %v1293
      %v1374 = vunpack.c.h.b16 %v1293
      %v1375 = vunpack.c.l.b16 %v1294
      %v1376 = vunpack.c.h.b16 %v1294
      %v1377 = vunpack.c.l.b16 %v1295
      %v1378 = vunpack.c.h.b16 %v1295
      %v1379 = vunpack.c.l.b16 %v1296
      %v1380 = vunpack.c.h.b16 %v1296
      %v1381 = vunpack.c.l.b16 %v1297
      %v1382 = vunpack.c.h.b16 %v1297
      %v1383 = vunpack.c.l.b16 %v1298
      %v1384 = vunpack.c.h.b16 %v1298
      %v1385 = vunpack.c.l.b16 %v1299
      %v1386 = vunpack.c.h.b16 %v1299
      %v1387 = vunpack.c.l.b16 %v1300
      %v1388 = vunpack.c.h.b16 %v1300
      %v1389 = vunpack.c.l.b16 %v1301
      %v1390 = vunpack.c.h.b16 %v1301
      %v1391 = vunpack.c.l.b16 %v1302
      %v1392 = vunpack.c.h.b16 %v1302
      %v1393 = vunpack.c.l.b16 %v1303
      %v1394 = vunpack.c.h.b16 %v1303
      %v1395 = vunpack.c.l.b16 %v1304
      %v1396 = vunpack.c.h.b16 %v1304
      %v1397 = vunpack.c.l.b16 %v1305
      %v1398 = vunpack.c.h.b16 %v1305
      %v1399 = vunpack.c.l.b16 %v1306
      %v1400 = vunpack.c.h.b16 %v1306
      %v1401 = vunpack.c.l.b16 %v1307
      %v1402 = vunpack.c.h.b16 %v1307
      %v1403 = vunpack.c.l.b16 %v1308
      %v1404 = vunpack.c.h.b16 %v1308
      %v1405 = vpack.c.b16 %v1341, %v1341
      %v1406 = vpack.c.b16 %v1342, %v1342
      %v1407 = vpack.c.b16 %v1343, %v1343
      %v1408 = vpack.c.b16 %v1344, %v1344
      %v1409 = vpack.c.b16 %v1345, %v1345
      %v1410 = vpack.c.b16 %v1346, %v1346
      %v1411 = vpack.c.b16 %v1347, %v1347
      %v1412 = vpack.c.b16 %v1348, %v1348
      %v1413 = vpack.c.b16 %v1349, %v1349
      %v1414 = vpack.c.b16 %v1350, %v1350
      %v1415 = vpack.c.b16 %v1351, %v1351
      %v1416 = vpack.c.b16 %v1352, %v1352
      %v1417 = vpack.c.b16 %v1353, %v1353
      %v1418 = vpack.c.b16 %v1354, %v1354
      %v1419 = vpack.c.b16 %v1355, %v1355
      %v1420 = vpack.c.b16 %v1356, %v1356
      %v1421 = vpack.c.b16 %v1357, %v1357
      %v1422 = vpack.c.b16 %v1358, %v1358
      %v1423 = vpack.c.b16 %v1359, %v1359
      %v1424 = vpack.c.b16 %v1360, %v1360
      %v1425 = vpack.c.b16 %v1361, %v1361
      %v1426 = vpack.c.b16 %v1362, %v1362
      %v1427 = vpack.c.b16 %v1363, %v1363
      %v1428 = vpack.c.b16 %v1364, %v1364
      %v1429 = vpack.c.b16 %v1365, %v1365
      %v1430 = vpack.c.b16 %v1366, %v1366
      %v1431 = vpack.c.b16 %v1367, %v1367
      %v1432 = vpack.c.b16 %v1368, %v1368
      %v1433 = vpack.c.b16 %v1369, %v1369
      %v1434 = vpack.c.b16 %v1370, %v1370
      %v1435 = vpack.c.b16 %v1371, %v1371
      %v1436 = vpack.c.b16 %v1372, %v1372
      %v1437 = vpack.c.b16 %v1373, %v1373
      %v1438 = vpack.c.b16 %v1374, %v1374
      %v1439 = vpack.c.b16 %v1375, %v1375
      %v1440 = vpack.c.b16 %v1376, %v1376
      %v1441 = vpack.c.b16 %v1377, %v1377
      %v1442 = vpack.c.b16 %v1378, %v1378
      %v1443 = vpack.c.b16 %v1379, %v1379
      %v1444 = vpack.c.b16 %v1380, %v1380
      %v1445 = vpack.c.b16 %v1381, %v1381
      %v1446 = vpack.c.b16 %v1382, %v1382
      %v1447 = vpack.c.b16 %v1383, %v1383
      %v1448 = vpack.c.b16 %v1384, %v1384
      %v1449 = vpack.c.b16 %v1385, %v1385
      %v1450 = vpack.c.b16 %v1386, %v1386
      %v1451 = vpack.c.b16 %v1387, %v1387
      %v1452 = vpack.c.b16 %v1388, %v1388
      %v1453 = vpack.c.b16 %v1389, %v1389
      %v1454 = vpack.c.b16 %v1390, %v1390
      %v1455 = vpack.c.b16 %v1391, %v1391
      %v1456 = vpack.c.b16 %v1392, %v1392
      %v1457 = vpack.c.b16 %v1393, %v1393
      %v1458 = vpack.c.b16 %v1394, %v1394
      %v1459 = vpack.c.b16 %v1395, %v1395
      %v1460 = vpack.c.b16 %v1396, %v1396
      %v1461 = vpack.c.b16 %v1397, %v1397
      %v1462 = vpack.c.b16 %v1398, %v1398
      %v1463 = vpack.c.b16 %v1399, %v1399
      %v1464 = vpack.c.b16 %v1400, %v1400
      %v1465 = vpack.c.b16 %v1401, %v1401
      %v1466 = vpack.c.b16 %v1402, %v1402
      %v1467 = vpack.c.b16 %v1403, %v1403
      %v1468 = vpack.c.b16 %v1404, %v1404
      %1533 = vst [vmem:[%s267] sm:$0xf] %v1405
      %1534 = vst [vmem:[%s267 + $0x4] sm:$0xf] %v1406
      %1535 = vst [vmem:[%s267 + $0x8] sm:$0xf] %v1407
      %1536 = vst [vmem:[%s267 + $0xc] sm:$0xf] %v1408
      %1537 = vst [vmem:[%s267 + $0x10] sm:$0xf] %v1409
      %1538 = vst [vmem:[%s267 + $0x14] sm:$0xf] %v1410
      %1539 = vst [vmem:[%s267 + $0x18] sm:$0xf] %v1411
      %1540 = vst [vmem:[%s267 + $0x1c] sm:$0xf] %v1412
      %1541 = vst [vmem:[%s267 + $0x20] sm:$0xf] %v1413
      %1542 = vst [vmem:[%s267 + $0x24] sm:$0xf] %v1414
      %1543 = vst [vmem:[%s267 + $0x28] sm:$0xf] %v1415
      %1544 = vst [vmem:[%s267 + $0x2c] sm:$0xf] %v1416
      %1545 = vst [vmem:[%s267 + $0x30] sm:$0xf] %v1417
      %1546 = vst [vmem:[%s267 + $0x34] sm:$0xf] %v1418
      %1547 = vst [vmem:[%s267 + $0x38] sm:$0xf] %v1419
      %1548 = vst [vmem:[%s267 + $0x3c] sm:$0xf] %v1420
      %1549 = vst [vmem:[%s267 + $0x40] sm:$0xf] %v1421
      %1550 = vst [vmem:[%s267 + $0x44] sm:$0xf] %v1422
      %1551 = vst [vmem:[%s267 + $0x48] sm:$0xf] %v1423
      %1552 = vst [vmem:[%s267 + $0x4c] sm:$0xf] %v1424
      %1553 = vst [vmem:[%s267 + $0x50] sm:$0xf] %v1425
      %1554 = vst [vmem:[%s267 + $0x54] sm:$0xf] %v1426
      %1555 = vst [vmem:[%s267 + $0x58] sm:$0xf] %v1427
      %1556 = vst [vmem:[%s267 + $0x5c] sm:$0xf] %v1428
      %1557 = vst [vmem:[%s267 + $0x60] sm:$0xf] %v1429
      %1558 = vst [vmem:[%s267 + $0x64] sm:$0xf] %v1430
      %1559 = vst [vmem:[%s267 + $0x68] sm:$0xf] %v1431
      %1560 = vst [vmem:[%s267 + $0x6c] sm:$0xf] %v1432
      %1561 = vst [vmem:[%s267 + $0x70] sm:$0xf] %v1433
      %1562 = vst [vmem:[%s267 + $0x74] sm:$0xf] %v1434
      %1563 = vst [vmem:[%s267 + $0x78] sm:$0xf] %v1435
      %1564 = vst [vmem:[%s267 + $0x7c] sm:$0xf] %v1436
      %1565 = vst [vmem:[%s267 + $0x80] sm:$0xf] %v1437
      %1566 = vst [vmem:[%s267 + $0x84] sm:$0xf] %v1438
      %1567 = vst [vmem:[%s267 + $0x88] sm:$0xf] %v1439
      %1568 = vst [vmem:[%s267 + $0x8c] sm:$0xf] %v1440
      %1569 = vst [vmem:[%s267 + $0x90] sm:$0xf] %v1441
      %1570 = vst [vmem:[%s267 + $0x94] sm:$0xf] %v1442
      %1571 = vst [vmem:[%s267 + $0x98] sm:$0xf] %v1443
      %1572 = vst [vmem:[%s267 + $0x9c] sm:$0xf] %v1444
      %1573 = vst [vmem:[%s267 + $0xa0] sm:$0xf] %v1445
      %1574 = vst [vmem:[%s267 + $0xa4] sm:$0xf] %v1446
      %1575 = vst [vmem:[%s267 + $0xa8] sm:$0xf] %v1447
      %1576 = vst [vmem:[%s267 + $0xac] sm:$0xf] %v1448
      %1577 = vst [vmem:[%s267 + $0xb0] sm:$0xf] %v1449
      %1578 = vst [vmem:[%s267 + $0xb4] sm:$0xf] %v1450
      %1579 = vst [vmem:[%s267 + $0xb8] sm:$0xf] %v1451
      %1580 = vst [vmem:[%s267 + $0xbc] sm:$0xf] %v1452
      %1581 = vst [vmem:[%s267 + $0xc0] sm:$0xf] %v1453
      %1582 = vst [vmem:[%s267 + $0xc4] sm:$0xf] %v1454
      %1583 = vst [vmem:[%s267 + $0xc8] sm:$0xf] %v1455
      %1584 = vst [vmem:[%s267 + $0xcc] sm:$0xf] %v1456
      %1585 = vst [vmem:[%s267 + $0xd0] sm:$0xf] %v1457
      %1586 = vst [vmem:[%s267 + $0xd4] sm:$0xf] %v1458
      %1587 = vst [vmem:[%s267 + $0xd8] sm:$0xf] %v1459
      %1588 = vst [vmem:[%s267 + $0xdc] sm:$0xf] %v1460
      %1589 = vst [vmem:[%s267 + $0xe0] sm:$0xf] %v1461
      %1590 = vst [vmem:[%s267 + $0xe4] sm:$0xf] %v1462
      %1591 = vst [vmem:[%s267 + $0xe8] sm:$0xf] %v1463
      %1592 = vst [vmem:[%s267 + $0xec] sm:$0xf] %v1464
      %1593 = vst [vmem:[%s267 + $0xf0] sm:$0xf] %v1465
      %1594 = vst [vmem:[%s267 + $0xf4] sm:$0xf] %v1466
      %1595 = vst [vmem:[%s267 + $0xf8] sm:$0xf] %v1467
      %1596 = vst [vmem:[%s267 + $0xfc] sm:$0xf] %v1468
      %s1597 = smul.u32 64, %s19
      %p1598 = scmp.lt.s32.totalorder %s1597, 191
      %s1599 = scalar_select %p1598, %s1597, 191
      %p1600 = scmp.lt.s32.totalorder %s20, 0
      %s1601 = scalar_select %p1600, %s20, 0
      %s1602 = sadd.s32 %s1601, %s1599
      %s1603 = smul.addr %s1602, 4
      %s1604 = scalar_lea.vmem %s4, %s1603
      // Predicated region
      $region37: #{generator_forward.13} parent=35 // pred_check
        %p1605 = pneg %p151
      $region38: #{generator_forward.13} parent=35 // pred_check_branch
        %1607 = sbr.rel (%p1605) target = $region40
      $region39: #{generator_forward.13} parent=35 // pred_region
        %s1608 = smul.u32 64, %s19
      $region40: #{generator_forward.13} parent=35 // pred_fallthru
        _
    $region36: #{generator_forward.13} parent=5 // pred_fallthru
      _
    %p1609 = scmp.le.s32.totalorder 2, %s10
    // Predicated region
    $region41: #{generator_forward.13} parent=5 // pred_check
      %p1610 = pneg %p1609
    $region42: #{generator_forward.13} parent=5 // pred_check_branch
      %1612 = sbr.rel (%p1610) target = $region44
    $region43: #{generator_forward.13} parent=5 // pred_region
      %s1613 = ssub.s32 %s10, 2
      // Predicated region
      $region45: #{generator_forward.13} parent=43 // pred_check
        %p1614 = pneg %p157
      $region46: #{generator_forward.13} parent=43 // pred_check_branch
        %1616 = sbr.rel (%p1614) target = $region48
      $region47: #{generator_forward.13} parent=43 // pred_region
        %s1617 = smul.u32 64, %s21
        %p1618 = scmp.lt.s32.totalorder %s1617, 191
        %s1619 = scalar_select %p1618, %s1617, 191
        %p1620 = scmp.lt.s32.totalorder %s22, 0
        %s1621 = scalar_select %p1620, %s22, 0
        %s1622 = sadd.s32 %s1621, %s1619
        %s1623 = smul.addr %s1622, 4
        %s1624 = scalar_lea.vmem %s4, %s1623
      $region48: #{generator_forward.13} parent=43 // pred_fallthru
        _
    $region44: #{generator_forward.13} parent=5 // pred_fallthru
      _
  $region6: #{generator_forward.13} parent=0 // loop_footer
    %s14 = sadd.s32 1, %s10
  $region7: #{generator_forward.13} parent=0 // loop_footer_branch
    %9 = sbr.rel target = $region3
  $region8: #{generator_forward.13} parent=0 // loop_exit
    _

// kernel: generator_forward.14
$region0: #{generator_forward.14}
  #allocation0 [shape = 'u32[]', space=smem, size = 0x4, offset = 0x4, fixed_abs, tag = 'smem constant byte address 0x4 - core index']
  #allocation1 [shape = 'u32[144,128]{1,0:T(1,128)}', space=vmem, size = 0x12000, scoped, tag = 'internal scratch']
  %s0 = inlined_call_operand.vmem [shape: bf16[4608,128], index: 0, kind: input, shape index: {}]
  %s1 = inlined_call_operand.vmem [shape: bf16[128,128], index: 1, kind: input, shape index: {}]
  %s2 = inlined_call_operand.vmem [shape: f32[1,128], index: 2, kind: input, shape index: {}]
  %s3 = inlined_call_operand.vmem [shape: f32[1,128], index: 3, kind: input, shape index: {}]
  %s4 = inlined_call_operand.vmem [shape: bf16[4608,128], index: 4, kind: output, shape index: {}]
  %s5 = sld [smem:[#allocation0]]
  $region49: #{generator_forward.14} parent=0
    _
  %s7 = ssub.s32 1, %s5
  %s8 = scalar_select 0, %s7, %s5
  loop: start=0, step=1, limit=11
  $region2: #{generator_forward.14} parent=0 // loop_pre_header
    _
  $region3: #{generator_forward.14} parent=0 // loop_header
    %s10 = sphi 0, %s14
    %p11 = scmp.ge.s32.totalorder %s10, 11
    %s17 = sphi 0, %s29
    %s18 = sphi 0, %s25
    %s19 = sphi 0, %s17
    %s20 = sphi 0, %s18
    %s21 = sphi 0, %s19
    %s22 = sphi 0, %s20
    %s32 = sphi 0, %s34
    %s35 = sphi 0, %s32
    %s36 = sphi 0, %s35
    %s52 = sphi 0, %s36
    %s58 = sphi 0, %s60
    %s61 = sphi 0, %s58
    %s62 = sphi 0, %s61
    %s78 = sphi 0, %s62
    %s84 = sphi 0, %s86
    %s87 = sphi 0, %s84
    %s88 = sphi 0, %s87
    %s104 = sphi 0, %s88
    %s110 = sphi 0, %s112
    %s113 = sphi 0, %s110
    %s114 = sphi 0, %s113
    %s130 = sphi 0, %s114
    %s138 = sphi 0, %s140
    %s141 = sphi 0, %s138
    %s142 = sphi 0, %s141
    %s158 = sphi 0, %s142
  $region4: #{generator_forward.14} parent=0 // loop_header_branch
    %13 = sbr.rel (%p11) target = $region8
  $region5: #{generator_forward.14} parent=0 // loop_body
    %s15 = ssub.s32 %s10, 1
    %s16 = ssub.s32 %s10, 2
    %s23 = sadd.s32 1, %s18
    %p24 = scmp.ge.s32.totalorder %s23, 1
    %s25 = scalar_select %p24, 0, %s23
    %s26 = sadd.s32 1, %s17
    %s27 = scalar_select %p24, %s26, %s17
    %p28 = scmp.ge.s32.totalorder %s27, 9
    %s29 = scalar_select %p28, 0, %s27
    %s30 = ssub.s32 %s17, %s29
    %p31 = scmp.eq.s32.totalorder %s30, 0
    %s33 = sadd.s32 %s32, 1
    %s34 = scalar_select %p31, %s32, %s33
    %p37 = pneg %p31
    %p38 = scmp.eq.s32.totalorder %s10, 8
    %p39 = por %p37, %p38
    %p40 = scmp.ne.s32.totalorder %s32, %s35
    %p41 = scmp.eq.s32.totalorder %s10, 0
    %p42 = por %p40, %p41
    %p43 = scmp.ne.s32.totalorder %s32, %s35
    %p44 = scmp.eq.s32.totalorder %s15, 8
    %p45 = por %p43, %p44
    %p46 = scmp.ne.s32.totalorder %s35, %s36
    %p47 = scmp.eq.s32.totalorder %s15, 0
    %p48 = por %p46, %p47
    %p49 = scmp.ne.s32.totalorder %s35, %s36
    %p50 = scmp.eq.s32.totalorder %s16, 8
    %p51 = por %p49, %p50
    %p53 = scmp.ne.s32.totalorder %s36, %s52
    %p54 = scmp.eq.s32.totalorder %s16, 0
    %p55 = por %p53, %p54
    %s56 = ssub.s32 %s18, %s25
    %p57 = scmp.eq.s32.totalorder %s56, 0
    %s59 = sadd.s32 %s58, 1
    %s60 = scalar_select %p57, %s58, %s59
    %p63 = pneg %p57
    %p64 = scmp.eq.s32.totalorder %s10, 8
    %p65 = por %p63, %p64
    %p66 = scmp.ne.s32.totalorder %s58, %s61
    %p67 = scmp.eq.s32.totalorder %s10, 0
    %p68 = por %p66, %p67
    %p69 = scmp.ne.s32.totalorder %s58, %s61
    %p70 = scmp.eq.s32.totalorder %s15, 8
    %p71 = por %p69, %p70
    %p72 = scmp.ne.s32.totalorder %s61, %s62
    %p73 = scmp.eq.s32.totalorder %s15, 0
    %p74 = por %p72, %p73
    %p75 = scmp.ne.s32.totalorder %s61, %s62
    %p76 = scmp.eq.s32.totalorder %s16, 8
    %p77 = por %p75, %p76
    %p79 = scmp.ne.s32.totalorder %s62, %s78
    %p80 = scmp.eq.s32.totalorder %s16, 0
    %p81 = por %p79, %p80
    %s82 = ssub.s32 %s18, %s25
    %p83 = scmp.eq.s32.totalorder %s82, 0
    %s85 = sadd.s32 %s84, 1
    %s86 = scalar_select %p83, %s84, %s85
    %p89 = pneg %p83
    %p90 = scmp.eq.s32.totalorder %s10, 8
    %p91 = por %p89, %p90
    %p92 = scmp.ne.s32.totalorder %s84, %s87
    %p93 = scmp.eq.s32.totalorder %s10, 0
    %p94 = por %p92, %p93
    %p95 = scmp.ne.s32.totalorder %s84, %s87
    %p96 = scmp.eq.s32.totalorder %s15, 8
    %p97 = por %p95, %p96
    %p98 = scmp.ne.s32.totalorder %s87, %s88
    %p99 = scmp.eq.s32.totalorder %s15, 0
    %p100 = por %p98, %p99
    %p101 = scmp.ne.s32.totalorder %s87, %s88
    %p102 = scmp.eq.s32.totalorder %s16, 8
    %p103 = por %p101, %p102
    %p105 = scmp.ne.s32.totalorder %s88, %s104
    %p106 = scmp.eq.s32.totalorder %s16, 0
    %p107 = por %p105, %p106
    %s108 = ssub.s32 %s18, %s25
    %p109 = scmp.eq.s32.totalorder %s108, 0
    %s111 = sadd.s32 %s110, 1
    %s112 = scalar_select %p109, %s110, %s111
    %p115 = pneg %p109
    %p116 = scmp.eq.s32.totalorder %s10, 8
    %p117 = por %p115, %p116
    %p118 = scmp.ne.s32.totalorder %s110, %s113
    %p119 = scmp.eq.s32.totalorder %s10, 0
    %p120 = por %p118, %p119
    %p121 = scmp.ne.s32.totalorder %s110, %s113
    %p122 = scmp.eq.s32.totalorder %s15, 8
    %p123 = por %p121, %p122
    %p124 = scmp.ne.s32.totalorder %s113, %s114
    %p125 = scmp.eq.s32.totalorder %s15, 0
    %p126 = por %p124, %p125
    %p127 = scmp.ne.s32.totalorder %s113, %s114
    %p128 = scmp.eq.s32.totalorder %s16, 8
    %p129 = por %p127, %p128
    %p131 = scmp.ne.s32.totalorder %s114, %s130
    %p132 = scmp.eq.s32.totalorder %s16, 0
    %p133 = por %p131, %p132
    %s134 = ssub.s32 %s17, %s29
    %s135 = ssub.s32 %s18, %s25
    %s136 = sor.u32 %s134, %s135
    %p137 = scmp.eq.s32.totalorder %s136, 0
    %s139 = sadd.s32 %s138, 1
    %s140 = scalar_select %p137, %s138, %s139
    %p143 = pneg %p137
    %p144 = scmp.eq.s32.totalorder %s10, 8
    %p145 = por %p143, %p144
    %p146 = scmp.ne.s32.totalorder %s138, %s141
    %p147 = scmp.eq.s32.totalorder %s10, 0
    %p148 = por %p146, %p147
    %p149 = scmp.ne.s32.totalorder %s138, %s141
    %p150 = scmp.eq.s32.totalorder %s15, 8
    %p151 = por %p149, %p150
    %p152 = scmp.ne.s32.totalorder %s141, %s142
    %p153 = scmp.eq.s32.totalorder %s15, 0
    %p154 = por %p152, %p153
    %p155 = scmp.ne.s32.totalorder %s141, %s142
    %p156 = scmp.eq.s32.totalorder %s16, 8
    %p157 = por %p155, %p156
    %p159 = scmp.ne.s32.totalorder %s142, %s158
    %p160 = scmp.eq.s32.totalorder %s16, 0
    %p161 = por %p159, %p160
    %p162 = scmp.le.s32.totalorder 1, %s10
    %p163 = scmp.lt.s32.totalorder %s10, 10
    %p164 = pnand %p162, %p163
    %p165 = pneg %p164
    // Predicated region
    $region9: #{generator_forward.14} parent=5 // pred_check
      _
    $region10: #{generator_forward.14} parent=5 // pred_check_branch
      %167 = sbr.rel (%p164) target = $region12
    $region11: #{generator_forward.14} parent=5 // pred_region
      %s168 = ssub.s32 %s10, 1
      // Predicated region
      $region13: #{generator_forward.14} parent=11 // pred_check
        %p169 = pneg %p74
      $region14: #{generator_forward.14} parent=11 // pred_check_branch
        %171 = sbr.rel (%p169) target = $region16
      $region15: #{generator_forward.14} parent=11 // pred_region
        %p172 = scmp.lt.s32.totalorder %s20, 0
        %s173 = scalar_select %p172, %s20, 0
        %s174 = smul.addr %s173, 4
        %s175 = scalar_lea.vmem %s1, %s174
      $region16: #{generator_forward.14} parent=11 // pred_fallthru
        _
      // Predicated region
      $region17: #{generator_forward.14} parent=11 // pred_check
        %p176 = pneg %p100
      $region18: #{generator_forward.14} parent=11 // pred_check_branch
        %178 = sbr.rel (%p176) target = $region20
      $region19: #{generator_forward.14} parent=11 // pred_region
        %p179 = scmp.lt.s32.totalorder %s20, 0
        %s180 = scalar_select %p179, %s20, 0
        %s181 = scalar_lea.vmem %s2, %s180
      $region20: #{generator_forward.14} parent=11 // pred_fallthru
        _
      // Predicated region
      $region21: #{generator_forward.14} parent=11 // pred_check
        %p182 = pneg %p126
      $region22: #{generator_forward.14} parent=11 // pred_check_branch
        %184 = sbr.rel (%p182) target = $region24
      $region23: #{generator_forward.14} parent=11 // pred_region
        %p185 = scmp.lt.s32.totalorder %s20, 0
        %s186 = scalar_select %p185, %s20, 0
        %s187 = scalar_lea.vmem %s3, %s186
      $region24: #{generator_forward.14} parent=11 // pred_fallthru
        _
    $region12: #{generator_forward.14} parent=5 // pred_fallthru
      _
    %p188 = scmp.lt.s32.totalorder %s10, 9
    // Predicated region
    $region25: #{generator_forward.14} parent=5 // pred_check
      %p189 = pneg %p188
    $region26: #{generator_forward.14} parent=5 // pred_check_branch
      %191 = sbr.rel (%p189) target = $region28
    $region27: #{generator_forward.14} parent=5 // pred_region
      // Predicated region
      $region29: #{generator_forward.14} parent=27 // pred_check
        %p192 = pneg %p42
      $region30: #{generator_forward.14} parent=27 // pred_check_branch
        %194 = sbr.rel (%p192) target = $region32
      $region31: #{generator_forward.14} parent=27 // pred_region
        %s195 = smul.u32 64, %s17
        %p196 = scmp.lt.s32.totalorder %s195, 575
        %s197 = scalar_select %p196, %s195, 575
        %s198 = smul.addr %s197, 4
        %s199 = scalar_lea.vmem %s0, %s198
        %s200 = smul.u32 64, %s17
      $region32: #{generator_forward.14} parent=27 // pred_fallthru
        _
    $region28: #{generator_forward.14} parent=5 // pred_fallthru
      _
    %p201 = scmp.le.s32.totalorder 1, %s10
    %p202 = scmp.lt.s32.totalorder %s10, 10
    %p203 = pnand %p201, %p202
    %p204 = pneg %p203
    // Predicated region
    $region33: #{generator_forward.14} parent=5 // pred_check
      _
    $region34: #{generator_forward.14} parent=5 // pred_check_branch
      %206 = sbr.rel (%p203) target = $region36
    $region35: #{generator_forward.14} parent=5 // pred_region
      %s207 = ssub.s32 %s10, 1
      %s208 = smul.u32 64, %s19
      %p209 = scmp.lt.s32.totalorder %s208, 575
      %s210 = scalar_select %p209, %s208, 575
      %s211 = smul.addr %s210, 4
      %s212 = scalar_lea.vmem %s0, %s211
      %p213 = pneg %p48
      %p214 = pneg %p45
      %p215 = scmp.lt.s32.totalorder %s20, 0
      %s216 = scalar_select %p215, %s20, 0
      %s217 = smul.addr %s216, 4
      %s218 = scalar_lea.vmem %s1, %s217
      %p219 = pneg %p74
      %p220 = pneg %p71
      %p221 = scmp.lt.s32.totalorder %s20, 0
      %s222 = scalar_select %p221, %s20, 0
      %s223 = scalar_lea.vmem %s2, %s222
      %p224 = pneg %p100
      %p225 = pneg %p97
      %p226 = scmp.lt.s32.totalorder %s20, 0
      %s227 = scalar_select %p226, %s20, 0
      %s228 = scalar_lea.vmem %s3, %s227
      %p229 = pneg %p126
      %p230 = pneg %p123
      %p231 = pneg %p154
      %p232 = pneg %p151
      %s233 = smul.u32 64, %s19
      %p234 = scmp.lt.s32.totalorder %s233, 575
      %s235 = scalar_select %p234, %s233, 575
      %p236 = scmp.lt.s32.totalorder %s20, 0
      %s237 = scalar_select %p236, %s20, 0
      %s238 = sadd.s32 %s237, %s235
      %s239 = smul.addr %s238, 4
      %s240 = scalar_lea.vmem %s4, %s239
      %s241 = smul.u32 64, %s19
      %p242 = scmp.lt.s32.totalorder %s241, 575
      %s243 = scalar_select %p242, %s241, 575
      %s244 = smul.addr %s243, 4
      %s245 = scalar_lea.vmem %s0, %s244
      %s246 = smul.u32 64, %s19
      %p247 = scmp.lt.s32.totalorder %s20, 0
      %s248 = scalar_select %p247, %s20, 0
      %s249 = smul.addr %s248, 4
      %s250 = scalar_lea.vmem %s1, %s249
      %p251 = scmp.lt.s32.totalorder %s20, 0
      %s252 = scalar_select %p251, %s20, 0
      %s253 = scalar_lea.vmem %s2, %s252
      %p254 = scmp.lt.s32.totalorder %s20, 0
      %s255 = scalar_select %p254, %s20, 0
      %s256 = scalar_lea.vmem %s3, %s255
      %s257 = smul.u32 64, %s19
      %p258 = scmp.lt.s32.totalorder %s257, 575
      %s259 = scalar_select %p258, %s257, 575
      %p260 = scmp.lt.s32.totalorder %s20, 0
      %s261 = scalar_select %p260, %s20, 0
      %s262 = sadd.s32 %s261, %s259
      %s263 = smul.addr %s262, 4
      %s264 = scalar_lea.vmem %s4, %s263
      %s265 = smul.u32 64, %s19
      %v267 = vld [vmem:[%s245] sm:$0xf]
      %v268 = vld [vmem:[%s245 + $0x4] sm:$0xf]
      %v269 = vld [vmem:[%s245 + $0x8] sm:$0xf]
      %v270 = vld [vmem:[%s245 + $0xc] sm:$0xf]
      %v271 = vld [vmem:[%s245 + $0x10] sm:$0xf]
      %v272 = vld [vmem:[%s245 + $0x14] sm:$0xf]
      %v273 = vld [vmem:[%s245 + $0x18] sm:$0xf]
      %v274 = vld [vmem:[%s245 + $0x1c] sm:$0xf]
      %v275 = vld [vmem:[%s245 + $0x20] sm:$0xf]
      %v276 = vld [vmem:[%s245 + $0x24] sm:$0xf]
      %v277 = vld [vmem:[%s245 + $0x28] sm:$0xf]
      %v278 = vld [vmem:[%s245 + $0x2c] sm:$0xf]
      %v279 = vld [vmem:[%s245 + $0x30] sm:$0xf]
      %v280 = vld [vmem:[%s245 + $0x34] sm:$0xf]
      %v281 = vld [vmem:[%s245 + $0x38] sm:$0xf]
      %v282 = vld [vmem:[%s245 + $0x3c] sm:$0xf]
      %v283 = vld [vmem:[%s245 + $0x40] sm:$0xf]
      %v284 = vld [vmem:[%s245 + $0x44] sm:$0xf]
      %v285 = vld [vmem:[%s245 + $0x48] sm:$0xf]
      %v286 = vld [vmem:[%s245 + $0x4c] sm:$0xf]
      %v287 = vld [vmem:[%s245 + $0x50] sm:$0xf]
      %v288 = vld [vmem:[%s245 + $0x54] sm:$0xf]
      %v289 = vld [vmem:[%s245 + $0x58] sm:$0xf]
      %v290 = vld [vmem:[%s245 + $0x5c] sm:$0xf]
      %v291 = vld [vmem:[%s245 + $0x60] sm:$0xf]
      %v292 = vld [vmem:[%s245 + $0x64] sm:$0xf]
      %v293 = vld [vmem:[%s245 + $0x68] sm:$0xf]
      %v294 = vld [vmem:[%s245 + $0x6c] sm:$0xf]
      %v295 = vld [vmem:[%s245 + $0x70] sm:$0xf]
      %v296 = vld [vmem:[%s245 + $0x74] sm:$0xf]
      %v297 = vld [vmem:[%s245 + $0x78] sm:$0xf]
      %v298 = vld [vmem:[%s245 + $0x7c] sm:$0xf]
      %v299 = vld [vmem:[%s245 + $0x80] sm:$0xf]
      %v300 = vld [vmem:[%s245 + $0x84] sm:$0xf]
      %v301 = vld [vmem:[%s245 + $0x88] sm:$0xf]
      %v302 = vld [vmem:[%s245 + $0x8c] sm:$0xf]
      %v303 = vld [vmem:[%s245 + $0x90] sm:$0xf]
      %v304 = vld [vmem:[%s245 + $0x94] sm:$0xf]
      %v305 = vld [vmem:[%s245 + $0x98] sm:$0xf]
      %v306 = vld [vmem:[%s245 + $0x9c] sm:$0xf]
      %v307 = vld [vmem:[%s245 + $0xa0] sm:$0xf]
      %v308 = vld [vmem:[%s245 + $0xa4] sm:$0xf]
      %v309 = vld [vmem:[%s245 + $0xa8] sm:$0xf]
      %v310 = vld [vmem:[%s245 + $0xac] sm:$0xf]
      %v311 = vld [vmem:[%s245 + $0xb0] sm:$0xf]
      %v312 = vld [vmem:[%s245 + $0xb4] sm:$0xf]
      %v313 = vld [vmem:[%s245 + $0xb8] sm:$0xf]
      %v314 = vld [vmem:[%s245 + $0xbc] sm:$0xf]
      %v315 = vld [vmem:[%s245 + $0xc0] sm:$0xf]
      %v316 = vld [vmem:[%s245 + $0xc4] sm:$0xf]
      %v317 = vld [vmem:[%s245 + $0xc8] sm:$0xf]
      %v318 = vld [vmem:[%s245 + $0xcc] sm:$0xf]
      %v319 = vld [vmem:[%s245 + $0xd0] sm:$0xf]
      %v320 = vld [vmem:[%s245 + $0xd4] sm:$0xf]
      %v321 = vld [vmem:[%s245 + $0xd8] sm:$0xf]
      %v322 = vld [vmem:[%s245 + $0xdc] sm:$0xf]
      %v323 = vld [vmem:[%s245 + $0xe0] sm:$0xf]
      %v324 = vld [vmem:[%s245 + $0xe4] sm:$0xf]
      %v325 = vld [vmem:[%s245 + $0xe8] sm:$0xf]
      %v326 = vld [vmem:[%s245 + $0xec] sm:$0xf]
      %v327 = vld [vmem:[%s245 + $0xf0] sm:$0xf]
      %v328 = vld [vmem:[%s245 + $0xf4] sm:$0xf]
      %v329 = vld [vmem:[%s245 + $0xf8] sm:$0xf]
      %v330 = vld [vmem:[%s245 + $0xfc] sm:$0xf]
      %v331 = vmax.bf16 %v267, 0
      %v332 = vmax.bf16 %v268, 0
      %v333 = vmax.bf16 %v269, 0
      %v334 = vmax.bf16 %v270, 0
      %v335 = vmax.bf16 %v271, 0
      %v336 = vmax.bf16 %v272, 0
      %v337 = vmax.bf16 %v273, 0
      %v338 = vmax.bf16 %v274, 0
      %v339 = vmax.bf16 %v275, 0
      %v340 = vmax.bf16 %v276, 0
      %v341 = vmax.bf16 %v277, 0
      %v342 = vmax.bf16 %v278, 0
      %v343 = vmax.bf16 %v279, 0
      %v344 = vmax.bf16 %v280, 0
      %v345 = vmax.bf16 %v281, 0
      %v346 = vmax.bf16 %v282, 0
      %v347 = vmax.bf16 %v283, 0
      %v348 = vmax.bf16 %v284, 0
      %v349 = vmax.bf16 %v285, 0
      %v350 = vmax.bf16 %v286, 0
      %v351 = vmax.bf16 %v287, 0
      %v352 = vmax.bf16 %v288, 0
      %v353 = vmax.bf16 %v289, 0
      %v354 = vmax.bf16 %v290, 0
      %v355 = vmax.bf16 %v291, 0
      %v356 = vmax.bf16 %v292, 0
      %v357 = vmax.bf16 %v293, 0
      %v358 = vmax.bf16 %v294, 0
      %v359 = vmax.bf16 %v295, 0
      %v360 = vmax.bf16 %v296, 0
      %v361 = vmax.bf16 %v297, 0
      %v362 = vmax.bf16 %v298, 0
      %v363 = vmax.bf16 %v299, 0
      %v364 = vmax.bf16 %v300, 0
      %v365 = vmax.bf16 %v301, 0
      %v366 = vmax.bf16 %v302, 0
      %v367 = vmax.bf16 %v303, 0
      %v368 = vmax.bf16 %v304, 0
      %v369 = vmax.bf16 %v305, 0
      %v370 = vmax.bf16 %v306, 0
      %v371 = vmax.bf16 %v307, 0
      %v372 = vmax.bf16 %v308, 0
      %v373 = vmax.bf16 %v309, 0
      %v374 = vmax.bf16 %v310, 0
      %v375 = vmax.bf16 %v311, 0
      %v376 = vmax.bf16 %v312, 0
      %v377 = vmax.bf16 %v313, 0
      %v378 = vmax.bf16 %v314, 0
      %v379 = vmax.bf16 %v315, 0
      %v380 = vmax.bf16 %v316, 0
      %v381 = vmax.bf16 %v317, 0
      %v382 = vmax.bf16 %v318, 0
      %v383 = vmax.bf16 %v319, 0
      %v384 = vmax.bf16 %v320, 0
      %v385 = vmax.bf16 %v321, 0
      %v386 = vmax.bf16 %v322, 0
      %v387 = vmax.bf16 %v323, 0
      %v388 = vmax.bf16 %v324, 0
      %v389 = vmax.bf16 %v325, 0
      %v390 = vmax.bf16 %v326, 0
      %v391 = vmax.bf16 %v327, 0
      %v392 = vmax.bf16 %v328, 0
      %v393 = vmax.bf16 %v329, 0
      %v394 = vmax.bf16 %v330, 0
      %v395 = vld [vmem:[%s250] sm:$0xf]
      %v396 = vld [vmem:[%s250 + $0x4] sm:$0xf]
      %v397 = vld [vmem:[%s250 + $0x8] sm:$0xf]
      %v398 = vld [vmem:[%s250 + $0xc] sm:$0xf]
      %v399 = vld [vmem:[%s250 + $0x10] sm:$0xf]
      %v400 = vld [vmem:[%s250 + $0x14] sm:$0xf]
      %v401 = vld [vmem:[%s250 + $0x18] sm:$0xf]
      %v402 = vld [vmem:[%s250 + $0x1c] sm:$0xf]
      %v403 = vld [vmem:[%s250 + $0x20] sm:$0xf]
      %v404 = vld [vmem:[%s250 + $0x24] sm:$0xf]
      %v405 = vld [vmem:[%s250 + $0x28] sm:$0xf]
      %v406 = vld [vmem:[%s250 + $0x2c] sm:$0xf]
      %v407 = vld [vmem:[%s250 + $0x30] sm:$0xf]
      %v408 = vld [vmem:[%s250 + $0x34] sm:$0xf]
      %v409 = vld [vmem:[%s250 + $0x38] sm:$0xf]
      %v410 = vld [vmem:[%s250 + $0x3c] sm:$0xf]
      %v475 = vunpack.c.l.b16 %v331
      %v476 = vunpack.c.l.b16 %v332
      %v477 = vunpack.c.l.b16 %v333
      %v478 = vunpack.c.l.b16 %v334
      %v479 = vunpack.c.l.b16 %v335
      %v480 = vunpack.c.l.b16 %v336
      %v481 = vunpack.c.l.b16 %v337
      %v482 = vunpack.c.l.b16 %v338
      %v483 = vunpack.c.l.b16 %v339
      %v484 = vunpack.c.l.b16 %v340
      %v485 = vunpack.c.l.b16 %v341
      %v486 = vunpack.c.l.b16 %v342
      %v487 = vunpack.c.l.b16 %v343
      %v488 = vunpack.c.l.b16 %v344
      %v489 = vunpack.c.l.b16 %v345
      %v490 = vunpack.c.l.b16 %v346
      %v491 = vunpack.c.l.b16 %v347
      %v492 = vunpack.c.l.b16 %v348
      %v493 = vunpack.c.l.b16 %v349
      %v494 = vunpack.c.l.b16 %v350
      %v495 = vunpack.c.l.b16 %v351
      %v496 = vunpack.c.l.b16 %v352
      %v497 = vunpack.c.l.b16 %v353
      %v498 = vunpack.c.l.b16 %v354
      %v499 = vunpack.c.l.b16 %v355
      %v500 = vunpack.c.l.b16 %v356
      %v501 = vunpack.c.l.b16 %v357
      %v502 = vunpack.c.l.b16 %v358
      %v503 = vunpack.c.l.b16 %v359
      %v504 = vunpack.c.l.b16 %v360
      %v505 = vunpack.c.l.b16 %v361
      %v506 = vunpack.c.l.b16 %v362
      %v507 = vunpack.c.l.b16 %v363
      %v508 = vunpack.c.l.b16 %v364
      %v509 = vunpack.c.l.b16 %v365
      %v510 = vunpack.c.l.b16 %v366
      %v511 = vunpack.c.l.b16 %v367
      %v512 = vunpack.c.l.b16 %v368
      %v513 = vunpack.c.l.b16 %v369
      %v514 = vunpack.c.l.b16 %v370
      %v515 = vunpack.c.l.b16 %v371
      %v516 = vunpack.c.l.b16 %v372
      %v517 = vunpack.c.l.b16 %v373
      %v518 = vunpack.c.l.b16 %v374
      %v519 = vunpack.c.l.b16 %v375
      %v520 = vunpack.c.l.b16 %v376
      %v521 = vunpack.c.l.b16 %v377
      %v522 = vunpack.c.l.b16 %v378
      %v523 = vunpack.c.l.b16 %v379
      %v524 = vunpack.c.l.b16 %v380
      %v525 = vunpack.c.l.b16 %v381
      %v526 = vunpack.c.l.b16 %v382
      %v527 = vunpack.c.l.b16 %v383
      %v528 = vunpack.c.l.b16 %v384
      %v529 = vunpack.c.l.b16 %v385
      %v530 = vunpack.c.l.b16 %v386
      %v531 = vunpack.c.l.b16 %v387
      %v532 = vunpack.c.l.b16 %v388
      %v533 = vunpack.c.l.b16 %v389
      %v534 = vunpack.c.l.b16 %v390
      %v535 = vunpack.c.l.b16 %v391
      %v536 = vunpack.c.l.b16 %v392
      %v537 = vunpack.c.l.b16 %v393
      %v538 = vunpack.c.l.b16 %v394
      %v539 = vpack.c.b16 %v476, %v475
      %v540 = vpack.c.b16 %v478, %v477
      %v541 = vpack.c.b16 %v480, %v479
      %v542 = vpack.c.b16 %v482, %v481
      %v543 = vpack.c.b16 %v484, %v483
      %v544 = vpack.c.b16 %v486, %v485
      %v545 = vpack.c.b16 %v488, %v487
      %v546 = vpack.c.b16 %v490, %v489
      %v547 = vpack.c.b16 %v492, %v491
      %v548 = vpack.c.b16 %v494, %v493
      %v549 = vpack.c.b16 %v496, %v495
      %v550 = vpack.c.b16 %v498, %v497
      %v551 = vpack.c.b16 %v500, %v499
      %v552 = vpack.c.b16 %v502, %v501
      %v553 = vpack.c.b16 %v504, %v503
      %v554 = vpack.c.b16 %v506, %v505
      %v555 = vpack.c.b16 %v508, %v507
      %v556 = vpack.c.b16 %v510, %v509
      %v557 = vpack.c.b16 %v512, %v511
      %v558 = vpack.c.b16 %v514, %v513
      %v559 = vpack.c.b16 %v516, %v515
      %v560 = vpack.c.b16 %v518, %v517
      %v561 = vpack.c.b16 %v520, %v519
      %v562 = vpack.c.b16 %v522, %v521
      %v563 = vpack.c.b16 %v524, %v523
      %v564 = vpack.c.b16 %v526, %v525
      %v565 = vpack.c.b16 %v528, %v527
      %v566 = vpack.c.b16 %v530, %v529
      %v567 = vpack.c.b16 %v532, %v531
      %v568 = vpack.c.b16 %v534, %v533
      %v569 = vpack.c.b16 %v536, %v535
      %v570 = vpack.c.b16 %v538, %v537
      %v619 = vunpack.c.l.b16 %v395
      %v620 = vunpack.c.l.b16 %v396
      %v621 = vunpack.c.l.b16 %v397
      %v622 = vunpack.c.l.b16 %v398
      %v623 = vunpack.c.l.b16 %v399
      %v624 = vunpack.c.l.b16 %v400
      %v625 = vunpack.c.l.b16 %v401
      %v626 = vunpack.c.l.b16 %v402
      %v627 = vunpack.c.l.b16 %v403
      %v628 = vunpack.c.l.b16 %v404
      %v629 = vunpack.c.l.b16 %v405
      %v630 = vunpack.c.l.b16 %v406
      %v631 = vunpack.c.l.b16 %v407
      %v632 = vunpack.c.l.b16 %v408
      %v633 = vunpack.c.l.b16 %v409
      %v634 = vunpack.c.l.b16 %v410
      %v635 = vpack.c.b16 %v620, %v619
      %v636 = vpack.c.b16 %v622, %v621
      %v637 = vpack.c.b16 %v624, %v623
      %v638 = vpack.c.b16 %v626, %v625
      %v639 = vpack.c.b16 %v628, %v627
      %v640 = vpack.c.b16 %v630, %v629
      %v641 = vpack.c.b16 %v632, %v631
      %v642 = vpack.c.b16 %v634, %v633
      %651 = vmatprep.subr.bf16.mxu0 0
      %652 = vmatpush1.bf16.msra.mxu0 %v635
      %653 = vmatprep.subr.bf16.mxu0 0
      %654 = vmatpush1.bf16.msra.mxu0 %v636
      %655 = vmatprep.subr.bf16.mxu0 0
      %656 = vmatpush1.bf16.msra.mxu0 %v637
      %657 = vmatprep.subr.bf16.mxu0 0
      %658 = vmatpush1.bf16.msra.mxu0 %v638
      %659 = vmatprep.subr.bf16.mxu0 0
      %660 = vmatpush1.bf16.msra.mxu0 %v639
      %661 = vmatprep.subr.bf16.mxu0 0
      %662 = vmatpush1.bf16.msra.mxu0 %v640
      %663 = vmatprep.subr.bf16.mxu0 0
      %664 = vmatpush1.bf16.msra.mxu0 %v641
      %665 = vmatprep.subr.bf16.mxu0 0
      %666 = vmatpush1.bf16.msra.mxu0 %v642
      %667 = vmatprep.subr.bf16.mxu0 0
      %668 = vmatpush1.bf16.msra.mxu0 0
      %669 = vmatprep.subr.bf16.mxu0 0
      %670 = vmatpush1.bf16.msra.mxu0 0
      %671 = vmatprep.subr.bf16.mxu0 0
      %672 = vmatpush1.bf16.msra.mxu0 0
      %673 = vmatprep.subr.bf16.mxu0 0
      %674 = vmatpush1.bf16.msra.mxu0 0
      %675 = vmatprep.subr.bf16.mxu0 0
      %676 = vmatpush1.bf16.msra.mxu0 0
      %677 = vmatprep.subr.bf16.mxu0 0
      %678 = vmatpush1.bf16.msra.mxu0 0
      %679 = vmatprep.subr.bf16.mxu0 0
      %680 = vmatpush1.bf16.msra.mxu0 0
      %681 = vmatprep.subr.bf16.mxu0 0
      %682 = vmatpush1.bf16.msra.mxu0 0
      %683 = vmatprep.mubr.bf16.mxu0 0
      %684 = vmatmul.mubr.bf16.gmra.mrb[0].mxu0 %v539
      %v685 = vpop.f32.mrb[0].mxu0
      %v686 = vadd.f32 0.0, %v685
      %v687 = vpop.f32.mrb[0].mxu0
      %v688 = vpop.f32.mrb[0].mxu0
      %v689 = vadd.f32 0.0, %v688
      %v690 = vpop.f32.mrb[0].mxu0
      %691 = vmatprep.mubr.bf16.mxu0 0
      %692 = vmatmul.mubr.bf16.gmra.mrb[0].mxu0 %v540
      %v693 = vpop.f32.mrb[0].mxu0
      %v694 = vadd.f32 0.0, %v693
      %v695 = vpop.f32.mrb[0].mxu0
      %v696 = vpop.f32.mrb[0].mxu0
      %v697 = vadd.f32 0.0, %v696
      %v698 = vpop.f32.mrb[0].mxu0
      %699 = vmatprep.mubr.bf16.mxu0 0
      %700 = vmatmul.mubr.bf16.gmra.mrb[0].mxu0 %v541
      %v701 = vpop.f32.mrb[0].mxu0
      %v702 = vadd.f32 0.0, %v701
      %v703 = vpop.f32.mrb[0].mxu0
      %v704 = vpop.f32.mrb[0].mxu0
      %v705 = vadd.f32 0.0, %v704
      %v706 = vpop.f32.mrb[0].mxu0
      %707 = vmatprep.mubr.bf16.mxu0 0
      %708 = vmatmul.mubr.bf16.gmra.mrb[0].mxu0 %v542
      %v709 = vpop.f32.mrb[0].mxu0
      %v710 = vadd.f32 0.0, %v709
      %v711 = vpop.f32.mrb[0].mxu0
      %v712 = vpop.f32.mrb[0].mxu0
      %v713 = vadd.f32 0.0, %v712
      %v714 = vpop.f32.mrb[0].mxu0
      %715 = vmatprep.mubr.bf16.mxu0 0
      %716 = vmatmul.mubr.bf16.gmra.mrb[0].mxu0 %v543
      %v717 = vpop.f32.mrb[0].mxu0
      %v718 = vadd.f32 0.0, %v717
      %v719 = vpop.f32.mrb[0].mxu0
      %v720 = vpop.f32.mrb[0].mxu0
      %v721 = vadd.f32 0.0, %v720
      %v722 = vpop.f32.mrb[0].mxu0
      %723 = vmatprep.mubr.bf16.mxu0 0
      %724 = vmatmul.mubr.bf16.gmra.mrb[0].mxu0 %v544
      %v725 = vpop.f32.mrb[0].mxu0
      %v726 = vadd.f32 0.0, %v725
      %v727 = vpop.f32.mrb[0].mxu0
      %v728 = vpop.f32.mrb[0].mxu0
      %v729 = vadd.f32 0.0, %v728
      %v730 = vpop.f32.mrb[0].mxu0
      %731 = vmatprep.mubr.bf16.mxu0 0
      %732 = vmatmul.mubr.bf16.gmra.mrb[0].mxu0 %v545
      %v733 = vpop.f32.mrb[0].mxu0
      %v734 = vadd.f32 0.0, %v733
      %v735 = vpop.f32.mrb[0].mxu0
      %v736 = vpop.f32.mrb[0].mxu0
      %v737 = vadd.f32 0.0, %v736
      %v738 = vpop.f32.mrb[0].mxu0
      %739 = vmatprep.mubr.bf16.mxu0 0
      %740 = vmatmul.mubr.bf16.gmra.mrb[0].mxu0 %v546
      %v741 = vpop.f32.mrb[0].mxu0
      %v742 = vadd.f32 0.0, %v741
      %v743 = vpop.f32.mrb[0].mxu0
      %v744 = vpop.f32.mrb[0].mxu0
      %v745 = vadd.f32 0.0, %v744
      %v746 = vpop.f32.mrb[0].mxu0
      %747 = vmatprep.mubr.bf16.mxu0 0
      %748 = vmatmul.mubr.bf16.gmra.mrb[0].mxu0 %v547
      %v749 = vpop.f32.mrb[0].mxu0
      %v750 = vadd.f32 0.0, %v749
      %v751 = vpop.f32.mrb[0].mxu0
      %v752 = vpop.f32.mrb[0].mxu0
      %v753 = vadd.f32 0.0, %v752
      %v754 = vpop.f32.mrb[0].mxu0
      %755 = vmatprep.mubr.bf16.mxu0 0
      %756 = vmatmul.mubr.bf16.gmra.mrb[0].mxu0 %v548
      %v757 = vpop.f32.mrb[0].mxu0
      %v758 = vadd.f32 0.0, %v757
      %v759 = vpop.f32.mrb[0].mxu0
      %v760 = vpop.f32.mrb[0].mxu0
      %v761 = vadd.f32 0.0, %v760
      %v762 = vpop.f32.mrb[0].mxu0
      %763 = vmatprep.mubr.bf16.mxu0 0
      %764 = vmatmul.mubr.bf16.gmra.mrb[0].mxu0 %v549
      %v765 = vpop.f32.mrb[0].mxu0
      %v766 = vadd.f32 0.0, %v765
      %v767 = vpop.f32.mrb[0].mxu0
      %v768 = vpop.f32.mrb[0].mxu0
      %v769 = vadd.f32 0.0, %v768
      %v770 = vpop.f32.mrb[0].mxu0
      %771 = vmatprep.mubr.bf16.mxu0 0
      %772 = vmatmul.mubr.bf16.gmra.mrb[0].mxu0 %v550
      %v773 = vpop.f32.mrb[0].mxu0
      %v774 = vadd.f32 0.0, %v773
      %v775 = vpop.f32.mrb[0].mxu0
      %v776 = vpop.f32.mrb[0].mxu0
      %v777 = vadd.f32 0.0, %v776
      %v778 = vpop.f32.mrb[0].mxu0
      %779 = vmatprep.mubr.bf16.mxu0 0
      %780 = vmatmul.mubr.bf16.gmra.mrb[0].mxu0 %v551
      %v781 = vpop.f32.mrb[0].mxu0
      %v782 = vadd.f32 0.0, %v781
      %v783 = vpop.f32.mrb[0].mxu0
      %v784 = vpop.f32.mrb[0].mxu0
      %v785 = vadd.f32 0.0, %v784
      %v786 = vpop.f32.mrb[0].mxu0
      %787 = vmatprep.mubr.bf16.mxu0 0
      %788 = vmatmul.mubr.bf16.gmra.mrb[0].mxu0 %v552
      %v789 = vpop.f32.mrb[0].mxu0
      %v790 = vadd.f32 0.0, %v789
      %v791 = vpop.f32.mrb[0].mxu0
      %v792 = vpop.f32.mrb[0].mxu0
      %v793 = vadd.f32 0.0, %v792
      %v794 = vpop.f32.mrb[0].mxu0
      %795 = vmatprep.mubr.bf16.mxu0 0
      %796 = vmatmul.mubr.bf16.gmra.mrb[0].mxu0 %v553
      %v797 = vpop.f32.mrb[0].mxu0
      %v798 = vadd.f32 0.0, %v797
      %v799 = vpop.f32.mrb[0].mxu0
      %v800 = vpop.f32.mrb[0].mxu0
      %v801 = vadd.f32 0.0, %v800
      %v802 = vpop.f32.mrb[0].mxu0
      %803 = vmatprep.mubr.bf16.mxu0 0
      %804 = vmatmul.mubr.bf16.gmra.mrb[0].mxu0 %v554
      %v805 = vpop.f32.mrb[0].mxu0
      %v806 = vadd.f32 0.0, %v805
      %v807 = vpop.f32.mrb[0].mxu0
      %v808 = vpop.f32.mrb[0].mxu0
      %v809 = vadd.f32 0.0, %v808
      %v810 = vpop.f32.mrb[0].mxu0
      %811 = vmatprep.mubr.bf16.mxu0 0
      %812 = vmatmul.mubr.bf16.gmra.mrb[0].mxu0 %v555
      %v813 = vpop.f32.mrb[0].mxu0
      %v814 = vadd.f32 0.0, %v813
      %v815 = vpop.f32.mrb[0].mxu0
      %v816 = vpop.f32.mrb[0].mxu0
      %v817 = vadd.f32 0.0, %v816
      %v818 = vpop.f32.mrb[0].mxu0
      %819 = vmatprep.mubr.bf16.mxu0 0
      %820 = vmatmul.mubr.bf16.gmra.mrb[0].mxu0 %v556
      %v821 = vpop.f32.mrb[0].mxu0
      %v822 = vadd.f32 0.0, %v821
      %v823 = vpop.f32.mrb[0].mxu0
      %v824 = vpop.f32.mrb[0].mxu0
      %v825 = vadd.f32 0.0, %v824
      %v826 = vpop.f32.mrb[0].mxu0
      %827 = vmatprep.mubr.bf16.mxu0 0
      %828 = vmatmul.mubr.bf16.gmra.mrb[0].mxu0 %v557
      %v829 = vpop.f32.mrb[0].mxu0
      %v830 = vadd.f32 0.0, %v829
      %v831 = vpop.f32.mrb[0].mxu0
      %v832 = vpop.f32.mrb[0].mxu0
      %v833 = vadd.f32 0.0, %v832
      %v834 = vpop.f32.mrb[0].mxu0
      %835 = vmatprep.mubr.bf16.mxu0 0
      %836 = vmatmul.mubr.bf16.gmra.mrb[0].mxu0 %v558
      %v837 = vpop.f32.mrb[0].mxu0
      %v838 = vadd.f32 0.0, %v837
      %v839 = vpop.f32.mrb[0].mxu0
      %v840 = vpop.f32.mrb[0].mxu0
      %v841 = vadd.f32 0.0, %v840
      %v842 = vpop.f32.mrb[0].mxu0
      %843 = vmatprep.mubr.bf16.mxu0 0
      %844 = vmatmul.mubr.bf16.gmra.mrb[0].mxu0 %v559
      %v845 = vpop.f32.mrb[0].mxu0
      %v846 = vadd.f32 0.0, %v845
      %v847 = vpop.f32.mrb[0].mxu0
      %v848 = vpop.f32.mrb[0].mxu0
      %v849 = vadd.f32 0.0, %v848
      %v850 = vpop.f32.mrb[0].mxu0
      %851 = vmatprep.mubr.bf16.mxu0 0
      %852 = vmatmul.mubr.bf16.gmra.mrb[0].mxu0 %v560
      %v853 = vpop.f32.mrb[0].mxu0
      %v854 = vadd.f32 0.0, %v853
      %v855 = vpop.f32.mrb[0].mxu0
      %v856 = vpop.f32.mrb[0].mxu0
      %v857 = vadd.f32 0.0, %v856
      %v858 = vpop.f32.mrb[0].mxu0
      %859 = vmatprep.mubr.bf16.mxu0 0
      %860 = vmatmul.mubr.bf16.gmra.mrb[0].mxu0 %v561
      %v861 = vpop.f32.mrb[0].mxu0
      %v862 = vadd.f32 0.0, %v861
      %v863 = vpop.f32.mrb[0].mxu0
      %v864 = vpop.f32.mrb[0].mxu0
      %v865 = vadd.f32 0.0, %v864
      %v866 = vpop.f32.mrb[0].mxu0
      %867 = vmatprep.mubr.bf16.mxu0 0
      %868 = vmatmul.mubr.bf16.gmra.mrb[0].mxu0 %v562
      %v869 = vpop.f32.mrb[0].mxu0
      %v870 = vadd.f32 0.0, %v869
      %v871 = vpop.f32.mrb[0].mxu0
      %v872 = vpop.f32.mrb[0].mxu0
      %v873 = vadd.f32 0.0, %v872
      %v874 = vpop.f32.mrb[0].mxu0
      %875 = vmatprep.mubr.bf16.mxu0 0
      %876 = vmatmul.mubr.bf16.gmra.mrb[0].mxu0 %v563
      %v877 = vpop.f32.mrb[0].mxu0
      %v878 = vadd.f32 0.0, %v877
      %v879 = vpop.f32.mrb[0].mxu0
      %v880 = vpop.f32.mrb[0].mxu0
      %v881 = vadd.f32 0.0, %v880
      %v882 = vpop.f32.mrb[0].mxu0
      %883 = vmatprep.mubr.bf16.mxu0 0
      %884 = vmatmul.mubr.bf16.gmra.mrb[0].mxu0 %v564
      %v885 = vpop.f32.mrb[0].mxu0
      %v886 = vadd.f32 0.0, %v885
      %v887 = vpop.f32.mrb[0].mxu0
      %v888 = vpop.f32.mrb[0].mxu0
      %v889 = vadd.f32 0.0, %v888
      %v890 = vpop.f32.mrb[0].mxu0
      %891 = vmatprep.mubr.bf16.mxu0 0
      %892 = vmatmul.mubr.bf16.gmra.mrb[0].mxu0 %v565
      %v893 = vpop.f32.mrb[0].mxu0
      %v894 = vadd.f32 0.0, %v893
      %v895 = vpop.f32.mrb[0].mxu0
      %v896 = vpop.f32.mrb[0].mxu0
      %v897 = vadd.f32 0.0, %v896
      %v898 = vpop.f32.mrb[0].mxu0
      %899 = vmatprep.mubr.bf16.mxu0 0
      %900 = vmatmul.mubr.bf16.gmra.mrb[0].mxu0 %v566
      %v901 = vpop.f32.mrb[0].mxu0
      %v902 = vadd.f32 0.0, %v901
      %v903 = vpop.f32.mrb[0].mxu0
      %v904 = vpop.f32.mrb[0].mxu0
      %v905 = vadd.f32 0.0, %v904
      %v906 = vpop.f32.mrb[0].mxu0
      %907 = vmatprep.mubr.bf16.mxu0 0
      %908 = vmatmul.mubr.bf16.gmra.mrb[0].mxu0 %v567
      %v909 = vpop.f32.mrb[0].mxu0
      %v910 = vadd.f32 0.0, %v909
      %v911 = vpop.f32.mrb[0].mxu0
      %v912 = vpop.f32.mrb[0].mxu0
      %v913 = vadd.f32 0.0, %v912
      %v914 = vpop.f32.mrb[0].mxu0
      %915 = vmatprep.mubr.bf16.mxu0 0
      %916 = vmatmul.mubr.bf16.gmra.mrb[0].mxu0 %v568
      %v917 = vpop.f32.mrb[0].mxu0
      %v918 = vadd.f32 0.0, %v917
      %v919 = vpop.f32.mrb[0].mxu0
      %v920 = vpop.f32.mrb[0].mxu0
      %v921 = vadd.f32 0.0, %v920
      %v922 = vpop.f32.mrb[0].mxu0
      %923 = vmatprep.mubr.bf16.mxu0 0
      %924 = vmatmul.mubr.bf16.gmra.mrb[0].mxu0 %v569
      %v925 = vpop.f32.mrb[0].mxu0
      %v926 = vadd.f32 0.0, %v925
      %v927 = vpop.f32.mrb[0].mxu0
      %v928 = vpop.f32.mrb[0].mxu0
      %v929 = vadd.f32 0.0, %v928
      %v930 = vpop.f32.mrb[0].mxu0
      %931 = vmatprep.mubr.bf16.mxu0 0
      %932 = vmatmul.mubr.bf16.gmra.mrb[0].mxu0 %v570
      %v933 = vpop.f32.mrb[0].mxu0
      %v934 = vadd.f32 0.0, %v933
      %v935 = vpop.f32.mrb[0].mxu0
      %v936 = vpop.f32.mrb[0].mxu0
      %v937 = vadd.f32 0.0, %v936
      %v938 = vpop.f32.mrb[0].mxu0
      %939 = vdwg.mxu0
      %v940 = vld [vmem:[%s253] sm:$0x1]
      %v942 = vlaneseq
      %v943 = vshrl.u32 %v942, 7
      %v944 = vsub.s32 0, %v943
      %v945 = vrot.slane %v940, %v944
      %v947 = vmul.f32 %v686, %v945
      %v948 = vmul.f32 %v689, %v945
      %v949 = vmul.f32 %v694, %v945
      %v950 = vmul.f32 %v697, %v945
      %v951 = vmul.f32 %v702, %v945
      %v952 = vmul.f32 %v705, %v945
      %v953 = vmul.f32 %v710, %v945
      %v954 = vmul.f32 %v713, %v945
      %v955 = vmul.f32 %v718, %v945
      %v956 = vmul.f32 %v721, %v945
      %v957 = vmul.f32 %v726, %v945
      %v958 = vmul.f32 %v729, %v945
      %v959 = vmul.f32 %v734, %v945
      %v960 = vmul.f32 %v737, %v945
      %v961 = vmul.f32 %v742, %v945
      %v962 = vmul.f32 %v745, %v945
      %v963 = vmul.f32 %v750, %v945
      %v964 = vmul.f32 %v753, %v945
      %v965 = vmul.f32 %v758, %v945
      %v966 = vmul.f32 %v761, %v945
      %v967 = vmul.f32 %v766, %v945
      %v968 = vmul.f32 %v769, %v945
      %v969 = vmul.f32 %v774, %v945
      %v970 = vmul.f32 %v777, %v945
      %v971 = vmul.f32 %v782, %v945
      %v972 = vmul.f32 %v785, %v945
      %v973 = vmul.f32 %v790, %v945
      %v974 = vmul.f32 %v793, %v945
      %v975 = vmul.f32 %v798, %v945
      %v976 = vmul.f32 %v801, %v945
      %v977 = vmul.f32 %v806, %v945
      %v978 = vmul.f32 %v809, %v945
      %v979 = vmul.f32 %v814, %v945
      %v980 = vmul.f32 %v817, %v945
      %v981 = vmul.f32 %v822, %v945
      %v982 = vmul.f32 %v825, %v945
      %v983 = vmul.f32 %v830, %v945
      %v984 = vmul.f32 %v833, %v945
      %v985 = vmul.f32 %v838, %v945
      %v986 = vmul.f32 %v841, %v945
      %v987 = vmul.f32 %v846, %v945
      %v988 = vmul.f32 %v849, %v945
      %v989 = vmul.f32 %v854, %v945
      %v990 = vmul.f32 %v857, %v945
      %v991 = vmul.f32 %v862, %v945
      %v992 = vmul.f32 %v865, %v945
      %v993 = vmul.f32 %v870, %v945
      %v994 = vmul.f32 %v873, %v945
      %v995 = vmul.f32 %v878, %v945
      %v996 = vmul.f32 %v881, %v945
      %v997 = vmul.f32 %v886, %v945
      %v998 = vmul.f32 %v889, %v945
      %v999 = vmul.f32 %v894, %v945
      %v1000 = vmul.f32 %v897, %v945
      %v1001 = vmul.f32 %v902, %v945
      %v1002 = vmul.f32 %v905, %v945
      %v1003 = vmul.f32 %v910, %v945
      %v1004 = vmul.f32 %v913, %v945
      %v1005 = vmul.f32 %v918, %v945
      %v1006 = vmul.f32 %v921, %v945
      %v1007 = vmul.f32 %v926, %v945
      %v1008 = vmul.f32 %v929, %v945
      %v1009 = vmul.f32 %v934, %v945
      %v1010 = vmul.f32 %v937, %v945
      %v1011 = vld [vmem:[%s256] sm:$0x1]
      %v1013 = vlaneseq
      %v1014 = vshrl.u32 %v1013, 7
      %v1015 = vsub.s32 0, %v1014
      %v1016 = vrot.slane %v1011, %v1015
      %v1018 = vadd.f32 %v947, %v1016
      %v1019 = vadd.f32 %v948, %v1016
      %v1020 = vadd.f32 %v949, %v1016
      %v1021 = vadd.f32 %v950, %v1016
      %v1022 = vadd.f32 %v951, %v1016
      %v1023 = vadd.f32 %v952, %v1016
      %v1024 = vadd.f32 %v953, %v1016
      %v1025 = vadd.f32 %v954, %v1016
      %v1026 = vadd.f32 %v955, %v1016
      %v1027 = vadd.f32 %v956, %v1016
      %v1028 = vadd.f32 %v957, %v1016
      %v1029 = vadd.f32 %v958, %v1016
      %v1030 = vadd.f32 %v959, %v1016
      %v1031 = vadd.f32 %v960, %v1016
      %v1032 = vadd.f32 %v961, %v1016
      %v1033 = vadd.f32 %v962, %v1016
      %v1034 = vadd.f32 %v963, %v1016
      %v1035 = vadd.f32 %v964, %v1016
      %v1036 = vadd.f32 %v965, %v1016
      %v1037 = vadd.f32 %v966, %v1016
      %v1038 = vadd.f32 %v967, %v1016
      %v1039 = vadd.f32 %v968, %v1016
      %v1040 = vadd.f32 %v969, %v1016
      %v1041 = vadd.f32 %v970, %v1016
      %v1042 = vadd.f32 %v971, %v1016
      %v1043 = vadd.f32 %v972, %v1016
      %v1044 = vadd.f32 %v973, %v1016
      %v1045 = vadd.f32 %v974, %v1016
      %v1046 = vadd.f32 %v975, %v1016
      %v1047 = vadd.f32 %v976, %v1016
      %v1048 = vadd.f32 %v977, %v1016
      %v1049 = vadd.f32 %v978, %v1016
      %v1050 = vadd.f32 %v979, %v1016
      %v1051 = vadd.f32 %v980, %v1016
      %v1052 = vadd.f32 %v981, %v1016
      %v1053 = vadd.f32 %v982, %v1016
      %v1054 = vadd.f32 %v983, %v1016
      %v1055 = vadd.f32 %v984, %v1016
      %v1056 = vadd.f32 %v985, %v1016
      %v1057 = vadd.f32 %v986, %v1016
      %v1058 = vadd.f32 %v987, %v1016
      %v1059 = vadd.f32 %v988, %v1016
      %v1060 = vadd.f32 %v989, %v1016
      %v1061 = vadd.f32 %v990, %v1016
      %v1062 = vadd.f32 %v991, %v1016
      %v1063 = vadd.f32 %v992, %v1016
      %v1064 = vadd.f32 %v993, %v1016
      %v1065 = vadd.f32 %v994, %v1016
      %v1066 = vadd.f32 %v995, %v1016
      %v1067 = vadd.f32 %v996, %v1016
      %v1068 = vadd.f32 %v997, %v1016
      %v1069 = vadd.f32 %v998, %v1016
      %v1070 = vadd.f32 %v999, %v1016
      %v1071 = vadd.f32 %v1000, %v1016
      %v1072 = vadd.f32 %v1001, %v1016
      %v1073 = vadd.f32 %v1002, %v1016
      %v1074 = vadd.f32 %v1003, %v1016
      %v1075 = vadd.f32 %v1004, %v1016
      %v1076 = vadd.f32 %v1005, %v1016
      %v1077 = vadd.f32 %v1006, %v1016
      %v1078 = vadd.f32 %v1007, %v1016
      %v1079 = vadd.f32 %v1008, %v1016
      %v1080 = vadd.f32 %v1009, %v1016
      %v1081 = vadd.f32 %v1010, %v1016
      %v1082 = vpack.c.bf16 %v1019, %v1018
      %v1083 = vpack.c.bf16 %v1021, %v1020
      %v1084 = vpack.c.bf16 %v1023, %v1022
      %v1085 = vpack.c.bf16 %v1025, %v1024
      %v1086 = vpack.c.bf16 %v1027, %v1026
      %v1087 = vpack.c.bf16 %v1029, %v1028
      %v1088 = vpack.c.bf16 %v1031, %v1030
      %v1089 = vpack.c.bf16 %v1033, %v1032
      %v1090 = vpack.c.bf16 %v1035, %v1034
      %v1091 = vpack.c.bf16 %v1037, %v1036
      %v1092 = vpack.c.bf16 %v1039, %v1038
      %v1093 = vpack.c.bf16 %v1041, %v1040
      %v1094 = vpack.c.bf16 %v1043, %v1042
      %v1095 = vpack.c.bf16 %v1045, %v1044
      %v1096 = vpack.c.bf16 %v1047, %v1046
      %v1097 = vpack.c.bf16 %v1049, %v1048
      %v1098 = vpack.c.bf16 %v1051, %v1050
      %v1099 = vpack.c.bf16 %v1053, %v1052
      %v1100 = vpack.c.bf16 %v1055, %v1054
      %v1101 = vpack.c.bf16 %v1057, %v1056
      %v1102 = vpack.c.bf16 %v1059, %v1058
      %v1103 = vpack.c.bf16 %v1061, %v1060
      %v1104 = vpack.c.bf16 %v1063, %v1062
      %v1105 = vpack.c.bf16 %v1065, %v1064
      %v1106 = vpack.c.bf16 %v1067, %v1066
      %v1107 = vpack.c.bf16 %v1069, %v1068
      %v1108 = vpack.c.bf16 %v1071, %v1070
      %v1109 = vpack.c.bf16 %v1073, %v1072
      %v1110 = vpack.c.bf16 %v1075, %v1074
      %v1111 = vpack.c.bf16 %v1077, %v1076
      %v1112 = vpack.c.bf16 %v1079, %v1078
      %v1113 = vpack.c.bf16 %v1081, %v1080
      %v1146 = vunpack.c.l.b16 %v1082
      %v1147 = vunpack.c.h.b16 %v1082
      %v1148 = vunpack.c.l.b16 %v1083
      %v1149 = vunpack.c.h.b16 %v1083
      %v1150 = vunpack.c.l.b16 %v1084
      %v1151 = vunpack.c.h.b16 %v1084
      %v1152 = vunpack.c.l.b16 %v1085
      %v1153 = vunpack.c.h.b16 %v1085
      %v1154 = vunpack.c.l.b16 %v1086
      %v1155 = vunpack.c.h.b16 %v1086
      %v1156 = vunpack.c.l.b16 %v1087
      %v1157 = vunpack.c.h.b16 %v1087
      %v1158 = vunpack.c.l.b16 %v1088
      %v1159 = vunpack.c.h.b16 %v1088
      %v1160 = vunpack.c.l.b16 %v1089
      %v1161 = vunpack.c.h.b16 %v1089
      %v1162 = vunpack.c.l.b16 %v1090
      %v1163 = vunpack.c.h.b16 %v1090
      %v1164 = vunpack.c.l.b16 %v1091
      %v1165 = vunpack.c.h.b16 %v1091
      %v1166 = vunpack.c.l.b16 %v1092
      %v1167 = vunpack.c.h.b16 %v1092
      %v1168 = vunpack.c.l.b16 %v1093
      %v1169 = vunpack.c.h.b16 %v1093
      %v1170 = vunpack.c.l.b16 %v1094
      %v1171 = vunpack.c.h.b16 %v1094
      %v1172 = vunpack.c.l.b16 %v1095
      %v1173 = vunpack.c.h.b16 %v1095
      %v1174 = vunpack.c.l.b16 %v1096
      %v1175 = vunpack.c.h.b16 %v1096
      %v1176 = vunpack.c.l.b16 %v1097
      %v1177 = vunpack.c.h.b16 %v1097
      %v1178 = vunpack.c.l.b16 %v1098
      %v1179 = vunpack.c.h.b16 %v1098
      %v1180 = vunpack.c.l.b16 %v1099
      %v1181 = vunpack.c.h.b16 %v1099
      %v1182 = vunpack.c.l.b16 %v1100
      %v1183 = vunpack.c.h.b16 %v1100
      %v1184 = vunpack.c.l.b16 %v1101
      %v1185 = vunpack.c.h.b16 %v1101
      %v1186 = vunpack.c.l.b16 %v1102
      %v1187 = vunpack.c.h.b16 %v1102
      %v1188 = vunpack.c.l.b16 %v1103
      %v1189 = vunpack.c.h.b16 %v1103
      %v1190 = vunpack.c.l.b16 %v1104
      %v1191 = vunpack.c.h.b16 %v1104
      %v1192 = vunpack.c.l.b16 %v1105
      %v1193 = vunpack.c.h.b16 %v1105
      %v1194 = vunpack.c.l.b16 %v1106
      %v1195 = vunpack.c.h.b16 %v1106
      %v1196 = vunpack.c.l.b16 %v1107
      %v1197 = vunpack.c.h.b16 %v1107
      %v1198 = vunpack.c.l.b16 %v1108
      %v1199 = vunpack.c.h.b16 %v1108
      %v1200 = vunpack.c.l.b16 %v1109
      %v1201 = vunpack.c.h.b16 %v1109
      %v1202 = vunpack.c.l.b16 %v1110
      %v1203 = vunpack.c.h.b16 %v1110
      %v1204 = vunpack.c.l.b16 %v1111
      %v1205 = vunpack.c.h.b16 %v1111
      %v1206 = vunpack.c.l.b16 %v1112
      %v1207 = vunpack.c.h.b16 %v1112
      %v1208 = vunpack.c.l.b16 %v1113
      %v1209 = vunpack.c.h.b16 %v1113
      %v1210 = vpack.c.b16 %v1146, %v1146
      %v1211 = vpack.c.b16 %v1147, %v1147
      %v1212 = vpack.c.b16 %v1148, %v1148
      %v1213 = vpack.c.b16 %v1149, %v1149
      %v1214 = vpack.c.b16 %v1150, %v1150
      %v1215 = vpack.c.b16 %v1151, %v1151
      %v1216 = vpack.c.b16 %v1152, %v1152
      %v1217 = vpack.c.b16 %v1153, %v1153
      %v1218 = vpack.c.b16 %v1154, %v1154
      %v1219 = vpack.c.b16 %v1155, %v1155
      %v1220 = vpack.c.b16 %v1156, %v1156
      %v1221 = vpack.c.b16 %v1157, %v1157
      %v1222 = vpack.c.b16 %v1158, %v1158
      %v1223 = vpack.c.b16 %v1159, %v1159
      %v1224 = vpack.c.b16 %v1160, %v1160
      %v1225 = vpack.c.b16 %v1161, %v1161
      %v1226 = vpack.c.b16 %v1162, %v1162
      %v1227 = vpack.c.b16 %v1163, %v1163
      %v1228 = vpack.c.b16 %v1164, %v1164
      %v1229 = vpack.c.b16 %v1165, %v1165
      %v1230 = vpack.c.b16 %v1166, %v1166
      %v1231 = vpack.c.b16 %v1167, %v1167
      %v1232 = vpack.c.b16 %v1168, %v1168
      %v1233 = vpack.c.b16 %v1169, %v1169
      %v1234 = vpack.c.b16 %v1170, %v1170
      %v1235 = vpack.c.b16 %v1171, %v1171
      %v1236 = vpack.c.b16 %v1172, %v1172
      %v1237 = vpack.c.b16 %v1173, %v1173
      %v1238 = vpack.c.b16 %v1174, %v1174
      %v1239 = vpack.c.b16 %v1175, %v1175
      %v1240 = vpack.c.b16 %v1176, %v1176
      %v1241 = vpack.c.b16 %v1177, %v1177
      %v1242 = vpack.c.b16 %v1178, %v1178
      %v1243 = vpack.c.b16 %v1179, %v1179
      %v1244 = vpack.c.b16 %v1180, %v1180
      %v1245 = vpack.c.b16 %v1181, %v1181
      %v1246 = vpack.c.b16 %v1182, %v1182
      %v1247 = vpack.c.b16 %v1183, %v1183
      %v1248 = vpack.c.b16 %v1184, %v1184
      %v1249 = vpack.c.b16 %v1185, %v1185
      %v1250 = vpack.c.b16 %v1186, %v1186
      %v1251 = vpack.c.b16 %v1187, %v1187
      %v1252 = vpack.c.b16 %v1188, %v1188
      %v1253 = vpack.c.b16 %v1189, %v1189
      %v1254 = vpack.c.b16 %v1190, %v1190
      %v1255 = vpack.c.b16 %v1191, %v1191
      %v1256 = vpack.c.b16 %v1192, %v1192
      %v1257 = vpack.c.b16 %v1193, %v1193
      %v1258 = vpack.c.b16 %v1194, %v1194
      %v1259 = vpack.c.b16 %v1195, %v1195
      %v1260 = vpack.c.b16 %v1196, %v1196
      %v1261 = vpack.c.b16 %v1197, %v1197
      %v1262 = vpack.c.b16 %v1198, %v1198
      %v1263 = vpack.c.b16 %v1199, %v1199
      %v1264 = vpack.c.b16 %v1200, %v1200
      %v1265 = vpack.c.b16 %v1201, %v1201
      %v1266 = vpack.c.b16 %v1202, %v1202
      %v1267 = vpack.c.b16 %v1203, %v1203
      %v1268 = vpack.c.b16 %v1204, %v1204
      %v1269 = vpack.c.b16 %v1205, %v1205
      %v1270 = vpack.c.b16 %v1206, %v1206
      %v1271 = vpack.c.b16 %v1207, %v1207
      %v1272 = vpack.c.b16 %v1208, %v1208
      %v1273 = vpack.c.b16 %v1209, %v1209
      %1338 = vst [vmem:[%s264] sm:$0xf] %v1210
      %1339 = vst [vmem:[%s264 + $0x4] sm:$0xf] %v1211
      %1340 = vst [vmem:[%s264 + $0x8] sm:$0xf] %v1212
      %1341 = vst [vmem:[%s264 + $0xc] sm:$0xf] %v1213
      %1342 = vst [vmem:[%s264 + $0x10] sm:$0xf] %v1214
      %1343 = vst [vmem:[%s264 + $0x14] sm:$0xf] %v1215
      %1344 = vst [vmem:[%s264 + $0x18] sm:$0xf] %v1216
      %1345 = vst [vmem:[%s264 + $0x1c] sm:$0xf] %v1217
      %1346 = vst [vmem:[%s264 + $0x20] sm:$0xf] %v1218
      %1347 = vst [vmem:[%s264 + $0x24] sm:$0xf] %v1219
      %1348 = vst [vmem:[%s264 + $0x28] sm:$0xf] %v1220
      %1349 = vst [vmem:[%s264 + $0x2c] sm:$0xf] %v1221
      %1350 = vst [vmem:[%s264 + $0x30] sm:$0xf] %v1222
      %1351 = vst [vmem:[%s264 + $0x34] sm:$0xf] %v1223
      %1352 = vst [vmem:[%s264 + $0x38] sm:$0xf] %v1224
      %1353 = vst [vmem:[%s264 + $0x3c] sm:$0xf] %v1225
      %1354 = vst [vmem:[%s264 + $0x40] sm:$0xf] %v1226
      %1355 = vst [vmem:[%s264 + $0x44] sm:$0xf] %v1227
      %1356 = vst [vmem:[%s264 + $0x48] sm:$0xf] %v1228
      %1357 = vst [vmem:[%s264 + $0x4c] sm:$0xf] %v1229
      %1358 = vst [vmem:[%s264 + $0x50] sm:$0xf] %v1230
      %1359 = vst [vmem:[%s264 + $0x54] sm:$0xf] %v1231
      %1360 = vst [vmem:[%s264 + $0x58] sm:$0xf] %v1232
      %1361 = vst [vmem:[%s264 + $0x5c] sm:$0xf] %v1233
      %1362 = vst [vmem:[%s264 + $0x60] sm:$0xf] %v1234
      %1363 = vst [vmem:[%s264 + $0x64] sm:$0xf] %v1235
      %1364 = vst [vmem:[%s264 + $0x68] sm:$0xf] %v1236
      %1365 = vst [vmem:[%s264 + $0x6c] sm:$0xf] %v1237
      %1366 = vst [vmem:[%s264 + $0x70] sm:$0xf] %v1238
      %1367 = vst [vmem:[%s264 + $0x74] sm:$0xf] %v1239
      %1368 = vst [vmem:[%s264 + $0x78] sm:$0xf] %v1240
      %1369 = vst [vmem:[%s264 + $0x7c] sm:$0xf] %v1241
      %1370 = vst [vmem:[%s264 + $0x80] sm:$0xf] %v1242
      %1371 = vst [vmem:[%s264 + $0x84] sm:$0xf] %v1243
      %1372 = vst [vmem:[%s264 + $0x88] sm:$0xf] %v1244
      %1373 = vst [vmem:[%s264 + $0x8c] sm:$0xf] %v1245
      %1374 = vst [vmem:[%s264 + $0x90] sm:$0xf] %v1246
      %1375 = vst [vmem:[%s264 + $0x94] sm:$0xf] %v1247
      %1376 = vst [vmem:[%s264 + $0x98] sm:$0xf] %v1248
      %1377 = vst [vmem:[%s264 + $0x9c] sm:$0xf] %v1249
      %1378 = vst [vmem:[%s264 + $0xa0] sm:$0xf] %v1250
      %1379 = vst [vmem:[%s264 + $0xa4] sm:$0xf] %v1251
      %1380 = vst [vmem:[%s264 + $0xa8] sm:$0xf] %v1252
      %1381 = vst [vmem:[%s264 + $0xac] sm:$0xf] %v1253
      %1382 = vst [vmem:[%s264 + $0xb0] sm:$0xf] %v1254
      %1383 = vst [vmem:[%s264 + $0xb4] sm:$0xf] %v1255
      %1384 = vst [vmem:[%s264 + $0xb8] sm:$0xf] %v1256
      %1385 = vst [vmem:[%s264 + $0xbc] sm:$0xf] %v1257
      %1386 = vst [vmem:[%s264 + $0xc0] sm:$0xf] %v1258
      %1387 = vst [vmem:[%s264 + $0xc4] sm:$0xf] %v1259
      %1388 = vst [vmem:[%s264 + $0xc8] sm:$0xf] %v1260
      %1389 = vst [vmem:[%s264 + $0xcc] sm:$0xf] %v1261
      %1390 = vst [vmem:[%s264 + $0xd0] sm:$0xf] %v1262
      %1391 = vst [vmem:[%s264 + $0xd4] sm:$0xf] %v1263
      %1392 = vst [vmem:[%s264 + $0xd8] sm:$0xf] %v1264
      %1393 = vst [vmem:[%s264 + $0xdc] sm:$0xf] %v1265
      %1394 = vst [vmem:[%s264 + $0xe0] sm:$0xf] %v1266
      %1395 = vst [vmem:[%s264 + $0xe4] sm:$0xf] %v1267
      %1396 = vst [vmem:[%s264 + $0xe8] sm:$0xf] %v1268
      %1397 = vst [vmem:[%s264 + $0xec] sm:$0xf] %v1269
      %1398 = vst [vmem:[%s264 + $0xf0] sm:$0xf] %v1270
      %1399 = vst [vmem:[%s264 + $0xf4] sm:$0xf] %v1271
      %1400 = vst [vmem:[%s264 + $0xf8] sm:$0xf] %v1272
      %1401 = vst [vmem:[%s264 + $0xfc] sm:$0xf] %v1273
      %s1402 = smul.u32 64, %s19
      %p1403 = scmp.lt.s32.totalorder %s1402, 575
      %s1404 = scalar_select %p1403, %s1402, 575
      %p1405 = scmp.lt.s32.totalorder %s20, 0
      %s1406 = scalar_select %p1405, %s20, 0
      %s1407 = sadd.s32 %s1406, %s1404
      %s1408 = smul.addr %s1407, 4
      %s1409 = scalar_lea.vmem %s4, %s1408
      // Predicated region
      $region37: #{generator_forward.14} parent=35 // pred_check
        %p1410 = pneg %p151
      $region38: #{generator_forward.14} parent=35 // pred_check_branch
        %1412 = sbr.rel (%p1410) target = $region40
      $region39: #{generator_forward.14} parent=35 // pred_region
        %s1413 = smul.u32 64, %s19
      $region40: #{generator_forward.14} parent=35 // pred_fallthru
        _
    $region36: #{generator_forward.14} parent=5 // pred_fallthru
      _
    %p1414 = scmp.le.s32.totalorder 2, %s10
    // Predicated region
    $region41: #{generator_forward.14} parent=5 // pred_check
      %p1415 = pneg %p1414
    $region42: #{generator_forward.14} parent=5 // pred_check_branch
      %1417 = sbr.rel (%p1415) target = $region44
    $region43: #{generator_forward.14} parent=5 // pred_region
      %s1418 = ssub.s32 %s10, 2
      // Predicated region
      $region45: #{generator_forward.14} parent=43 // pred_check
        %p1419 = pneg %p157
      $region46: #{generator_forward.14} parent=43 // pred_check_branch
        %1421 = sbr.rel (%p1419) target = $region48
      $region47: #{generator_forward.14} parent=43 // pred_region
        %s1422 = smul.u32 64, %s21
        %p1423 = scmp.lt.s32.totalorder %s1422, 575
        %s1424 = scalar_select %p1423, %s1422, 575
        %p1425 = scmp.lt.s32.totalorder %s22, 0
        %s1426 = scalar_select %p1425, %s22, 0
        %s1427 = sadd.s32 %s1426, %s1424
        %s1428 = smul.addr %s1427, 4
        %s1429 = scalar_lea.vmem %s4, %s1428
      $region48: #{generator_forward.14} parent=43 // pred_fallthru
        _
    $region44: #{generator_forward.14} parent=5 // pred_fallthru
      _
  $region6: #{generator_forward.14} parent=0 // loop_footer
    %s14 = sadd.s32 1, %s10
  $region7: #{generator_forward.14} parent=0 // loop_footer_branch
    %9 = sbr.rel target = $region3
  $region8: #{generator_forward.14} parent=0 // loop_exit
    _

// kernel: generator_forward.15
$region0: #{generator_forward.15}
  #allocation0 [shape = 'u32[]', space=smem, size = 0x4, offset = 0x4, fixed_abs, tag = 'smem constant byte address 0x4 - core index']
  #allocation1 [shape = 'u32[144,128]{1,0:T(1,128)}', space=vmem, size = 0x12000, scoped, tag = 'internal scratch']
  %s0 = inlined_call_operand.vmem [shape: bf16[16896,128], index: 0, kind: input, shape index: {}]
  %s1 = inlined_call_operand.vmem [shape: bf16[128,128], index: 1, kind: input, shape index: {}]
  %s2 = inlined_call_operand.vmem [shape: f32[1,128], index: 2, kind: input, shape index: {}]
  %s3 = inlined_call_operand.vmem [shape: f32[1,128], index: 3, kind: input, shape index: {}]
  %s4 = inlined_call_operand.vmem [shape: f32[16896,128], index: 4, kind: output, shape index: {}]
  %s5 = sld [smem:[#allocation0]]
  $region49: #{generator_forward.15} parent=0
    _
  %s7 = ssub.s32 1, %s5
  %s8 = scalar_select 0, %s7, %s5
  loop: start=0, step=1, limit=35
  $region2: #{generator_forward.15} parent=0 // loop_pre_header
    _
  $region3: #{generator_forward.15} parent=0 // loop_header
    %s10 = sphi 0, %s14
    %p11 = scmp.ge.s32.totalorder %s10, 35
    %s17 = sphi 0, %s29
    %s18 = sphi 0, %s25
    %s19 = sphi 0, %s17
    %s20 = sphi 0, %s18
    %s21 = sphi 0, %s19
    %s22 = sphi 0, %s20
    %s32 = sphi 0, %s34
    %s35 = sphi 0, %s32
    %s36 = sphi 0, %s35
    %s52 = sphi 0, %s36
    %s58 = sphi 0, %s60
    %s61 = sphi 0, %s58
    %s62 = sphi 0, %s61
    %s78 = sphi 0, %s62
    %s84 = sphi 0, %s86
    %s87 = sphi 0, %s84
    %s88 = sphi 0, %s87
    %s104 = sphi 0, %s88
    %s110 = sphi 0, %s112
    %s113 = sphi 0, %s110
    %s114 = sphi 0, %s113
    %s130 = sphi 0, %s114
    %s138 = sphi 0, %s140
    %s141 = sphi 0, %s138
    %s142 = sphi 0, %s141
    %s158 = sphi 0, %s142
  $region4: #{generator_forward.15} parent=0 // loop_header_branch
    %13 = sbr.rel (%p11) target = $region8
  $region5: #{generator_forward.15} parent=0 // loop_body
    %s15 = ssub.s32 %s10, 1
    %s16 = ssub.s32 %s10, 2
    %s23 = sadd.s32 1, %s18
    %p24 = scmp.ge.s32.totalorder %s23, 1
    %s25 = scalar_select %p24, 0, %s23
    %s26 = sadd.s32 1, %s17
    %s27 = scalar_select %p24, %s26, %s17
    %p28 = scmp.ge.s32.totalorder %s27, 33
    %s29 = scalar_select %p28, 0, %s27
    %s30 = ssub.s32 %s17, %s29
    %p31 = scmp.eq.s32.totalorder %s30, 0
    %s33 = sadd.s32 %s32, 1
    %s34 = scalar_select %p31, %s32, %s33
    %p37 = pneg %p31
    %p38 = scmp.eq.s32.totalorder %s10, 32
    %p39 = por %p37, %p38
    %p40 = scmp.ne.s32.totalorder %s32, %s35
    %p41 = scmp.eq.s32.totalorder %s10, 0
    %p42 = por %p40, %p41
    %p43 = scmp.ne.s32.totalorder %s32, %s35
    %p44 = scmp.eq.s32.totalorder %s15, 32
    %p45 = por %p43, %p44
    %p46 = scmp.ne.s32.totalorder %s35, %s36
    %p47 = scmp.eq.s32.totalorder %s15, 0
    %p48 = por %p46, %p47
    %p49 = scmp.ne.s32.totalorder %s35, %s36
    %p50 = scmp.eq.s32.totalorder %s16, 32
    %p51 = por %p49, %p50
    %p53 = scmp.ne.s32.totalorder %s36, %s52
    %p54 = scmp.eq.s32.totalorder %s16, 0
    %p55 = por %p53, %p54
    %s56 = ssub.s32 %s18, %s25
    %p57 = scmp.eq.s32.totalorder %s56, 0
    %s59 = sadd.s32 %s58, 1
    %s60 = scalar_select %p57, %s58, %s59
    %p63 = pneg %p57
    %p64 = scmp.eq.s32.totalorder %s10, 32
    %p65 = por %p63, %p64
    %p66 = scmp.ne.s32.totalorder %s58, %s61
    %p67 = scmp.eq.s32.totalorder %s10, 0
    %p68 = por %p66, %p67
    %p69 = scmp.ne.s32.totalorder %s58, %s61
    %p70 = scmp.eq.s32.totalorder %s15, 32
    %p71 = por %p69, %p70
    %p72 = scmp.ne.s32.totalorder %s61, %s62
    %p73 = scmp.eq.s32.totalorder %s15, 0
    %p74 = por %p72, %p73
    %p75 = scmp.ne.s32.totalorder %s61, %s62
    %p76 = scmp.eq.s32.totalorder %s16, 32
    %p77 = por %p75, %p76
    %p79 = scmp.ne.s32.totalorder %s62, %s78
    %p80 = scmp.eq.s32.totalorder %s16, 0
    %p81 = por %p79, %p80
    %s82 = ssub.s32 %s18, %s25
    %p83 = scmp.eq.s32.totalorder %s82, 0
    %s85 = sadd.s32 %s84, 1
    %s86 = scalar_select %p83, %s84, %s85
    %p89 = pneg %p83
    %p90 = scmp.eq.s32.totalorder %s10, 32
    %p91 = por %p89, %p90
    %p92 = scmp.ne.s32.totalorder %s84, %s87
    %p93 = scmp.eq.s32.totalorder %s10, 0
    %p94 = por %p92, %p93
    %p95 = scmp.ne.s32.totalorder %s84, %s87
    %p96 = scmp.eq.s32.totalorder %s15, 32
    %p97 = por %p95, %p96
    %p98 = scmp.ne.s32.totalorder %s87, %s88
    %p99 = scmp.eq.s32.totalorder %s15, 0
    %p100 = por %p98, %p99
    %p101 = scmp.ne.s32.totalorder %s87, %s88
    %p102 = scmp.eq.s32.totalorder %s16, 32
    %p103 = por %p101, %p102
    %p105 = scmp.ne.s32.totalorder %s88, %s104
    %p106 = scmp.eq.s32.totalorder %s16, 0
    %p107 = por %p105, %p106
    %s108 = ssub.s32 %s18, %s25
    %p109 = scmp.eq.s32.totalorder %s108, 0
    %s111 = sadd.s32 %s110, 1
    %s112 = scalar_select %p109, %s110, %s111
    %p115 = pneg %p109
    %p116 = scmp.eq.s32.totalorder %s10, 32
    %p117 = por %p115, %p116
    %p118 = scmp.ne.s32.totalorder %s110, %s113
    %p119 = scmp.eq.s32.totalorder %s10, 0
    %p120 = por %p118, %p119
    %p121 = scmp.ne.s32.totalorder %s110, %s113
    %p122 = scmp.eq.s32.totalorder %s15, 32
    %p123 = por %p121, %p122
    %p124 = scmp.ne.s32.totalorder %s113, %s114
    %p125 = scmp.eq.s32.totalorder %s15, 0
    %p126 = por %p124, %p125
    %p127 = scmp.ne.s32.totalorder %s113, %s114
    %p128 = scmp.eq.s32.totalorder %s16, 32
    %p129 = por %p127, %p128
    %p131 = scmp.ne.s32.totalorder %s114, %s130
    %p132 = scmp.eq.s32.totalorder %s16, 0
    %p133 = por %p131, %p132
    %s134 = ssub.s32 %s17, %s29
    %s135 = ssub.s32 %s18, %s25
    %s136 = sor.u32 %s134, %s135
    %p137 = scmp.eq.s32.totalorder %s136, 0
    %s139 = sadd.s32 %s138, 1
    %s140 = scalar_select %p137, %s138, %s139
    %p143 = pneg %p137
    %p144 = scmp.eq.s32.totalorder %s10, 32
    %p145 = por %p143, %p144
    %p146 = scmp.ne.s32.totalorder %s138, %s141
    %p147 = scmp.eq.s32.totalorder %s10, 0
    %p148 = por %p146, %p147
    %p149 = scmp.ne.s32.totalorder %s138, %s141
    %p150 = scmp.eq.s32.totalorder %s15, 32
    %p151 = por %p149, %p150
    %p152 = scmp.ne.s32.totalorder %s141, %s142
    %p153 = scmp.eq.s32.totalorder %s15, 0
    %p154 = por %p152, %p153
    %p155 = scmp.ne.s32.totalorder %s141, %s142
    %p156 = scmp.eq.s32.totalorder %s16, 32
    %p157 = por %p155, %p156
    %p159 = scmp.ne.s32.totalorder %s142, %s158
    %p160 = scmp.eq.s32.totalorder %s16, 0
    %p161 = por %p159, %p160
    %p162 = scmp.le.s32.totalorder 1, %s10
    %p163 = scmp.lt.s32.totalorder %s10, 34
    %p164 = pnand %p162, %p163
    %p165 = pneg %p164
    // Predicated region
    $region9: #{generator_forward.15} parent=5 // pred_check
      _
    $region10: #{generator_forward.15} parent=5 // pred_check_branch
      %167 = sbr.rel (%p164) target = $region12
    $region11: #{generator_forward.15} parent=5 // pred_region
      %s168 = ssub.s32 %s10, 1
      // Predicated region
      $region13: #{generator_forward.15} parent=11 // pred_check
        %p169 = pneg %p74
      $region14: #{generator_forward.15} parent=11 // pred_check_branch
        %171 = sbr.rel (%p169) target = $region16
      $region15: #{generator_forward.15} parent=11 // pred_region
        %p172 = scmp.lt.s32.totalorder %s20, 0
        %s173 = scalar_select %p172, %s20, 0
        %s174 = smul.addr %s173, 4
        %s175 = scalar_lea.vmem %s1, %s174
      $region16: #{generator_forward.15} parent=11 // pred_fallthru
        _
      // Predicated region
      $region17: #{generator_forward.15} parent=11 // pred_check
        %p176 = pneg %p100
      $region18: #{generator_forward.15} parent=11 // pred_check_branch
        %178 = sbr.rel (%p176) target = $region20
      $region19: #{generator_forward.15} parent=11 // pred_region
        %p179 = scmp.lt.s32.totalorder %s20, 0
        %s180 = scalar_select %p179, %s20, 0
        %s181 = scalar_lea.vmem %s2, %s180
      $region20: #{generator_forward.15} parent=11 // pred_fallthru
        _
      // Predicated region
      $region21: #{generator_forward.15} parent=11 // pred_check
        %p182 = pneg %p126
      $region22: #{generator_forward.15} parent=11 // pred_check_branch
        %184 = sbr.rel (%p182) target = $region24
      $region23: #{generator_forward.15} parent=11 // pred_region
        %p185 = scmp.lt.s32.totalorder %s20, 0
        %s186 = scalar_select %p185, %s20, 0
        %s187 = scalar_lea.vmem %s3, %s186
      $region24: #{generator_forward.15} parent=11 // pred_fallthru
        _
    $region12: #{generator_forward.15} parent=5 // pred_fallthru
      _
    %p188 = scmp.lt.s32.totalorder %s10, 33
    // Predicated region
    $region25: #{generator_forward.15} parent=5 // pred_check
      %p189 = pneg %p188
    $region26: #{generator_forward.15} parent=5 // pred_check_branch
      %191 = sbr.rel (%p189) target = $region28
    $region27: #{generator_forward.15} parent=5 // pred_region
      // Predicated region
      $region29: #{generator_forward.15} parent=27 // pred_check
        %p192 = pneg %p42
      $region30: #{generator_forward.15} parent=27 // pred_check_branch
        %194 = sbr.rel (%p192) target = $region32
      $region31: #{generator_forward.15} parent=27 // pred_region
        %s195 = smul.u32 64, %s17
        %p196 = scmp.lt.s32.totalorder %s195, 2111
        %s197 = scalar_select %p196, %s195, 2111
        %s198 = smul.addr %s197, 4
        %s199 = scalar_lea.vmem %s0, %s198
        %s200 = smul.u32 64, %s17
      $region32: #{generator_forward.15} parent=27 // pred_fallthru
        _
    $region28: #{generator_forward.15} parent=5 // pred_fallthru
      _
    %p201 = scmp.le.s32.totalorder 1, %s10
    %p202 = scmp.lt.s32.totalorder %s10, 34
    %p203 = pnand %p201, %p202
    %p204 = pneg %p203
    // Predicated region
    $region33: #{generator_forward.15} parent=5 // pred_check
      _
    $region34: #{generator_forward.15} parent=5 // pred_check_branch
      %206 = sbr.rel (%p203) target = $region36
    $region35: #{generator_forward.15} parent=5 // pred_region
      %s207 = ssub.s32 %s10, 1
      %s208 = smul.u32 64, %s19
      %p209 = scmp.lt.s32.totalorder %s208, 2111
      %s210 = scalar_select %p209, %s208, 2111
      %s211 = smul.addr %s210, 4
      %s212 = scalar_lea.vmem %s0, %s211
      %p213 = pneg %p48
      %p214 = pneg %p45
      %p215 = scmp.lt.s32.totalorder %s20, 0
      %s216 = scalar_select %p215, %s20, 0
      %s217 = smul.addr %s216, 4
      %s218 = scalar_lea.vmem %s1, %s217
      %p219 = pneg %p74
      %p220 = pneg %p71
      %p221 = scmp.lt.s32.totalorder %s20, 0
      %s222 = scalar_select %p221, %s20, 0
      %s223 = scalar_lea.vmem %s2, %s222
      %p224 = pneg %p100
      %p225 = pneg %p97
      %p226 = scmp.lt.s32.totalorder %s20, 0
      %s227 = scalar_select %p226, %s20, 0
      %s228 = scalar_lea.vmem %s3, %s227
      %p229 = pneg %p126
      %p230 = pneg %p123
      %p231 = pneg %p154
      %p232 = pneg %p151
      %s233 = smul.u32 64, %s19
      %p234 = scmp.lt.s32.totalorder %s233, 2111
      %s235 = scalar_select %p234, %s233, 2111
      %p236 = scmp.lt.s32.totalorder %s20, 0
      %s237 = scalar_select %p236, %s20, 0
      %s238 = sadd.s32 %s237, %s235
      %s239 = smul.addr %s238, 8
      %s240 = scalar_lea.vmem %s4, %s239
      %s241 = smul.u32 64, %s19
      %p242 = scmp.lt.s32.totalorder %s241, 2111
      %s243 = scalar_select %p242, %s241, 2111
      %s244 = smul.addr %s243, 4
      %s245 = scalar_lea.vmem %s0, %s244
      %s246 = smul.u32 64, %s19
      %p247 = scmp.lt.s32.totalorder %s20, 0
      %s248 = scalar_select %p247, %s20, 0
      %s249 = smul.addr %s248, 4
      %s250 = scalar_lea.vmem %s1, %s249
      %p251 = scmp.lt.s32.totalorder %s20, 0
      %s252 = scalar_select %p251, %s20, 0
      %s253 = scalar_lea.vmem %s2, %s252
      %p254 = scmp.lt.s32.totalorder %s20, 0
      %s255 = scalar_select %p254, %s20, 0
      %s256 = scalar_lea.vmem %s3, %s255
      %s257 = smul.u32 64, %s19
      %p258 = scmp.lt.s32.totalorder %s257, 2111
      %s259 = scalar_select %p258, %s257, 2111
      %p260 = scmp.lt.s32.totalorder %s20, 0
      %s261 = scalar_select %p260, %s20, 0
      %s262 = sadd.s32 %s261, %s259
      %s263 = smul.addr %s262, 8
      %s264 = scalar_lea.vmem %s4, %s263
      %s265 = smul.u32 64, %s19
      %v267 = vld [vmem:[%s245] sm:$0xf]
      %v268 = vld [vmem:[%s245 + $0x4] sm:$0xf]
      %v269 = vld [vmem:[%s245 + $0x8] sm:$0xf]
      %v270 = vld [vmem:[%s245 + $0xc] sm:$0xf]
      %v271 = vld [vmem:[%s245 + $0x10] sm:$0xf]
      %v272 = vld [vmem:[%s245 + $0x14] sm:$0xf]
      %v273 = vld [vmem:[%s245 + $0x18] sm:$0xf]
      %v274 = vld [vmem:[%s245 + $0x1c] sm:$0xf]
      %v275 = vld [vmem:[%s245 + $0x20] sm:$0xf]
      %v276 = vld [vmem:[%s245 + $0x24] sm:$0xf]
      %v277 = vld [vmem:[%s245 + $0x28] sm:$0xf]
      %v278 = vld [vmem:[%s245 + $0x2c] sm:$0xf]
      %v279 = vld [vmem:[%s245 + $0x30] sm:$0xf]
      %v280 = vld [vmem:[%s245 + $0x34] sm:$0xf]
      %v281 = vld [vmem:[%s245 + $0x38] sm:$0xf]
      %v282 = vld [vmem:[%s245 + $0x3c] sm:$0xf]
      %v283 = vld [vmem:[%s245 + $0x40] sm:$0xf]
      %v284 = vld [vmem:[%s245 + $0x44] sm:$0xf]
      %v285 = vld [vmem:[%s245 + $0x48] sm:$0xf]
      %v286 = vld [vmem:[%s245 + $0x4c] sm:$0xf]
      %v287 = vld [vmem:[%s245 + $0x50] sm:$0xf]
      %v288 = vld [vmem:[%s245 + $0x54] sm:$0xf]
      %v289 = vld [vmem:[%s245 + $0x58] sm:$0xf]
      %v290 = vld [vmem:[%s245 + $0x5c] sm:$0xf]
      %v291 = vld [vmem:[%s245 + $0x60] sm:$0xf]
      %v292 = vld [vmem:[%s245 + $0x64] sm:$0xf]
      %v293 = vld [vmem:[%s245 + $0x68] sm:$0xf]
      %v294 = vld [vmem:[%s245 + $0x6c] sm:$0xf]
      %v295 = vld [vmem:[%s245 + $0x70] sm:$0xf]
      %v296 = vld [vmem:[%s245 + $0x74] sm:$0xf]
      %v297 = vld [vmem:[%s245 + $0x78] sm:$0xf]
      %v298 = vld [vmem:[%s245 + $0x7c] sm:$0xf]
      %v299 = vld [vmem:[%s245 + $0x80] sm:$0xf]
      %v300 = vld [vmem:[%s245 + $0x84] sm:$0xf]
      %v301 = vld [vmem:[%s245 + $0x88] sm:$0xf]
      %v302 = vld [vmem:[%s245 + $0x8c] sm:$0xf]
      %v303 = vld [vmem:[%s245 + $0x90] sm:$0xf]
      %v304 = vld [vmem:[%s245 + $0x94] sm:$0xf]
      %v305 = vld [vmem:[%s245 + $0x98] sm:$0xf]
      %v306 = vld [vmem:[%s245 + $0x9c] sm:$0xf]
      %v307 = vld [vmem:[%s245 + $0xa0] sm:$0xf]
      %v308 = vld [vmem:[%s245 + $0xa4] sm:$0xf]
      %v309 = vld [vmem:[%s245 + $0xa8] sm:$0xf]
      %v310 = vld [vmem:[%s245 + $0xac] sm:$0xf]
      %v311 = vld [vmem:[%s245 + $0xb0] sm:$0xf]
      %v312 = vld [vmem:[%s245 + $0xb4] sm:$0xf]
      %v313 = vld [vmem:[%s245 + $0xb8] sm:$0xf]
      %v314 = vld [vmem:[%s245 + $0xbc] sm:$0xf]
      %v315 = vld [vmem:[%s245 + $0xc0] sm:$0xf]
      %v316 = vld [vmem:[%s245 + $0xc4] sm:$0xf]
      %v317 = vld [vmem:[%s245 + $0xc8] sm:$0xf]
      %v318 = vld [vmem:[%s245 + $0xcc] sm:$0xf]
      %v319 = vld [vmem:[%s245 + $0xd0] sm:$0xf]
      %v320 = vld [vmem:[%s245 + $0xd4] sm:$0xf]
      %v321 = vld [vmem:[%s245 + $0xd8] sm:$0xf]
      %v322 = vld [vmem:[%s245 + $0xdc] sm:$0xf]
      %v323 = vld [vmem:[%s245 + $0xe0] sm:$0xf]
      %v324 = vld [vmem:[%s245 + $0xe4] sm:$0xf]
      %v325 = vld [vmem:[%s245 + $0xe8] sm:$0xf]
      %v326 = vld [vmem:[%s245 + $0xec] sm:$0xf]
      %v327 = vld [vmem:[%s245 + $0xf0] sm:$0xf]
      %v328 = vld [vmem:[%s245 + $0xf4] sm:$0xf]
      %v329 = vld [vmem:[%s245 + $0xf8] sm:$0xf]
      %v330 = vld [vmem:[%s245 + $0xfc] sm:$0xf]
      %v331 = vmax.bf16 %v267, 0
      %v332 = vmax.bf16 %v268, 0
      %v333 = vmax.bf16 %v269, 0
      %v334 = vmax.bf16 %v270, 0
      %v335 = vmax.bf16 %v271, 0
      %v336 = vmax.bf16 %v272, 0
      %v337 = vmax.bf16 %v273, 0
      %v338 = vmax.bf16 %v274, 0
      %v339 = vmax.bf16 %v275, 0
      %v340 = vmax.bf16 %v276, 0
      %v341 = vmax.bf16 %v277, 0
      %v342 = vmax.bf16 %v278, 0
      %v343 = vmax.bf16 %v279, 0
      %v344 = vmax.bf16 %v280, 0
      %v345 = vmax.bf16 %v281, 0
      %v346 = vmax.bf16 %v282, 0
      %v347 = vmax.bf16 %v283, 0
      %v348 = vmax.bf16 %v284, 0
      %v349 = vmax.bf16 %v285, 0
      %v350 = vmax.bf16 %v286, 0
      %v351 = vmax.bf16 %v287, 0
      %v352 = vmax.bf16 %v288, 0
      %v353 = vmax.bf16 %v289, 0
      %v354 = vmax.bf16 %v290, 0
      %v355 = vmax.bf16 %v291, 0
      %v356 = vmax.bf16 %v292, 0
      %v357 = vmax.bf16 %v293, 0
      %v358 = vmax.bf16 %v294, 0
      %v359 = vmax.bf16 %v295, 0
      %v360 = vmax.bf16 %v296, 0
      %v361 = vmax.bf16 %v297, 0
      %v362 = vmax.bf16 %v298, 0
      %v363 = vmax.bf16 %v299, 0
      %v364 = vmax.bf16 %v300, 0
      %v365 = vmax.bf16 %v301, 0
      %v366 = vmax.bf16 %v302, 0
      %v367 = vmax.bf16 %v303, 0
      %v368 = vmax.bf16 %v304, 0
      %v369 = vmax.bf16 %v305, 0
      %v370 = vmax.bf16 %v306, 0
      %v371 = vmax.bf16 %v307, 0
      %v372 = vmax.bf16 %v308, 0
      %v373 = vmax.bf16 %v309, 0
      %v374 = vmax.bf16 %v310, 0
      %v375 = vmax.bf16 %v311, 0
      %v376 = vmax.bf16 %v312, 0
      %v377 = vmax.bf16 %v313, 0
      %v378 = vmax.bf16 %v314, 0
      %v379 = vmax.bf16 %v315, 0
      %v380 = vmax.bf16 %v316, 0
      %v381 = vmax.bf16 %v317, 0
      %v382 = vmax.bf16 %v318, 0
      %v383 = vmax.bf16 %v319, 0
      %v384 = vmax.bf16 %v320, 0
      %v385 = vmax.bf16 %v321, 0
      %v386 = vmax.bf16 %v322, 0
      %v387 = vmax.bf16 %v323, 0
      %v388 = vmax.bf16 %v324, 0
      %v389 = vmax.bf16 %v325, 0
      %v390 = vmax.bf16 %v326, 0
      %v391 = vmax.bf16 %v327, 0
      %v392 = vmax.bf16 %v328, 0
      %v393 = vmax.bf16 %v329, 0
      %v394 = vmax.bf16 %v330, 0
      %v395 = vld [vmem:[%s250] sm:$0xf]
      %v396 = vld [vmem:[%s250 + $0x4] sm:$0xf]
      %v397 = vld [vmem:[%s250 + $0x8] sm:$0xf]
      %v398 = vld [vmem:[%s250 + $0xc] sm:$0xf]
      %v399 = vld [vmem:[%s250 + $0x10] sm:$0xf]
      %v400 = vld [vmem:[%s250 + $0x14] sm:$0xf]
      %v401 = vld [vmem:[%s250 + $0x18] sm:$0xf]
      %v402 = vld [vmem:[%s250 + $0x1c] sm:$0xf]
      %v403 = vld [vmem:[%s250 + $0x20] sm:$0xf]
      %v404 = vld [vmem:[%s250 + $0x24] sm:$0xf]
      %v405 = vld [vmem:[%s250 + $0x28] sm:$0xf]
      %v406 = vld [vmem:[%s250 + $0x2c] sm:$0xf]
      %v407 = vld [vmem:[%s250 + $0x30] sm:$0xf]
      %v408 = vld [vmem:[%s250 + $0x34] sm:$0xf]
      %v409 = vld [vmem:[%s250 + $0x38] sm:$0xf]
      %v410 = vld [vmem:[%s250 + $0x3c] sm:$0xf]
      %v475 = vunpack.c.l.b16 %v331
      %v476 = vunpack.c.l.b16 %v332
      %v477 = vunpack.c.l.b16 %v333
      %v478 = vunpack.c.l.b16 %v334
      %v479 = vunpack.c.l.b16 %v335
      %v480 = vunpack.c.l.b16 %v336
      %v481 = vunpack.c.l.b16 %v337
      %v482 = vunpack.c.l.b16 %v338
      %v483 = vunpack.c.l.b16 %v339
      %v484 = vunpack.c.l.b16 %v340
      %v485 = vunpack.c.l.b16 %v341
      %v486 = vunpack.c.l.b16 %v342
      %v487 = vunpack.c.l.b16 %v343
      %v488 = vunpack.c.l.b16 %v344
      %v489 = vunpack.c.l.b16 %v345
      %v490 = vunpack.c.l.b16 %v346
      %v491 = vunpack.c.l.b16 %v347
      %v492 = vunpack.c.l.b16 %v348
      %v493 = vunpack.c.l.b16 %v349
      %v494 = vunpack.c.l.b16 %v350
      %v495 = vunpack.c.l.b16 %v351
      %v496 = vunpack.c.l.b16 %v352
      %v497 = vunpack.c.l.b16 %v353
      %v498 = vunpack.c.l.b16 %v354
      %v499 = vunpack.c.l.b16 %v355
      %v500 = vunpack.c.l.b16 %v356
      %v501 = vunpack.c.l.b16 %v357
      %v502 = vunpack.c.l.b16 %v358
      %v503 = vunpack.c.l.b16 %v359
      %v504 = vunpack.c.l.b16 %v360
      %v505 = vunpack.c.l.b16 %v361
      %v506 = vunpack.c.l.b16 %v362
      %v507 = vunpack.c.l.b16 %v363
      %v508 = vunpack.c.l.b16 %v364
      %v509 = vunpack.c.l.b16 %v365
      %v510 = vunpack.c.l.b16 %v366
      %v511 = vunpack.c.l.b16 %v367
      %v512 = vunpack.c.l.b16 %v368
      %v513 = vunpack.c.l.b16 %v369
      %v514 = vunpack.c.l.b16 %v370
      %v515 = vunpack.c.l.b16 %v371
      %v516 = vunpack.c.l.b16 %v372
      %v517 = vunpack.c.l.b16 %v373
      %v518 = vunpack.c.l.b16 %v374
      %v519 = vunpack.c.l.b16 %v375
      %v520 = vunpack.c.l.b16 %v376
      %v521 = vunpack.c.l.b16 %v377
      %v522 = vunpack.c.l.b16 %v378
      %v523 = vunpack.c.l.b16 %v379
      %v524 = vunpack.c.l.b16 %v380
      %v525 = vunpack.c.l.b16 %v381
      %v526 = vunpack.c.l.b16 %v382
      %v527 = vunpack.c.l.b16 %v383
      %v528 = vunpack.c.l.b16 %v384
      %v529 = vunpack.c.l.b16 %v385
      %v530 = vunpack.c.l.b16 %v386
      %v531 = vunpack.c.l.b16 %v387
      %v532 = vunpack.c.l.b16 %v388
      %v533 = vunpack.c.l.b16 %v389
      %v534 = vunpack.c.l.b16 %v390
      %v535 = vunpack.c.l.b16 %v391
      %v536 = vunpack.c.l.b16 %v392
      %v537 = vunpack.c.l.b16 %v393
      %v538 = vunpack.c.l.b16 %v394
      %v539 = vpack.c.b16 %v476, %v475
      %v540 = vpack.c.b16 %v478, %v477
      %v541 = vpack.c.b16 %v480, %v479
      %v542 = vpack.c.b16 %v482, %v481
      %v543 = vpack.c.b16 %v484, %v483
      %v544 = vpack.c.b16 %v486, %v485
      %v545 = vpack.c.b16 %v488, %v487
      %v546 = vpack.c.b16 %v490, %v489
      %v547 = vpack.c.b16 %v492, %v491
      %v548 = vpack.c.b16 %v494, %v493
      %v549 = vpack.c.b16 %v496, %v495
      %v550 = vpack.c.b16 %v498, %v497
      %v551 = vpack.c.b16 %v500, %v499
      %v552 = vpack.c.b16 %v502, %v501
      %v553 = vpack.c.b16 %v504, %v503
      %v554 = vpack.c.b16 %v506, %v505
      %v555 = vpack.c.b16 %v508, %v507
      %v556 = vpack.c.b16 %v510, %v509
      %v557 = vpack.c.b16 %v512, %v511
      %v558 = vpack.c.b16 %v514, %v513
      %v559 = vpack.c.b16 %v516, %v515
      %v560 = vpack.c.b16 %v518, %v517
      %v561 = vpack.c.b16 %v520, %v519
      %v562 = vpack.c.b16 %v522, %v521
      %v563 = vpack.c.b16 %v524, %v523
      %v564 = vpack.c.b16 %v526, %v525
      %v565 = vpack.c.b16 %v528, %v527
      %v566 = vpack.c.b16 %v530, %v529
      %v567 = vpack.c.b16 %v532, %v531
      %v568 = vpack.c.b16 %v534, %v533
      %v569 = vpack.c.b16 %v536, %v535
      %v570 = vpack.c.b16 %v538, %v537
      %v619 = vunpack.c.l.b16 %v395
      %v620 = vunpack.c.l.b16 %v396
      %v621 = vunpack.c.l.b16 %v397
      %v622 = vunpack.c.l.b16 %v398
      %v623 = vunpack.c.l.b16 %v399
      %v624 = vunpack.c.l.b16 %v400
      %v625 = vunpack.c.l.b16 %v401
      %v626 = vunpack.c.l.b16 %v402
      %v627 = vunpack.c.l.b16 %v403
      %v628 = vunpack.c.l.b16 %v404
      %v629 = vunpack.c.l.b16 %v405
      %v630 = vunpack.c.l.b16 %v406
      %v631 = vunpack.c.l.b16 %v407
      %v632 = vunpack.c.l.b16 %v408
      %v633 = vunpack.c.l.b16 %v409
      %v634 = vunpack.c.l.b16 %v410
      %v635 = vpack.c.b16 %v620, %v619
      %v636 = vpack.c.b16 %v622, %v621
      %v637 = vpack.c.b16 %v624, %v623
      %v638 = vpack.c.b16 %v626, %v625
      %v639 = vpack.c.b16 %v628, %v627
      %v640 = vpack.c.b16 %v630, %v629
      %v641 = vpack.c.b16 %v632, %v631
      %v642 = vpack.c.b16 %v634, %v633
      %651 = vmatprep.subr.bf16.mxu0 0
      %652 = vmatpush1.bf16.msra.mxu0 %v635
      %653 = vmatprep.subr.bf16.mxu0 0
      %654 = vmatpush1.bf16.msra.mxu0 %v636
      %655 = vmatprep.subr.bf16.mxu0 0
      %656 = vmatpush1.bf16.msra.mxu0 %v637
      %657 = vmatprep.subr.bf16.mxu0 0
      %658 = vmatpush1.bf16.msra.mxu0 %v638
      %659 = vmatprep.subr.bf16.mxu0 0
      %660 = vmatpush1.bf16.msra.mxu0 %v639
      %661 = vmatprep.subr.bf16.mxu0 0
      %662 = vmatpush1.bf16.msra.mxu0 %v640
      %663 = vmatprep.subr.bf16.mxu0 0
      %664 = vmatpush1.bf16.msra.mxu0 %v641
      %665 = vmatprep.subr.bf16.mxu0 0
      %666 = vmatpush1.bf16.msra.mxu0 %v642
      %667 = vmatprep.subr.bf16.mxu0 0
      %668 = vmatpush1.bf16.msra.mxu0 0
      %669 = vmatprep.subr.bf16.mxu0 0
      %670 = vmatpush1.bf16.msra.mxu0 0
      %671 = vmatprep.subr.bf16.mxu0 0
      %672 = vmatpush1.bf16.msra.mxu0 0
      %673 = vmatprep.subr.bf16.mxu0 0
      %674 = vmatpush1.bf16.msra.mxu0 0
      %675 = vmatprep.subr.bf16.mxu0 0
      %676 = vmatpush1.bf16.msra.mxu0 0
      %677 = vmatprep.subr.bf16.mxu0 0
      %678 = vmatpush1.bf16.msra.mxu0 0
      %679 = vmatprep.subr.bf16.mxu0 0
      %680 = vmatpush1.bf16.msra.mxu0 0
      %681 = vmatprep.subr.bf16.mxu0 0
      %682 = vmatpush1.bf16.msra.mxu0 0
      %683 = vmatprep.mubr.bf16.mxu0 0
      %684 = vmatmul.mubr.bf16.gmra.mrb[0].mxu0 %v539
      %v685 = vpop.f32.mrb[0].mxu0
      %v686 = vadd.f32 0.0, %v685
      %v687 = vpop.f32.mrb[0].mxu0
      %v688 = vpop.f32.mrb[0].mxu0
      %v689 = vadd.f32 0.0, %v688
      %v690 = vpop.f32.mrb[0].mxu0
      %691 = vmatprep.mubr.bf16.mxu0 0
      %692 = vmatmul.mubr.bf16.gmra.mrb[0].mxu0 %v540
      %v693 = vpop.f32.mrb[0].mxu0
      %v694 = vadd.f32 0.0, %v693
      %v695 = vpop.f32.mrb[0].mxu0
      %v696 = vpop.f32.mrb[0].mxu0
      %v697 = vadd.f32 0.0, %v696
      %v698 = vpop.f32.mrb[0].mxu0
      %699 = vmatprep.mubr.bf16.mxu0 0
      %700 = vmatmul.mubr.bf16.gmra.mrb[0].mxu0 %v541
      %v701 = vpop.f32.mrb[0].mxu0
      %v702 = vadd.f32 0.0, %v701
      %v703 = vpop.f32.mrb[0].mxu0
      %v704 = vpop.f32.mrb[0].mxu0
      %v705 = vadd.f32 0.0, %v704
      %v706 = vpop.f32.mrb[0].mxu0
      %707 = vmatprep.mubr.bf16.mxu0 0
      %708 = vmatmul.mubr.bf16.gmra.mrb[0].mxu0 %v542
      %v709 = vpop.f32.mrb[0].mxu0
      %v710 = vadd.f32 0.0, %v709
      %v711 = vpop.f32.mrb[0].mxu0
      %v712 = vpop.f32.mrb[0].mxu0
      %v713 = vadd.f32 0.0, %v712
      %v714 = vpop.f32.mrb[0].mxu0
      %715 = vmatprep.mubr.bf16.mxu0 0
      %716 = vmatmul.mubr.bf16.gmra.mrb[0].mxu0 %v543
      %v717 = vpop.f32.mrb[0].mxu0
      %v718 = vadd.f32 0.0, %v717
      %v719 = vpop.f32.mrb[0].mxu0
      %v720 = vpop.f32.mrb[0].mxu0
      %v721 = vadd.f32 0.0, %v720
      %v722 = vpop.f32.mrb[0].mxu0
      %723 = vmatprep.mubr.bf16.mxu0 0
      %724 = vmatmul.mubr.bf16.gmra.mrb[0].mxu0 %v544
      %v725 = vpop.f32.mrb[0].mxu0
      %v726 = vadd.f32 0.0, %v725
      %v727 = vpop.f32.mrb[0].mxu0
      %v728 = vpop.f32.mrb[0].mxu0
      %v729 = vadd.f32 0.0, %v728
      %v730 = vpop.f32.mrb[0].mxu0
      %731 = vmatprep.mubr.bf16.mxu0 0
      %732 = vmatmul.mubr.bf16.gmra.mrb[0].mxu0 %v545
      %v733 = vpop.f32.mrb[0].mxu0
      %v734 = vadd.f32 0.0, %v733
      %v735 = vpop.f32.mrb[0].mxu0
      %v736 = vpop.f32.mrb[0].mxu0
      %v737 = vadd.f32 0.0, %v736
      %v738 = vpop.f32.mrb[0].mxu0
      %739 = vmatprep.mubr.bf16.mxu0 0
      %740 = vmatmul.mubr.bf16.gmra.mrb[0].mxu0 %v546
      %v741 = vpop.f32.mrb[0].mxu0
      %v742 = vadd.f32 0.0, %v741
      %v743 = vpop.f32.mrb[0].mxu0
      %v744 = vpop.f32.mrb[0].mxu0
      %v745 = vadd.f32 0.0, %v744
      %v746 = vpop.f32.mrb[0].mxu0
      %747 = vmatprep.mubr.bf16.mxu0 0
      %748 = vmatmul.mubr.bf16.gmra.mrb[0].mxu0 %v547
      %v749 = vpop.f32.mrb[0].mxu0
      %v750 = vadd.f32 0.0, %v749
      %v751 = vpop.f32.mrb[0].mxu0
      %v752 = vpop.f32.mrb[0].mxu0
      %v753 = vadd.f32 0.0, %v752
      %v754 = vpop.f32.mrb[0].mxu0
      %755 = vmatprep.mubr.bf16.mxu0 0
      %756 = vmatmul.mubr.bf16.gmra.mrb[0].mxu0 %v548
      %v757 = vpop.f32.mrb[0].mxu0
      %v758 = vadd.f32 0.0, %v757
      %v759 = vpop.f32.mrb[0].mxu0
      %v760 = vpop.f32.mrb[0].mxu0
      %v761 = vadd.f32 0.0, %v760
      %v762 = vpop.f32.mrb[0].mxu0
      %763 = vmatprep.mubr.bf16.mxu0 0
      %764 = vmatmul.mubr.bf16.gmra.mrb[0].mxu0 %v549
      %v765 = vpop.f32.mrb[0].mxu0
      %v766 = vadd.f32 0.0, %v765
      %v767 = vpop.f32.mrb[0].mxu0
      %v768 = vpop.f32.mrb[0].mxu0
      %v769 = vadd.f32 0.0, %v768
      %v770 = vpop.f32.mrb[0].mxu0
      %771 = vmatprep.mubr.bf16.mxu0 0
      %772 = vmatmul.mubr.bf16.gmra.mrb[0].mxu0 %v550
      %v773 = vpop.f32.mrb[0].mxu0
      %v774 = vadd.f32 0.0, %v773
      %v775 = vpop.f32.mrb[0].mxu0
      %v776 = vpop.f32.mrb[0].mxu0
      %v777 = vadd.f32 0.0, %v776
      %v778 = vpop.f32.mrb[0].mxu0
      %779 = vmatprep.mubr.bf16.mxu0 0
      %780 = vmatmul.mubr.bf16.gmra.mrb[0].mxu0 %v551
      %v781 = vpop.f32.mrb[0].mxu0
      %v782 = vadd.f32 0.0, %v781
      %v783 = vpop.f32.mrb[0].mxu0
      %v784 = vpop.f32.mrb[0].mxu0
      %v785 = vadd.f32 0.0, %v784
      %v786 = vpop.f32.mrb[0].mxu0
      %787 = vmatprep.mubr.bf16.mxu0 0
      %788 = vmatmul.mubr.bf16.gmra.mrb[0].mxu0 %v552
      %v789 = vpop.f32.mrb[0].mxu0
      %v790 = vadd.f32 0.0, %v789
      %v791 = vpop.f32.mrb[0].mxu0
      %v792 = vpop.f32.mrb[0].mxu0
      %v793 = vadd.f32 0.0, %v792
      %v794 = vpop.f32.mrb[0].mxu0
      %795 = vmatprep.mubr.bf16.mxu0 0
      %796 = vmatmul.mubr.bf16.gmra.mrb[0].mxu0 %v553
      %v797 = vpop.f32.mrb[0].mxu0
      %v798 = vadd.f32 0.0, %v797
      %v799 = vpop.f32.mrb[0].mxu0
      %v800 = vpop.f32.mrb[0].mxu0
      %v801 = vadd.f32 0.0, %v800
      %v802 = vpop.f32.mrb[0].mxu0
      %803 = vmatprep.mubr.bf16.mxu0 0
      %804 = vmatmul.mubr.bf16.gmra.mrb[0].mxu0 %v554
      %v805 = vpop.f32.mrb[0].mxu0
      %v806 = vadd.f32 0.0, %v805
      %v807 = vpop.f32.mrb[0].mxu0
      %v808 = vpop.f32.mrb[0].mxu0
      %v809 = vadd.f32 0.0, %v808
      %v810 = vpop.f32.mrb[0].mxu0
      %811 = vmatprep.mubr.bf16.mxu0 0
      %812 = vmatmul.mubr.bf16.gmra.mrb[0].mxu0 %v555
      %v813 = vpop.f32.mrb[0].mxu0
      %v814 = vadd.f32 0.0, %v813
      %v815 = vpop.f32.mrb[0].mxu0
      %v816 = vpop.f32.mrb[0].mxu0
      %v817 = vadd.f32 0.0, %v816
      %v818 = vpop.f32.mrb[0].mxu0
      %819 = vmatprep.mubr.bf16.mxu0 0
      %820 = vmatmul.mubr.bf16.gmra.mrb[0].mxu0 %v556
      %v821 = vpop.f32.mrb[0].mxu0
      %v822 = vadd.f32 0.0, %v821
      %v823 = vpop.f32.mrb[0].mxu0
      %v824 = vpop.f32.mrb[0].mxu0
      %v825 = vadd.f32 0.0, %v824
      %v826 = vpop.f32.mrb[0].mxu0
      %827 = vmatprep.mubr.bf16.mxu0 0
      %828 = vmatmul.mubr.bf16.gmra.mrb[0].mxu0 %v557
      %v829 = vpop.f32.mrb[0].mxu0
      %v830 = vadd.f32 0.0, %v829
      %v831 = vpop.f32.mrb[0].mxu0
      %v832 = vpop.f32.mrb[0].mxu0
      %v833 = vadd.f32 0.0, %v832
      %v834 = vpop.f32.mrb[0].mxu0
      %835 = vmatprep.mubr.bf16.mxu0 0
      %836 = vmatmul.mubr.bf16.gmra.mrb[0].mxu0 %v558
      %v837 = vpop.f32.mrb[0].mxu0
      %v838 = vadd.f32 0.0, %v837
      %v839 = vpop.f32.mrb[0].mxu0
      %v840 = vpop.f32.mrb[0].mxu0
      %v841 = vadd.f32 0.0, %v840
      %v842 = vpop.f32.mrb[0].mxu0
      %843 = vmatprep.mubr.bf16.mxu0 0
      %844 = vmatmul.mubr.bf16.gmra.mrb[0].mxu0 %v559
      %v845 = vpop.f32.mrb[0].mxu0
      %v846 = vadd.f32 0.0, %v845
      %v847 = vpop.f32.mrb[0].mxu0
      %v848 = vpop.f32.mrb[0].mxu0
      %v849 = vadd.f32 0.0, %v848
      %v850 = vpop.f32.mrb[0].mxu0
      %851 = vmatprep.mubr.bf16.mxu0 0
      %852 = vmatmul.mubr.bf16.gmra.mrb[0].mxu0 %v560
      %v853 = vpop.f32.mrb[0].mxu0
      %v854 = vadd.f32 0.0, %v853
      %v855 = vpop.f32.mrb[0].mxu0
      %v856 = vpop.f32.mrb[0].mxu0
      %v857 = vadd.f32 0.0, %v856
      %v858 = vpop.f32.mrb[0].mxu0
      %859 = vmatprep.mubr.bf16.mxu0 0
      %860 = vmatmul.mubr.bf16.gmra.mrb[0].mxu0 %v561
      %v861 = vpop.f32.mrb[0].mxu0
      %v862 = vadd.f32 0.0, %v861
      %v863 = vpop.f32.mrb[0].mxu0
      %v864 = vpop.f32.mrb[0].mxu0
      %v865 = vadd.f32 0.0, %v864
      %v866 = vpop.f32.mrb[0].mxu0
      %867 = vmatprep.mubr.bf16.mxu0 0
      %868 = vmatmul.mubr.bf16.gmra.mrb[0].mxu0 %v562
      %v869 = vpop.f32.mrb[0].mxu0
      %v870 = vadd.f32 0.0, %v869
      %v871 = vpop.f32.mrb[0].mxu0
      %v872 = vpop.f32.mrb[0].mxu0
      %v873 = vadd.f32 0.0, %v872
      %v874 = vpop.f32.mrb[0].mxu0
      %875 = vmatprep.mubr.bf16.mxu0 0
      %876 = vmatmul.mubr.bf16.gmra.mrb[0].mxu0 %v563
      %v877 = vpop.f32.mrb[0].mxu0
      %v878 = vadd.f32 0.0, %v877
      %v879 = vpop.f32.mrb[0].mxu0
      %v880 = vpop.f32.mrb[0].mxu0
      %v881 = vadd.f32 0.0, %v880
      %v882 = vpop.f32.mrb[0].mxu0
      %883 = vmatprep.mubr.bf16.mxu0 0
      %884 = vmatmul.mubr.bf16.gmra.mrb[0].mxu0 %v564
      %v885 = vpop.f32.mrb[0].mxu0
      %v886 = vadd.f32 0.0, %v885
      %v887 = vpop.f32.mrb[0].mxu0
      %v888 = vpop.f32.mrb[0].mxu0
      %v889 = vadd.f32 0.0, %v888
      %v890 = vpop.f32.mrb[0].mxu0
      %891 = vmatprep.mubr.bf16.mxu0 0
      %892 = vmatmul.mubr.bf16.gmra.mrb[0].mxu0 %v565
      %v893 = vpop.f32.mrb[0].mxu0
      %v894 = vadd.f32 0.0, %v893
      %v895 = vpop.f32.mrb[0].mxu0
      %v896 = vpop.f32.mrb[0].mxu0
      %v897 = vadd.f32 0.0, %v896
      %v898 = vpop.f32.mrb[0].mxu0
      %899 = vmatprep.mubr.bf16.mxu0 0
      %900 = vmatmul.mubr.bf16.gmra.mrb[0].mxu0 %v566
      %v901 = vpop.f32.mrb[0].mxu0
      %v902 = vadd.f32 0.0, %v901
      %v903 = vpop.f32.mrb[0].mxu0
      %v904 = vpop.f32.mrb[0].mxu0
      %v905 = vadd.f32 0.0, %v904
      %v906 = vpop.f32.mrb[0].mxu0
      %907 = vmatprep.mubr.bf16.mxu0 0
      %908 = vmatmul.mubr.bf16.gmra.mrb[0].mxu0 %v567
      %v909 = vpop.f32.mrb[0].mxu0
      %v910 = vadd.f32 0.0, %v909
      %v911 = vpop.f32.mrb[0].mxu0
      %v912 = vpop.f32.mrb[0].mxu0
      %v913 = vadd.f32 0.0, %v912
      %v914 = vpop.f32.mrb[0].mxu0
      %915 = vmatprep.mubr.bf16.mxu0 0
      %916 = vmatmul.mubr.bf16.gmra.mrb[0].mxu0 %v568
      %v917 = vpop.f32.mrb[0].mxu0
      %v918 = vadd.f32 0.0, %v917
      %v919 = vpop.f32.mrb[0].mxu0
      %v920 = vpop.f32.mrb[0].mxu0
      %v921 = vadd.f32 0.0, %v920
      %v922 = vpop.f32.mrb[0].mxu0
      %923 = vmatprep.mubr.bf16.mxu0 0
      %924 = vmatmul.mubr.bf16.gmra.mrb[0].mxu0 %v569
      %v925 = vpop.f32.mrb[0].mxu0
      %v926 = vadd.f32 0.0, %v925
      %v927 = vpop.f32.mrb[0].mxu0
      %v928 = vpop.f32.mrb[0].mxu0
      %v929 = vadd.f32 0.0, %v928
      %v930 = vpop.f32.mrb[0].mxu0
      %931 = vmatprep.mubr.bf16.mxu0 0
      %932 = vmatmul.mubr.bf16.gmra.mrb[0].mxu0 %v570
      %v933 = vpop.f32.mrb[0].mxu0
      %v934 = vadd.f32 0.0, %v933
      %v935 = vpop.f32.mrb[0].mxu0
      %v936 = vpop.f32.mrb[0].mxu0
      %v937 = vadd.f32 0.0, %v936
      %v938 = vpop.f32.mrb[0].mxu0
      %939 = vdwg.mxu0
      %v940 = vld [vmem:[%s253] sm:$0x1]
      %v942 = vlaneseq
      %v943 = vshrl.u32 %v942, 7
      %v944 = vsub.s32 0, %v943
      %v945 = vrot.slane %v940, %v944
      %v947 = vmul.f32 %v686, %v945
      %v948 = vmul.f32 %v689, %v945
      %v949 = vmul.f32 %v694, %v945
      %v950 = vmul.f32 %v697, %v945
      %v951 = vmul.f32 %v702, %v945
      %v952 = vmul.f32 %v705, %v945
      %v953 = vmul.f32 %v710, %v945
      %v954 = vmul.f32 %v713, %v945
      %v955 = vmul.f32 %v718, %v945
      %v956 = vmul.f32 %v721, %v945
      %v957 = vmul.f32 %v726, %v945
      %v958 = vmul.f32 %v729, %v945
      %v959 = vmul.f32 %v734, %v945
      %v960 = vmul.f32 %v737, %v945
      %v961 = vmul.f32 %v742, %v945
      %v962 = vmul.f32 %v745, %v945
      %v963 = vmul.f32 %v750, %v945
      %v964 = vmul.f32 %v753, %v945
      %v965 = vmul.f32 %v758, %v945
      %v966 = vmul.f32 %v761, %v945
      %v967 = vmul.f32 %v766, %v945
      %v968 = vmul.f32 %v769, %v945
      %v969 = vmul.f32 %v774, %v945
      %v970 = vmul.f32 %v777, %v945
      %v971 = vmul.f32 %v782, %v945
      %v972 = vmul.f32 %v785, %v945
      %v973 = vmul.f32 %v790, %v945
      %v974 = vmul.f32 %v793, %v945
      %v975 = vmul.f32 %v798, %v945
      %v976 = vmul.f32 %v801, %v945
      %v977 = vmul.f32 %v806, %v945
      %v978 = vmul.f32 %v809, %v945
      %v979 = vmul.f32 %v814, %v945
      %v980 = vmul.f32 %v817, %v945
      %v981 = vmul.f32 %v822, %v945
      %v982 = vmul.f32 %v825, %v945
      %v983 = vmul.f32 %v830, %v945
      %v984 = vmul.f32 %v833, %v945
      %v985 = vmul.f32 %v838, %v945
      %v986 = vmul.f32 %v841, %v945
      %v987 = vmul.f32 %v846, %v945
      %v988 = vmul.f32 %v849, %v945
      %v989 = vmul.f32 %v854, %v945
      %v990 = vmul.f32 %v857, %v945
      %v991 = vmul.f32 %v862, %v945
      %v992 = vmul.f32 %v865, %v945
      %v993 = vmul.f32 %v870, %v945
      %v994 = vmul.f32 %v873, %v945
      %v995 = vmul.f32 %v878, %v945
      %v996 = vmul.f32 %v881, %v945
      %v997 = vmul.f32 %v886, %v945
      %v998 = vmul.f32 %v889, %v945
      %v999 = vmul.f32 %v894, %v945
      %v1000 = vmul.f32 %v897, %v945
      %v1001 = vmul.f32 %v902, %v945
      %v1002 = vmul.f32 %v905, %v945
      %v1003 = vmul.f32 %v910, %v945
      %v1004 = vmul.f32 %v913, %v945
      %v1005 = vmul.f32 %v918, %v945
      %v1006 = vmul.f32 %v921, %v945
      %v1007 = vmul.f32 %v926, %v945
      %v1008 = vmul.f32 %v929, %v945
      %v1009 = vmul.f32 %v934, %v945
      %v1010 = vmul.f32 %v937, %v945
      %v1011 = vld [vmem:[%s256] sm:$0x1]
      %v1013 = vlaneseq
      %v1014 = vshrl.u32 %v1013, 7
      %v1015 = vsub.s32 0, %v1014
      %v1016 = vrot.slane %v1011, %v1015
      %v1018 = vadd.f32 %v947, %v1016
      %v1019 = vadd.f32 %v948, %v1016
      %v1020 = vadd.f32 %v949, %v1016
      %v1021 = vadd.f32 %v950, %v1016
      %v1022 = vadd.f32 %v951, %v1016
      %v1023 = vadd.f32 %v952, %v1016
      %v1024 = vadd.f32 %v953, %v1016
      %v1025 = vadd.f32 %v954, %v1016
      %v1026 = vadd.f32 %v955, %v1016
      %v1027 = vadd.f32 %v956, %v1016
      %v1028 = vadd.f32 %v957, %v1016
      %v1029 = vadd.f32 %v958, %v1016
      %v1030 = vadd.f32 %v959, %v1016
      %v1031 = vadd.f32 %v960, %v1016
      %v1032 = vadd.f32 %v961, %v1016
      %v1033 = vadd.f32 %v962, %v1016
      %v1034 = vadd.f32 %v963, %v1016
      %v1035 = vadd.f32 %v964, %v1016
      %v1036 = vadd.f32 %v965, %v1016
      %v1037 = vadd.f32 %v966, %v1016
      %v1038 = vadd.f32 %v967, %v1016
      %v1039 = vadd.f32 %v968, %v1016
      %v1040 = vadd.f32 %v969, %v1016
      %v1041 = vadd.f32 %v970, %v1016
      %v1042 = vadd.f32 %v971, %v1016
      %v1043 = vadd.f32 %v972, %v1016
      %v1044 = vadd.f32 %v973, %v1016
      %v1045 = vadd.f32 %v974, %v1016
      %v1046 = vadd.f32 %v975, %v1016
      %v1047 = vadd.f32 %v976, %v1016
      %v1048 = vadd.f32 %v977, %v1016
      %v1049 = vadd.f32 %v978, %v1016
      %v1050 = vadd.f32 %v979, %v1016
      %v1051 = vadd.f32 %v980, %v1016
      %v1052 = vadd.f32 %v981, %v1016
      %v1053 = vadd.f32 %v982, %v1016
      %v1054 = vadd.f32 %v983, %v1016
      %v1055 = vadd.f32 %v984, %v1016
      %v1056 = vadd.f32 %v985, %v1016
      %v1057 = vadd.f32 %v986, %v1016
      %v1058 = vadd.f32 %v987, %v1016
      %v1059 = vadd.f32 %v988, %v1016
      %v1060 = vadd.f32 %v989, %v1016
      %v1061 = vadd.f32 %v990, %v1016
      %v1062 = vadd.f32 %v991, %v1016
      %v1063 = vadd.f32 %v992, %v1016
      %v1064 = vadd.f32 %v993, %v1016
      %v1065 = vadd.f32 %v994, %v1016
      %v1066 = vadd.f32 %v995, %v1016
      %v1067 = vadd.f32 %v996, %v1016
      %v1068 = vadd.f32 %v997, %v1016
      %v1069 = vadd.f32 %v998, %v1016
      %v1070 = vadd.f32 %v999, %v1016
      %v1071 = vadd.f32 %v1000, %v1016
      %v1072 = vadd.f32 %v1001, %v1016
      %v1073 = vadd.f32 %v1002, %v1016
      %v1074 = vadd.f32 %v1003, %v1016
      %v1075 = vadd.f32 %v1004, %v1016
      %v1076 = vadd.f32 %v1005, %v1016
      %v1077 = vadd.f32 %v1006, %v1016
      %v1078 = vadd.f32 %v1007, %v1016
      %v1079 = vadd.f32 %v1008, %v1016
      %v1080 = vadd.f32 %v1009, %v1016
      %v1081 = vadd.f32 %v1010, %v1016
      %v1082 = vtanh.pop %v1018
      %v1083 = vtanh.pop %v1019
      %v1084 = vtanh.pop %v1020
      %v1085 = vtanh.pop %v1021
      %v1086 = vtanh.pop %v1022
      %v1087 = vtanh.pop %v1023
      %v1088 = vtanh.pop %v1024
      %v1089 = vtanh.pop %v1025
      %v1090 = vtanh.pop %v1026
      %v1091 = vtanh.pop %v1027
      %v1092 = vtanh.pop %v1028
      %v1093 = vtanh.pop %v1029
      %v1094 = vtanh.pop %v1030
      %v1095 = vtanh.pop %v1031
      %v1096 = vtanh.pop %v1032
      %v1097 = vtanh.pop %v1033
      %v1098 = vtanh.pop %v1034
      %v1099 = vtanh.pop %v1035
      %v1100 = vtanh.pop %v1036
      %v1101 = vtanh.pop %v1037
      %v1102 = vtanh.pop %v1038
      %v1103 = vtanh.pop %v1039
      %v1104 = vtanh.pop %v1040
      %v1105 = vtanh.pop %v1041
      %v1106 = vtanh.pop %v1042
      %v1107 = vtanh.pop %v1043
      %v1108 = vtanh.pop %v1044
      %v1109 = vtanh.pop %v1045
      %v1110 = vtanh.pop %v1046
      %v1111 = vtanh.pop %v1047
      %v1112 = vtanh.pop %v1048
      %v1113 = vtanh.pop %v1049
      %v1114 = vtanh.pop %v1050
      %v1115 = vtanh.pop %v1051
      %v1116 = vtanh.pop %v1052
      %v1117 = vtanh.pop %v1053
      %v1118 = vtanh.pop %v1054
      %v1119 = vtanh.pop %v1055
      %v1120 = vtanh.pop %v1056
      %v1121 = vtanh.pop %v1057
      %v1122 = vtanh.pop %v1058
      %v1123 = vtanh.pop %v1059
      %v1124 = vtanh.pop %v1060
      %v1125 = vtanh.pop %v1061
      %v1126 = vtanh.pop %v1062
      %v1127 = vtanh.pop %v1063
      %v1128 = vtanh.pop %v1064
      %v1129 = vtanh.pop %v1065
      %v1130 = vtanh.pop %v1066
      %v1131 = vtanh.pop %v1067
      %v1132 = vtanh.pop %v1068
      %v1133 = vtanh.pop %v1069
      %v1134 = vtanh.pop %v1070
      %v1135 = vtanh.pop %v1071
      %v1136 = vtanh.pop %v1072
      %v1137 = vtanh.pop %v1073
      %v1138 = vtanh.pop %v1074
      %v1139 = vtanh.pop %v1075
      %v1140 = vtanh.pop %v1076
      %v1141 = vtanh.pop %v1077
      %v1142 = vtanh.pop %v1078
      %v1143 = vtanh.pop %v1079
      %v1144 = vtanh.pop %v1080
      %v1145 = vtanh.pop %v1081
      %1146 = vst [vmem:[%s264] sm:$0xff] %v1082
      %1147 = vst [vmem:[%s264 + $0x8] sm:$0xff] %v1083
      %1148 = vst [vmem:[%s264 + $0x10] sm:$0xff] %v1084
      %1149 = vst [vmem:[%s264 + $0x18] sm:$0xff] %v1085
      %1150 = vst [vmem:[%s264 + $0x20] sm:$0xff] %v1086
      %1151 = vst [vmem:[%s264 + $0x28] sm:$0xff] %v1087
      %1152 = vst [vmem:[%s264 + $0x30] sm:$0xff] %v1088
      %1153 = vst [vmem:[%s264 + $0x38] sm:$0xff] %v1089
      %1154 = vst [vmem:[%s264 + $0x40] sm:$0xff] %v1090
      %1155 = vst [vmem:[%s264 + $0x48] sm:$0xff] %v1091
      %1156 = vst [vmem:[%s264 + $0x50] sm:$0xff] %v1092
      %1157 = vst [vmem:[%s264 + $0x58] sm:$0xff] %v1093
      %1158 = vst [vmem:[%s264 + $0x60] sm:$0xff] %v1094
      %1159 = vst [vmem:[%s264 + $0x68] sm:$0xff] %v1095
      %1160 = vst [vmem:[%s264 + $0x70] sm:$0xff] %v1096
      %1161 = vst [vmem:[%s264 + $0x78] sm:$0xff] %v1097
      %1162 = vst [vmem:[%s264 + $0x80] sm:$0xff] %v1098
      %1163 = vst [vmem:[%s264 + $0x88] sm:$0xff] %v1099
      %1164 = vst [vmem:[%s264 + $0x90] sm:$0xff] %v1100
      %1165 = vst [vmem:[%s264 + $0x98] sm:$0xff] %v1101
      %1166 = vst [vmem:[%s264 + $0xa0] sm:$0xff] %v1102
      %1167 = vst [vmem:[%s264 + $0xa8] sm:$0xff] %v1103
      %1168 = vst [vmem:[%s264 + $0xb0] sm:$0xff] %v1104
      %1169 = vst [vmem:[%s264 + $0xb8] sm:$0xff] %v1105
      %1170 = vst [vmem:[%s264 + $0xc0] sm:$0xff] %v1106
      %1171 = vst [vmem:[%s264 + $0xc8] sm:$0xff] %v1107
      %1172 = vst [vmem:[%s264 + $0xd0] sm:$0xff] %v1108
      %1173 = vst [vmem:[%s264 + $0xd8] sm:$0xff] %v1109
      %1174 = vst [vmem:[%s264 + $0xe0] sm:$0xff] %v1110
      %1175 = vst [vmem:[%s264 + $0xe8] sm:$0xff] %v1111
      %1176 = vst [vmem:[%s264 + $0xf0] sm:$0xff] %v1112
      %1177 = vst [vmem:[%s264 + $0xf8] sm:$0xff] %v1113
      %1178 = vst [vmem:[%s264 + $0x100] sm:$0xff] %v1114
      %1179 = vst [vmem:[%s264 + $0x108] sm:$0xff] %v1115
      %1180 = vst [vmem:[%s264 + $0x110] sm:$0xff] %v1116
      %1181 = vst [vmem:[%s264 + $0x118] sm:$0xff] %v1117
      %1182 = vst [vmem:[%s264 + $0x120] sm:$0xff] %v1118
      %1183 = vst [vmem:[%s264 + $0x128] sm:$0xff] %v1119
      %1184 = vst [vmem:[%s264 + $0x130] sm:$0xff] %v1120
      %1185 = vst [vmem:[%s264 + $0x138] sm:$0xff] %v1121
      %1186 = vst [vmem:[%s264 + $0x140] sm:$0xff] %v1122
      %1187 = vst [vmem:[%s264 + $0x148] sm:$0xff] %v1123
      %1188 = vst [vmem:[%s264 + $0x150] sm:$0xff] %v1124
      %1189 = vst [vmem:[%s264 + $0x158] sm:$0xff] %v1125
      %1190 = vst [vmem:[%s264 + $0x160] sm:$0xff] %v1126
      %1191 = vst [vmem:[%s264 + $0x168] sm:$0xff] %v1127
      %1192 = vst [vmem:[%s264 + $0x170] sm:$0xff] %v1128
      %1193 = vst [vmem:[%s264 + $0x178] sm:$0xff] %v1129
      %1194 = vst [vmem:[%s264 + $0x180] sm:$0xff] %v1130
      %1195 = vst [vmem:[%s264 + $0x188] sm:$0xff] %v1131
      %1196 = vst [vmem:[%s264 + $0x190] sm:$0xff] %v1132
      %1197 = vst [vmem:[%s264 + $0x198] sm:$0xff] %v1133
      %1198 = vst [vmem:[%s264 + $0x1a0] sm:$0xff] %v1134
      %1199 = vst [vmem:[%s264 + $0x1a8] sm:$0xff] %v1135
      %1200 = vst [vmem:[%s264 + $0x1b0] sm:$0xff] %v1136
      %1201 = vst [vmem:[%s264 + $0x1b8] sm:$0xff] %v1137
      %1202 = vst [vmem:[%s264 + $0x1c0] sm:$0xff] %v1138
      %1203 = vst [vmem:[%s264 + $0x1c8] sm:$0xff] %v1139
      %1204 = vst [vmem:[%s264 + $0x1d0] sm:$0xff] %v1140
      %1205 = vst [vmem:[%s264 + $0x1d8] sm:$0xff] %v1141
      %1206 = vst [vmem:[%s264 + $0x1e0] sm:$0xff] %v1142
      %1207 = vst [vmem:[%s264 + $0x1e8] sm:$0xff] %v1143
      %1208 = vst [vmem:[%s264 + $0x1f0] sm:$0xff] %v1144
      %1209 = vst [vmem:[%s264 + $0x1f8] sm:$0xff] %v1145
      %s1210 = smul.u32 64, %s19
      %p1211 = scmp.lt.s32.totalorder %s1210, 2111
      %s1212 = scalar_select %p1211, %s1210, 2111
      %p1213 = scmp.lt.s32.totalorder %s20, 0
      %s1214 = scalar_select %p1213, %s20, 0
      %s1215 = sadd.s32 %s1214, %s1212
      %s1216 = smul.addr %s1215, 8
      %s1217 = scalar_lea.vmem %s4, %s1216
      // Predicated region
      $region37: #{generator_forward.15} parent=35 // pred_check
        %p1218 = pneg %p151
      $region38: #{generator_forward.15} parent=35 // pred_check_branch
        %1220 = sbr.rel (%p1218) target = $region40
      $region39: #{generator_forward.15} parent=35 // pred_region
        %s1221 = smul.u32 64, %s19
      $region40: #{generator_forward.15} parent=35 // pred_fallthru
        _
    $region36: #{generator_forward.15} parent=5 // pred_fallthru
      _
    %p1222 = scmp.le.s32.totalorder 2, %s10
    // Predicated region
    $region41: #{generator_forward.15} parent=5 // pred_check
      %p1223 = pneg %p1222
    $region42: #{generator_forward.15} parent=5 // pred_check_branch
      %1225 = sbr.rel (%p1223) target = $region44
    $region43: #{generator_forward.15} parent=5 // pred_region
      %s1226 = ssub.s32 %s10, 2
      // Predicated region
      $region45: #{generator_forward.15} parent=43 // pred_check
        %p1227 = pneg %p157
      $region46: #{generator_forward.15} parent=43 // pred_check_branch
        %1229 = sbr.rel (%p1227) target = $region48
      $region47: #{generator_forward.15} parent=43 // pred_region
        %s1230 = smul.u32 64, %s21
        %p1231 = scmp.lt.s32.totalorder %s1230, 2111
        %s1232 = scalar_select %p1231, %s1230, 2111
        %p1233 = scmp.lt.s32.totalorder %s22, 0
        %s1234 = scalar_select %p1233, %s22, 0
        %s1235 = sadd.s32 %s1234, %s1232
        %s1236 = smul.addr %s1235, 8
        %s1237 = scalar_lea.vmem %s4, %s1236
      $region48: #{generator_forward.15} parent=43 // pred_fallthru
        _
    $region44: #{generator_forward.15} parent=5 // pred_fallthru
      _
  $region6: #{generator_forward.15} parent=0 // loop_footer
    %s14 = sadd.s32 1, %s10
  $region7: #{generator_forward.15} parent=0 // loop_footer_branch
    %9 = sbr.rel target = $region3
  $region8: #{generator_forward.15} parent=0 // loop_exit
    _

</llo_original>
